<compile_context>
chip_gen: v7x
topology: tpu7x:2x2x1
jax: 0.10.0
libtpu: 0.0.40
codegen_flags: <defaults>
</compile_context>

<pallas_src>
import functools

import jax
import jax.numpy as jnp
from jax import lax
from jax.experimental import pallas as pl
from jax.experimental.pallas import tpu as pltpu


# ----------------------------------------------------------------------------
# Pallas kernel: one full layer (all 3 recurrences, all timesteps).
# ----------------------------------------------------------------------------
def _lstm_cell(gates, c, H):
    """PyTorch gate order (i, f, g, o)."""
    i_g = jax.nn.sigmoid(gates[:, 0:H])
    f_g = jax.nn.sigmoid(gates[:, H:2 * H])
    g_g = jnp.tanh(gates[:, 2 * H:3 * H])
    o_g = jax.nn.sigmoid(gates[:, 3 * H:4 * H])
    c_new = f_g * c + i_g * g_g
    h_new = o_g * jnp.tanh(c_new)
    return h_new, c_new


def _awd_layer_kernel(len_ref, xw_ref, whh_ref,
                      y_fwd_ref, y_rev_ref, hn_ref, cn_ref, cfr_ref, crr_ref):
    # len_ref : (B, 1)  int32  valid lengths
    # xw_ref  : (T, B, 12H) f32  [x@Wih^T + b] for (fwd-stack | rev-fwd | rev-rev),
    #                            the rev-rev slice is pre-flipped in time.
    # whh_ref : (3, H, 4H) f32   W_hh^T per recurrence.
    # outputs : y_fwd (T,B,H), y_rev (T,B,H), h_n/c_n fwd-stack (B,H),
    #           c_n rev-stack fwd dir (B,H), c_n rev-stack rev dir (B,H).
    T, B, _ = xw_ref.shape
    H = hn_ref.shape[-1]

    len_col = len_ref[...]                       # (B, 1) int32
    w_f = whh_ref[0]                             # (H, 4H)  fwd-stack
    w_rf = whh_ref[1]                            # (H, 4H)  rev-stack, forward dir
    w_rr = whh_ref[2]                            # (H, 4H)  rev-stack, reverse dir

    zeros = jnp.zeros((B, H), jnp.float32)

    def step(s, carry):
        h_f, c_f, h_rf, c_rf, h_rr, c_rr = carry
        xw = xw_ref[s]                           # (B, 12H) — loaded from VMEM
        t_rev = T - 1 - s                        # real time index of the reverse dir

        mask_fwd = s < len_col                   # (B,1) bool — packed-seq validity
        mask_rev = t_rev < len_col               # (B,1) bool

        # --- fwd-stack unidirectional LSTM ---------------------------------
        g = xw[:, 0:4 * H] + jnp.dot(h_f, w_f, preferred_element_type=jnp.float32)
        h_new, c_new = _lstm_cell(g, c_f, H)
        y_fwd_ref[pl.ds(s, 1), :, :] = jnp.where(mask_fwd, h_new, 0.0)[None]
        h_f = jnp.where(mask_fwd, h_new, h_f)
        c_f = jnp.where(mask_fwd, c_new, c_f)

        # --- rev-stack bi-LSTM, forward direction (only final c kept) ------
        g = xw[:, 4 * H:8 * H] + jnp.dot(h_rf, w_rf, preferred_element_type=jnp.float32)
        h_new, c_new = _lstm_cell(g, c_rf, H)
        h_rf = jnp.where(mask_fwd, h_new, h_rf)
        c_rf = jnp.where(mask_fwd, c_new, c_rf)

        # --- rev-stack bi-LSTM, reverse direction (xw pre-flipped in time) -
        g = xw[:, 8 * H:12 * H] + jnp.dot(h_rr, w_rr, preferred_element_type=jnp.float32)
        h_new, c_new = _lstm_cell(g, c_rr, H)
        y_rev_ref[pl.ds(t_rev, 1), :, :] = jnp.where(mask_rev, h_new, 0.0)[None]
        h_rr = jnp.where(mask_rev, h_new, h_rr)
        c_rr = jnp.where(mask_rev, c_new, c_rr)

        return h_f, c_f, h_rf, c_rf, h_rr, c_rr

    init = (zeros, zeros, zeros, zeros, zeros, zeros)
    h_f, c_f, _, c_rf, _, c_rr = lax.fori_loop(0, T, step, init,
                                               unroll=(T <= 32))

    # Final states written once, after the recurrence (not every step).
    hn_ref[...] = h_f
    cn_ref[...] = c_f
    cfr_ref[...] = c_rf
    crr_ref[...] = c_rr


def awd_layer(x_fwd, x_rev, len_col, p_fwd, p_rev_f, p_rev_r):
    """One BiAWDEmbedding layer: fwd-stack LSTM + rev-stack bi-LSTM (fused).

    x_fwd, x_rev: (T, B, D) float32, time-major inputs of the two stacks.
    len_col:      (B, 1) int32 valid lengths.
    Returns (y_fwd, y_rev, h_n, c_n, c_rev_fwd, c_rev_rev).
    """
    T, B, _ = x_fwd.shape
    H = p_fwd["w_hh"].shape[1]

    def proj(x, p):
        # Hoisted input projection: one big (T*B, D) x (D, 4H) matmul + bias.
        wih_t = jnp.asarray(p["w_ih"], jnp.float32).T            # (D, 4H)
        bias = (jnp.asarray(p["b_ih"], jnp.float32)
                + jnp.asarray(p["b_hh"], jnp.float32))
        return jnp.einsum("tbd,dg->tbg", x, wih_t,
                          preferred_element_type=jnp.float32) + bias

    xw_f = proj(x_fwd, p_fwd)                  # (T, B, 4H)
    xw_rf = proj(x_rev, p_rev_f)               # (T, B, 4H)
    xw_rr = proj(x_rev, p_rev_r)[::-1]         # (T, B, 4H), time-flipped
    xw = jnp.concatenate([xw_f, xw_rf, xw_rr], axis=-1)          # (T, B, 12H)

    whh = jnp.stack([jnp.asarray(p["w_hh"], jnp.float32).T
                     for p in (p_fwd, p_rev_f, p_rev_r)], axis=0)  # (3, H, 4H)

    vmem = pl.BlockSpec(memory_space=pltpu.MemorySpace.VMEM)
    out_shape = (
        jax.ShapeDtypeStruct((T, B, H), jnp.float32),   # y fwd-stack
        jax.ShapeDtypeStruct((T, B, H), jnp.float32),   # y rev-stack (reverse dir)
        jax.ShapeDtypeStruct((B, H), jnp.float32),      # h_n fwd-stack
        jax.ShapeDtypeStruct((B, H), jnp.float32),      # c_n fwd-stack
        jax.ShapeDtypeStruct((B, H), jnp.float32),      # c_n rev-stack fwd dir
        jax.ShapeDtypeStruct((B, H), jnp.float32),      # c_n rev-stack rev dir
    )

    return pl.pallas_call(
        _awd_layer_kernel,
        out_shape=out_shape,
        in_specs=[vmem, vmem, vmem],
        out_specs=(vmem, vmem, vmem, vmem, vmem, vmem),
    )(len_col, xw, whh)


# ----------------------------------------------------------------------------
# Parameter init (deterministic, shapes follow BiAWDEmbedding.__init__,
# tie_weights=False) and full forward pass.
# ----------------------------------------------------------------------------
def _init_lstm(key, din, h):
    k1, k2, k3, k4 = jax.random.split(key, 4)
    s = 1.0 / jnp.sqrt(jnp.float32(h))
    return dict(
        w_ih=jax.random.uniform(k1, (4 * h, din), jnp.float32, -s, s),
        w_hh=jax.random.uniform(k2, (4 * h, h), jnp.float32, -s, s),
        b_ih=jax.random.uniform(k3, (4 * h,), jnp.float32, -s, s),
        b_hh=jax.random.uniform(k4, (4 * h,), jnp.float32, -s, s),
    )


def init_params(key, ntoken, ninp, nhid, nlayers):
    keys = jax.random.split(key, 1 + 3 * nlayers)
    params = {
        "encoder": jax.random.uniform(keys[0], (ntoken, ninp), jnp.float32,
                                      -0.1, 0.1),
        "rnns": [],
        "rnns_rev": [],
    }
    for l in range(nlayers):
        din = ninp if l == 0 else nhid
        h = nhid  # tie_weights=False -> last layer is also nhid
        params["rnns"].append(_init_lstm(keys[1 + 3 * l], din, h))
        params["rnns_rev"].append({
            "fwd": _init_lstm(keys[2 + 3 * l], din, h),   # forward dir of bi-LSTM
            "rev": _init_lstm(keys[3 + 3 * l], din, h),   # reverse dir of bi-LSTM
        })
    return params


def bi_awd_embedding_forward(params, tokens, seq_lengths, nlayers):
    """Eval-mode forward of BiAWDEmbedding.

    Returns ((outputs, outputs_rev), (hidden, hidden_rev), emb) with the same
    shapes / axis conventions as the PyTorch module.
    """
    # Embedding lookup (glue); embedded_dropout/lockdrop are identity in eval.
    emb = params["encoder"][tokens]            # (B, T, ninp)
    emb = jnp.transpose(emb, (1, 0, 2))        # (T, B, ninp) == emb.permute(1,0,2)
    T, B, _ = emb.shape
    len_col = seq_lengths.astype(jnp.int32).reshape(B, 1)

    raw_output = emb
    raw_output_rev = emb
    outputs, outputs_rev, hidden, hidden_rev = [], [], [], []

    for l in range(nlayers):
        p = params["rnns"][l]
        pf = params["rnns_rev"][l]["fwd"]
        pr = params["rnns_rev"][l]["rev"]

        y_f, y_r, h_n, c_n, c_rf, c_rr = awd_layer(
            raw_output, raw_output_rev, len_col, p, pf, pr)

        raw_output = y_f
        # Only the reverse-direction half of the bi-LSTM output is kept
        # (PyTorch: raw_output_rev[:, :, H:]).
        raw_output_rev = y_r

        hidden.append((h_n[None, :, :], c_n[None, :, :]))      # (1, B, H) each
        hidden_rev.append(jnp.stack([c_rf, c_rr], axis=0))     # (2, B, H)

        # LockedDropout (dropouth / dropout) is identity at inference.
        outputs.append(raw_output)
        outputs_rev.append(raw_output_rev)

    return (outputs, outputs_rev), (hidden, hidden_rev), emb


if __name__ == "__main__":
    ntoken, ninp, nhid, nlayers = 50, 32, 32, 2
    B, T = 8, 8

    key = jax.random.PRNGKey(0)
    k_params, k_tok = jax.random.split(key)
    params = init_params(k_params, ntoken, ninp, nhid, nlayers)

    tokens = jax.random.randint(k_tok, (B, T), 0, ntoken, dtype=jnp.int32)
    # pack_padded_sequence expects descending lengths.
    seq_lengths = jnp.array([8, 8, 7, 6, 5, 4, 3, 2], dtype=jnp.int32)

    fwd = jax.jit(functools.partial(bi_awd_embedding_forward, nlayers=nlayers))
    result = fwd(params, tokens, seq_lengths)
    jax.block_until_ready(result)

    (outputs, outputs_rev), (hidden, hidden_rev), emb = result
    assert len(outputs) == nlayers and len(outputs_rev) == nlayers
    assert outputs[-1].shape == (T, B, nhid)
    assert outputs_rev[-1].shape == (T, B, nhid)
    assert hidden[0][0].shape == (1, B, nhid)
    assert hidden_rev[0].shape == (2, B, nhid)
    assert emb.shape == (T, B, ninp)

    print("KERNEL_OK")
</pallas_src>

<mosaic_0001>
module attributes {stable_mosaic.version = 11 : i64} {
  func.func @_awd_layer_kernel(%arg0: memref<8x1xi32, #tpu.memory_space<vmem>>, %arg1: memref<8x8x384xf32, #tpu.memory_space<vmem>>, %arg2: memref<3x32x128xf32, #tpu.memory_space<vmem>>, %arg3: memref<8x8x32xf32, #tpu.memory_space<vmem>>, %arg4: memref<8x8x32xf32, #tpu.memory_space<vmem>>, %arg5: memref<8x32xf32, #tpu.memory_space<vmem>>, %arg6: memref<8x32xf32, #tpu.memory_space<vmem>>, %arg7: memref<8x32xf32, #tpu.memory_space<vmem>>, %arg8: memref<8x32xf32, #tpu.memory_space<vmem>>) attributes {dimension_semantics = [], scalar_prefetch = 0 : i64, scratch_operands = 0 : i64, tpu.core_type = #tpu.core_type<tc>} {
    %c0 = arith.constant 0 : index
    %c0_0 = arith.constant 0 : index
    %0 = vector.load %arg0[%c0, %c0_0] : memref<8x1xi32, #tpu.memory_space<vmem>>, vector<8x1xi32>
    %c0_1 = arith.constant 0 : index
    %c0_2 = arith.constant 0 : index
    %c0_3 = arith.constant 0 : index
    %1 = vector.load %arg2[%c0_1, %c0_2, %c0_3] : memref<3x32x128xf32, #tpu.memory_space<vmem>>, vector<1x32x128xf32>
    %2 = vector.shape_cast %1 : vector<1x32x128xf32> to vector<32x128xf32>
    %c1 = arith.constant 1 : index
    %c0_4 = arith.constant 0 : index
    %c0_5 = arith.constant 0 : index
    %3 = vector.load %arg2[%c1, %c0_4, %c0_5] : memref<3x32x128xf32, #tpu.memory_space<vmem>>, vector<1x32x128xf32>
    %4 = vector.shape_cast %3 : vector<1x32x128xf32> to vector<32x128xf32>
    %c2 = arith.constant 2 : index
    %c0_6 = arith.constant 0 : index
    %c0_7 = arith.constant 0 : index
    %5 = vector.load %arg2[%c2, %c0_6, %c0_7] : memref<3x32x128xf32, #tpu.memory_space<vmem>>, vector<1x32x128xf32>
    %6 = vector.shape_cast %5 : vector<1x32x128xf32> to vector<32x128xf32>
    %cst = arith.constant 0.000000e+00 : f32
    %7 = vector.broadcast %cst : f32 to vector<8x32xf32>
    %c0_i32 = arith.constant 0 : i32
    %8 = arith.index_cast %c0_i32 : i32 to index
    %c0_8 = arith.constant 0 : index
    %c0_9 = arith.constant 0 : index
    %9 = vector.load %arg1[%8, %c0_8, %c0_9] : memref<8x8x384xf32, #tpu.memory_space<vmem>>, vector<1x8x384xf32>
    %10 = vector.shape_cast %9 : vector<1x8x384xf32> to vector<8x384xf32>
    %c7_i32 = arith.constant 7 : i32
    %11 = arith.subi %c7_i32, %c0_i32 : i32
    %12 = vector.broadcast %c0_i32 : i32 to vector<8x1xi32>
    %13 = arith.cmpi slt, %12, %0 : vector<8x1xi32>
    %14 = vector.broadcast %11 : i32 to vector<8x1xi32>
    %15 = arith.cmpi slt, %14, %0 : vector<8x1xi32>
    %16 = vector.extract_strided_slice %10 {offsets = [0, 0], sizes = [8, 128], strides = [1, 1]} : vector<8x384xf32> to vector<8x128xf32>
    %cst_10 = arith.constant dense<0.000000e+00> : vector<8x128xf32>
    %17 = tpu.matmul %7, %2, %cst_10 {dimension_numbers = #tpu.dot_dimension_numbers<[1], [0], [0], [1], [0, 0, 1, 1], [], []>} : vector<8x32xf32>, vector<32x128xf32>, vector<8x128xf32> -> vector<8x128xf32>
    %18 = arith.addf %16, %17 : vector<8x128xf32>
    %19 = vector.extract_strided_slice %18 {offsets = [0, 0], sizes = [8, 32], strides = [1, 1]} : vector<8x128xf32> to vector<8x32xf32>
    %20 = arith.negf %19 : vector<8x32xf32>
    %21 = math.exp %20 : vector<8x32xf32>
    %cst_11 = arith.constant 1.000000e+00 : f32
    %22 = vector.broadcast %cst_11 : f32 to vector<8x32xf32>
    %23 = arith.addf %22, %21 : vector<8x32xf32>
    %24 = arith.divf %22, %23 : vector<8x32xf32>
    %25 = vector.extract_strided_slice %18 {offsets = [0, 32], sizes = [8, 32], strides = [1, 1]} : vector<8x128xf32> to vector<8x32xf32>
    %26 = arith.negf %25 : vector<8x32xf32>
    %27 = math.exp %26 : vector<8x32xf32>
    %cst_12 = arith.constant 1.000000e+00 : f32
    %28 = vector.broadcast %cst_12 : f32 to vector<8x32xf32>
    %29 = arith.addf %28, %27 : vector<8x32xf32>
    %30 = arith.divf %28, %29 : vector<8x32xf32>
    %31 = vector.extract_strided_slice %18 {offsets = [0, 64], sizes = [8, 32], strides = [1, 1]} : vector<8x128xf32> to vector<8x32xf32>
    %32 = math.tanh %31 : vector<8x32xf32>
    %33 = vector.extract_strided_slice %18 {offsets = [0, 96], sizes = [8, 32], strides = [1, 1]} : vector<8x128xf32> to vector<8x32xf32>
    %34 = arith.negf %33 : vector<8x32xf32>
    %35 = math.exp %34 : vector<8x32xf32>
    %cst_13 = arith.constant 1.000000e+00 : f32
    %36 = vector.broadcast %cst_13 : f32 to vector<8x32xf32>
    %37 = arith.addf %36, %35 : vector<8x32xf32>
    %38 = arith.divf %36, %37 : vector<8x32xf32>
    %39 = arith.mulf %30, %7 : vector<8x32xf32>
    %40 = arith.mulf %24, %32 : vector<8x32xf32>
    %41 = arith.addf %39, %40 : vector<8x32xf32>
    %42 = math.tanh %41 : vector<8x32xf32>
    %43 = arith.mulf %38, %42 : vector<8x32xf32>
    %cst_14 = arith.constant 0.000000e+00 : f32
    %44 = vector.shape_cast %13 : vector<8x1xi1> to vector<8x1xi1>
    %45 = vector.broadcast %44 : vector<8x1xi1> to vector<8x32xi1>
    %46 = vector.broadcast %cst_14 : f32 to vector<8x32xf32>
    %47 = arith.select %45, %43, %46 : vector<8x32xi1>, vector<8x32xf32>
    %48 = vector.shape_cast %47 : vector<8x32xf32> to vector<1x8x32xf32>
    %49 = arith.index_cast %c0_i32 : i32 to index
    %c0_15 = arith.constant 0 : index
    %c0_16 = arith.constant 0 : index
    %50 = vector.load %arg3[%49, %c0_15, %c0_16] : memref<8x8x32xf32, #tpu.memory_space<vmem>>, vector<1x8x32xf32>
    tpu.vector_store %arg3[%49, %c0_15, %c0_16], %48 {strides = array<i32>} : memref<8x8x32xf32, #tpu.memory_space<vmem>>, vector<1x8x32xf32>,
    %51 = vector.shape_cast %13 : vector<8x1xi1> to vector<8x1xi1>
    %52 = vector.broadcast %51 : vector<8x1xi1> to vector<8x32xi1>
    %53 = arith.select %52, %43, %7 : vector<8x32xi1>, vector<8x32xf32>
    %54 = vector.shape_cast %13 : vector<8x1xi1> to vector<8x1xi1>
    %55 = vector.broadcast %54 : vector<8x1xi1> to vector<8x32xi1>
    %56 = arith.select %55, %41, %7 : vector<8x32xi1>, vector<8x32xf32>
    %57 = vector.extract_strided_slice %10 {offsets = [0, 128], sizes = [8, 128], strides = [1, 1]} : vector<8x384xf32> to vector<8x128xf32>
    %cst_17 = arith.constant dense<0.000000e+00> : vector<8x128xf32>
    %58 = tpu.matmul %7, %4, %cst_17 {dimension_numbers = #tpu.dot_dimension_numbers<[1], [0], [0], [1], [0, 0, 1, 1], [], []>} : vector<8x32xf32>, vector<32x128xf32>, vector<8x128xf32> -> vector<8x128xf32>
    %59 = arith.addf %57, %58 : vector<8x128xf32>
    %60 = vector.extract_strided_slice %59 {offsets = [0, 0], sizes = [8, 32], strides = [1, 1]} : vector<8x128xf32> to vector<8x32xf32>
    %61 = arith.negf %60 : vector<8x32xf32>
    %62 = math.exp %61 : vector<8x32xf32>
    %cst_18 = arith.constant 1.000000e+00 : f32
    %63 = vector.broadcast %cst_18 : f32 to vector<8x32xf32>
    %64 = arith.addf %63, %62 : vector<8x32xf32>
    %65 = arith.divf %63, %64 : vector<8x32xf32>
    %66 = vector.extract_strided_slice %59 {offsets = [0, 32], sizes = [8, 32], strides = [1, 1]} : vector<8x128xf32> to vector<8x32xf32>
    %67 = arith.negf %66 : vector<8x32xf32>
    %68 = math.exp %67 : vector<8x32xf32>
    %cst_19 = arith.constant 1.000000e+00 : f32
    %69 = vector.broadcast %cst_19 : f32 to vector<8x32xf32>
    %70 = arith.addf %69, %68 : vector<8x32xf32>
    %71 = arith.divf %69, %70 : vector<8x32xf32>
    %72 = vector.extract_strided_slice %59 {offsets = [0, 64], sizes = [8, 32], strides = [1, 1]} : vector<8x128xf32> to vector<8x32xf32>
    %73 = math.tanh %72 : vector<8x32xf32>
    %74 = vector.extract_strided_slice %59 {offsets = [0, 96], sizes = [8, 32], strides = [1, 1]} : vector<8x128xf32> to vector<8x32xf32>
    %75 = arith.negf %74 : vector<8x32xf32>
    %76 = math.exp %75 : vector<8x32xf32>
    %cst_20 = arith.constant 1.000000e+00 : f32
    %77 = vector.broadcast %cst_20 : f32 to vector<8x32xf32>
    %78 = arith.addf %77, %76 : vector<8x32xf32>
    %79 = arith.divf %77, %78 : vector<8x32xf32>
    %80 = arith.mulf %71, %7 : vector<8x32xf32>
    %81 = arith.mulf %65, %73 : vector<8x32xf32>
    %82 = arith.addf %80, %81 : vector<8x32xf32>
    %83 = math.tanh %82 : vector<8x32xf32>
    %84 = arith.mulf %79, %83 : vector<8x32xf32>
    %85 = vector.shape_cast %13 : vector<8x1xi1> to vector<8x1xi1>
    %86 = vector.broadcast %85 : vector<8x1xi1> to vector<8x32xi1>
    %87 = arith.select %86, %84, %7 : vector<8x32xi1>, vector<8x32xf32>
    %88 = vector.shape_cast %13 : vector<8x1xi1> to vector<8x1xi1>
    %89 = vector.broadcast %88 : vector<8x1xi1> to vector<8x32xi1>
    %90 = arith.select %89, %82, %7 : vector<8x32xi1>, vector<8x32xf32>
    %91 = vector.extract_strided_slice %10 {offsets = [0, 256], sizes = [8, 128], strides = [1, 1]} : vector<8x384xf32> to vector<8x128xf32>
    %cst_21 = arith.constant dense<0.000000e+00> : vector<8x128xf32>
    %92 = tpu.matmul %7, %6, %cst_21 {dimension_numbers = #tpu.dot_dimension_numbers<[1], [0], [0], [1], [0, 0, 1, 1], [], []>} : vector<8x32xf32>, vector<32x128xf32>, vector<8x128xf32> -> vector<8x128xf32>
    %93 = arith.addf %91, %92 : vector<8x128xf32>
    %94 = vector.extract_strided_slice %93 {offsets = [0, 0], sizes = [8, 32], strides = [1, 1]} : vector<8x128xf32> to vector<8x32xf32>
    %95 = arith.negf %94 : vector<8x32xf32>
    %96 = math.exp %95 : vector<8x32xf32>
    %cst_22 = arith.constant 1.000000e+00 : f32
    %97 = vector.broadcast %cst_22 : f32 to vector<8x32xf32>
    %98 = arith.addf %97, %96 : vector<8x32xf32>
    %99 = arith.divf %97, %98 : vector<8x32xf32>
    %100 = vector.extract_strided_slice %93 {offsets = [0, 32], sizes = [8, 32], strides = [1, 1]} : vector<8x128xf32> to vector<8x32xf32>
    %101 = arith.negf %100 : vector<8x32xf32>
    %102 = math.exp %101 : vector<8x32xf32>
    %cst_23 = arith.constant 1.000000e+00 : f32
    %103 = vector.broadcast %cst_23 : f32 to vector<8x32xf32>
    %104 = arith.addf %103, %102 : vector<8x32xf32>
    %105 = arith.divf %103, %104 : vector<8x32xf32>
    %106 = vector.extract_strided_slice %93 {offsets = [0, 64], sizes = [8, 32], strides = [1, 1]} : vector<8x128xf32> to vector<8x32xf32>
    %107 = math.tanh %106 : vector<8x32xf32>
    %108 = vector.extract_strided_slice %93 {offsets = [0, 96], sizes = [8, 32], strides = [1, 1]} : vector<8x128xf32> to vector<8x32xf32>
    %109 = arith.negf %108 : vector<8x32xf32>
    %110 = math.exp %109 : vector<8x32xf32>
    %cst_24 = arith.constant 1.000000e+00 : f32
    %111 = vector.broadcast %cst_24 : f32 to vector<8x32xf32>
    %112 = arith.addf %111, %110 : vector<8x32xf32>
    %113 = arith.divf %111, %112 : vector<8x32xf32>
    %114 = arith.mulf %105, %7 : vector<8x32xf32>
    %115 = arith.mulf %99, %107 : vector<8x32xf32>
    %116 = arith.addf %114, %115 : vector<8x32xf32>
    %117 = math.tanh %116 : vector<8x32xf32>
    %118 = arith.mulf %113, %117 : vector<8x32xf32>
    %cst_25 = arith.constant 0.000000e+00 : f32
    %119 = vector.shape_cast %15 : vector<8x1xi1> to vector<8x1xi1>
    %120 = vector.broadcast %119 : vector<8x1xi1> to vector<8x32xi1>
    %121 = vector.broadcast %cst_25 : f32 to vector<8x32xf32>
    %122 = arith.select %120, %118, %121 : vector<8x32xi1>, vector<8x32xf32>
    %123 = vector.shape_cast %122 : vector<8x32xf32> to vector<1x8x32xf32>
    %124 = arith.index_cast %11 : i32 to index
    %c0_26 = arith.constant 0 : index
    %c0_27 = arith.constant 0 : index
    %125 = vector.load %arg4[%124, %c0_26, %c0_27] : memref<8x8x32xf32, #tpu.memory_space<vmem>>, vector<1x8x32xf32>
    tpu.vector_store %arg4[%124, %c0_26, %c0_27], %123 {strides = array<i32>} : memref<8x8x32xf32, #tpu.memory_space<vmem>>, vector<1x8x32xf32>,
    %126 = vector.shape_cast %15 : vector<8x1xi1> to vector<8x1xi1>
    %127 = vector.broadcast %126 : vector<8x1xi1> to vector<8x32xi1>
    %128 = arith.select %127, %118, %7 : vector<8x32xi1>, vector<8x32xf32>
    %129 = vector.shape_cast %15 : vector<8x1xi1> to vector<8x1xi1>
    %130 = vector.broadcast %129 : vector<8x1xi1> to vector<8x32xi1>
    %131 = arith.select %130, %116, %7 : vector<8x32xi1>, vector<8x32xf32>
    %c1_i32 = arith.constant 1 : i32
    %132 = arith.index_cast %c1_i32 : i32 to index
    %c0_28 = arith.constant 0 : index
    %c0_29 = arith.constant 0 : index
    %133 = vector.load %arg1[%132, %c0_28, %c0_29] : memref<8x8x384xf32, #tpu.memory_space<vmem>>, vector<1x8x384xf32>
    %134 = vector.shape_cast %133 : vector<1x8x384xf32> to vector<8x384xf32>
    %c7_i32_30 = arith.constant 7 : i32
    %135 = arith.subi %c7_i32_30, %c1_i32 : i32
    %136 = vector.broadcast %c1_i32 : i32 to vector<8x1xi32>
    %137 = arith.cmpi slt, %136, %0 : vector<8x1xi32>
    %138 = vector.broadcast %135 : i32 to vector<8x1xi32>
    %139 = arith.cmpi slt, %138, %0 : vector<8x1xi32>
    %140 = vector.extract_strided_slice %134 {offsets = [0, 0], sizes = [8, 128], strides = [1, 1]} : vector<8x384xf32> to vector<8x128xf32>
    %cst_31 = arith.constant dense<0.000000e+00> : vector<8x128xf32>
    %141 = tpu.matmul %53, %2, %cst_31 {dimension_numbers = #tpu.dot_dimension_numbers<[1], [0], [0], [1], [0, 0, 1, 1], [], []>} : vector<8x32xf32>, vector<32x128xf32>, vector<8x128xf32> -> vector<8x128xf32>
    %142 = arith.addf %140, %141 : vector<8x128xf32>
    %143 = vector.extract_strided_slice %142 {offsets = [0, 0], sizes = [8, 32], strides = [1, 1]} : vector<8x128xf32> to vector<8x32xf32>
    %144 = arith.negf %143 : vector<8x32xf32>
    %145 = math.exp %144 : vector<8x32xf32>
    %cst_32 = arith.constant 1.000000e+00 : f32
    %146 = vector.broadcast %cst_32 : f32 to vector<8x32xf32>
    %147 = arith.addf %146, %145 : vector<8x32xf32>
    %148 = arith.divf %146, %147 : vector<8x32xf32>
    %149 = vector.extract_strided_slice %142 {offsets = [0, 32], sizes = [8, 32], strides = [1, 1]} : vector<8x128xf32> to vector<8x32xf32>
    %150 = arith.negf %149 : vector<8x32xf32>
    %151 = math.exp %150 : vector<8x32xf32>
    %cst_33 = arith.constant 1.000000e+00 : f32
    %152 = vector.broadcast %cst_33 : f32 to vector<8x32xf32>
    %153 = arith.addf %152, %151 : vector<8x32xf32>
    %154 = arith.divf %152, %153 : vector<8x32xf32>
    %155 = vector.extract_strided_slice %142 {offsets = [0, 64], sizes = [8, 32], strides = [1, 1]} : vector<8x128xf32> to vector<8x32xf32>
    %156 = math.tanh %155 : vector<8x32xf32>
    %157 = vector.extract_strided_slice %142 {offsets = [0, 96], sizes = [8, 32], strides = [1, 1]} : vector<8x128xf32> to vector<8x32xf32>
    %158 = arith.negf %157 : vector<8x32xf32>
    %159 = math.exp %158 : vector<8x32xf32>
    %cst_34 = arith.constant 1.000000e+00 : f32
    %160 = vector.broadcast %cst_34 : f32 to vector<8x32xf32>
    %161 = arith.addf %160, %159 : vector<8x32xf32>
    %162 = arith.divf %160, %161 : vector<8x32xf32>
    %163 = arith.mulf %154, %56 : vector<8x32xf32>
    %164 = arith.mulf %148, %156 : vector<8x32xf32>
    %165 = arith.addf %163, %164 : vector<8x32xf32>
    %166 = math.tanh %165 : vector<8x32xf32>
    %167 = arith.mulf %162, %166 : vector<8x32xf32>
    %cst_35 = arith.constant 0.000000e+00 : f32
    %168 = vector.shape_cast %137 : vector<8x1xi1> to vector<8x1xi1>
    %169 = vector.broadcast %168 : vector<8x1xi1> to vector<8x32xi1>
    %170 = vector.broadcast %cst_35 : f32 to vector<8x32xf32>
    %171 = arith.select %169, %167, %170 : vector<8x32xi1>, vector<8x32xf32>
    %172 = vector.shape_cast %171 : vector<8x32xf32> to vector<1x8x32xf32>
    %173 = arith.index_cast %c1_i32 : i32 to index
    %c0_36 = arith.constant 0 : index
    %c0_37 = arith.constant 0 : index
    %174 = vector.load %arg3[%173, %c0_36, %c0_37] : memref<8x8x32xf32, #tpu.memory_space<vmem>>, vector<1x8x32xf32>
    tpu.vector_store %arg3[%173, %c0_36, %c0_37], %172 {strides = array<i32>} : memref<8x8x32xf32, #tpu.memory_space<vmem>>, vector<1x8x32xf32>,
    %175 = vector.shape_cast %137 : vector<8x1xi1> to vector<8x1xi1>
    %176 = vector.broadcast %175 : vector<8x1xi1> to vector<8x32xi1>
    %177 = arith.select %176, %167, %53 : vector<8x32xi1>, vector<8x32xf32>
    %178 = vector.shape_cast %137 : vector<8x1xi1> to vector<8x1xi1>
    %179 = vector.broadcast %178 : vector<8x1xi1> to vector<8x32xi1>
    %180 = arith.select %179, %165, %56 : vector<8x32xi1>, vector<8x32xf32>
    %181 = vector.extract_strided_slice %134 {offsets = [0, 128], sizes = [8, 128], strides = [1, 1]} : vector<8x384xf32> to vector<8x128xf32>
    %cst_38 = arith.constant dense<0.000000e+00> : vector<8x128xf32>
    %182 = tpu.matmul %87, %4, %cst_38 {dimension_numbers = #tpu.dot_dimension_numbers<[1], [0], [0], [1], [0, 0, 1, 1], [], []>} : vector<8x32xf32>, vector<32x128xf32>, vector<8x128xf32> -> vector<8x128xf32>
    %183 = arith.addf %181, %182 : vector<8x128xf32>
    %184 = vector.extract_strided_slice %183 {offsets = [0, 0], sizes = [8, 32], strides = [1, 1]} : vector<8x128xf32> to vector<8x32xf32>
    %185 = arith.negf %184 : vector<8x32xf32>
    %186 = math.exp %185 : vector<8x32xf32>
    %cst_39 = arith.constant 1.000000e+00 : f32
    %187 = vector.broadcast %cst_39 : f32 to vector<8x32xf32>
    %188 = arith.addf %187, %186 : vector<8x32xf32>
    %189 = arith.divf %187, %188 : vector<8x32xf32>
    %190 = vector.extract_strided_slice %183 {offsets = [0, 32], sizes = [8, 32], strides = [1, 1]} : vector<8x128xf32> to vector<8x32xf32>
    %191 = arith.negf %190 : vector<8x32xf32>
    %192 = math.exp %191 : vector<8x32xf32>
    %cst_40 = arith.constant 1.000000e+00 : f32
    %193 = vector.broadcast %cst_40 : f32 to vector<8x32xf32>
    %194 = arith.addf %193, %192 : vector<8x32xf32>
    %195 = arith.divf %193, %194 : vector<8x32xf32>
    %196 = vector.extract_strided_slice %183 {offsets = [0, 64], sizes = [8, 32], strides = [1, 1]} : vector<8x128xf32> to vector<8x32xf32>
    %197 = math.tanh %196 : vector<8x32xf32>
    %198 = vector.extract_strided_slice %183 {offsets = [0, 96], sizes = [8, 32], strides = [1, 1]} : vector<8x128xf32> to vector<8x32xf32>
    %199 = arith.negf %198 : vector<8x32xf32>
    %200 = math.exp %199 : vector<8x32xf32>
    %cst_41 = arith.constant 1.000000e+00 : f32
    %201 = vector.broadcast %cst_41 : f32 to vector<8x32xf32>
    %202 = arith.addf %201, %200 : vector<8x32xf32>
    %203 = arith.divf %201, %202 : vector<8x32xf32>
    %204 = arith.mulf %195, %90 : vector<8x32xf32>
    %205 = arith.mulf %189, %197 : vector<8x32xf32>
    %206 = arith.addf %204, %205 : vector<8x32xf32>
    %207 = math.tanh %206 : vector<8x32xf32>
    %208 = arith.mulf %203, %207 : vector<8x32xf32>
    %209 = vector.shape_cast %137 : vector<8x1xi1> to vector<8x1xi1>
    %210 = vector.broadcast %209 : vector<8x1xi1> to vector<8x32xi1>
    %211 = arith.select %210, %208, %87 : vector<8x32xi1>, vector<8x32xf32>
    %212 = vector.shape_cast %137 : vector<8x1xi1> to vector<8x1xi1>
    %213 = vector.broadcast %212 : vector<8x1xi1> to vector<8x32xi1>
    %214 = arith.select %213, %206, %90 : vector<8x32xi1>, vector<8x32xf32>
    %215 = vector.extract_strided_slice %134 {offsets = [0, 256], sizes = [8, 128], strides = [1, 1]} : vector<8x384xf32> to vector<8x128xf32>
    %cst_42 = arith.constant dense<0.000000e+00> : vector<8x128xf32>
    %216 = tpu.matmul %128, %6, %cst_42 {dimension_numbers = #tpu.dot_dimension_numbers<[1], [0], [0], [1], [0, 0, 1, 1], [], []>} : vector<8x32xf32>, vector<32x128xf32>, vector<8x128xf32> -> vector<8x128xf32>
    %217 = arith.addf %215, %216 : vector<8x128xf32>
    %218 = vector.extract_strided_slice %217 {offsets = [0, 0], sizes = [8, 32], strides = [1, 1]} : vector<8x128xf32> to vector<8x32xf32>
    %219 = arith.negf %218 : vector<8x32xf32>
    %220 = math.exp %219 : vector<8x32xf32>
    %cst_43 = arith.constant 1.000000e+00 : f32
    %221 = vector.broadcast %cst_43 : f32 to vector<8x32xf32>
    %222 = arith.addf %221, %220 : vector<8x32xf32>
    %223 = arith.divf %221, %222 : vector<8x32xf32>
    %224 = vector.extract_strided_slice %217 {offsets = [0, 32], sizes = [8, 32], strides = [1, 1]} : vector<8x128xf32> to vector<8x32xf32>
    %225 = arith.negf %224 : vector<8x32xf32>
    %226 = math.exp %225 : vector<8x32xf32>
    %cst_44 = arith.constant 1.000000e+00 : f32
    %227 = vector.broadcast %cst_44 : f32 to vector<8x32xf32>
    %228 = arith.addf %227, %226 : vector<8x32xf32>
    %229 = arith.divf %227, %228 : vector<8x32xf32>
    %230 = vector.extract_strided_slice %217 {offsets = [0, 64], sizes = [8, 32], strides = [1, 1]} : vector<8x128xf32> to vector<8x32xf32>
    %231 = math.tanh %230 : vector<8x32xf32>
    %232 = vector.extract_strided_slice %217 {offsets = [0, 96], sizes = [8, 32], strides = [1, 1]} : vector<8x128xf32> to vector<8x32xf32>
    %233 = arith.negf %232 : vector<8x32xf32>
    %234 = math.exp %233 : vector<8x32xf32>
    %cst_45 = arith.constant 1.000000e+00 : f32
    %235 = vector.broadcast %cst_45 : f32 to vector<8x32xf32>
    %236 = arith.addf %235, %234 : vector<8x32xf32>
    %237 = arith.divf %235, %236 : vector<8x32xf32>
    %238 = arith.mulf %229, %131 : vector<8x32xf32>
    %239 = arith.mulf %223, %231 : vector<8x32xf32>
    %240 = arith.addf %238, %239 : vector<8x32xf32>
    %241 = math.tanh %240 : vector<8x32xf32>
    %242 = arith.mulf %237, %241 : vector<8x32xf32>
    %cst_46 = arith.constant 0.000000e+00 : f32
    %243 = vector.shape_cast %139 : vector<8x1xi1> to vector<8x1xi1>
    %244 = vector.broadcast %243 : vector<8x1xi1> to vector<8x32xi1>
    %245 = vector.broadcast %cst_46 : f32 to vector<8x32xf32>
    %246 = arith.select %244, %242, %245 : vector<8x32xi1>, vector<8x32xf32>
    %247 = vector.shape_cast %246 : vector<8x32xf32> to vector<1x8x32xf32>
    %248 = arith.index_cast %135 : i32 to index
    %c0_47 = arith.constant 0 : index
    %c0_48 = arith.constant 0 : index
    %249 = vector.load %arg4[%248, %c0_47, %c0_48] : memref<8x8x32xf32, #tpu.memory_space<vmem>>, vector<1x8x32xf32>
    tpu.vector_store %arg4[%248, %c0_47, %c0_48], %247 {strides = array<i32>} : memref<8x8x32xf32, #tpu.memory_space<vmem>>, vector<1x8x32xf32>,
    %250 = vector.shape_cast %139 : vector<8x1xi1> to vector<8x1xi1>
    %251 = vector.broadcast %250 : vector<8x1xi1> to vector<8x32xi1>
    %252 = arith.select %251, %242, %128 : vector<8x32xi1>, vector<8x32xf32>
    %253 = vector.shape_cast %139 : vector<8x1xi1> to vector<8x1xi1>
    %254 = vector.broadcast %253 : vector<8x1xi1> to vector<8x32xi1>
    %255 = arith.select %254, %240, %131 : vector<8x32xi1>, vector<8x32xf32>
    %c2_i32 = arith.constant 2 : i32
    %256 = arith.index_cast %c2_i32 : i32 to index
    %c0_49 = arith.constant 0 : index
    %c0_50 = arith.constant 0 : index
    %257 = vector.load %arg1[%256, %c0_49, %c0_50] : memref<8x8x384xf32, #tpu.memory_space<vmem>>, vector<1x8x384xf32>
    %258 = vector.shape_cast %257 : vector<1x8x384xf32> to vector<8x384xf32>
    %c7_i32_51 = arith.constant 7 : i32
    %259 = arith.subi %c7_i32_51, %c2_i32 : i32
    %260 = vector.broadcast %c2_i32 : i32 to vector<8x1xi32>
    %261 = arith.cmpi slt, %260, %0 : vector<8x1xi32>
    %262 = vector.broadcast %259 : i32 to vector<8x1xi32>
    %263 = arith.cmpi slt, %262, %0 : vector<8x1xi32>
    %264 = vector.extract_strided_slice %258 {offsets = [0, 0], sizes = [8, 128], strides = [1, 1]} : vector<8x384xf32> to vector<8x128xf32>
    %cst_52 = arith.constant dense<0.000000e+00> : vector<8x128xf32>
    %265 = tpu.matmul %177, %2, %cst_52 {dimension_numbers = #tpu.dot_dimension_numbers<[1], [0], [0], [1], [0, 0, 1, 1], [], []>} : vector<8x32xf32>, vector<32x128xf32>, vector<8x128xf32> -> vector<8x128xf32>
    %266 = arith.addf %264, %265 : vector<8x128xf32>
    %267 = vector.extract_strided_slice %266 {offsets = [0, 0], sizes = [8, 32], strides = [1, 1]} : vector<8x128xf32> to vector<8x32xf32>
    %268 = arith.negf %267 : vector<8x32xf32>
    %269 = math.exp %268 : vector<8x32xf32>
    %cst_53 = arith.constant 1.000000e+00 : f32
    %270 = vector.broadcast %cst_53 : f32 to vector<8x32xf32>
    %271 = arith.addf %270, %269 : vector<8x32xf32>
    %272 = arith.divf %270, %271 : vector<8x32xf32>
    %273 = vector.extract_strided_slice %266 {offsets = [0, 32], sizes = [8, 32], strides = [1, 1]} : vector<8x128xf32> to vector<8x32xf32>
    %274 = arith.negf %273 : vector<8x32xf32>
    %275 = math.exp %274 : vector<8x32xf32>
    %cst_54 = arith.constant 1.000000e+00 : f32
    %276 = vector.broadcast %cst_54 : f32 to vector<8x32xf32>
    %277 = arith.addf %276, %275 : vector<8x32xf32>
    %278 = arith.divf %276, %277 : vector<8x32xf32>
    %279 = vector.extract_strided_slice %266 {offsets = [0, 64], sizes = [8, 32], strides = [1, 1]} : vector<8x128xf32> to vector<8x32xf32>
    %280 = math.tanh %279 : vector<8x32xf32>
    %281 = vector.extract_strided_slice %266 {offsets = [0, 96], sizes = [8, 32], strides = [1, 1]} : vector<8x128xf32> to vector<8x32xf32>
    %282 = arith.negf %281 : vector<8x32xf32>
    %283 = math.exp %282 : vector<8x32xf32>
    %cst_55 = arith.constant 1.000000e+00 : f32
    %284 = vector.broadcast %cst_55 : f32 to vector<8x32xf32>
    %285 = arith.addf %284, %283 : vector<8x32xf32>
    %286 = arith.divf %284, %285 : vector<8x32xf32>
    %287 = arith.mulf %278, %180 : vector<8x32xf32>
    %288 = arith.mulf %272, %280 : vector<8x32xf32>
    %289 = arith.addf %287, %288 : vector<8x32xf32>
    %290 = math.tanh %289 : vector<8x32xf32>
    %291 = arith.mulf %286, %290 : vector<8x32xf32>
    %cst_56 = arith.constant 0.000000e+00 : f32
    %292 = vector.shape_cast %261 : vector<8x1xi1> to vector<8x1xi1>
    %293 = vector.broadcast %292 : vector<8x1xi1> to vector<8x32xi1>
    %294 = vector.broadcast %cst_56 : f32 to vector<8x32xf32>
    %295 = arith.select %293, %291, %294 : vector<8x32xi1>, vector<8x32xf32>
    %296 = vector.shape_cast %295 : vector<8x32xf32> to vector<1x8x32xf32>
    %297 = arith.index_cast %c2_i32 : i32 to index
    %c0_57 = arith.constant 0 : index
    %c0_58 = arith.constant 0 : index
    %298 = vector.load %arg3[%297, %c0_57, %c0_58] : memref<8x8x32xf32, #tpu.memory_space<vmem>>, vector<1x8x32xf32>
    tpu.vector_store %arg3[%297, %c0_57, %c0_58], %296 {strides = array<i32>} : memref<8x8x32xf32, #tpu.memory_space<vmem>>, vector<1x8x32xf32>,
    %299 = vector.shape_cast %261 : vector<8x1xi1> to vector<8x1xi1>
    %300 = vector.broadcast %299 : vector<8x1xi1> to vector<8x32xi1>
    %301 = arith.select %300, %291, %177 : vector<8x32xi1>, vector<8x32xf32>
    %302 = vector.shape_cast %261 : vector<8x1xi1> to vector<8x1xi1>
    %303 = vector.broadcast %302 : vector<8x1xi1> to vector<8x32xi1>
    %304 = arith.select %303, %289, %180 : vector<8x32xi1>, vector<8x32xf32>
    %305 = vector.extract_strided_slice %258 {offsets = [0, 128], sizes = [8, 128], strides = [1, 1]} : vector<8x384xf32> to vector<8x128xf32>
    %cst_59 = arith.constant dense<0.000000e+00> : vector<8x128xf32>
    %306 = tpu.matmul %211, %4, %cst_59 {dimension_numbers = #tpu.dot_dimension_numbers<[1], [0], [0], [1], [0, 0, 1, 1], [], []>} : vector<8x32xf32>, vector<32x128xf32>, vector<8x128xf32> -> vector<8x128xf32>
    %307 = arith.addf %305, %306 : vector<8x128xf32>
    %308 = vector.extract_strided_slice %307 {offsets = [0, 0], sizes = [8, 32], strides = [1, 1]} : vector<8x128xf32> to vector<8x32xf32>
    %309 = arith.negf %308 : vector<8x32xf32>
    %310 = math.exp %309 : vector<8x32xf32>
    %cst_60 = arith.constant 1.000000e+00 : f32
    %311 = vector.broadcast %cst_60 : f32 to vector<8x32xf32>
    %312 = arith.addf %311, %310 : vector<8x32xf32>
    %313 = arith.divf %311, %312 : vector<8x32xf32>
    %314 = vector.extract_strided_slice %307 {offsets = [0, 32], sizes = [8, 32], strides = [1, 1]} : vector<8x128xf32> to vector<8x32xf32>
    %315 = arith.negf %314 : vector<8x32xf32>
    %316 = math.exp %315 : vector<8x32xf32>
    %cst_61 = arith.constant 1.000000e+00 : f32
    %317 = vector.broadcast %cst_61 : f32 to vector<8x32xf32>
    %318 = arith.addf %317, %316 : vector<8x32xf32>
    %319 = arith.divf %317, %318 : vector<8x32xf32>
    %320 = vector.extract_strided_slice %307 {offsets = [0, 64], sizes = [8, 32], strides = [1, 1]} : vector<8x128xf32> to vector<8x32xf32>
    %321 = math.tanh %320 : vector<8x32xf32>
    %322 = vector.extract_strided_slice %307 {offsets = [0, 96], sizes = [8, 32], strides = [1, 1]} : vector<8x128xf32> to vector<8x32xf32>
    %323 = arith.negf %322 : vector<8x32xf32>
    %324 = math.exp %323 : vector<8x32xf32>
    %cst_62 = arith.constant 1.000000e+00 : f32
    %325 = vector.broadcast %cst_62 : f32 to vector<8x32xf32>
    %326 = arith.addf %325, %324 : vector<8x32xf32>
    %327 = arith.divf %325, %326 : vector<8x32xf32>
    %328 = arith.mulf %319, %214 : vector<8x32xf32>
    %329 = arith.mulf %313, %321 : vector<8x32xf32>
    %330 = arith.addf %328, %329 : vector<8x32xf32>
    %331 = math.tanh %330 : vector<8x32xf32>
    %332 = arith.mulf %327, %331 : vector<8x32xf32>
    %333 = vector.shape_cast %261 : vector<8x1xi1> to vector<8x1xi1>
    %334 = vector.broadcast %333 : vector<8x1xi1> to vector<8x32xi1>
    %335 = arith.select %334, %332, %211 : vector<8x32xi1>, vector<8x32xf32>
    %336 = vector.shape_cast %261 : vector<8x1xi1> to vector<8x1xi1>
    %337 = vector.broadcast %336 : vector<8x1xi1> to vector<8x32xi1>
    %338 = arith.select %337, %330, %214 : vector<8x32xi1>, vector<8x32xf32>
    %339 = vector.extract_strided_slice %258 {offsets = [0, 256], sizes = [8, 128], strides = [1, 1]} : vector<8x384xf32> to vector<8x128xf32>
    %cst_63 = arith.constant dense<0.000000e+00> : vector<8x128xf32>
    %340 = tpu.matmul %252, %6, %cst_63 {dimension_numbers = #tpu.dot_dimension_numbers<[1], [0], [0], [1], [0, 0, 1, 1], [], []>} : vector<8x32xf32>, vector<32x128xf32>, vector<8x128xf32> -> vector<8x128xf32>
    %341 = arith.addf %339, %340 : vector<8x128xf32>
    %342 = vector.extract_strided_slice %341 {offsets = [0, 0], sizes = [8, 32], strides = [1, 1]} : vector<8x128xf32> to vector<8x32xf32>
    %343 = arith.negf %342 : vector<8x32xf32>
    %344 = math.exp %343 : vector<8x32xf32>
    %cst_64 = arith.constant 1.000000e+00 : f32
    %345 = vector.broadcast %cst_64 : f32 to vector<8x32xf32>
    %346 = arith.addf %345, %344 : vector<8x32xf32>
    %347 = arith.divf %345, %346 : vector<8x32xf32>
    %348 = vector.extract_strided_slice %341 {offsets = [0, 32], sizes = [8, 32], strides = [1, 1]} : vector<8x128xf32> to vector<8x32xf32>
    %349 = arith.negf %348 : vector<8x32xf32>
    %350 = math.exp %349 : vector<8x32xf32>
    %cst_65 = arith.constant 1.000000e+00 : f32
    %351 = vector.broadcast %cst_65 : f32 to vector<8x32xf32>
    %352 = arith.addf %351, %350 : vector<8x32xf32>
    %353 = arith.divf %351, %352 : vector<8x32xf32>
    %354 = vector.extract_strided_slice %341 {offsets = [0, 64], sizes = [8, 32], strides = [1, 1]} : vector<8x128xf32> to vector<8x32xf32>
    %355 = math.tanh %354 : vector<8x32xf32>
    %356 = vector.extract_strided_slice %341 {offsets = [0, 96], sizes = [8, 32], strides = [1, 1]} : vector<8x128xf32> to vector<8x32xf32>
    %357 = arith.negf %356 : vector<8x32xf32>
    %358 = math.exp %357 : vector<8x32xf32>
    %cst_66 = arith.constant 1.000000e+00 : f32
    %359 = vector.broadcast %cst_66 : f32 to vector<8x32xf32>
    %360 = arith.addf %359, %358 : vector<8x32xf32>
    %361 = arith.divf %359, %360 : vector<8x32xf32>
    %362 = arith.mulf %353, %255 : vector<8x32xf32>
    %363 = arith.mulf %347, %355 : vector<8x32xf32>
    %364 = arith.addf %362, %363 : vector<8x32xf32>
    %365 = math.tanh %364 : vector<8x32xf32>
    %366 = arith.mulf %361, %365 : vector<8x32xf32>
    %cst_67 = arith.constant 0.000000e+00 : f32
    %367 = vector.shape_cast %263 : vector<8x1xi1> to vector<8x1xi1>
    %368 = vector.broadcast %367 : vector<8x1xi1> to vector<8x32xi1>
    %369 = vector.broadcast %cst_67 : f32 to vector<8x32xf32>
    %370 = arith.select %368, %366, %369 : vector<8x32xi1>, vector<8x32xf32>
    %371 = vector.shape_cast %370 : vector<8x32xf32> to vector<1x8x32xf32>
    %372 = arith.index_cast %259 : i32 to index
    %c0_68 = arith.constant 0 : index
    %c0_69 = arith.constant 0 : index
    %373 = vector.load %arg4[%372, %c0_68, %c0_69] : memref<8x8x32xf32, #tpu.memory_space<vmem>>, vector<1x8x32xf32>
    tpu.vector_store %arg4[%372, %c0_68, %c0_69], %371 {strides = array<i32>} : memref<8x8x32xf32, #tpu.memory_space<vmem>>, vector<1x8x32xf32>,
    %374 = vector.shape_cast %263 : vector<8x1xi1> to vector<8x1xi1>
    %375 = vector.broadcast %374 : vector<8x1xi1> to vector<8x32xi1>
    %376 = arith.select %375, %366, %252 : vector<8x32xi1>, vector<8x32xf32>
    %377 = vector.shape_cast %263 : vector<8x1xi1> to vector<8x1xi1>
    %378 = vector.broadcast %377 : vector<8x1xi1> to vector<8x32xi1>
    %379 = arith.select %378, %364, %255 : vector<8x32xi1>, vector<8x32xf32>
    %c3_i32 = arith.constant 3 : i32
    %380 = arith.index_cast %c3_i32 : i32 to index
    %c0_70 = arith.constant 0 : index
    %c0_71 = arith.constant 0 : index
    %381 = vector.load %arg1[%380, %c0_70, %c0_71] : memref<8x8x384xf32, #tpu.memory_space<vmem>>, vector<1x8x384xf32>
    %382 = vector.shape_cast %381 : vector<1x8x384xf32> to vector<8x384xf32>
    %c7_i32_72 = arith.constant 7 : i32
    %383 = arith.subi %c7_i32_72, %c3_i32 : i32
    %384 = vector.broadcast %c3_i32 : i32 to vector<8x1xi32>
    %385 = arith.cmpi slt, %384, %0 : vector<8x1xi32>
    %386 = vector.broadcast %383 : i32 to vector<8x1xi32>
    %387 = arith.cmpi slt, %386, %0 : vector<8x1xi32>
    %388 = vector.extract_strided_slice %382 {offsets = [0, 0], sizes = [8, 128], strides = [1, 1]} : vector<8x384xf32> to vector<8x128xf32>
    %cst_73 = arith.constant dense<0.000000e+00> : vector<8x128xf32>
    %389 = tpu.matmul %301, %2, %cst_73 {dimension_numbers = #tpu.dot_dimension_numbers<[1], [0], [0], [1], [0, 0, 1, 1], [], []>} : vector<8x32xf32>, vector<32x128xf32>, vector<8x128xf32> -> vector<8x128xf32>
    %390 = arith.addf %388, %389 : vector<8x128xf32>
    %391 = vector.extract_strided_slice %390 {offsets = [0, 0], sizes = [8, 32], strides = [1, 1]} : vector<8x128xf32> to vector<8x32xf32>
    %392 = arith.negf %391 : vector<8x32xf32>
    %393 = math.exp %392 : vector<8x32xf32>
    %cst_74 = arith.constant 1.000000e+00 : f32
    %394 = vector.broadcast %cst_74 : f32 to vector<8x32xf32>
    %395 = arith.addf %394, %393 : vector<8x32xf32>
    %396 = arith.divf %394, %395 : vector<8x32xf32>
    %397 = vector.extract_strided_slice %390 {offsets = [0, 32], sizes = [8, 32], strides = [1, 1]} : vector<8x128xf32> to vector<8x32xf32>
    %398 = arith.negf %397 : vector<8x32xf32>
    %399 = math.exp %398 : vector<8x32xf32>
    %cst_75 = arith.constant 1.000000e+00 : f32
    %400 = vector.broadcast %cst_75 : f32 to vector<8x32xf32>
    %401 = arith.addf %400, %399 : vector<8x32xf32>
    %402 = arith.divf %400, %401 : vector<8x32xf32>
    %403 = vector.extract_strided_slice %390 {offsets = [0, 64], sizes = [8, 32], strides = [1, 1]} : vector<8x128xf32> to vector<8x32xf32>
    %404 = math.tanh %403 : vector<8x32xf32>
    %405 = vector.extract_strided_slice %390 {offsets = [0, 96], sizes = [8, 32], strides = [1, 1]} : vector<8x128xf32> to vector<8x32xf32>
    %406 = arith.negf %405 : vector<8x32xf32>
    %407 = math.exp %406 : vector<8x32xf32>
    %cst_76 = arith.constant 1.000000e+00 : f32
    %408 = vector.broadcast %cst_76 : f32 to vector<8x32xf32>
    %409 = arith.addf %408, %407 : vector<8x32xf32>
    %410 = arith.divf %408, %409 : vector<8x32xf32>
    %411 = arith.mulf %402, %304 : vector<8x32xf32>
    %412 = arith.mulf %396, %404 : vector<8x32xf32>
    %413 = arith.addf %411, %412 : vector<8x32xf32>
    %414 = math.tanh %413 : vector<8x32xf32>
    %415 = arith.mulf %410, %414 : vector<8x32xf32>
    %cst_77 = arith.constant 0.000000e+00 : f32
    %416 = vector.shape_cast %385 : vector<8x1xi1> to vector<8x1xi1>
    %417 = vector.broadcast %416 : vector<8x1xi1> to vector<8x32xi1>
    %418 = vector.broadcast %cst_77 : f32 to vector<8x32xf32>
    %419 = arith.select %417, %415, %418 : vector<8x32xi1>, vector<8x32xf32>
    %420 = vector.shape_cast %419 : vector<8x32xf32> to vector<1x8x32xf32>
    %421 = arith.index_cast %c3_i32 : i32 to index
    %c0_78 = arith.constant 0 : index
    %c0_79 = arith.constant 0 : index
    %422 = vector.load %arg3[%421, %c0_78, %c0_79] : memref<8x8x32xf32, #tpu.memory_space<vmem>>, vector<1x8x32xf32>
    tpu.vector_store %arg3[%421, %c0_78, %c0_79], %420 {strides = array<i32>} : memref<8x8x32xf32, #tpu.memory_space<vmem>>, vector<1x8x32xf32>,
    %423 = vector.shape_cast %385 : vector<8x1xi1> to vector<8x1xi1>
    %424 = vector.broadcast %423 : vector<8x1xi1> to vector<8x32xi1>
    %425 = arith.select %424, %415, %301 : vector<8x32xi1>, vector<8x32xf32>
    %426 = vector.shape_cast %385 : vector<8x1xi1> to vector<8x1xi1>
    %427 = vector.broadcast %426 : vector<8x1xi1> to vector<8x32xi1>
    %428 = arith.select %427, %413, %304 : vector<8x32xi1>, vector<8x32xf32>
    %429 = vector.extract_strided_slice %382 {offsets = [0, 128], sizes = [8, 128], strides = [1, 1]} : vector<8x384xf32> to vector<8x128xf32>
    %cst_80 = arith.constant dense<0.000000e+00> : vector<8x128xf32>
    %430 = tpu.matmul %335, %4, %cst_80 {dimension_numbers = #tpu.dot_dimension_numbers<[1], [0], [0], [1], [0, 0, 1, 1], [], []>} : vector<8x32xf32>, vector<32x128xf32>, vector<8x128xf32> -> vector<8x128xf32>
    %431 = arith.addf %429, %430 : vector<8x128xf32>
    %432 = vector.extract_strided_slice %431 {offsets = [0, 0], sizes = [8, 32], strides = [1, 1]} : vector<8x128xf32> to vector<8x32xf32>
    %433 = arith.negf %432 : vector<8x32xf32>
    %434 = math.exp %433 : vector<8x32xf32>
    %cst_81 = arith.constant 1.000000e+00 : f32
    %435 = vector.broadcast %cst_81 : f32 to vector<8x32xf32>
    %436 = arith.addf %435, %434 : vector<8x32xf32>
    %437 = arith.divf %435, %436 : vector<8x32xf32>
    %438 = vector.extract_strided_slice %431 {offsets = [0, 32], sizes = [8, 32], strides = [1, 1]} : vector<8x128xf32> to vector<8x32xf32>
    %439 = arith.negf %438 : vector<8x32xf32>
    %440 = math.exp %439 : vector<8x32xf32>
    %cst_82 = arith.constant 1.000000e+00 : f32
    %441 = vector.broadcast %cst_82 : f32 to vector<8x32xf32>
    %442 = arith.addf %441, %440 : vector<8x32xf32>
    %443 = arith.divf %441, %442 : vector<8x32xf32>
    %444 = vector.extract_strided_slice %431 {offsets = [0, 64], sizes = [8, 32], strides = [1, 1]} : vector<8x128xf32> to vector<8x32xf32>
    %445 = math.tanh %444 : vector<8x32xf32>
    %446 = vector.extract_strided_slice %431 {offsets = [0, 96], sizes = [8, 32], strides = [1, 1]} : vector<8x128xf32> to vector<8x32xf32>
    %447 = arith.negf %446 : vector<8x32xf32>
    %448 = math.exp %447 : vector<8x32xf32>
    %cst_83 = arith.constant 1.000000e+00 : f32
    %449 = vector.broadcast %cst_83 : f32 to vector<8x32xf32>
    %450 = arith.addf %449, %448 : vector<8x32xf32>
    %451 = arith.divf %449, %450 : vector<8x32xf32>
    %452 = arith.mulf %443, %338 : vector<8x32xf32>
    %453 = arith.mulf %437, %445 : vector<8x32xf32>
    %454 = arith.addf %452, %453 : vector<8x32xf32>
    %455 = math.tanh %454 : vector<8x32xf32>
    %456 = arith.mulf %451, %455 : vector<8x32xf32>
    %457 = vector.shape_cast %385 : vector<8x1xi1> to vector<8x1xi1>
    %458 = vector.broadcast %457 : vector<8x1xi1> to vector<8x32xi1>
    %459 = arith.select %458, %456, %335 : vector<8x32xi1>, vector<8x32xf32>
    %460 = vector.shape_cast %385 : vector<8x1xi1> to vector<8x1xi1>
    %461 = vector.broadcast %460 : vector<8x1xi1> to vector<8x32xi1>
    %462 = arith.select %461, %454, %338 : vector<8x32xi1>, vector<8x32xf32>
    %463 = vector.extract_strided_slice %382 {offsets = [0, 256], sizes = [8, 128], strides = [1, 1]} : vector<8x384xf32> to vector<8x128xf32>
    %cst_84 = arith.constant dense<0.000000e+00> : vector<8x128xf32>
    %464 = tpu.matmul %376, %6, %cst_84 {dimension_numbers = #tpu.dot_dimension_numbers<[1], [0], [0], [1], [0, 0, 1, 1], [], []>} : vector<8x32xf32>, vector<32x128xf32>, vector<8x128xf32> -> vector<8x128xf32>
    %465 = arith.addf %463, %464 : vector<8x128xf32>
    %466 = vector.extract_strided_slice %465 {offsets = [0, 0], sizes = [8, 32], strides = [1, 1]} : vector<8x128xf32> to vector<8x32xf32>
    %467 = arith.negf %466 : vector<8x32xf32>
    %468 = math.exp %467 : vector<8x32xf32>
    %cst_85 = arith.constant 1.000000e+00 : f32
    %469 = vector.broadcast %cst_85 : f32 to vector<8x32xf32>
    %470 = arith.addf %469, %468 : vector<8x32xf32>
    %471 = arith.divf %469, %470 : vector<8x32xf32>
    %472 = vector.extract_strided_slice %465 {offsets = [0, 32], sizes = [8, 32], strides = [1, 1]} : vector<8x128xf32> to vector<8x32xf32>
    %473 = arith.negf %472 : vector<8x32xf32>
    %474 = math.exp %473 : vector<8x32xf32>
    %cst_86 = arith.constant 1.000000e+00 : f32
    %475 = vector.broadcast %cst_86 : f32 to vector<8x32xf32>
    %476 = arith.addf %475, %474 : vector<8x32xf32>
    %477 = arith.divf %475, %476 : vector<8x32xf32>
    %478 = vector.extract_strided_slice %465 {offsets = [0, 64], sizes = [8, 32], strides = [1, 1]} : vector<8x128xf32> to vector<8x32xf32>
    %479 = math.tanh %478 : vector<8x32xf32>
    %480 = vector.extract_strided_slice %465 {offsets = [0, 96], sizes = [8, 32], strides = [1, 1]} : vector<8x128xf32> to vector<8x32xf32>
    %481 = arith.negf %480 : vector<8x32xf32>
    %482 = math.exp %481 : vector<8x32xf32>
    %cst_87 = arith.constant 1.000000e+00 : f32
    %483 = vector.broadcast %cst_87 : f32 to vector<8x32xf32>
    %484 = arith.addf %483, %482 : vector<8x32xf32>
    %485 = arith.divf %483, %484 : vector<8x32xf32>
    %486 = arith.mulf %477, %379 : vector<8x32xf32>
    %487 = arith.mulf %471, %479 : vector<8x32xf32>
    %488 = arith.addf %486, %487 : vector<8x32xf32>
    %489 = math.tanh %488 : vector<8x32xf32>
    %490 = arith.mulf %485, %489 : vector<8x32xf32>
    %cst_88 = arith.constant 0.000000e+00 : f32
    %491 = vector.shape_cast %387 : vector<8x1xi1> to vector<8x1xi1>
    %492 = vector.broadcast %491 : vector<8x1xi1> to vector<8x32xi1>
    %493 = vector.broadcast %cst_88 : f32 to vector<8x32xf32>
    %494 = arith.select %492, %490, %493 : vector<8x32xi1>, vector<8x32xf32>
    %495 = vector.shape_cast %494 : vector<8x32xf32> to vector<1x8x32xf32>
    %496 = arith.index_cast %383 : i32 to index
    %c0_89 = arith.constant 0 : index
    %c0_90 = arith.constant 0 : index
    %497 = vector.load %arg4[%496, %c0_89, %c0_90] : memref<8x8x32xf32, #tpu.memory_space<vmem>>, vector<1x8x32xf32>
    tpu.vector_store %arg4[%496, %c0_89, %c0_90], %495 {strides = array<i32>} : memref<8x8x32xf32, #tpu.memory_space<vmem>>, vector<1x8x32xf32>,
    %498 = vector.shape_cast %387 : vector<8x1xi1> to vector<8x1xi1>
    %499 = vector.broadcast %498 : vector<8x1xi1> to vector<8x32xi1>
    %500 = arith.select %499, %490, %376 : vector<8x32xi1>, vector<8x32xf32>
    %501 = vector.shape_cast %387 : vector<8x1xi1> to vector<8x1xi1>
    %502 = vector.broadcast %501 : vector<8x1xi1> to vector<8x32xi1>
    %503 = arith.select %502, %488, %379 : vector<8x32xi1>, vector<8x32xf32>
    %c4_i32 = arith.constant 4 : i32
    %504 = arith.index_cast %c4_i32 : i32 to index
    %c0_91 = arith.constant 0 : index
    %c0_92 = arith.constant 0 : index
    %505 = vector.load %arg1[%504, %c0_91, %c0_92] : memref<8x8x384xf32, #tpu.memory_space<vmem>>, vector<1x8x384xf32>
    %506 = vector.shape_cast %505 : vector<1x8x384xf32> to vector<8x384xf32>
    %c7_i32_93 = arith.constant 7 : i32
    %507 = arith.subi %c7_i32_93, %c4_i32 : i32
    %508 = vector.broadcast %c4_i32 : i32 to vector<8x1xi32>
    %509 = arith.cmpi slt, %508, %0 : vector<8x1xi32>
    %510 = vector.broadcast %507 : i32 to vector<8x1xi32>
    %511 = arith.cmpi slt, %510, %0 : vector<8x1xi32>
    %512 = vector.extract_strided_slice %506 {offsets = [0, 0], sizes = [8, 128], strides = [1, 1]} : vector<8x384xf32> to vector<8x128xf32>
    %cst_94 = arith.constant dense<0.000000e+00> : vector<8x128xf32>
    %513 = tpu.matmul %425, %2, %cst_94 {dimension_numbers = #tpu.dot_dimension_numbers<[1], [0], [0], [1], [0, 0, 1, 1], [], []>} : vector<8x32xf32>, vector<32x128xf32>, vector<8x128xf32> -> vector<8x128xf32>
    %514 = arith.addf %512, %513 : vector<8x128xf32>
    %515 = vector.extract_strided_slice %514 {offsets = [0, 0], sizes = [8, 32], strides = [1, 1]} : vector<8x128xf32> to vector<8x32xf32>
    %516 = arith.negf %515 : vector<8x32xf32>
    %517 = math.exp %516 : vector<8x32xf32>
    %cst_95 = arith.constant 1.000000e+00 : f32
    %518 = vector.broadcast %cst_95 : f32 to vector<8x32xf32>
    %519 = arith.addf %518, %517 : vector<8x32xf32>
    %520 = arith.divf %518, %519 : vector<8x32xf32>
    %521 = vector.extract_strided_slice %514 {offsets = [0, 32], sizes = [8, 32], strides = [1, 1]} : vector<8x128xf32> to vector<8x32xf32>
    %522 = arith.negf %521 : vector<8x32xf32>
    %523 = math.exp %522 : vector<8x32xf32>
    %cst_96 = arith.constant 1.000000e+00 : f32
    %524 = vector.broadcast %cst_96 : f32 to vector<8x32xf32>
    %525 = arith.addf %524, %523 : vector<8x32xf32>
    %526 = arith.divf %524, %525 : vector<8x32xf32>
    %527 = vector.extract_strided_slice %514 {offsets = [0, 64], sizes = [8, 32], strides = [1, 1]} : vector<8x128xf32> to vector<8x32xf32>
    %528 = math.tanh %527 : vector<8x32xf32>
    %529 = vector.extract_strided_slice %514 {offsets = [0, 96], sizes = [8, 32], strides = [1, 1]} : vector<8x128xf32> to vector<8x32xf32>
    %530 = arith.negf %529 : vector<8x32xf32>
    %531 = math.exp %530 : vector<8x32xf32>
    %cst_97 = arith.constant 1.000000e+00 : f32
    %532 = vector.broadcast %cst_97 : f32 to vector<8x32xf32>
    %533 = arith.addf %532, %531 : vector<8x32xf32>
    %534 = arith.divf %532, %533 : vector<8x32xf32>
    %535 = arith.mulf %526, %428 : vector<8x32xf32>
    %536 = arith.mulf %520, %528 : vector<8x32xf32>
    %537 = arith.addf %535, %536 : vector<8x32xf32>
    %538 = math.tanh %537 : vector<8x32xf32>
    %539 = arith.mulf %534, %538 : vector<8x32xf32>
    %cst_98 = arith.constant 0.000000e+00 : f32
    %540 = vector.shape_cast %509 : vector<8x1xi1> to vector<8x1xi1>
    %541 = vector.broadcast %540 : vector<8x1xi1> to vector<8x32xi1>
    %542 = vector.broadcast %cst_98 : f32 to vector<8x32xf32>
    %543 = arith.select %541, %539, %542 : vector<8x32xi1>, vector<8x32xf32>
    %544 = vector.shape_cast %543 : vector<8x32xf32> to vector<1x8x32xf32>
    %545 = arith.index_cast %c4_i32 : i32 to index
    %c0_99 = arith.constant 0 : index
    %c0_100 = arith.constant 0 : index
    %546 = vector.load %arg3[%545, %c0_99, %c0_100] : memref<8x8x32xf32, #tpu.memory_space<vmem>>, vector<1x8x32xf32>
    tpu.vector_store %arg3[%545, %c0_99, %c0_100], %544 {strides = array<i32>} : memref<8x8x32xf32, #tpu.memory_space<vmem>>, vector<1x8x32xf32>,
    %547 = vector.shape_cast %509 : vector<8x1xi1> to vector<8x1xi1>
    %548 = vector.broadcast %547 : vector<8x1xi1> to vector<8x32xi1>
    %549 = arith.select %548, %539, %425 : vector<8x32xi1>, vector<8x32xf32>
    %550 = vector.shape_cast %509 : vector<8x1xi1> to vector<8x1xi1>
    %551 = vector.broadcast %550 : vector<8x1xi1> to vector<8x32xi1>
    %552 = arith.select %551, %537, %428 : vector<8x32xi1>, vector<8x32xf32>
    %553 = vector.extract_strided_slice %506 {offsets = [0, 128], sizes = [8, 128], strides = [1, 1]} : vector<8x384xf32> to vector<8x128xf32>
    %cst_101 = arith.constant dense<0.000000e+00> : vector<8x128xf32>
    %554 = tpu.matmul %459, %4, %cst_101 {dimension_numbers = #tpu.dot_dimension_numbers<[1], [0], [0], [1], [0, 0, 1, 1], [], []>} : vector<8x32xf32>, vector<32x128xf32>, vector<8x128xf32> -> vector<8x128xf32>
    %555 = arith.addf %553, %554 : vector<8x128xf32>
    %556 = vector.extract_strided_slice %555 {offsets = [0, 0], sizes = [8, 32], strides = [1, 1]} : vector<8x128xf32> to vector<8x32xf32>
    %557 = arith.negf %556 : vector<8x32xf32>
    %558 = math.exp %557 : vector<8x32xf32>
    %cst_102 = arith.constant 1.000000e+00 : f32
    %559 = vector.broadcast %cst_102 : f32 to vector<8x32xf32>
    %560 = arith.addf %559, %558 : vector<8x32xf32>
    %561 = arith.divf %559, %560 : vector<8x32xf32>
    %562 = vector.extract_strided_slice %555 {offsets = [0, 32], sizes = [8, 32], strides = [1, 1]} : vector<8x128xf32> to vector<8x32xf32>
    %563 = arith.negf %562 : vector<8x32xf32>
    %564 = math.exp %563 : vector<8x32xf32>
    %cst_103 = arith.constant 1.000000e+00 : f32
    %565 = vector.broadcast %cst_103 : f32 to vector<8x32xf32>
    %566 = arith.addf %565, %564 : vector<8x32xf32>
    %567 = arith.divf %565, %566 : vector<8x32xf32>
    %568 = vector.extract_strided_slice %555 {offsets = [0, 64], sizes = [8, 32], strides = [1, 1]} : vector<8x128xf32> to vector<8x32xf32>
    %569 = math.tanh %568 : vector<8x32xf32>
    %570 = vector.extract_strided_slice %555 {offsets = [0, 96], sizes = [8, 32], strides = [1, 1]} : vector<8x128xf32> to vector<8x32xf32>
    %571 = arith.negf %570 : vector<8x32xf32>
    %572 = math.exp %571 : vector<8x32xf32>
    %cst_104 = arith.constant 1.000000e+00 : f32
    %573 = vector.broadcast %cst_104 : f32 to vector<8x32xf32>
    %574 = arith.addf %573, %572 : vector<8x32xf32>
    %575 = arith.divf %573, %574 : vector<8x32xf32>
    %576 = arith.mulf %567, %462 : vector<8x32xf32>
    %577 = arith.mulf %561, %569 : vector<8x32xf32>
    %578 = arith.addf %576, %577 : vector<8x32xf32>
    %579 = math.tanh %578 : vector<8x32xf32>
    %580 = arith.mulf %575, %579 : vector<8x32xf32>
    %581 = vector.shape_cast %509 : vector<8x1xi1> to vector<8x1xi1>
    %582 = vector.broadcast %581 : vector<8x1xi1> to vector<8x32xi1>
    %583 = arith.select %582, %580, %459 : vector<8x32xi1>, vector<8x32xf32>
    %584 = vector.shape_cast %509 : vector<8x1xi1> to vector<8x1xi1>
    %585 = vector.broadcast %584 : vector<8x1xi1> to vector<8x32xi1>
    %586 = arith.select %585, %578, %462 : vector<8x32xi1>, vector<8x32xf32>
    %587 = vector.extract_strided_slice %506 {offsets = [0, 256], sizes = [8, 128], strides = [1, 1]} : vector<8x384xf32> to vector<8x128xf32>
    %cst_105 = arith.constant dense<0.000000e+00> : vector<8x128xf32>
    %588 = tpu.matmul %500, %6, %cst_105 {dimension_numbers = #tpu.dot_dimension_numbers<[1], [0], [0], [1], [0, 0, 1, 1], [], []>} : vector<8x32xf32>, vector<32x128xf32>, vector<8x128xf32> -> vector<8x128xf32>
    %589 = arith.addf %587, %588 : vector<8x128xf32>
    %590 = vector.extract_strided_slice %589 {offsets = [0, 0], sizes = [8, 32], strides = [1, 1]} : vector<8x128xf32> to vector<8x32xf32>
    %591 = arith.negf %590 : vector<8x32xf32>
    %592 = math.exp %591 : vector<8x32xf32>
    %cst_106 = arith.constant 1.000000e+00 : f32
    %593 = vector.broadcast %cst_106 : f32 to vector<8x32xf32>
    %594 = arith.addf %593, %592 : vector<8x32xf32>
    %595 = arith.divf %593, %594 : vector<8x32xf32>
    %596 = vector.extract_strided_slice %589 {offsets = [0, 32], sizes = [8, 32], strides = [1, 1]} : vector<8x128xf32> to vector<8x32xf32>
    %597 = arith.negf %596 : vector<8x32xf32>
    %598 = math.exp %597 : vector<8x32xf32>
    %cst_107 = arith.constant 1.000000e+00 : f32
    %599 = vector.broadcast %cst_107 : f32 to vector<8x32xf32>
    %600 = arith.addf %599, %598 : vector<8x32xf32>
    %601 = arith.divf %599, %600 : vector<8x32xf32>
    %602 = vector.extract_strided_slice %589 {offsets = [0, 64], sizes = [8, 32], strides = [1, 1]} : vector<8x128xf32> to vector<8x32xf32>
    %603 = math.tanh %602 : vector<8x32xf32>
    %604 = vector.extract_strided_slice %589 {offsets = [0, 96], sizes = [8, 32], strides = [1, 1]} : vector<8x128xf32> to vector<8x32xf32>
    %605 = arith.negf %604 : vector<8x32xf32>
    %606 = math.exp %605 : vector<8x32xf32>
    %cst_108 = arith.constant 1.000000e+00 : f32
    %607 = vector.broadcast %cst_108 : f32 to vector<8x32xf32>
    %608 = arith.addf %607, %606 : vector<8x32xf32>
    %609 = arith.divf %607, %608 : vector<8x32xf32>
    %610 = arith.mulf %601, %503 : vector<8x32xf32>
    %611 = arith.mulf %595, %603 : vector<8x32xf32>
    %612 = arith.addf %610, %611 : vector<8x32xf32>
    %613 = math.tanh %612 : vector<8x32xf32>
    %614 = arith.mulf %609, %613 : vector<8x32xf32>
    %cst_109 = arith.constant 0.000000e+00 : f32
    %615 = vector.shape_cast %511 : vector<8x1xi1> to vector<8x1xi1>
    %616 = vector.broadcast %615 : vector<8x1xi1> to vector<8x32xi1>
    %617 = vector.broadcast %cst_109 : f32 to vector<8x32xf32>
    %618 = arith.select %616, %614, %617 : vector<8x32xi1>, vector<8x32xf32>
    %619 = vector.shape_cast %618 : vector<8x32xf32> to vector<1x8x32xf32>
    %620 = arith.index_cast %507 : i32 to index
    %c0_110 = arith.constant 0 : index
    %c0_111 = arith.constant 0 : index
    %621 = vector.load %arg4[%620, %c0_110, %c0_111] : memref<8x8x32xf32, #tpu.memory_space<vmem>>, vector<1x8x32xf32>
    tpu.vector_store %arg4[%620, %c0_110, %c0_111], %619 {strides = array<i32>} : memref<8x8x32xf32, #tpu.memory_space<vmem>>, vector<1x8x32xf32>,
    %622 = vector.shape_cast %511 : vector<8x1xi1> to vector<8x1xi1>
    %623 = vector.broadcast %622 : vector<8x1xi1> to vector<8x32xi1>
    %624 = arith.select %623, %614, %500 : vector<8x32xi1>, vector<8x32xf32>
    %625 = vector.shape_cast %511 : vector<8x1xi1> to vector<8x1xi1>
    %626 = vector.broadcast %625 : vector<8x1xi1> to vector<8x32xi1>
    %627 = arith.select %626, %612, %503 : vector<8x32xi1>, vector<8x32xf32>
    %c5_i32 = arith.constant 5 : i32
    %628 = arith.index_cast %c5_i32 : i32 to index
    %c0_112 = arith.constant 0 : index
    %c0_113 = arith.constant 0 : index
    %629 = vector.load %arg1[%628, %c0_112, %c0_113] : memref<8x8x384xf32, #tpu.memory_space<vmem>>, vector<1x8x384xf32>
    %630 = vector.shape_cast %629 : vector<1x8x384xf32> to vector<8x384xf32>
    %c7_i32_114 = arith.constant 7 : i32
    %631 = arith.subi %c7_i32_114, %c5_i32 : i32
    %632 = vector.broadcast %c5_i32 : i32 to vector<8x1xi32>
    %633 = arith.cmpi slt, %632, %0 : vector<8x1xi32>
    %634 = vector.broadcast %631 : i32 to vector<8x1xi32>
    %635 = arith.cmpi slt, %634, %0 : vector<8x1xi32>
    %636 = vector.extract_strided_slice %630 {offsets = [0, 0], sizes = [8, 128], strides = [1, 1]} : vector<8x384xf32> to vector<8x128xf32>
    %cst_115 = arith.constant dense<0.000000e+00> : vector<8x128xf32>
    %637 = tpu.matmul %549, %2, %cst_115 {dimension_numbers = #tpu.dot_dimension_numbers<[1], [0], [0], [1], [0, 0, 1, 1], [], []>} : vector<8x32xf32>, vector<32x128xf32>, vector<8x128xf32> -> vector<8x128xf32>
    %638 = arith.addf %636, %637 : vector<8x128xf32>
    %639 = vector.extract_strided_slice %638 {offsets = [0, 0], sizes = [8, 32], strides = [1, 1]} : vector<8x128xf32> to vector<8x32xf32>
    %640 = arith.negf %639 : vector<8x32xf32>
    %641 = math.exp %640 : vector<8x32xf32>
    %cst_116 = arith.constant 1.000000e+00 : f32
    %642 = vector.broadcast %cst_116 : f32 to vector<8x32xf32>
    %643 = arith.addf %642, %641 : vector<8x32xf32>
    %644 = arith.divf %642, %643 : vector<8x32xf32>
    %645 = vector.extract_strided_slice %638 {offsets = [0, 32], sizes = [8, 32], strides = [1, 1]} : vector<8x128xf32> to vector<8x32xf32>
    %646 = arith.negf %645 : vector<8x32xf32>
    %647 = math.exp %646 : vector<8x32xf32>
    %cst_117 = arith.constant 1.000000e+00 : f32
    %648 = vector.broadcast %cst_117 : f32 to vector<8x32xf32>
    %649 = arith.addf %648, %647 : vector<8x32xf32>
    %650 = arith.divf %648, %649 : vector<8x32xf32>
    %651 = vector.extract_strided_slice %638 {offsets = [0, 64], sizes = [8, 32], strides = [1, 1]} : vector<8x128xf32> to vector<8x32xf32>
    %652 = math.tanh %651 : vector<8x32xf32>
    %653 = vector.extract_strided_slice %638 {offsets = [0, 96], sizes = [8, 32], strides = [1, 1]} : vector<8x128xf32> to vector<8x32xf32>
    %654 = arith.negf %653 : vector<8x32xf32>
    %655 = math.exp %654 : vector<8x32xf32>
    %cst_118 = arith.constant 1.000000e+00 : f32
    %656 = vector.broadcast %cst_118 : f32 to vector<8x32xf32>
    %657 = arith.addf %656, %655 : vector<8x32xf32>
    %658 = arith.divf %656, %657 : vector<8x32xf32>
    %659 = arith.mulf %650, %552 : vector<8x32xf32>
    %660 = arith.mulf %644, %652 : vector<8x32xf32>
    %661 = arith.addf %659, %660 : vector<8x32xf32>
    %662 = math.tanh %661 : vector<8x32xf32>
    %663 = arith.mulf %658, %662 : vector<8x32xf32>
    %cst_119 = arith.constant 0.000000e+00 : f32
    %664 = vector.shape_cast %633 : vector<8x1xi1> to vector<8x1xi1>
    %665 = vector.broadcast %664 : vector<8x1xi1> to vector<8x32xi1>
    %666 = vector.broadcast %cst_119 : f32 to vector<8x32xf32>
    %667 = arith.select %665, %663, %666 : vector<8x32xi1>, vector<8x32xf32>
    %668 = vector.shape_cast %667 : vector<8x32xf32> to vector<1x8x32xf32>
    %669 = arith.index_cast %c5_i32 : i32 to index
    %c0_120 = arith.constant 0 : index
    %c0_121 = arith.constant 0 : index
    %670 = vector.load %arg3[%669, %c0_120, %c0_121] : memref<8x8x32xf32, #tpu.memory_space<vmem>>, vector<1x8x32xf32>
    tpu.vector_store %arg3[%669, %c0_120, %c0_121], %668 {strides = array<i32>} : memref<8x8x32xf32, #tpu.memory_space<vmem>>, vector<1x8x32xf32>,
    %671 = vector.shape_cast %633 : vector<8x1xi1> to vector<8x1xi1>
    %672 = vector.broadcast %671 : vector<8x1xi1> to vector<8x32xi1>
    %673 = arith.select %672, %663, %549 : vector<8x32xi1>, vector<8x32xf32>
    %674 = vector.shape_cast %633 : vector<8x1xi1> to vector<8x1xi1>
    %675 = vector.broadcast %674 : vector<8x1xi1> to vector<8x32xi1>
    %676 = arith.select %675, %661, %552 : vector<8x32xi1>, vector<8x32xf32>
    %677 = vector.extract_strided_slice %630 {offsets = [0, 128], sizes = [8, 128], strides = [1, 1]} : vector<8x384xf32> to vector<8x128xf32>
    %cst_122 = arith.constant dense<0.000000e+00> : vector<8x128xf32>
    %678 = tpu.matmul %583, %4, %cst_122 {dimension_numbers = #tpu.dot_dimension_numbers<[1], [0], [0], [1], [0, 0, 1, 1], [], []>} : vector<8x32xf32>, vector<32x128xf32>, vector<8x128xf32> -> vector<8x128xf32>
    %679 = arith.addf %677, %678 : vector<8x128xf32>
    %680 = vector.extract_strided_slice %679 {offsets = [0, 0], sizes = [8, 32], strides = [1, 1]} : vector<8x128xf32> to vector<8x32xf32>
    %681 = arith.negf %680 : vector<8x32xf32>
    %682 = math.exp %681 : vector<8x32xf32>
    %cst_123 = arith.constant 1.000000e+00 : f32
    %683 = vector.broadcast %cst_123 : f32 to vector<8x32xf32>
    %684 = arith.addf %683, %682 : vector<8x32xf32>
    %685 = arith.divf %683, %684 : vector<8x32xf32>
    %686 = vector.extract_strided_slice %679 {offsets = [0, 32], sizes = [8, 32], strides = [1, 1]} : vector<8x128xf32> to vector<8x32xf32>
    %687 = arith.negf %686 : vector<8x32xf32>
    %688 = math.exp %687 : vector<8x32xf32>
    %cst_124 = arith.constant 1.000000e+00 : f32
    %689 = vector.broadcast %cst_124 : f32 to vector<8x32xf32>
    %690 = arith.addf %689, %688 : vector<8x32xf32>
    %691 = arith.divf %689, %690 : vector<8x32xf32>
    %692 = vector.extract_strided_slice %679 {offsets = [0, 64], sizes = [8, 32], strides = [1, 1]} : vector<8x128xf32> to vector<8x32xf32>
    %693 = math.tanh %692 : vector<8x32xf32>
    %694 = vector.extract_strided_slice %679 {offsets = [0, 96], sizes = [8, 32], strides = [1, 1]} : vector<8x128xf32> to vector<8x32xf32>
    %695 = arith.negf %694 : vector<8x32xf32>
    %696 = math.exp %695 : vector<8x32xf32>
    %cst_125 = arith.constant 1.000000e+00 : f32
    %697 = vector.broadcast %cst_125 : f32 to vector<8x32xf32>
    %698 = arith.addf %697, %696 : vector<8x32xf32>
    %699 = arith.divf %697, %698 : vector<8x32xf32>
    %700 = arith.mulf %691, %586 : vector<8x32xf32>
    %701 = arith.mulf %685, %693 : vector<8x32xf32>
    %702 = arith.addf %700, %701 : vector<8x32xf32>
    %703 = math.tanh %702 : vector<8x32xf32>
    %704 = arith.mulf %699, %703 : vector<8x32xf32>
    %705 = vector.shape_cast %633 : vector<8x1xi1> to vector<8x1xi1>
    %706 = vector.broadcast %705 : vector<8x1xi1> to vector<8x32xi1>
    %707 = arith.select %706, %704, %583 : vector<8x32xi1>, vector<8x32xf32>
    %708 = vector.shape_cast %633 : vector<8x1xi1> to vector<8x1xi1>
    %709 = vector.broadcast %708 : vector<8x1xi1> to vector<8x32xi1>
    %710 = arith.select %709, %702, %586 : vector<8x32xi1>, vector<8x32xf32>
    %711 = vector.extract_strided_slice %630 {offsets = [0, 256], sizes = [8, 128], strides = [1, 1]} : vector<8x384xf32> to vector<8x128xf32>
    %cst_126 = arith.constant dense<0.000000e+00> : vector<8x128xf32>
    %712 = tpu.matmul %624, %6, %cst_126 {dimension_numbers = #tpu.dot_dimension_numbers<[1], [0], [0], [1], [0, 0, 1, 1], [], []>} : vector<8x32xf32>, vector<32x128xf32>, vector<8x128xf32> -> vector<8x128xf32>
    %713 = arith.addf %711, %712 : vector<8x128xf32>
    %714 = vector.extract_strided_slice %713 {offsets = [0, 0], sizes = [8, 32], strides = [1, 1]} : vector<8x128xf32> to vector<8x32xf32>
    %715 = arith.negf %714 : vector<8x32xf32>
    %716 = math.exp %715 : vector<8x32xf32>
    %cst_127 = arith.constant 1.000000e+00 : f32
    %717 = vector.broadcast %cst_127 : f32 to vector<8x32xf32>
    %718 = arith.addf %717, %716 : vector<8x32xf32>
    %719 = arith.divf %717, %718 : vector<8x32xf32>
    %720 = vector.extract_strided_slice %713 {offsets = [0, 32], sizes = [8, 32], strides = [1, 1]} : vector<8x128xf32> to vector<8x32xf32>
    %721 = arith.negf %720 : vector<8x32xf32>
    %722 = math.exp %721 : vector<8x32xf32>
    %cst_128 = arith.constant 1.000000e+00 : f32
    %723 = vector.broadcast %cst_128 : f32 to vector<8x32xf32>
    %724 = arith.addf %723, %722 : vector<8x32xf32>
    %725 = arith.divf %723, %724 : vector<8x32xf32>
    %726 = vector.extract_strided_slice %713 {offsets = [0, 64], sizes = [8, 32], strides = [1, 1]} : vector<8x128xf32> to vector<8x32xf32>
    %727 = math.tanh %726 : vector<8x32xf32>
    %728 = vector.extract_strided_slice %713 {offsets = [0, 96], sizes = [8, 32], strides = [1, 1]} : vector<8x128xf32> to vector<8x32xf32>
    %729 = arith.negf %728 : vector<8x32xf32>
    %730 = math.exp %729 : vector<8x32xf32>
    %cst_129 = arith.constant 1.000000e+00 : f32
    %731 = vector.broadcast %cst_129 : f32 to vector<8x32xf32>
    %732 = arith.addf %731, %730 : vector<8x32xf32>
    %733 = arith.divf %731, %732 : vector<8x32xf32>
    %734 = arith.mulf %725, %627 : vector<8x32xf32>
    %735 = arith.mulf %719, %727 : vector<8x32xf32>
    %736 = arith.addf %734, %735 : vector<8x32xf32>
    %737 = math.tanh %736 : vector<8x32xf32>
    %738 = arith.mulf %733, %737 : vector<8x32xf32>
    %cst_130 = arith.constant 0.000000e+00 : f32
    %739 = vector.shape_cast %635 : vector<8x1xi1> to vector<8x1xi1>
    %740 = vector.broadcast %739 : vector<8x1xi1> to vector<8x32xi1>
    %741 = vector.broadcast %cst_130 : f32 to vector<8x32xf32>
    %742 = arith.select %740, %738, %741 : vector<8x32xi1>, vector<8x32xf32>
    %743 = vector.shape_cast %742 : vector<8x32xf32> to vector<1x8x32xf32>
    %744 = arith.index_cast %631 : i32 to index
    %c0_131 = arith.constant 0 : index
    %c0_132 = arith.constant 0 : index
    %745 = vector.load %arg4[%744, %c0_131, %c0_132] : memref<8x8x32xf32, #tpu.memory_space<vmem>>, vector<1x8x32xf32>
    tpu.vector_store %arg4[%744, %c0_131, %c0_132], %743 {strides = array<i32>} : memref<8x8x32xf32, #tpu.memory_space<vmem>>, vector<1x8x32xf32>,
    %746 = vector.shape_cast %635 : vector<8x1xi1> to vector<8x1xi1>
    %747 = vector.broadcast %746 : vector<8x1xi1> to vector<8x32xi1>
    %748 = arith.select %747, %738, %624 : vector<8x32xi1>, vector<8x32xf32>
    %749 = vector.shape_cast %635 : vector<8x1xi1> to vector<8x1xi1>
    %750 = vector.broadcast %749 : vector<8x1xi1> to vector<8x32xi1>
    %751 = arith.select %750, %736, %627 : vector<8x32xi1>, vector<8x32xf32>
    %c6_i32 = arith.constant 6 : i32
    %752 = arith.index_cast %c6_i32 : i32 to index
    %c0_133 = arith.constant 0 : index
    %c0_134 = arith.constant 0 : index
    %753 = vector.load %arg1[%752, %c0_133, %c0_134] : memref<8x8x384xf32, #tpu.memory_space<vmem>>, vector<1x8x384xf32>
    %754 = vector.shape_cast %753 : vector<1x8x384xf32> to vector<8x384xf32>
    %c7_i32_135 = arith.constant 7 : i32
    %755 = arith.subi %c7_i32_135, %c6_i32 : i32
    %756 = vector.broadcast %c6_i32 : i32 to vector<8x1xi32>
    %757 = arith.cmpi slt, %756, %0 : vector<8x1xi32>
    %758 = vector.broadcast %755 : i32 to vector<8x1xi32>
    %759 = arith.cmpi slt, %758, %0 : vector<8x1xi32>
    %760 = vector.extract_strided_slice %754 {offsets = [0, 0], sizes = [8, 128], strides = [1, 1]} : vector<8x384xf32> to vector<8x128xf32>
    %cst_136 = arith.constant dense<0.000000e+00> : vector<8x128xf32>
    %761 = tpu.matmul %673, %2, %cst_136 {dimension_numbers = #tpu.dot_dimension_numbers<[1], [0], [0], [1], [0, 0, 1, 1], [], []>} : vector<8x32xf32>, vector<32x128xf32>, vector<8x128xf32> -> vector<8x128xf32>
    %762 = arith.addf %760, %761 : vector<8x128xf32>
    %763 = vector.extract_strided_slice %762 {offsets = [0, 0], sizes = [8, 32], strides = [1, 1]} : vector<8x128xf32> to vector<8x32xf32>
    %764 = arith.negf %763 : vector<8x32xf32>
    %765 = math.exp %764 : vector<8x32xf32>
    %cst_137 = arith.constant 1.000000e+00 : f32
    %766 = vector.broadcast %cst_137 : f32 to vector<8x32xf32>
    %767 = arith.addf %766, %765 : vector<8x32xf32>
    %768 = arith.divf %766, %767 : vector<8x32xf32>
    %769 = vector.extract_strided_slice %762 {offsets = [0, 32], sizes = [8, 32], strides = [1, 1]} : vector<8x128xf32> to vector<8x32xf32>
    %770 = arith.negf %769 : vector<8x32xf32>
    %771 = math.exp %770 : vector<8x32xf32>
    %cst_138 = arith.constant 1.000000e+00 : f32
    %772 = vector.broadcast %cst_138 : f32 to vector<8x32xf32>
    %773 = arith.addf %772, %771 : vector<8x32xf32>
    %774 = arith.divf %772, %773 : vector<8x32xf32>
    %775 = vector.extract_strided_slice %762 {offsets = [0, 64], sizes = [8, 32], strides = [1, 1]} : vector<8x128xf32> to vector<8x32xf32>
    %776 = math.tanh %775 : vector<8x32xf32>
    %777 = vector.extract_strided_slice %762 {offsets = [0, 96], sizes = [8, 32], strides = [1, 1]} : vector<8x128xf32> to vector<8x32xf32>
    %778 = arith.negf %777 : vector<8x32xf32>
    %779 = math.exp %778 : vector<8x32xf32>
    %cst_139 = arith.constant 1.000000e+00 : f32
    %780 = vector.broadcast %cst_139 : f32 to vector<8x32xf32>
    %781 = arith.addf %780, %779 : vector<8x32xf32>
    %782 = arith.divf %780, %781 : vector<8x32xf32>
    %783 = arith.mulf %774, %676 : vector<8x32xf32>
    %784 = arith.mulf %768, %776 : vector<8x32xf32>
    %785 = arith.addf %783, %784 : vector<8x32xf32>
    %786 = math.tanh %785 : vector<8x32xf32>
    %787 = arith.mulf %782, %786 : vector<8x32xf32>
    %cst_140 = arith.constant 0.000000e+00 : f32
    %788 = vector.shape_cast %757 : vector<8x1xi1> to vector<8x1xi1>
    %789 = vector.broadcast %788 : vector<8x1xi1> to vector<8x32xi1>
    %790 = vector.broadcast %cst_140 : f32 to vector<8x32xf32>
    %791 = arith.select %789, %787, %790 : vector<8x32xi1>, vector<8x32xf32>
    %792 = vector.shape_cast %791 : vector<8x32xf32> to vector<1x8x32xf32>
    %793 = arith.index_cast %c6_i32 : i32 to index
    %c0_141 = arith.constant 0 : index
    %c0_142 = arith.constant 0 : index
    %794 = vector.load %arg3[%793, %c0_141, %c0_142] : memref<8x8x32xf32, #tpu.memory_space<vmem>>, vector<1x8x32xf32>
    tpu.vector_store %arg3[%793, %c0_141, %c0_142], %792 {strides = array<i32>} : memref<8x8x32xf32, #tpu.memory_space<vmem>>, vector<1x8x32xf32>,
    %795 = vector.shape_cast %757 : vector<8x1xi1> to vector<8x1xi1>
    %796 = vector.broadcast %795 : vector<8x1xi1> to vector<8x32xi1>
    %797 = arith.select %796, %787, %673 : vector<8x32xi1>, vector<8x32xf32>
    %798 = vector.shape_cast %757 : vector<8x1xi1> to vector<8x1xi1>
    %799 = vector.broadcast %798 : vector<8x1xi1> to vector<8x32xi1>
    %800 = arith.select %799, %785, %676 : vector<8x32xi1>, vector<8x32xf32>
    %801 = vector.extract_strided_slice %754 {offsets = [0, 128], sizes = [8, 128], strides = [1, 1]} : vector<8x384xf32> to vector<8x128xf32>
    %cst_143 = arith.constant dense<0.000000e+00> : vector<8x128xf32>
    %802 = tpu.matmul %707, %4, %cst_143 {dimension_numbers = #tpu.dot_dimension_numbers<[1], [0], [0], [1], [0, 0, 1, 1], [], []>} : vector<8x32xf32>, vector<32x128xf32>, vector<8x128xf32> -> vector<8x128xf32>
    %803 = arith.addf %801, %802 : vector<8x128xf32>
    %804 = vector.extract_strided_slice %803 {offsets = [0, 0], sizes = [8, 32], strides = [1, 1]} : vector<8x128xf32> to vector<8x32xf32>
    %805 = arith.negf %804 : vector<8x32xf32>
    %806 = math.exp %805 : vector<8x32xf32>
    %cst_144 = arith.constant 1.000000e+00 : f32
    %807 = vector.broadcast %cst_144 : f32 to vector<8x32xf32>
    %808 = arith.addf %807, %806 : vector<8x32xf32>
    %809 = arith.divf %807, %808 : vector<8x32xf32>
    %810 = vector.extract_strided_slice %803 {offsets = [0, 32], sizes = [8, 32], strides = [1, 1]} : vector<8x128xf32> to vector<8x32xf32>
    %811 = arith.negf %810 : vector<8x32xf32>
    %812 = math.exp %811 : vector<8x32xf32>
    %cst_145 = arith.constant 1.000000e+00 : f32
    %813 = vector.broadcast %cst_145 : f32 to vector<8x32xf32>
    %814 = arith.addf %813, %812 : vector<8x32xf32>
    %815 = arith.divf %813, %814 : vector<8x32xf32>
    %816 = vector.extract_strided_slice %803 {offsets = [0, 64], sizes = [8, 32], strides = [1, 1]} : vector<8x128xf32> to vector<8x32xf32>
    %817 = math.tanh %816 : vector<8x32xf32>
    %818 = vector.extract_strided_slice %803 {offsets = [0, 96], sizes = [8, 32], strides = [1, 1]} : vector<8x128xf32> to vector<8x32xf32>
    %819 = arith.negf %818 : vector<8x32xf32>
    %820 = math.exp %819 : vector<8x32xf32>
    %cst_146 = arith.constant 1.000000e+00 : f32
    %821 = vector.broadcast %cst_146 : f32 to vector<8x32xf32>
    %822 = arith.addf %821, %820 : vector<8x32xf32>
    %823 = arith.divf %821, %822 : vector<8x32xf32>
    %824 = arith.mulf %815, %710 : vector<8x32xf32>
    %825 = arith.mulf %809, %817 : vector<8x32xf32>
    %826 = arith.addf %824, %825 : vector<8x32xf32>
    %827 = math.tanh %826 : vector<8x32xf32>
    %828 = arith.mulf %823, %827 : vector<8x32xf32>
    %829 = vector.shape_cast %757 : vector<8x1xi1> to vector<8x1xi1>
    %830 = vector.broadcast %829 : vector<8x1xi1> to vector<8x32xi1>
    %831 = arith.select %830, %828, %707 : vector<8x32xi1>, vector<8x32xf32>
    %832 = vector.shape_cast %757 : vector<8x1xi1> to vector<8x1xi1>
    %833 = vector.broadcast %832 : vector<8x1xi1> to vector<8x32xi1>
    %834 = arith.select %833, %826, %710 : vector<8x32xi1>, vector<8x32xf32>
    %835 = vector.extract_strided_slice %754 {offsets = [0, 256], sizes = [8, 128], strides = [1, 1]} : vector<8x384xf32> to vector<8x128xf32>
    %cst_147 = arith.constant dense<0.000000e+00> : vector<8x128xf32>
    %836 = tpu.matmul %748, %6, %cst_147 {dimension_numbers = #tpu.dot_dimension_numbers<[1], [0], [0], [1], [0, 0, 1, 1], [], []>} : vector<8x32xf32>, vector<32x128xf32>, vector<8x128xf32> -> vector<8x128xf32>
    %837 = arith.addf %835, %836 : vector<8x128xf32>
    %838 = vector.extract_strided_slice %837 {offsets = [0, 0], sizes = [8, 32], strides = [1, 1]} : vector<8x128xf32> to vector<8x32xf32>
    %839 = arith.negf %838 : vector<8x32xf32>
    %840 = math.exp %839 : vector<8x32xf32>
    %cst_148 = arith.constant 1.000000e+00 : f32
    %841 = vector.broadcast %cst_148 : f32 to vector<8x32xf32>
    %842 = arith.addf %841, %840 : vector<8x32xf32>
    %843 = arith.divf %841, %842 : vector<8x32xf32>
    %844 = vector.extract_strided_slice %837 {offsets = [0, 32], sizes = [8, 32], strides = [1, 1]} : vector<8x128xf32> to vector<8x32xf32>
    %845 = arith.negf %844 : vector<8x32xf32>
    %846 = math.exp %845 : vector<8x32xf32>
    %cst_149 = arith.constant 1.000000e+00 : f32
    %847 = vector.broadcast %cst_149 : f32 to vector<8x32xf32>
    %848 = arith.addf %847, %846 : vector<8x32xf32>
    %849 = arith.divf %847, %848 : vector<8x32xf32>
    %850 = vector.extract_strided_slice %837 {offsets = [0, 64], sizes = [8, 32], strides = [1, 1]} : vector<8x128xf32> to vector<8x32xf32>
    %851 = math.tanh %850 : vector<8x32xf32>
    %852 = vector.extract_strided_slice %837 {offsets = [0, 96], sizes = [8, 32], strides = [1, 1]} : vector<8x128xf32> to vector<8x32xf32>
    %853 = arith.negf %852 : vector<8x32xf32>
    %854 = math.exp %853 : vector<8x32xf32>
    %cst_150 = arith.constant 1.000000e+00 : f32
    %855 = vector.broadcast %cst_150 : f32 to vector<8x32xf32>
    %856 = arith.addf %855, %854 : vector<8x32xf32>
    %857 = arith.divf %855, %856 : vector<8x32xf32>
    %858 = arith.mulf %849, %751 : vector<8x32xf32>
    %859 = arith.mulf %843, %851 : vector<8x32xf32>
    %860 = arith.addf %858, %859 : vector<8x32xf32>
    %861 = math.tanh %860 : vector<8x32xf32>
    %862 = arith.mulf %857, %861 : vector<8x32xf32>
    %cst_151 = arith.constant 0.000000e+00 : f32
    %863 = vector.shape_cast %759 : vector<8x1xi1> to vector<8x1xi1>
    %864 = vector.broadcast %863 : vector<8x1xi1> to vector<8x32xi1>
    %865 = vector.broadcast %cst_151 : f32 to vector<8x32xf32>
    %866 = arith.select %864, %862, %865 : vector<8x32xi1>, vector<8x32xf32>
    %867 = vector.shape_cast %866 : vector<8x32xf32> to vector<1x8x32xf32>
    %868 = arith.index_cast %755 : i32 to index
    %c0_152 = arith.constant 0 : index
    %c0_153 = arith.constant 0 : index
    %869 = vector.load %arg4[%868, %c0_152, %c0_153] : memref<8x8x32xf32, #tpu.memory_space<vmem>>, vector<1x8x32xf32>
    tpu.vector_store %arg4[%868, %c0_152, %c0_153], %867 {strides = array<i32>} : memref<8x8x32xf32, #tpu.memory_space<vmem>>, vector<1x8x32xf32>,
    %870 = vector.shape_cast %759 : vector<8x1xi1> to vector<8x1xi1>
    %871 = vector.broadcast %870 : vector<8x1xi1> to vector<8x32xi1>
    %872 = arith.select %871, %862, %748 : vector<8x32xi1>, vector<8x32xf32>
    %873 = vector.shape_cast %759 : vector<8x1xi1> to vector<8x1xi1>
    %874 = vector.broadcast %873 : vector<8x1xi1> to vector<8x32xi1>
    %875 = arith.select %874, %860, %751 : vector<8x32xi1>, vector<8x32xf32>
    %c7_i32_154 = arith.constant 7 : i32
    %876 = arith.index_cast %c7_i32_154 : i32 to index
    %c0_155 = arith.constant 0 : index
    %c0_156 = arith.constant 0 : index
    %877 = vector.load %arg1[%876, %c0_155, %c0_156] : memref<8x8x384xf32, #tpu.memory_space<vmem>>, vector<1x8x384xf32>
    %878 = vector.shape_cast %877 : vector<1x8x384xf32> to vector<8x384xf32>
    %c7_i32_157 = arith.constant 7 : i32
    %879 = arith.subi %c7_i32_157, %c7_i32_154 : i32
    %880 = vector.broadcast %c7_i32_154 : i32 to vector<8x1xi32>
    %881 = arith.cmpi slt, %880, %0 : vector<8x1xi32>
    %882 = vector.broadcast %879 : i32 to vector<8x1xi32>
    %883 = arith.cmpi slt, %882, %0 : vector<8x1xi32>
    %884 = vector.extract_strided_slice %878 {offsets = [0, 0], sizes = [8, 128], strides = [1, 1]} : vector<8x384xf32> to vector<8x128xf32>
    %cst_158 = arith.constant dense<0.000000e+00> : vector<8x128xf32>
    %885 = tpu.matmul %797, %2, %cst_158 {dimension_numbers = #tpu.dot_dimension_numbers<[1], [0], [0], [1], [0, 0, 1, 1], [], []>} : vector<8x32xf32>, vector<32x128xf32>, vector<8x128xf32> -> vector<8x128xf32>
    %886 = arith.addf %884, %885 : vector<8x128xf32>
    %887 = vector.extract_strided_slice %886 {offsets = [0, 0], sizes = [8, 32], strides = [1, 1]} : vector<8x128xf32> to vector<8x32xf32>
    %888 = arith.negf %887 : vector<8x32xf32>
    %889 = math.exp %888 : vector<8x32xf32>
    %cst_159 = arith.constant 1.000000e+00 : f32
    %890 = vector.broadcast %cst_159 : f32 to vector<8x32xf32>
    %891 = arith.addf %890, %889 : vector<8x32xf32>
    %892 = arith.divf %890, %891 : vector<8x32xf32>
    %893 = vector.extract_strided_slice %886 {offsets = [0, 32], sizes = [8, 32], strides = [1, 1]} : vector<8x128xf32> to vector<8x32xf32>
    %894 = arith.negf %893 : vector<8x32xf32>
    %895 = math.exp %894 : vector<8x32xf32>
    %cst_160 = arith.constant 1.000000e+00 : f32
    %896 = vector.broadcast %cst_160 : f32 to vector<8x32xf32>
    %897 = arith.addf %896, %895 : vector<8x32xf32>
    %898 = arith.divf %896, %897 : vector<8x32xf32>
    %899 = vector.extract_strided_slice %886 {offsets = [0, 64], sizes = [8, 32], strides = [1, 1]} : vector<8x128xf32> to vector<8x32xf32>
    %900 = math.tanh %899 : vector<8x32xf32>
    %901 = vector.extract_strided_slice %886 {offsets = [0, 96], sizes = [8, 32], strides = [1, 1]} : vector<8x128xf32> to vector<8x32xf32>
    %902 = arith.negf %901 : vector<8x32xf32>
    %903 = math.exp %902 : vector<8x32xf32>
    %cst_161 = arith.constant 1.000000e+00 : f32
    %904 = vector.broadcast %cst_161 : f32 to vector<8x32xf32>
    %905 = arith.addf %904, %903 : vector<8x32xf32>
    %906 = arith.divf %904, %905 : vector<8x32xf32>
    %907 = arith.mulf %898, %800 : vector<8x32xf32>
    %908 = arith.mulf %892, %900 : vector<8x32xf32>
    %909 = arith.addf %907, %908 : vector<8x32xf32>
    %910 = math.tanh %909 : vector<8x32xf32>
    %911 = arith.mulf %906, %910 : vector<8x32xf32>
    %cst_162 = arith.constant 0.000000e+00 : f32
    %912 = vector.shape_cast %881 : vector<8x1xi1> to vector<8x1xi1>
    %913 = vector.broadcast %912 : vector<8x1xi1> to vector<8x32xi1>
    %914 = vector.broadcast %cst_162 : f32 to vector<8x32xf32>
    %915 = arith.select %913, %911, %914 : vector<8x32xi1>, vector<8x32xf32>
    %916 = vector.shape_cast %915 : vector<8x32xf32> to vector<1x8x32xf32>
    %917 = arith.index_cast %c7_i32_154 : i32 to index
    %c0_163 = arith.constant 0 : index
    %c0_164 = arith.constant 0 : index
    %918 = vector.load %arg3[%917, %c0_163, %c0_164] : memref<8x8x32xf32, #tpu.memory_space<vmem>>, vector<1x8x32xf32>
    tpu.vector_store %arg3[%917, %c0_163, %c0_164], %916 {strides = array<i32>} : memref<8x8x32xf32, #tpu.memory_space<vmem>>, vector<1x8x32xf32>,
    %919 = vector.shape_cast %881 : vector<8x1xi1> to vector<8x1xi1>
    %920 = vector.broadcast %919 : vector<8x1xi1> to vector<8x32xi1>
    %921 = arith.select %920, %911, %797 : vector<8x32xi1>, vector<8x32xf32>
    %922 = vector.shape_cast %881 : vector<8x1xi1> to vector<8x1xi1>
    %923 = vector.broadcast %922 : vector<8x1xi1> to vector<8x32xi1>
    %924 = arith.select %923, %909, %800 : vector<8x32xi1>, vector<8x32xf32>
    %925 = vector.extract_strided_slice %878 {offsets = [0, 128], sizes = [8, 128], strides = [1, 1]} : vector<8x384xf32> to vector<8x128xf32>
    %cst_165 = arith.constant dense<0.000000e+00> : vector<8x128xf32>
    %926 = tpu.matmul %831, %4, %cst_165 {dimension_numbers = #tpu.dot_dimension_numbers<[1], [0], [0], [1], [0, 0, 1, 1], [], []>} : vector<8x32xf32>, vector<32x128xf32>, vector<8x128xf32> -> vector<8x128xf32>
    %927 = arith.addf %925, %926 : vector<8x128xf32>
    %928 = vector.extract_strided_slice %927 {offsets = [0, 0], sizes = [8, 32], strides = [1, 1]} : vector<8x128xf32> to vector<8x32xf32>
    %929 = arith.negf %928 : vector<8x32xf32>
    %930 = math.exp %929 : vector<8x32xf32>
    %cst_166 = arith.constant 1.000000e+00 : f32
    %931 = vector.broadcast %cst_166 : f32 to vector<8x32xf32>
    %932 = arith.addf %931, %930 : vector<8x32xf32>
    %933 = arith.divf %931, %932 : vector<8x32xf32>
    %934 = vector.extract_strided_slice %927 {offsets = [0, 32], sizes = [8, 32], strides = [1, 1]} : vector<8x128xf32> to vector<8x32xf32>
    %935 = arith.negf %934 : vector<8x32xf32>
    %936 = math.exp %935 : vector<8x32xf32>
    %cst_167 = arith.constant 1.000000e+00 : f32
    %937 = vector.broadcast %cst_167 : f32 to vector<8x32xf32>
    %938 = arith.addf %937, %936 : vector<8x32xf32>
    %939 = arith.divf %937, %938 : vector<8x32xf32>
    %940 = vector.extract_strided_slice %927 {offsets = [0, 64], sizes = [8, 32], strides = [1, 1]} : vector<8x128xf32> to vector<8x32xf32>
    %941 = math.tanh %940 : vector<8x32xf32>
    %942 = vector.extract_strided_slice %927 {offsets = [0, 96], sizes = [8, 32], strides = [1, 1]} : vector<8x128xf32> to vector<8x32xf32>
    %943 = arith.negf %942 : vector<8x32xf32>
    %944 = math.exp %943 : vector<8x32xf32>
    %cst_168 = arith.constant 1.000000e+00 : f32
    %945 = vector.broadcast %cst_168 : f32 to vector<8x32xf32>
    %946 = arith.addf %945, %944 : vector<8x32xf32>
    %947 = arith.divf %945, %946 : vector<8x32xf32>
    %948 = arith.mulf %939, %834 : vector<8x32xf32>
    %949 = arith.mulf %933, %941 : vector<8x32xf32>
    %950 = arith.addf %948, %949 : vector<8x32xf32>
    %951 = math.tanh %950 : vector<8x32xf32>
    %952 = arith.mulf %947, %951 : vector<8x32xf32>
    %953 = vector.shape_cast %881 : vector<8x1xi1> to vector<8x1xi1>
    %954 = vector.broadcast %953 : vector<8x1xi1> to vector<8x32xi1>
    %955 = arith.select %954, %952, %831 : vector<8x32xi1>, vector<8x32xf32>
    %956 = vector.shape_cast %881 : vector<8x1xi1> to vector<8x1xi1>
    %957 = vector.broadcast %956 : vector<8x1xi1> to vector<8x32xi1>
    %958 = arith.select %957, %950, %834 : vector<8x32xi1>, vector<8x32xf32>
    %959 = vector.extract_strided_slice %878 {offsets = [0, 256], sizes = [8, 128], strides = [1, 1]} : vector<8x384xf32> to vector<8x128xf32>
    %cst_169 = arith.constant dense<0.000000e+00> : vector<8x128xf32>
    %960 = tpu.matmul %872, %6, %cst_169 {dimension_numbers = #tpu.dot_dimension_numbers<[1], [0], [0], [1], [0, 0, 1, 1], [], []>} : vector<8x32xf32>, vector<32x128xf32>, vector<8x128xf32> -> vector<8x128xf32>
    %961 = arith.addf %959, %960 : vector<8x128xf32>
    %962 = vector.extract_strided_slice %961 {offsets = [0, 0], sizes = [8, 32], strides = [1, 1]} : vector<8x128xf32> to vector<8x32xf32>
    %963 = arith.negf %962 : vector<8x32xf32>
    %964 = math.exp %963 : vector<8x32xf32>
    %cst_170 = arith.constant 1.000000e+00 : f32
    %965 = vector.broadcast %cst_170 : f32 to vector<8x32xf32>
    %966 = arith.addf %965, %964 : vector<8x32xf32>
    %967 = arith.divf %965, %966 : vector<8x32xf32>
    %968 = vector.extract_strided_slice %961 {offsets = [0, 32], sizes = [8, 32], strides = [1, 1]} : vector<8x128xf32> to vector<8x32xf32>
    %969 = arith.negf %968 : vector<8x32xf32>
    %970 = math.exp %969 : vector<8x32xf32>
    %cst_171 = arith.constant 1.000000e+00 : f32
    %971 = vector.broadcast %cst_171 : f32 to vector<8x32xf32>
    %972 = arith.addf %971, %970 : vector<8x32xf32>
    %973 = arith.divf %971, %972 : vector<8x32xf32>
    %974 = vector.extract_strided_slice %961 {offsets = [0, 64], sizes = [8, 32], strides = [1, 1]} : vector<8x128xf32> to vector<8x32xf32>
    %975 = math.tanh %974 : vector<8x32xf32>
    %976 = vector.extract_strided_slice %961 {offsets = [0, 96], sizes = [8, 32], strides = [1, 1]} : vector<8x128xf32> to vector<8x32xf32>
    %977 = arith.negf %976 : vector<8x32xf32>
    %978 = math.exp %977 : vector<8x32xf32>
    %cst_172 = arith.constant 1.000000e+00 : f32
    %979 = vector.broadcast %cst_172 : f32 to vector<8x32xf32>
    %980 = arith.addf %979, %978 : vector<8x32xf32>
    %981 = arith.divf %979, %980 : vector<8x32xf32>
    %982 = arith.mulf %973, %875 : vector<8x32xf32>
    %983 = arith.mulf %967, %975 : vector<8x32xf32>
    %984 = arith.addf %982, %983 : vector<8x32xf32>
    %985 = math.tanh %984 : vector<8x32xf32>
    %986 = arith.mulf %981, %985 : vector<8x32xf32>
    %cst_173 = arith.constant 0.000000e+00 : f32
    %987 = vector.shape_cast %883 : vector<8x1xi1> to vector<8x1xi1>
    %988 = vector.broadcast %987 : vector<8x1xi1> to vector<8x32xi1>
    %989 = vector.broadcast %cst_173 : f32 to vector<8x32xf32>
    %990 = arith.select %988, %986, %989 : vector<8x32xi1>, vector<8x32xf32>
    %991 = vector.shape_cast %990 : vector<8x32xf32> to vector<1x8x32xf32>
    %992 = arith.index_cast %879 : i32 to index
    %c0_174 = arith.constant 0 : index
    %c0_175 = arith.constant 0 : index
    %993 = vector.load %arg4[%992, %c0_174, %c0_175] : memref<8x8x32xf32, #tpu.memory_space<vmem>>, vector<1x8x32xf32>
    tpu.vector_store %arg4[%992, %c0_174, %c0_175], %991 {strides = array<i32>} : memref<8x8x32xf32, #tpu.memory_space<vmem>>, vector<1x8x32xf32>,
    %994 = vector.shape_cast %883 : vector<8x1xi1> to vector<8x1xi1>
    %995 = vector.broadcast %994 : vector<8x1xi1> to vector<8x32xi1>
    %996 = arith.select %995, %986, %872 : vector<8x32xi1>, vector<8x32xf32>
    %997 = vector.shape_cast %883 : vector<8x1xi1> to vector<8x1xi1>
    %998 = vector.broadcast %997 : vector<8x1xi1> to vector<8x32xi1>
    %999 = arith.select %998, %984, %875 : vector<8x32xi1>, vector<8x32xf32>
    %c8_i32 = arith.constant 8 : i32
    %c0_176 = arith.constant 0 : index
    %c0_177 = arith.constant 0 : index
    %1000 = vector.load %arg5[%c0_176, %c0_177] : memref<8x32xf32, #tpu.memory_space<vmem>>, vector<8x32xf32>
    tpu.vector_store %arg5[%c0_176, %c0_177], %921 {strides = array<i32>} : memref<8x32xf32, #tpu.memory_space<vmem>>, vector<8x32xf32>,
    %c0_178 = arith.constant 0 : index
    %c0_179 = arith.constant 0 : index
    %1001 = vector.load %arg6[%c0_178, %c0_179] : memref<8x32xf32, #tpu.memory_space<vmem>>, vector<8x32xf32>
    tpu.vector_store %arg6[%c0_178, %c0_179], %924 {strides = array<i32>} : memref<8x32xf32, #tpu.memory_space<vmem>>, vector<8x32xf32>,
    %c0_180 = arith.constant 0 : index
    %c0_181 = arith.constant 0 : index
    %1002 = vector.load %arg7[%c0_180, %c0_181] : memref<8x32xf32, #tpu.memory_space<vmem>>, vector<8x32xf32>
    tpu.vector_store %arg7[%c0_180, %c0_181], %958 {strides = array<i32>} : memref<8x32xf32, #tpu.memory_space<vmem>>, vector<8x32xf32>,
    %c0_182 = arith.constant 0 : index
    %c0_183 = arith.constant 0 : index
    %1003 = vector.load %arg8[%c0_182, %c0_183] : memref<8x32xf32, #tpu.memory_space<vmem>>, vector<8x32xf32>
    tpu.vector_store %arg8[%c0_182, %c0_183], %999 {strides = array<i32>} : memref<8x32xf32, #tpu.memory_space<vmem>>, vector<8x32xf32>,
    return
  }
}

module attributes {stable_mosaic.version = 11 : i64} {
  func.func @_awd_layer_kernel(%arg0: memref<8x1xi32, #tpu.memory_space<vmem>>, %arg1: memref<8x8x384xf32, #tpu.memory_space<vmem>>, %arg2: memref<3x32x128xf32, #tpu.memory_space<vmem>>, %arg3: memref<8x8x32xf32, #tpu.memory_space<vmem>>, %arg4: memref<8x8x32xf32, #tpu.memory_space<vmem>>, %arg5: memref<8x32xf32, #tpu.memory_space<vmem>>, %arg6: memref<8x32xf32, #tpu.memory_space<vmem>>, %arg7: memref<8x32xf32, #tpu.memory_space<vmem>>, %arg8: memref<8x32xf32, #tpu.memory_space<vmem>>) attributes {dimension_semantics = [], scalar_prefetch = 0 : i64, scratch_operands = 0 : i64, tpu.core_type = #tpu.core_type<tc>} {
    %c0 = arith.constant 0 : index
    %c0_0 = arith.constant 0 : index
    %0 = vector.load %arg0[%c0, %c0_0] : memref<8x1xi32, #tpu.memory_space<vmem>>, vector<8x1xi32>
    %c0_1 = arith.constant 0 : index
    %c0_2 = arith.constant 0 : index
    %c0_3 = arith.constant 0 : index
    %1 = vector.load %arg2[%c0_1, %c0_2, %c0_3] : memref<3x32x128xf32, #tpu.memory_space<vmem>>, vector<1x32x128xf32>
    %2 = vector.shape_cast %1 : vector<1x32x128xf32> to vector<32x128xf32>
    %c1 = arith.constant 1 : index
    %c0_4 = arith.constant 0 : index
    %c0_5 = arith.constant 0 : index
    %3 = vector.load %arg2[%c1, %c0_4, %c0_5] : memref<3x32x128xf32, #tpu.memory_space<vmem>>, vector<1x32x128xf32>
    %4 = vector.shape_cast %3 : vector<1x32x128xf32> to vector<32x128xf32>
    %c2 = arith.constant 2 : index
    %c0_6 = arith.constant 0 : index
    %c0_7 = arith.constant 0 : index
    %5 = vector.load %arg2[%c2, %c0_6, %c0_7] : memref<3x32x128xf32, #tpu.memory_space<vmem>>, vector<1x32x128xf32>
    %6 = vector.shape_cast %5 : vector<1x32x128xf32> to vector<32x128xf32>
    %cst = arith.constant 0.000000e+00 : f32
    %7 = vector.broadcast %cst : f32 to vector<8x32xf32>
    %c0_i32 = arith.constant 0 : i32
    %8 = arith.index_cast %c0_i32 : i32 to index
    %c0_8 = arith.constant 0 : index
    %c0_9 = arith.constant 0 : index
    %9 = vector.load %arg1[%8, %c0_8, %c0_9] : memref<8x8x384xf32, #tpu.memory_space<vmem>>, vector<1x8x384xf32>
    %10 = vector.shape_cast %9 : vector<1x8x384xf32> to vector<8x384xf32>
    %c7_i32 = arith.constant 7 : i32
    %11 = arith.subi %c7_i32, %c0_i32 : i32
    %12 = vector.broadcast %c0_i32 : i32 to vector<8x1xi32>
    %13 = arith.cmpi slt, %12, %0 : vector<8x1xi32>
    %14 = vector.broadcast %11 : i32 to vector<8x1xi32>
    %15 = arith.cmpi slt, %14, %0 : vector<8x1xi32>
    %16 = vector.extract_strided_slice %10 {offsets = [0, 0], sizes = [8, 128], strides = [1, 1]} : vector<8x384xf32> to vector<8x128xf32>
    %cst_10 = arith.constant dense<0.000000e+00> : vector<8x128xf32>
    %17 = tpu.matmul %7, %2, %cst_10 {dimension_numbers = #tpu.dot_dimension_numbers<[1], [0], [0], [1], [0, 0, 1, 1], [], []>} : vector<8x32xf32>, vector<32x128xf32>, vector<8x128xf32> -> vector<8x128xf32>
    %18 = arith.addf %16, %17 : vector<8x128xf32>
    %19 = vector.extract_strided_slice %18 {offsets = [0, 0], sizes = [8, 32], strides = [1, 1]} : vector<8x128xf32> to vector<8x32xf32>
    %20 = arith.negf %19 : vector<8x32xf32>
    %21 = math.exp %20 : vector<8x32xf32>
    %cst_11 = arith.constant 1.000000e+00 : f32
    %22 = vector.broadcast %cst_11 : f32 to vector<8x32xf32>
    %23 = arith.addf %22, %21 : vector<8x32xf32>
    %24 = arith.divf %22, %23 : vector<8x32xf32>
    %25 = vector.extract_strided_slice %18 {offsets = [0, 32], sizes = [8, 32], strides = [1, 1]} : vector<8x128xf32> to vector<8x32xf32>
    %26 = arith.negf %25 : vector<8x32xf32>
    %27 = math.exp %26 : vector<8x32xf32>
    %cst_12 = arith.constant 1.000000e+00 : f32
    %28 = vector.broadcast %cst_12 : f32 to vector<8x32xf32>
    %29 = arith.addf %28, %27 : vector<8x32xf32>
    %30 = arith.divf %28, %29 : vector<8x32xf32>
    %31 = vector.extract_strided_slice %18 {offsets = [0, 64], sizes = [8, 32], strides = [1, 1]} : vector<8x128xf32> to vector<8x32xf32>
    %32 = math.tanh %31 : vector<8x32xf32>
    %33 = vector.extract_strided_slice %18 {offsets = [0, 96], sizes = [8, 32], strides = [1, 1]} : vector<8x128xf32> to vector<8x32xf32>
    %34 = arith.negf %33 : vector<8x32xf32>
    %35 = math.exp %34 : vector<8x32xf32>
    %cst_13 = arith.constant 1.000000e+00 : f32
    %36 = vector.broadcast %cst_13 : f32 to vector<8x32xf32>
    %37 = arith.addf %36, %35 : vector<8x32xf32>
    %38 = arith.divf %36, %37 : vector<8x32xf32>
    %39 = arith.mulf %30, %7 : vector<8x32xf32>
    %40 = arith.mulf %24, %32 : vector<8x32xf32>
    %41 = arith.addf %39, %40 : vector<8x32xf32>
    %42 = math.tanh %41 : vector<8x32xf32>
    %43 = arith.mulf %38, %42 : vector<8x32xf32>
    %cst_14 = arith.constant 0.000000e+00 : f32
    %44 = vector.shape_cast %13 : vector<8x1xi1> to vector<8x1xi1>
    %45 = vector.broadcast %44 : vector<8x1xi1> to vector<8x32xi1>
    %46 = vector.broadcast %cst_14 : f32 to vector<8x32xf32>
    %47 = arith.select %45, %43, %46 : vector<8x32xi1>, vector<8x32xf32>
    %48 = vector.shape_cast %47 : vector<8x32xf32> to vector<1x8x32xf32>
    %49 = arith.index_cast %c0_i32 : i32 to index
    %c0_15 = arith.constant 0 : index
    %c0_16 = arith.constant 0 : index
    %50 = vector.load %arg3[%49, %c0_15, %c0_16] : memref<8x8x32xf32, #tpu.memory_space<vmem>>, vector<1x8x32xf32>
    tpu.vector_store %arg3[%49, %c0_15, %c0_16], %48 {strides = array<i32>} : memref<8x8x32xf32, #tpu.memory_space<vmem>>, vector<1x8x32xf32>,
    %51 = vector.shape_cast %13 : vector<8x1xi1> to vector<8x1xi1>
    %52 = vector.broadcast %51 : vector<8x1xi1> to vector<8x32xi1>
    %53 = arith.select %52, %43, %7 : vector<8x32xi1>, vector<8x32xf32>
    %54 = vector.shape_cast %13 : vector<8x1xi1> to vector<8x1xi1>
    %55 = vector.broadcast %54 : vector<8x1xi1> to vector<8x32xi1>
    %56 = arith.select %55, %41, %7 : vector<8x32xi1>, vector<8x32xf32>
    %57 = vector.extract_strided_slice %10 {offsets = [0, 128], sizes = [8, 128], strides = [1, 1]} : vector<8x384xf32> to vector<8x128xf32>
    %cst_17 = arith.constant dense<0.000000e+00> : vector<8x128xf32>
    %58 = tpu.matmul %7, %4, %cst_17 {dimension_numbers = #tpu.dot_dimension_numbers<[1], [0], [0], [1], [0, 0, 1, 1], [], []>} : vector<8x32xf32>, vector<32x128xf32>, vector<8x128xf32> -> vector<8x128xf32>
    %59 = arith.addf %57, %58 : vector<8x128xf32>
    %60 = vector.extract_strided_slice %59 {offsets = [0, 0], sizes = [8, 32], strides = [1, 1]} : vector<8x128xf32> to vector<8x32xf32>
    %61 = arith.negf %60 : vector<8x32xf32>
    %62 = math.exp %61 : vector<8x32xf32>
    %cst_18 = arith.constant 1.000000e+00 : f32
    %63 = vector.broadcast %cst_18 : f32 to vector<8x32xf32>
    %64 = arith.addf %63, %62 : vector<8x32xf32>
    %65 = arith.divf %63, %64 : vector<8x32xf32>
    %66 = vector.extract_strided_slice %59 {offsets = [0, 32], sizes = [8, 32], strides = [1, 1]} : vector<8x128xf32> to vector<8x32xf32>
    %67 = arith.negf %66 : vector<8x32xf32>
    %68 = math.exp %67 : vector<8x32xf32>
    %cst_19 = arith.constant 1.000000e+00 : f32
    %69 = vector.broadcast %cst_19 : f32 to vector<8x32xf32>
    %70 = arith.addf %69, %68 : vector<8x32xf32>
    %71 = arith.divf %69, %70 : vector<8x32xf32>
    %72 = vector.extract_strided_slice %59 {offsets = [0, 64], sizes = [8, 32], strides = [1, 1]} : vector<8x128xf32> to vector<8x32xf32>
    %73 = math.tanh %72 : vector<8x32xf32>
    %74 = vector.extract_strided_slice %59 {offsets = [0, 96], sizes = [8, 32], strides = [1, 1]} : vector<8x128xf32> to vector<8x32xf32>
    %75 = arith.negf %74 : vector<8x32xf32>
    %76 = math.exp %75 : vector<8x32xf32>
    %cst_20 = arith.constant 1.000000e+00 : f32
    %77 = vector.broadcast %cst_20 : f32 to vector<8x32xf32>
    %78 = arith.addf %77, %76 : vector<8x32xf32>
    %79 = arith.divf %77, %78 : vector<8x32xf32>
    %80 = arith.mulf %71, %7 : vector<8x32xf32>
    %81 = arith.mulf %65, %73 : vector<8x32xf32>
    %82 = arith.addf %80, %81 : vector<8x32xf32>
    %83 = math.tanh %82 : vector<8x32xf32>
    %84 = arith.mulf %79, %83 : vector<8x32xf32>
    %85 = vector.shape_cast %13 : vector<8x1xi1> to vector<8x1xi1>
    %86 = vector.broadcast %85 : vector<8x1xi1> to vector<8x32xi1>
    %87 = arith.select %86, %84, %7 : vector<8x32xi1>, vector<8x32xf32>
    %88 = vector.shape_cast %13 : vector<8x1xi1> to vector<8x1xi1>
    %89 = vector.broadcast %88 : vector<8x1xi1> to vector<8x32xi1>
    %90 = arith.select %89, %82, %7 : vector<8x32xi1>, vector<8x32xf32>
    %91 = vector.extract_strided_slice %10 {offsets = [0, 256], sizes = [8, 128], strides = [1, 1]} : vector<8x384xf32> to vector<8x128xf32>
    %cst_21 = arith.constant dense<0.000000e+00> : vector<8x128xf32>
    %92 = tpu.matmul %7, %6, %cst_21 {dimension_numbers = #tpu.dot_dimension_numbers<[1], [0], [0], [1], [0, 0, 1, 1], [], []>} : vector<8x32xf32>, vector<32x128xf32>, vector<8x128xf32> -> vector<8x128xf32>
    %93 = arith.addf %91, %92 : vector<8x128xf32>
    %94 = vector.extract_strided_slice %93 {offsets = [0, 0], sizes = [8, 32], strides = [1, 1]} : vector<8x128xf32> to vector<8x32xf32>
    %95 = arith.negf %94 : vector<8x32xf32>
    %96 = math.exp %95 : vector<8x32xf32>
    %cst_22 = arith.constant 1.000000e+00 : f32
    %97 = vector.broadcast %cst_22 : f32 to vector<8x32xf32>
    %98 = arith.addf %97, %96 : vector<8x32xf32>
    %99 = arith.divf %97, %98 : vector<8x32xf32>
    %100 = vector.extract_strided_slice %93 {offsets = [0, 32], sizes = [8, 32], strides = [1, 1]} : vector<8x128xf32> to vector<8x32xf32>
    %101 = arith.negf %100 : vector<8x32xf32>
    %102 = math.exp %101 : vector<8x32xf32>
    %cst_23 = arith.constant 1.000000e+00 : f32
    %103 = vector.broadcast %cst_23 : f32 to vector<8x32xf32>
    %104 = arith.addf %103, %102 : vector<8x32xf32>
    %105 = arith.divf %103, %104 : vector<8x32xf32>
    %106 = vector.extract_strided_slice %93 {offsets = [0, 64], sizes = [8, 32], strides = [1, 1]} : vector<8x128xf32> to vector<8x32xf32>
    %107 = math.tanh %106 : vector<8x32xf32>
    %108 = vector.extract_strided_slice %93 {offsets = [0, 96], sizes = [8, 32], strides = [1, 1]} : vector<8x128xf32> to vector<8x32xf32>
    %109 = arith.negf %108 : vector<8x32xf32>
    %110 = math.exp %109 : vector<8x32xf32>
    %cst_24 = arith.constant 1.000000e+00 : f32
    %111 = vector.broadcast %cst_24 : f32 to vector<8x32xf32>
    %112 = arith.addf %111, %110 : vector<8x32xf32>
    %113 = arith.divf %111, %112 : vector<8x32xf32>
    %114 = arith.mulf %105, %7 : vector<8x32xf32>
    %115 = arith.mulf %99, %107 : vector<8x32xf32>
    %116 = arith.addf %114, %115 : vector<8x32xf32>
    %117 = math.tanh %116 : vector<8x32xf32>
    %118 = arith.mulf %113, %117 : vector<8x32xf32>
    %cst_25 = arith.constant 0.000000e+00 : f32
    %119 = vector.shape_cast %15 : vector<8x1xi1> to vector<8x1xi1>
    %120 = vector.broadcast %119 : vector<8x1xi1> to vector<8x32xi1>
    %121 = vector.broadcast %cst_25 : f32 to vector<8x32xf32>
    %122 = arith.select %120, %118, %121 : vector<8x32xi1>, vector<8x32xf32>
    %123 = vector.shape_cast %122 : vector<8x32xf32> to vector<1x8x32xf32>
    %124 = arith.index_cast %11 : i32 to index
    %c0_26 = arith.constant 0 : index
    %c0_27 = arith.constant 0 : index
    %125 = vector.load %arg4[%124, %c0_26, %c0_27] : memref<8x8x32xf32, #tpu.memory_space<vmem>>, vector<1x8x32xf32>
    tpu.vector_store %arg4[%124, %c0_26, %c0_27], %123 {strides = array<i32>} : memref<8x8x32xf32, #tpu.memory_space<vmem>>, vector<1x8x32xf32>,
    %126 = vector.shape_cast %15 : vector<8x1xi1> to vector<8x1xi1>
    %127 = vector.broadcast %126 : vector<8x1xi1> to vector<8x32xi1>
    %128 = arith.select %127, %118, %7 : vector<8x32xi1>, vector<8x32xf32>
    %129 = vector.shape_cast %15 : vector<8x1xi1> to vector<8x1xi1>
    %130 = vector.broadcast %129 : vector<8x1xi1> to vector<8x32xi1>
    %131 = arith.select %130, %116, %7 : vector<8x32xi1>, vector<8x32xf32>
    %c1_i32 = arith.constant 1 : i32
    %132 = arith.index_cast %c1_i32 : i32 to index
    %c0_28 = arith.constant 0 : index
    %c0_29 = arith.constant 0 : index
    %133 = vector.load %arg1[%132, %c0_28, %c0_29] : memref<8x8x384xf32, #tpu.memory_space<vmem>>, vector<1x8x384xf32>
    %134 = vector.shape_cast %133 : vector<1x8x384xf32> to vector<8x384xf32>
    %c7_i32_30 = arith.constant 7 : i32
    %135 = arith.subi %c7_i32_30, %c1_i32 : i32
    %136 = vector.broadcast %c1_i32 : i32 to vector<8x1xi32>
    %137 = arith.cmpi slt, %136, %0 : vector<8x1xi32>
    %138 = vector.broadcast %135 : i32 to vector<8x1xi32>
    %139 = arith.cmpi slt, %138, %0 : vector<8x1xi32>
    %140 = vector.extract_strided_slice %134 {offsets = [0, 0], sizes = [8, 128], strides = [1, 1]} : vector<8x384xf32> to vector<8x128xf32>
    %cst_31 = arith.constant dense<0.000000e+00> : vector<8x128xf32>
    %141 = tpu.matmul %53, %2, %cst_31 {dimension_numbers = #tpu.dot_dimension_numbers<[1], [0], [0], [1], [0, 0, 1, 1], [], []>} : vector<8x32xf32>, vector<32x128xf32>, vector<8x128xf32> -> vector<8x128xf32>
    %142 = arith.addf %140, %141 : vector<8x128xf32>
    %143 = vector.extract_strided_slice %142 {offsets = [0, 0], sizes = [8, 32], strides = [1, 1]} : vector<8x128xf32> to vector<8x32xf32>
    %144 = arith.negf %143 : vector<8x32xf32>
    %145 = math.exp %144 : vector<8x32xf32>
    %cst_32 = arith.constant 1.000000e+00 : f32
    %146 = vector.broadcast %cst_32 : f32 to vector<8x32xf32>
    %147 = arith.addf %146, %145 : vector<8x32xf32>
    %148 = arith.divf %146, %147 : vector<8x32xf32>
    %149 = vector.extract_strided_slice %142 {offsets = [0, 32], sizes = [8, 32], strides = [1, 1]} : vector<8x128xf32> to vector<8x32xf32>
    %150 = arith.negf %149 : vector<8x32xf32>
    %151 = math.exp %150 : vector<8x32xf32>
    %cst_33 = arith.constant 1.000000e+00 : f32
    %152 = vector.broadcast %cst_33 : f32 to vector<8x32xf32>
    %153 = arith.addf %152, %151 : vector<8x32xf32>
    %154 = arith.divf %152, %153 : vector<8x32xf32>
    %155 = vector.extract_strided_slice %142 {offsets = [0, 64], sizes = [8, 32], strides = [1, 1]} : vector<8x128xf32> to vector<8x32xf32>
    %156 = math.tanh %155 : vector<8x32xf32>
    %157 = vector.extract_strided_slice %142 {offsets = [0, 96], sizes = [8, 32], strides = [1, 1]} : vector<8x128xf32> to vector<8x32xf32>
    %158 = arith.negf %157 : vector<8x32xf32>
    %159 = math.exp %158 : vector<8x32xf32>
    %cst_34 = arith.constant 1.000000e+00 : f32
    %160 = vector.broadcast %cst_34 : f32 to vector<8x32xf32>
    %161 = arith.addf %160, %159 : vector<8x32xf32>
    %162 = arith.divf %160, %161 : vector<8x32xf32>
    %163 = arith.mulf %154, %56 : vector<8x32xf32>
    %164 = arith.mulf %148, %156 : vector<8x32xf32>
    %165 = arith.addf %163, %164 : vector<8x32xf32>
    %166 = math.tanh %165 : vector<8x32xf32>
    %167 = arith.mulf %162, %166 : vector<8x32xf32>
    %cst_35 = arith.constant 0.000000e+00 : f32
    %168 = vector.shape_cast %137 : vector<8x1xi1> to vector<8x1xi1>
    %169 = vector.broadcast %168 : vector<8x1xi1> to vector<8x32xi1>
    %170 = vector.broadcast %cst_35 : f32 to vector<8x32xf32>
    %171 = arith.select %169, %167, %170 : vector<8x32xi1>, vector<8x32xf32>
    %172 = vector.shape_cast %171 : vector<8x32xf32> to vector<1x8x32xf32>
    %173 = arith.index_cast %c1_i32 : i32 to index
    %c0_36 = arith.constant 0 : index
    %c0_37 = arith.constant 0 : index
    %174 = vector.load %arg3[%173, %c0_36, %c0_37] : memref<8x8x32xf32, #tpu.memory_space<vmem>>, vector<1x8x32xf32>
    tpu.vector_store %arg3[%173, %c0_36, %c0_37], %172 {strides = array<i32>} : memref<8x8x32xf32, #tpu.memory_space<vmem>>, vector<1x8x32xf32>,
    %175 = vector.shape_cast %137 : vector<8x1xi1> to vector<8x1xi1>
    %176 = vector.broadcast %175 : vector<8x1xi1> to vector<8x32xi1>
    %177 = arith.select %176, %167, %53 : vector<8x32xi1>, vector<8x32xf32>
    %178 = vector.shape_cast %137 : vector<8x1xi1> to vector<8x1xi1>
    %179 = vector.broadcast %178 : vector<8x1xi1> to vector<8x32xi1>
    %180 = arith.select %179, %165, %56 : vector<8x32xi1>, vector<8x32xf32>
    %181 = vector.extract_strided_slice %134 {offsets = [0, 128], sizes = [8, 128], strides = [1, 1]} : vector<8x384xf32> to vector<8x128xf32>
    %cst_38 = arith.constant dense<0.000000e+00> : vector<8x128xf32>
    %182 = tpu.matmul %87, %4, %cst_38 {dimension_numbers = #tpu.dot_dimension_numbers<[1], [0], [0], [1], [0, 0, 1, 1], [], []>} : vector<8x32xf32>, vector<32x128xf32>, vector<8x128xf32> -> vector<8x128xf32>
    %183 = arith.addf %181, %182 : vector<8x128xf32>
    %184 = vector.extract_strided_slice %183 {offsets = [0, 0], sizes = [8, 32], strides = [1, 1]} : vector<8x128xf32> to vector<8x32xf32>
    %185 = arith.negf %184 : vector<8x32xf32>
    %186 = math.exp %185 : vector<8x32xf32>
    %cst_39 = arith.constant 1.000000e+00 : f32
    %187 = vector.broadcast %cst_39 : f32 to vector<8x32xf32>
    %188 = arith.addf %187, %186 : vector<8x32xf32>
    %189 = arith.divf %187, %188 : vector<8x32xf32>
    %190 = vector.extract_strided_slice %183 {offsets = [0, 32], sizes = [8, 32], strides = [1, 1]} : vector<8x128xf32> to vector<8x32xf32>
    %191 = arith.negf %190 : vector<8x32xf32>
    %192 = math.exp %191 : vector<8x32xf32>
    %cst_40 = arith.constant 1.000000e+00 : f32
    %193 = vector.broadcast %cst_40 : f32 to vector<8x32xf32>
    %194 = arith.addf %193, %192 : vector<8x32xf32>
    %195 = arith.divf %193, %194 : vector<8x32xf32>
    %196 = vector.extract_strided_slice %183 {offsets = [0, 64], sizes = [8, 32], strides = [1, 1]} : vector<8x128xf32> to vector<8x32xf32>
    %197 = math.tanh %196 : vector<8x32xf32>
    %198 = vector.extract_strided_slice %183 {offsets = [0, 96], sizes = [8, 32], strides = [1, 1]} : vector<8x128xf32> to vector<8x32xf32>
    %199 = arith.negf %198 : vector<8x32xf32>
    %200 = math.exp %199 : vector<8x32xf32>
    %cst_41 = arith.constant 1.000000e+00 : f32
    %201 = vector.broadcast %cst_41 : f32 to vector<8x32xf32>
    %202 = arith.addf %201, %200 : vector<8x32xf32>
    %203 = arith.divf %201, %202 : vector<8x32xf32>
    %204 = arith.mulf %195, %90 : vector<8x32xf32>
    %205 = arith.mulf %189, %197 : vector<8x32xf32>
    %206 = arith.addf %204, %205 : vector<8x32xf32>
    %207 = math.tanh %206 : vector<8x32xf32>
    %208 = arith.mulf %203, %207 : vector<8x32xf32>
    %209 = vector.shape_cast %137 : vector<8x1xi1> to vector<8x1xi1>
    %210 = vector.broadcast %209 : vector<8x1xi1> to vector<8x32xi1>
    %211 = arith.select %210, %208, %87 : vector<8x32xi1>, vector<8x32xf32>
    %212 = vector.shape_cast %137 : vector<8x1xi1> to vector<8x1xi1>
    %213 = vector.broadcast %212 : vector<8x1xi1> to vector<8x32xi1>
    %214 = arith.select %213, %206, %90 : vector<8x32xi1>, vector<8x32xf32>
    %215 = vector.extract_strided_slice %134 {offsets = [0, 256], sizes = [8, 128], strides = [1, 1]} : vector<8x384xf32> to vector<8x128xf32>
    %cst_42 = arith.constant dense<0.000000e+00> : vector<8x128xf32>
    %216 = tpu.matmul %128, %6, %cst_42 {dimension_numbers = #tpu.dot_dimension_numbers<[1], [0], [0], [1], [0, 0, 1, 1], [], []>} : vector<8x32xf32>, vector<32x128xf32>, vector<8x128xf32> -> vector<8x128xf32>
    %217 = arith.addf %215, %216 : vector<8x128xf32>
    %218 = vector.extract_strided_slice %217 {offsets = [0, 0], sizes = [8, 32], strides = [1, 1]} : vector<8x128xf32> to vector<8x32xf32>
    %219 = arith.negf %218 : vector<8x32xf32>
    %220 = math.exp %219 : vector<8x32xf32>
    %cst_43 = arith.constant 1.000000e+00 : f32
    %221 = vector.broadcast %cst_43 : f32 to vector<8x32xf32>
    %222 = arith.addf %221, %220 : vector<8x32xf32>
    %223 = arith.divf %221, %222 : vector<8x32xf32>
    %224 = vector.extract_strided_slice %217 {offsets = [0, 32], sizes = [8, 32], strides = [1, 1]} : vector<8x128xf32> to vector<8x32xf32>
    %225 = arith.negf %224 : vector<8x32xf32>
    %226 = math.exp %225 : vector<8x32xf32>
    %cst_44 = arith.constant 1.000000e+00 : f32
    %227 = vector.broadcast %cst_44 : f32 to vector<8x32xf32>
    %228 = arith.addf %227, %226 : vector<8x32xf32>
    %229 = arith.divf %227, %228 : vector<8x32xf32>
    %230 = vector.extract_strided_slice %217 {offsets = [0, 64], sizes = [8, 32], strides = [1, 1]} : vector<8x128xf32> to vector<8x32xf32>
    %231 = math.tanh %230 : vector<8x32xf32>
    %232 = vector.extract_strided_slice %217 {offsets = [0, 96], sizes = [8, 32], strides = [1, 1]} : vector<8x128xf32> to vector<8x32xf32>
    %233 = arith.negf %232 : vector<8x32xf32>
    %234 = math.exp %233 : vector<8x32xf32>
    %cst_45 = arith.constant 1.000000e+00 : f32
    %235 = vector.broadcast %cst_45 : f32 to vector<8x32xf32>
    %236 = arith.addf %235, %234 : vector<8x32xf32>
    %237 = arith.divf %235, %236 : vector<8x32xf32>
    %238 = arith.mulf %229, %131 : vector<8x32xf32>
    %239 = arith.mulf %223, %231 : vector<8x32xf32>
    %240 = arith.addf %238, %239 : vector<8x32xf32>
    %241 = math.tanh %240 : vector<8x32xf32>
    %242 = arith.mulf %237, %241 : vector<8x32xf32>
    %cst_46 = arith.constant 0.000000e+00 : f32
    %243 = vector.shape_cast %139 : vector<8x1xi1> to vector<8x1xi1>
    %244 = vector.broadcast %243 : vector<8x1xi1> to vector<8x32xi1>
    %245 = vector.broadcast %cst_46 : f32 to vector<8x32xf32>
    %246 = arith.select %244, %242, %245 : vector<8x32xi1>, vector<8x32xf32>
    %247 = vector.shape_cast %246 : vector<8x32xf32> to vector<1x8x32xf32>
    %248 = arith.index_cast %135 : i32 to index
    %c0_47 = arith.constant 0 : index
    %c0_48 = arith.constant 0 : index
    %249 = vector.load %arg4[%248, %c0_47, %c0_48] : memref<8x8x32xf32, #tpu.memory_space<vmem>>, vector<1x8x32xf32>
    tpu.vector_store %arg4[%248, %c0_47, %c0_48], %247 {strides = array<i32>} : memref<8x8x32xf32, #tpu.memory_space<vmem>>, vector<1x8x32xf32>,
    %250 = vector.shape_cast %139 : vector<8x1xi1> to vector<8x1xi1>
    %251 = vector.broadcast %250 : vector<8x1xi1> to vector<8x32xi1>
    %252 = arith.select %251, %242, %128 : vector<8x32xi1>, vector<8x32xf32>
    %253 = vector.shape_cast %139 : vector<8x1xi1> to vector<8x1xi1>
    %254 = vector.broadcast %253 : vector<8x1xi1> to vector<8x32xi1>
    %255 = arith.select %254, %240, %131 : vector<8x32xi1>, vector<8x32xf32>
    %c2_i32 = arith.constant 2 : i32
    %256 = arith.index_cast %c2_i32 : i32 to index
    %c0_49 = arith.constant 0 : index
    %c0_50 = arith.constant 0 : index
    %257 = vector.load %arg1[%256, %c0_49, %c0_50] : memref<8x8x384xf32, #tpu.memory_space<vmem>>, vector<1x8x384xf32>
    %258 = vector.shape_cast %257 : vector<1x8x384xf32> to vector<8x384xf32>
    %c7_i32_51 = arith.constant 7 : i32
    %259 = arith.subi %c7_i32_51, %c2_i32 : i32
    %260 = vector.broadcast %c2_i32 : i32 to vector<8x1xi32>
    %261 = arith.cmpi slt, %260, %0 : vector<8x1xi32>
    %262 = vector.broadcast %259 : i32 to vector<8x1xi32>
    %263 = arith.cmpi slt, %262, %0 : vector<8x1xi32>
    %264 = vector.extract_strided_slice %258 {offsets = [0, 0], sizes = [8, 128], strides = [1, 1]} : vector<8x384xf32> to vector<8x128xf32>
    %cst_52 = arith.constant dense<0.000000e+00> : vector<8x128xf32>
    %265 = tpu.matmul %177, %2, %cst_52 {dimension_numbers = #tpu.dot_dimension_numbers<[1], [0], [0], [1], [0, 0, 1, 1], [], []>} : vector<8x32xf32>, vector<32x128xf32>, vector<8x128xf32> -> vector<8x128xf32>
    %266 = arith.addf %264, %265 : vector<8x128xf32>
    %267 = vector.extract_strided_slice %266 {offsets = [0, 0], sizes = [8, 32], strides = [1, 1]} : vector<8x128xf32> to vector<8x32xf32>
    %268 = arith.negf %267 : vector<8x32xf32>
    %269 = math.exp %268 : vector<8x32xf32>
    %cst_53 = arith.constant 1.000000e+00 : f32
    %270 = vector.broadcast %cst_53 : f32 to vector<8x32xf32>
    %271 = arith.addf %270, %269 : vector<8x32xf32>
    %272 = arith.divf %270, %271 : vector<8x32xf32>
    %273 = vector.extract_strided_slice %266 {offsets = [0, 32], sizes = [8, 32], strides = [1, 1]} : vector<8x128xf32> to vector<8x32xf32>
    %274 = arith.negf %273 : vector<8x32xf32>
    %275 = math.exp %274 : vector<8x32xf32>
    %cst_54 = arith.constant 1.000000e+00 : f32
    %276 = vector.broadcast %cst_54 : f32 to vector<8x32xf32>
    %277 = arith.addf %276, %275 : vector<8x32xf32>
    %278 = arith.divf %276, %277 : vector<8x32xf32>
    %279 = vector.extract_strided_slice %266 {offsets = [0, 64], sizes = [8, 32], strides = [1, 1]} : vector<8x128xf32> to vector<8x32xf32>
    %280 = math.tanh %279 : vector<8x32xf32>
    %281 = vector.extract_strided_slice %266 {offsets = [0, 96], sizes = [8, 32], strides = [1, 1]} : vector<8x128xf32> to vector<8x32xf32>
    %282 = arith.negf %281 : vector<8x32xf32>
    %283 = math.exp %282 : vector<8x32xf32>
    %cst_55 = arith.constant 1.000000e+00 : f32
    %284 = vector.broadcast %cst_55 : f32 to vector<8x32xf32>
    %285 = arith.addf %284, %283 : vector<8x32xf32>
    %286 = arith.divf %284, %285 : vector<8x32xf32>
    %287 = arith.mulf %278, %180 : vector<8x32xf32>
    %288 = arith.mulf %272, %280 : vector<8x32xf32>
    %289 = arith.addf %287, %288 : vector<8x32xf32>
    %290 = math.tanh %289 : vector<8x32xf32>
    %291 = arith.mulf %286, %290 : vector<8x32xf32>
    %cst_56 = arith.constant 0.000000e+00 : f32
    %292 = vector.shape_cast %261 : vector<8x1xi1> to vector<8x1xi1>
    %293 = vector.broadcast %292 : vector<8x1xi1> to vector<8x32xi1>
    %294 = vector.broadcast %cst_56 : f32 to vector<8x32xf32>
    %295 = arith.select %293, %291, %294 : vector<8x32xi1>, vector<8x32xf32>
    %296 = vector.shape_cast %295 : vector<8x32xf32> to vector<1x8x32xf32>
    %297 = arith.index_cast %c2_i32 : i32 to index
    %c0_57 = arith.constant 0 : index
    %c0_58 = arith.constant 0 : index
    %298 = vector.load %arg3[%297, %c0_57, %c0_58] : memref<8x8x32xf32, #tpu.memory_space<vmem>>, vector<1x8x32xf32>
    tpu.vector_store %arg3[%297, %c0_57, %c0_58], %296 {strides = array<i32>} : memref<8x8x32xf32, #tpu.memory_space<vmem>>, vector<1x8x32xf32>,
    %299 = vector.shape_cast %261 : vector<8x1xi1> to vector<8x1xi1>
    %300 = vector.broadcast %299 : vector<8x1xi1> to vector<8x32xi1>
    %301 = arith.select %300, %291, %177 : vector<8x32xi1>, vector<8x32xf32>
    %302 = vector.shape_cast %261 : vector<8x1xi1> to vector<8x1xi1>
    %303 = vector.broadcast %302 : vector<8x1xi1> to vector<8x32xi1>
    %304 = arith.select %303, %289, %180 : vector<8x32xi1>, vector<8x32xf32>
    %305 = vector.extract_strided_slice %258 {offsets = [0, 128], sizes = [8, 128], strides = [1, 1]} : vector<8x384xf32> to vector<8x128xf32>
    %cst_59 = arith.constant dense<0.000000e+00> : vector<8x128xf32>
    %306 = tpu.matmul %211, %4, %cst_59 {dimension_numbers = #tpu.dot_dimension_numbers<[1], [0], [0], [1], [0, 0, 1, 1], [], []>} : vector<8x32xf32>, vector<32x128xf32>, vector<8x128xf32> -> vector<8x128xf32>
    %307 = arith.addf %305, %306 : vector<8x128xf32>
    %308 = vector.extract_strided_slice %307 {offsets = [0, 0], sizes = [8, 32], strides = [1, 1]} : vector<8x128xf32> to vector<8x32xf32>
    %309 = arith.negf %308 : vector<8x32xf32>
    %310 = math.exp %309 : vector<8x32xf32>
    %cst_60 = arith.constant 1.000000e+00 : f32
    %311 = vector.broadcast %cst_60 : f32 to vector<8x32xf32>
    %312 = arith.addf %311, %310 : vector<8x32xf32>
    %313 = arith.divf %311, %312 : vector<8x32xf32>
    %314 = vector.extract_strided_slice %307 {offsets = [0, 32], sizes = [8, 32], strides = [1, 1]} : vector<8x128xf32> to vector<8x32xf32>
    %315 = arith.negf %314 : vector<8x32xf32>
    %316 = math.exp %315 : vector<8x32xf32>
    %cst_61 = arith.constant 1.000000e+00 : f32
    %317 = vector.broadcast %cst_61 : f32 to vector<8x32xf32>
    %318 = arith.addf %317, %316 : vector<8x32xf32>
    %319 = arith.divf %317, %318 : vector<8x32xf32>
    %320 = vector.extract_strided_slice %307 {offsets = [0, 64], sizes = [8, 32], strides = [1, 1]} : vector<8x128xf32> to vector<8x32xf32>
    %321 = math.tanh %320 : vector<8x32xf32>
    %322 = vector.extract_strided_slice %307 {offsets = [0, 96], sizes = [8, 32], strides = [1, 1]} : vector<8x128xf32> to vector<8x32xf32>
    %323 = arith.negf %322 : vector<8x32xf32>
    %324 = math.exp %323 : vector<8x32xf32>
    %cst_62 = arith.constant 1.000000e+00 : f32
    %325 = vector.broadcast %cst_62 : f32 to vector<8x32xf32>
    %326 = arith.addf %325, %324 : vector<8x32xf32>
    %327 = arith.divf %325, %326 : vector<8x32xf32>
    %328 = arith.mulf %319, %214 : vector<8x32xf32>
    %329 = arith.mulf %313, %321 : vector<8x32xf32>
    %330 = arith.addf %328, %329 : vector<8x32xf32>
    %331 = math.tanh %330 : vector<8x32xf32>
    %332 = arith.mulf %327, %331 : vector<8x32xf32>
    %333 = vector.shape_cast %261 : vector<8x1xi1> to vector<8x1xi1>
    %334 = vector.broadcast %333 : vector<8x1xi1> to vector<8x32xi1>
    %335 = arith.select %334, %332, %211 : vector<8x32xi1>, vector<8x32xf32>
    %336 = vector.shape_cast %261 : vector<8x1xi1> to vector<8x1xi1>
    %337 = vector.broadcast %336 : vector<8x1xi1> to vector<8x32xi1>
    %338 = arith.select %337, %330, %214 : vector<8x32xi1>, vector<8x32xf32>
    %339 = vector.extract_strided_slice %258 {offsets = [0, 256], sizes = [8, 128], strides = [1, 1]} : vector<8x384xf32> to vector<8x128xf32>
    %cst_63 = arith.constant dense<0.000000e+00> : vector<8x128xf32>
    %340 = tpu.matmul %252, %6, %cst_63 {dimension_numbers = #tpu.dot_dimension_numbers<[1], [0], [0], [1], [0, 0, 1, 1], [], []>} : vector<8x32xf32>, vector<32x128xf32>, vector<8x128xf32> -> vector<8x128xf32>
    %341 = arith.addf %339, %340 : vector<8x128xf32>
    %342 = vector.extract_strided_slice %341 {offsets = [0, 0], sizes = [8, 32], strides = [1, 1]} : vector<8x128xf32> to vector<8x32xf32>
    %343 = arith.negf %342 : vector<8x32xf32>
    %344 = math.exp %343 : vector<8x32xf32>
    %cst_64 = arith.constant 1.000000e+00 : f32
    %345 = vector.broadcast %cst_64 : f32 to vector<8x32xf32>
    %346 = arith.addf %345, %344 : vector<8x32xf32>
    %347 = arith.divf %345, %346 : vector<8x32xf32>
    %348 = vector.extract_strided_slice %341 {offsets = [0, 32], sizes = [8, 32], strides = [1, 1]} : vector<8x128xf32> to vector<8x32xf32>
    %349 = arith.negf %348 : vector<8x32xf32>
    %350 = math.exp %349 : vector<8x32xf32>
    %cst_65 = arith.constant 1.000000e+00 : f32
    %351 = vector.broadcast %cst_65 : f32 to vector<8x32xf32>
    %352 = arith.addf %351, %350 : vector<8x32xf32>
    %353 = arith.divf %351, %352 : vector<8x32xf32>
    %354 = vector.extract_strided_slice %341 {offsets = [0, 64], sizes = [8, 32], strides = [1, 1]} : vector<8x128xf32> to vector<8x32xf32>
    %355 = math.tanh %354 : vector<8x32xf32>
    %356 = vector.extract_strided_slice %341 {offsets = [0, 96], sizes = [8, 32], strides = [1, 1]} : vector<8x128xf32> to vector<8x32xf32>
    %357 = arith.negf %356 : vector<8x32xf32>
    %358 = math.exp %357 : vector<8x32xf32>
    %cst_66 = arith.constant 1.000000e+00 : f32
    %359 = vector.broadcast %cst_66 : f32 to vector<8x32xf32>
    %360 = arith.addf %359, %358 : vector<8x32xf32>
    %361 = arith.divf %359, %360 : vector<8x32xf32>
    %362 = arith.mulf %353, %255 : vector<8x32xf32>
    %363 = arith.mulf %347, %355 : vector<8x32xf32>
    %364 = arith.addf %362, %363 : vector<8x32xf32>
    %365 = math.tanh %364 : vector<8x32xf32>
    %366 = arith.mulf %361, %365 : vector<8x32xf32>
    %cst_67 = arith.constant 0.000000e+00 : f32
    %367 = vector.shape_cast %263 : vector<8x1xi1> to vector<8x1xi1>
    %368 = vector.broadcast %367 : vector<8x1xi1> to vector<8x32xi1>
    %369 = vector.broadcast %cst_67 : f32 to vector<8x32xf32>
    %370 = arith.select %368, %366, %369 : vector<8x32xi1>, vector<8x32xf32>
    %371 = vector.shape_cast %370 : vector<8x32xf32> to vector<1x8x32xf32>
    %372 = arith.index_cast %259 : i32 to index
    %c0_68 = arith.constant 0 : index
    %c0_69 = arith.constant 0 : index
    %373 = vector.load %arg4[%372, %c0_68, %c0_69] : memref<8x8x32xf32, #tpu.memory_space<vmem>>, vector<1x8x32xf32>
    tpu.vector_store %arg4[%372, %c0_68, %c0_69], %371 {strides = array<i32>} : memref<8x8x32xf32, #tpu.memory_space<vmem>>, vector<1x8x32xf32>,
    %374 = vector.shape_cast %263 : vector<8x1xi1> to vector<8x1xi1>
    %375 = vector.broadcast %374 : vector<8x1xi1> to vector<8x32xi1>
    %376 = arith.select %375, %366, %252 : vector<8x32xi1>, vector<8x32xf32>
    %377 = vector.shape_cast %263 : vector<8x1xi1> to vector<8x1xi1>
    %378 = vector.broadcast %377 : vector<8x1xi1> to vector<8x32xi1>
    %379 = arith.select %378, %364, %255 : vector<8x32xi1>, vector<8x32xf32>
    %c3_i32 = arith.constant 3 : i32
    %380 = arith.index_cast %c3_i32 : i32 to index
    %c0_70 = arith.constant 0 : index
    %c0_71 = arith.constant 0 : index
    %381 = vector.load %arg1[%380, %c0_70, %c0_71] : memref<8x8x384xf32, #tpu.memory_space<vmem>>, vector<1x8x384xf32>
    %382 = vector.shape_cast %381 : vector<1x8x384xf32> to vector<8x384xf32>
    %c7_i32_72 = arith.constant 7 : i32
    %383 = arith.subi %c7_i32_72, %c3_i32 : i32
    %384 = vector.broadcast %c3_i32 : i32 to vector<8x1xi32>
    %385 = arith.cmpi slt, %384, %0 : vector<8x1xi32>
    %386 = vector.broadcast %383 : i32 to vector<8x1xi32>
    %387 = arith.cmpi slt, %386, %0 : vector<8x1xi32>
    %388 = vector.extract_strided_slice %382 {offsets = [0, 0], sizes = [8, 128], strides = [1, 1]} : vector<8x384xf32> to vector<8x128xf32>
    %cst_73 = arith.constant dense<0.000000e+00> : vector<8x128xf32>
    %389 = tpu.matmul %301, %2, %cst_73 {dimension_numbers = #tpu.dot_dimension_numbers<[1], [0], [0], [1], [0, 0, 1, 1], [], []>} : vector<8x32xf32>, vector<32x128xf32>, vector<8x128xf32> -> vector<8x128xf32>
    %390 = arith.addf %388, %389 : vector<8x128xf32>
    %391 = vector.extract_strided_slice %390 {offsets = [0, 0], sizes = [8, 32], strides = [1, 1]} : vector<8x128xf32> to vector<8x32xf32>
    %392 = arith.negf %391 : vector<8x32xf32>
    %393 = math.exp %392 : vector<8x32xf32>
    %cst_74 = arith.constant 1.000000e+00 : f32
    %394 = vector.broadcast %cst_74 : f32 to vector<8x32xf32>
    %395 = arith.addf %394, %393 : vector<8x32xf32>
    %396 = arith.divf %394, %395 : vector<8x32xf32>
    %397 = vector.extract_strided_slice %390 {offsets = [0, 32], sizes = [8, 32], strides = [1, 1]} : vector<8x128xf32> to vector<8x32xf32>
    %398 = arith.negf %397 : vector<8x32xf32>
    %399 = math.exp %398 : vector<8x32xf32>
    %cst_75 = arith.constant 1.000000e+00 : f32
    %400 = vector.broadcast %cst_75 : f32 to vector<8x32xf32>
    %401 = arith.addf %400, %399 : vector<8x32xf32>
    %402 = arith.divf %400, %401 : vector<8x32xf32>
    %403 = vector.extract_strided_slice %390 {offsets = [0, 64], sizes = [8, 32], strides = [1, 1]} : vector<8x128xf32> to vector<8x32xf32>
    %404 = math.tanh %403 : vector<8x32xf32>
    %405 = vector.extract_strided_slice %390 {offsets = [0, 96], sizes = [8, 32], strides = [1, 1]} : vector<8x128xf32> to vector<8x32xf32>
    %406 = arith.negf %405 : vector<8x32xf32>
    %407 = math.exp %406 : vector<8x32xf32>
    %cst_76 = arith.constant 1.000000e+00 : f32
    %408 = vector.broadcast %cst_76 : f32 to vector<8x32xf32>
    %409 = arith.addf %408, %407 : vector<8x32xf32>
    %410 = arith.divf %408, %409 : vector<8x32xf32>
    %411 = arith.mulf %402, %304 : vector<8x32xf32>
    %412 = arith.mulf %396, %404 : vector<8x32xf32>
    %413 = arith.addf %411, %412 : vector<8x32xf32>
    %414 = math.tanh %413 : vector<8x32xf32>
    %415 = arith.mulf %410, %414 : vector<8x32xf32>
    %cst_77 = arith.constant 0.000000e+00 : f32
    %416 = vector.shape_cast %385 : vector<8x1xi1> to vector<8x1xi1>
    %417 = vector.broadcast %416 : vector<8x1xi1> to vector<8x32xi1>
    %418 = vector.broadcast %cst_77 : f32 to vector<8x32xf32>
    %419 = arith.select %417, %415, %418 : vector<8x32xi1>, vector<8x32xf32>
    %420 = vector.shape_cast %419 : vector<8x32xf32> to vector<1x8x32xf32>
    %421 = arith.index_cast %c3_i32 : i32 to index
    %c0_78 = arith.constant 0 : index
    %c0_79 = arith.constant 0 : index
    %422 = vector.load %arg3[%421, %c0_78, %c0_79] : memref<8x8x32xf32, #tpu.memory_space<vmem>>, vector<1x8x32xf32>
    tpu.vector_store %arg3[%421, %c0_78, %c0_79], %420 {strides = array<i32>} : memref<8x8x32xf32, #tpu.memory_space<vmem>>, vector<1x8x32xf32>,
    %423 = vector.shape_cast %385 : vector<8x1xi1> to vector<8x1xi1>
    %424 = vector.broadcast %423 : vector<8x1xi1> to vector<8x32xi1>
    %425 = arith.select %424, %415, %301 : vector<8x32xi1>, vector<8x32xf32>
    %426 = vector.shape_cast %385 : vector<8x1xi1> to vector<8x1xi1>
    %427 = vector.broadcast %426 : vector<8x1xi1> to vector<8x32xi1>
    %428 = arith.select %427, %413, %304 : vector<8x32xi1>, vector<8x32xf32>
    %429 = vector.extract_strided_slice %382 {offsets = [0, 128], sizes = [8, 128], strides = [1, 1]} : vector<8x384xf32> to vector<8x128xf32>
    %cst_80 = arith.constant dense<0.000000e+00> : vector<8x128xf32>
    %430 = tpu.matmul %335, %4, %cst_80 {dimension_numbers = #tpu.dot_dimension_numbers<[1], [0], [0], [1], [0, 0, 1, 1], [], []>} : vector<8x32xf32>, vector<32x128xf32>, vector<8x128xf32> -> vector<8x128xf32>
    %431 = arith.addf %429, %430 : vector<8x128xf32>
    %432 = vector.extract_strided_slice %431 {offsets = [0, 0], sizes = [8, 32], strides = [1, 1]} : vector<8x128xf32> to vector<8x32xf32>
    %433 = arith.negf %432 : vector<8x32xf32>
    %434 = math.exp %433 : vector<8x32xf32>
    %cst_81 = arith.constant 1.000000e+00 : f32
    %435 = vector.broadcast %cst_81 : f32 to vector<8x32xf32>
    %436 = arith.addf %435, %434 : vector<8x32xf32>
    %437 = arith.divf %435, %436 : vector<8x32xf32>
    %438 = vector.extract_strided_slice %431 {offsets = [0, 32], sizes = [8, 32], strides = [1, 1]} : vector<8x128xf32> to vector<8x32xf32>
    %439 = arith.negf %438 : vector<8x32xf32>
    %440 = math.exp %439 : vector<8x32xf32>
    %cst_82 = arith.constant 1.000000e+00 : f32
    %441 = vector.broadcast %cst_82 : f32 to vector<8x32xf32>
    %442 = arith.addf %441, %440 : vector<8x32xf32>
    %443 = arith.divf %441, %442 : vector<8x32xf32>
    %444 = vector.extract_strided_slice %431 {offsets = [0, 64], sizes = [8, 32], strides = [1, 1]} : vector<8x128xf32> to vector<8x32xf32>
    %445 = math.tanh %444 : vector<8x32xf32>
    %446 = vector.extract_strided_slice %431 {offsets = [0, 96], sizes = [8, 32], strides = [1, 1]} : vector<8x128xf32> to vector<8x32xf32>
    %447 = arith.negf %446 : vector<8x32xf32>
    %448 = math.exp %447 : vector<8x32xf32>
    %cst_83 = arith.constant 1.000000e+00 : f32
    %449 = vector.broadcast %cst_83 : f32 to vector<8x32xf32>
    %450 = arith.addf %449, %448 : vector<8x32xf32>
    %451 = arith.divf %449, %450 : vector<8x32xf32>
    %452 = arith.mulf %443, %338 : vector<8x32xf32>
    %453 = arith.mulf %437, %445 : vector<8x32xf32>
    %454 = arith.addf %452, %453 : vector<8x32xf32>
    %455 = math.tanh %454 : vector<8x32xf32>
    %456 = arith.mulf %451, %455 : vector<8x32xf32>
    %457 = vector.shape_cast %385 : vector<8x1xi1> to vector<8x1xi1>
    %458 = vector.broadcast %457 : vector<8x1xi1> to vector<8x32xi1>
    %459 = arith.select %458, %456, %335 : vector<8x32xi1>, vector<8x32xf32>
    %460 = vector.shape_cast %385 : vector<8x1xi1> to vector<8x1xi1>
    %461 = vector.broadcast %460 : vector<8x1xi1> to vector<8x32xi1>
    %462 = arith.select %461, %454, %338 : vector<8x32xi1>, vector<8x32xf32>
    %463 = vector.extract_strided_slice %382 {offsets = [0, 256], sizes = [8, 128], strides = [1, 1]} : vector<8x384xf32> to vector<8x128xf32>
    %cst_84 = arith.constant dense<0.000000e+00> : vector<8x128xf32>
    %464 = tpu.matmul %376, %6, %cst_84 {dimension_numbers = #tpu.dot_dimension_numbers<[1], [0], [0], [1], [0, 0, 1, 1], [], []>} : vector<8x32xf32>, vector<32x128xf32>, vector<8x128xf32> -> vector<8x128xf32>
    %465 = arith.addf %463, %464 : vector<8x128xf32>
    %466 = vector.extract_strided_slice %465 {offsets = [0, 0], sizes = [8, 32], strides = [1, 1]} : vector<8x128xf32> to vector<8x32xf32>
    %467 = arith.negf %466 : vector<8x32xf32>
    %468 = math.exp %467 : vector<8x32xf32>
    %cst_85 = arith.constant 1.000000e+00 : f32
    %469 = vector.broadcast %cst_85 : f32 to vector<8x32xf32>
    %470 = arith.addf %469, %468 : vector<8x32xf32>
    %471 = arith.divf %469, %470 : vector<8x32xf32>
    %472 = vector.extract_strided_slice %465 {offsets = [0, 32], sizes = [8, 32], strides = [1, 1]} : vector<8x128xf32> to vector<8x32xf32>
    %473 = arith.negf %472 : vector<8x32xf32>
    %474 = math.exp %473 : vector<8x32xf32>
    %cst_86 = arith.constant 1.000000e+00 : f32
    %475 = vector.broadcast %cst_86 : f32 to vector<8x32xf32>
    %476 = arith.addf %475, %474 : vector<8x32xf32>
    %477 = arith.divf %475, %476 : vector<8x32xf32>
    %478 = vector.extract_strided_slice %465 {offsets = [0, 64], sizes = [8, 32], strides = [1, 1]} : vector<8x128xf32> to vector<8x32xf32>
    %479 = math.tanh %478 : vector<8x32xf32>
    %480 = vector.extract_strided_slice %465 {offsets = [0, 96], sizes = [8, 32], strides = [1, 1]} : vector<8x128xf32> to vector<8x32xf32>
    %481 = arith.negf %480 : vector<8x32xf32>
    %482 = math.exp %481 : vector<8x32xf32>
    %cst_87 = arith.constant 1.000000e+00 : f32
    %483 = vector.broadcast %cst_87 : f32 to vector<8x32xf32>
    %484 = arith.addf %483, %482 : vector<8x32xf32>
    %485 = arith.divf %483, %484 : vector<8x32xf32>
    %486 = arith.mulf %477, %379 : vector<8x32xf32>
    %487 = arith.mulf %471, %479 : vector<8x32xf32>
    %488 = arith.addf %486, %487 : vector<8x32xf32>
    %489 = math.tanh %488 : vector<8x32xf32>
    %490 = arith.mulf %485, %489 : vector<8x32xf32>
    %cst_88 = arith.constant 0.000000e+00 : f32
    %491 = vector.shape_cast %387 : vector<8x1xi1> to vector<8x1xi1>
    %492 = vector.broadcast %491 : vector<8x1xi1> to vector<8x32xi1>
    %493 = vector.broadcast %cst_88 : f32 to vector<8x32xf32>
    %494 = arith.select %492, %490, %493 : vector<8x32xi1>, vector<8x32xf32>
    %495 = vector.shape_cast %494 : vector<8x32xf32> to vector<1x8x32xf32>
    %496 = arith.index_cast %383 : i32 to index
    %c0_89 = arith.constant 0 : index
    %c0_90 = arith.constant 0 : index
    %497 = vector.load %arg4[%496, %c0_89, %c0_90] : memref<8x8x32xf32, #tpu.memory_space<vmem>>, vector<1x8x32xf32>
    tpu.vector_store %arg4[%496, %c0_89, %c0_90], %495 {strides = array<i32>} : memref<8x8x32xf32, #tpu.memory_space<vmem>>, vector<1x8x32xf32>,
    %498 = vector.shape_cast %387 : vector<8x1xi1> to vector<8x1xi1>
    %499 = vector.broadcast %498 : vector<8x1xi1> to vector<8x32xi1>
    %500 = arith.select %499, %490, %376 : vector<8x32xi1>, vector<8x32xf32>
    %501 = vector.shape_cast %387 : vector<8x1xi1> to vector<8x1xi1>
    %502 = vector.broadcast %501 : vector<8x1xi1> to vector<8x32xi1>
    %503 = arith.select %502, %488, %379 : vector<8x32xi1>, vector<8x32xf32>
    %c4_i32 = arith.constant 4 : i32
    %504 = arith.index_cast %c4_i32 : i32 to index
    %c0_91 = arith.constant 0 : index
    %c0_92 = arith.constant 0 : index
    %505 = vector.load %arg1[%504, %c0_91, %c0_92] : memref<8x8x384xf32, #tpu.memory_space<vmem>>, vector<1x8x384xf32>
    %506 = vector.shape_cast %505 : vector<1x8x384xf32> to vector<8x384xf32>
    %c7_i32_93 = arith.constant 7 : i32
    %507 = arith.subi %c7_i32_93, %c4_i32 : i32
    %508 = vector.broadcast %c4_i32 : i32 to vector<8x1xi32>
    %509 = arith.cmpi slt, %508, %0 : vector<8x1xi32>
    %510 = vector.broadcast %507 : i32 to vector<8x1xi32>
    %511 = arith.cmpi slt, %510, %0 : vector<8x1xi32>
    %512 = vector.extract_strided_slice %506 {offsets = [0, 0], sizes = [8, 128], strides = [1, 1]} : vector<8x384xf32> to vector<8x128xf32>
    %cst_94 = arith.constant dense<0.000000e+00> : vector<8x128xf32>
    %513 = tpu.matmul %425, %2, %cst_94 {dimension_numbers = #tpu.dot_dimension_numbers<[1], [0], [0], [1], [0, 0, 1, 1], [], []>} : vector<8x32xf32>, vector<32x128xf32>, vector<8x128xf32> -> vector<8x128xf32>
    %514 = arith.addf %512, %513 : vector<8x128xf32>
    %515 = vector.extract_strided_slice %514 {offsets = [0, 0], sizes = [8, 32], strides = [1, 1]} : vector<8x128xf32> to vector<8x32xf32>
    %516 = arith.negf %515 : vector<8x32xf32>
    %517 = math.exp %516 : vector<8x32xf32>
    %cst_95 = arith.constant 1.000000e+00 : f32
    %518 = vector.broadcast %cst_95 : f32 to vector<8x32xf32>
    %519 = arith.addf %518, %517 : vector<8x32xf32>
    %520 = arith.divf %518, %519 : vector<8x32xf32>
    %521 = vector.extract_strided_slice %514 {offsets = [0, 32], sizes = [8, 32], strides = [1, 1]} : vector<8x128xf32> to vector<8x32xf32>
    %522 = arith.negf %521 : vector<8x32xf32>
    %523 = math.exp %522 : vector<8x32xf32>
    %cst_96 = arith.constant 1.000000e+00 : f32
    %524 = vector.broadcast %cst_96 : f32 to vector<8x32xf32>
    %525 = arith.addf %524, %523 : vector<8x32xf32>
    %526 = arith.divf %524, %525 : vector<8x32xf32>
    %527 = vector.extract_strided_slice %514 {offsets = [0, 64], sizes = [8, 32], strides = [1, 1]} : vector<8x128xf32> to vector<8x32xf32>
    %528 = math.tanh %527 : vector<8x32xf32>
    %529 = vector.extract_strided_slice %514 {offsets = [0, 96], sizes = [8, 32], strides = [1, 1]} : vector<8x128xf32> to vector<8x32xf32>
    %530 = arith.negf %529 : vector<8x32xf32>
    %531 = math.exp %530 : vector<8x32xf32>
    %cst_97 = arith.constant 1.000000e+00 : f32
    %532 = vector.broadcast %cst_97 : f32 to vector<8x32xf32>
    %533 = arith.addf %532, %531 : vector<8x32xf32>
    %534 = arith.divf %532, %533 : vector<8x32xf32>
    %535 = arith.mulf %526, %428 : vector<8x32xf32>
    %536 = arith.mulf %520, %528 : vector<8x32xf32>
    %537 = arith.addf %535, %536 : vector<8x32xf32>
    %538 = math.tanh %537 : vector<8x32xf32>
    %539 = arith.mulf %534, %538 : vector<8x32xf32>
    %cst_98 = arith.constant 0.000000e+00 : f32
    %540 = vector.shape_cast %509 : vector<8x1xi1> to vector<8x1xi1>
    %541 = vector.broadcast %540 : vector<8x1xi1> to vector<8x32xi1>
    %542 = vector.broadcast %cst_98 : f32 to vector<8x32xf32>
    %543 = arith.select %541, %539, %542 : vector<8x32xi1>, vector<8x32xf32>
    %544 = vector.shape_cast %543 : vector<8x32xf32> to vector<1x8x32xf32>
    %545 = arith.index_cast %c4_i32 : i32 to index
    %c0_99 = arith.constant 0 : index
    %c0_100 = arith.constant 0 : index
    %546 = vector.load %arg3[%545, %c0_99, %c0_100] : memref<8x8x32xf32, #tpu.memory_space<vmem>>, vector<1x8x32xf32>
    tpu.vector_store %arg3[%545, %c0_99, %c0_100], %544 {strides = array<i32>} : memref<8x8x32xf32, #tpu.memory_space<vmem>>, vector<1x8x32xf32>,
    %547 = vector.shape_cast %509 : vector<8x1xi1> to vector<8x1xi1>
    %548 = vector.broadcast %547 : vector<8x1xi1> to vector<8x32xi1>
    %549 = arith.select %548, %539, %425 : vector<8x32xi1>, vector<8x32xf32>
    %550 = vector.shape_cast %509 : vector<8x1xi1> to vector<8x1xi1>
    %551 = vector.broadcast %550 : vector<8x1xi1> to vector<8x32xi1>
    %552 = arith.select %551, %537, %428 : vector<8x32xi1>, vector<8x32xf32>
    %553 = vector.extract_strided_slice %506 {offsets = [0, 128], sizes = [8, 128], strides = [1, 1]} : vector<8x384xf32> to vector<8x128xf32>
    %cst_101 = arith.constant dense<0.000000e+00> : vector<8x128xf32>
    %554 = tpu.matmul %459, %4, %cst_101 {dimension_numbers = #tpu.dot_dimension_numbers<[1], [0], [0], [1], [0, 0, 1, 1], [], []>} : vector<8x32xf32>, vector<32x128xf32>, vector<8x128xf32> -> vector<8x128xf32>
    %555 = arith.addf %553, %554 : vector<8x128xf32>
    %556 = vector.extract_strided_slice %555 {offsets = [0, 0], sizes = [8, 32], strides = [1, 1]} : vector<8x128xf32> to vector<8x32xf32>
    %557 = arith.negf %556 : vector<8x32xf32>
    %558 = math.exp %557 : vector<8x32xf32>
    %cst_102 = arith.constant 1.000000e+00 : f32
    %559 = vector.broadcast %cst_102 : f32 to vector<8x32xf32>
    %560 = arith.addf %559, %558 : vector<8x32xf32>
    %561 = arith.divf %559, %560 : vector<8x32xf32>
    %562 = vector.extract_strided_slice %555 {offsets = [0, 32], sizes = [8, 32], strides = [1, 1]} : vector<8x128xf32> to vector<8x32xf32>
    %563 = arith.negf %562 : vector<8x32xf32>
    %564 = math.exp %563 : vector<8x32xf32>
    %cst_103 = arith.constant 1.000000e+00 : f32
    %565 = vector.broadcast %cst_103 : f32 to vector<8x32xf32>
    %566 = arith.addf %565, %564 : vector<8x32xf32>
    %567 = arith.divf %565, %566 : vector<8x32xf32>
    %568 = vector.extract_strided_slice %555 {offsets = [0, 64], sizes = [8, 32], strides = [1, 1]} : vector<8x128xf32> to vector<8x32xf32>
    %569 = math.tanh %568 : vector<8x32xf32>
    %570 = vector.extract_strided_slice %555 {offsets = [0, 96], sizes = [8, 32], strides = [1, 1]} : vector<8x128xf32> to vector<8x32xf32>
    %571 = arith.negf %570 : vector<8x32xf32>
    %572 = math.exp %571 : vector<8x32xf32>
    %cst_104 = arith.constant 1.000000e+00 : f32
    %573 = vector.broadcast %cst_104 : f32 to vector<8x32xf32>
    %574 = arith.addf %573, %572 : vector<8x32xf32>
    %575 = arith.divf %573, %574 : vector<8x32xf32>
    %576 = arith.mulf %567, %462 : vector<8x32xf32>
    %577 = arith.mulf %561, %569 : vector<8x32xf32>
    %578 = arith.addf %576, %577 : vector<8x32xf32>
    %579 = math.tanh %578 : vector<8x32xf32>
    %580 = arith.mulf %575, %579 : vector<8x32xf32>
    %581 = vector.shape_cast %509 : vector<8x1xi1> to vector<8x1xi1>
    %582 = vector.broadcast %581 : vector<8x1xi1> to vector<8x32xi1>
    %583 = arith.select %582, %580, %459 : vector<8x32xi1>, vector<8x32xf32>
    %584 = vector.shape_cast %509 : vector<8x1xi1> to vector<8x1xi1>
    %585 = vector.broadcast %584 : vector<8x1xi1> to vector<8x32xi1>
    %586 = arith.select %585, %578, %462 : vector<8x32xi1>, vector<8x32xf32>
    %587 = vector.extract_strided_slice %506 {offsets = [0, 256], sizes = [8, 128], strides = [1, 1]} : vector<8x384xf32> to vector<8x128xf32>
    %cst_105 = arith.constant dense<0.000000e+00> : vector<8x128xf32>
    %588 = tpu.matmul %500, %6, %cst_105 {dimension_numbers = #tpu.dot_dimension_numbers<[1], [0], [0], [1], [0, 0, 1, 1], [], []>} : vector<8x32xf32>, vector<32x128xf32>, vector<8x128xf32> -> vector<8x128xf32>
    %589 = arith.addf %587, %588 : vector<8x128xf32>
    %590 = vector.extract_strided_slice %589 {offsets = [0, 0], sizes = [8, 32], strides = [1, 1]} : vector<8x128xf32> to vector<8x32xf32>
    %591 = arith.negf %590 : vector<8x32xf32>
    %592 = math.exp %591 : vector<8x32xf32>
    %cst_106 = arith.constant 1.000000e+00 : f32
    %593 = vector.broadcast %cst_106 : f32 to vector<8x32xf32>
    %594 = arith.addf %593, %592 : vector<8x32xf32>
    %595 = arith.divf %593, %594 : vector<8x32xf32>
    %596 = vector.extract_strided_slice %589 {offsets = [0, 32], sizes = [8, 32], strides = [1, 1]} : vector<8x128xf32> to vector<8x32xf32>
    %597 = arith.negf %596 : vector<8x32xf32>
    %598 = math.exp %597 : vector<8x32xf32>
    %cst_107 = arith.constant 1.000000e+00 : f32
    %599 = vector.broadcast %cst_107 : f32 to vector<8x32xf32>
    %600 = arith.addf %599, %598 : vector<8x32xf32>
    %601 = arith.divf %599, %600 : vector<8x32xf32>
    %602 = vector.extract_strided_slice %589 {offsets = [0, 64], sizes = [8, 32], strides = [1, 1]} : vector<8x128xf32> to vector<8x32xf32>
    %603 = math.tanh %602 : vector<8x32xf32>
    %604 = vector.extract_strided_slice %589 {offsets = [0, 96], sizes = [8, 32], strides = [1, 1]} : vector<8x128xf32> to vector<8x32xf32>
    %605 = arith.negf %604 : vector<8x32xf32>
    %606 = math.exp %605 : vector<8x32xf32>
    %cst_108 = arith.constant 1.000000e+00 : f32
    %607 = vector.broadcast %cst_108 : f32 to vector<8x32xf32>
    %608 = arith.addf %607, %606 : vector<8x32xf32>
    %609 = arith.divf %607, %608 : vector<8x32xf32>
    %610 = arith.mulf %601, %503 : vector<8x32xf32>
    %611 = arith.mulf %595, %603 : vector<8x32xf32>
    %612 = arith.addf %610, %611 : vector<8x32xf32>
    %613 = math.tanh %612 : vector<8x32xf32>
    %614 = arith.mulf %609, %613 : vector<8x32xf32>
    %cst_109 = arith.constant 0.000000e+00 : f32
    %615 = vector.shape_cast %511 : vector<8x1xi1> to vector<8x1xi1>
    %616 = vector.broadcast %615 : vector<8x1xi1> to vector<8x32xi1>
    %617 = vector.broadcast %cst_109 : f32 to vector<8x32xf32>
    %618 = arith.select %616, %614, %617 : vector<8x32xi1>, vector<8x32xf32>
    %619 = vector.shape_cast %618 : vector<8x32xf32> to vector<1x8x32xf32>
    %620 = arith.index_cast %507 : i32 to index
    %c0_110 = arith.constant 0 : index
    %c0_111 = arith.constant 0 : index
    %621 = vector.load %arg4[%620, %c0_110, %c0_111] : memref<8x8x32xf32, #tpu.memory_space<vmem>>, vector<1x8x32xf32>
    tpu.vector_store %arg4[%620, %c0_110, %c0_111], %619 {strides = array<i32>} : memref<8x8x32xf32, #tpu.memory_space<vmem>>, vector<1x8x32xf32>,
    %622 = vector.shape_cast %511 : vector<8x1xi1> to vector<8x1xi1>
    %623 = vector.broadcast %622 : vector<8x1xi1> to vector<8x32xi1>
    %624 = arith.select %623, %614, %500 : vector<8x32xi1>, vector<8x32xf32>
    %625 = vector.shape_cast %511 : vector<8x1xi1> to vector<8x1xi1>
    %626 = vector.broadcast %625 : vector<8x1xi1> to vector<8x32xi1>
    %627 = arith.select %626, %612, %503 : vector<8x32xi1>, vector<8x32xf32>
    %c5_i32 = arith.constant 5 : i32
    %628 = arith.index_cast %c5_i32 : i32 to index
    %c0_112 = arith.constant 0 : index
    %c0_113 = arith.constant 0 : index
    %629 = vector.load %arg1[%628, %c0_112, %c0_113] : memref<8x8x384xf32, #tpu.memory_space<vmem>>, vector<1x8x384xf32>
    %630 = vector.shape_cast %629 : vector<1x8x384xf32> to vector<8x384xf32>
    %c7_i32_114 = arith.constant 7 : i32
    %631 = arith.subi %c7_i32_114, %c5_i32 : i32
    %632 = vector.broadcast %c5_i32 : i32 to vector<8x1xi32>
    %633 = arith.cmpi slt, %632, %0 : vector<8x1xi32>
    %634 = vector.broadcast %631 : i32 to vector<8x1xi32>
    %635 = arith.cmpi slt, %634, %0 : vector<8x1xi32>
    %636 = vector.extract_strided_slice %630 {offsets = [0, 0], sizes = [8, 128], strides = [1, 1]} : vector<8x384xf32> to vector<8x128xf32>
    %cst_115 = arith.constant dense<0.000000e+00> : vector<8x128xf32>
    %637 = tpu.matmul %549, %2, %cst_115 {dimension_numbers = #tpu.dot_dimension_numbers<[1], [0], [0], [1], [0, 0, 1, 1], [], []>} : vector<8x32xf32>, vector<32x128xf32>, vector<8x128xf32> -> vector<8x128xf32>
    %638 = arith.addf %636, %637 : vector<8x128xf32>
    %639 = vector.extract_strided_slice %638 {offsets = [0, 0], sizes = [8, 32], strides = [1, 1]} : vector<8x128xf32> to vector<8x32xf32>
    %640 = arith.negf %639 : vector<8x32xf32>
    %641 = math.exp %640 : vector<8x32xf32>
    %cst_116 = arith.constant 1.000000e+00 : f32
    %642 = vector.broadcast %cst_116 : f32 to vector<8x32xf32>
    %643 = arith.addf %642, %641 : vector<8x32xf32>
    %644 = arith.divf %642, %643 : vector<8x32xf32>
    %645 = vector.extract_strided_slice %638 {offsets = [0, 32], sizes = [8, 32], strides = [1, 1]} : vector<8x128xf32> to vector<8x32xf32>
    %646 = arith.negf %645 : vector<8x32xf32>
    %647 = math.exp %646 : vector<8x32xf32>
    %cst_117 = arith.constant 1.000000e+00 : f32
    %648 = vector.broadcast %cst_117 : f32 to vector<8x32xf32>
    %649 = arith.addf %648, %647 : vector<8x32xf32>
    %650 = arith.divf %648, %649 : vector<8x32xf32>
    %651 = vector.extract_strided_slice %638 {offsets = [0, 64], sizes = [8, 32], strides = [1, 1]} : vector<8x128xf32> to vector<8x32xf32>
    %652 = math.tanh %651 : vector<8x32xf32>
    %653 = vector.extract_strided_slice %638 {offsets = [0, 96], sizes = [8, 32], strides = [1, 1]} : vector<8x128xf32> to vector<8x32xf32>
    %654 = arith.negf %653 : vector<8x32xf32>
    %655 = math.exp %654 : vector<8x32xf32>
    %cst_118 = arith.constant 1.000000e+00 : f32
    %656 = vector.broadcast %cst_118 : f32 to vector<8x32xf32>
    %657 = arith.addf %656, %655 : vector<8x32xf32>
    %658 = arith.divf %656, %657 : vector<8x32xf32>
    %659 = arith.mulf %650, %552 : vector<8x32xf32>
    %660 = arith.mulf %644, %652 : vector<8x32xf32>
    %661 = arith.addf %659, %660 : vector<8x32xf32>
    %662 = math.tanh %661 : vector<8x32xf32>
    %663 = arith.mulf %658, %662 : vector<8x32xf32>
    %cst_119 = arith.constant 0.000000e+00 : f32
    %664 = vector.shape_cast %633 : vector<8x1xi1> to vector<8x1xi1>
    %665 = vector.broadcast %664 : vector<8x1xi1> to vector<8x32xi1>
    %666 = vector.broadcast %cst_119 : f32 to vector<8x32xf32>
    %667 = arith.select %665, %663, %666 : vector<8x32xi1>, vector<8x32xf32>
    %668 = vector.shape_cast %667 : vector<8x32xf32> to vector<1x8x32xf32>
    %669 = arith.index_cast %c5_i32 : i32 to index
    %c0_120 = arith.constant 0 : index
    %c0_121 = arith.constant 0 : index
    %670 = vector.load %arg3[%669, %c0_120, %c0_121] : memref<8x8x32xf32, #tpu.memory_space<vmem>>, vector<1x8x32xf32>
    tpu.vector_store %arg3[%669, %c0_120, %c0_121], %668 {strides = array<i32>} : memref<8x8x32xf32, #tpu.memory_space<vmem>>, vector<1x8x32xf32>,
    %671 = vector.shape_cast %633 : vector<8x1xi1> to vector<8x1xi1>
    %672 = vector.broadcast %671 : vector<8x1xi1> to vector<8x32xi1>
    %673 = arith.select %672, %663, %549 : vector<8x32xi1>, vector<8x32xf32>
    %674 = vector.shape_cast %633 : vector<8x1xi1> to vector<8x1xi1>
    %675 = vector.broadcast %674 : vector<8x1xi1> to vector<8x32xi1>
    %676 = arith.select %675, %661, %552 : vector<8x32xi1>, vector<8x32xf32>
    %677 = vector.extract_strided_slice %630 {offsets = [0, 128], sizes = [8, 128], strides = [1, 1]} : vector<8x384xf32> to vector<8x128xf32>
    %cst_122 = arith.constant dense<0.000000e+00> : vector<8x128xf32>
    %678 = tpu.matmul %583, %4, %cst_122 {dimension_numbers = #tpu.dot_dimension_numbers<[1], [0], [0], [1], [0, 0, 1, 1], [], []>} : vector<8x32xf32>, vector<32x128xf32>, vector<8x128xf32> -> vector<8x128xf32>
    %679 = arith.addf %677, %678 : vector<8x128xf32>
    %680 = vector.extract_strided_slice %679 {offsets = [0, 0], sizes = [8, 32], strides = [1, 1]} : vector<8x128xf32> to vector<8x32xf32>
    %681 = arith.negf %680 : vector<8x32xf32>
    %682 = math.exp %681 : vector<8x32xf32>
    %cst_123 = arith.constant 1.000000e+00 : f32
    %683 = vector.broadcast %cst_123 : f32 to vector<8x32xf32>
    %684 = arith.addf %683, %682 : vector<8x32xf32>
    %685 = arith.divf %683, %684 : vector<8x32xf32>
    %686 = vector.extract_strided_slice %679 {offsets = [0, 32], sizes = [8, 32], strides = [1, 1]} : vector<8x128xf32> to vector<8x32xf32>
    %687 = arith.negf %686 : vector<8x32xf32>
    %688 = math.exp %687 : vector<8x32xf32>
    %cst_124 = arith.constant 1.000000e+00 : f32
    %689 = vector.broadcast %cst_124 : f32 to vector<8x32xf32>
    %690 = arith.addf %689, %688 : vector<8x32xf32>
    %691 = arith.divf %689, %690 : vector<8x32xf32>
    %692 = vector.extract_strided_slice %679 {offsets = [0, 64], sizes = [8, 32], strides = [1, 1]} : vector<8x128xf32> to vector<8x32xf32>
    %693 = math.tanh %692 : vector<8x32xf32>
    %694 = vector.extract_strided_slice %679 {offsets = [0, 96], sizes = [8, 32], strides = [1, 1]} : vector<8x128xf32> to vector<8x32xf32>
    %695 = arith.negf %694 : vector<8x32xf32>
    %696 = math.exp %695 : vector<8x32xf32>
    %cst_125 = arith.constant 1.000000e+00 : f32
    %697 = vector.broadcast %cst_125 : f32 to vector<8x32xf32>
    %698 = arith.addf %697, %696 : vector<8x32xf32>
    %699 = arith.divf %697, %698 : vector<8x32xf32>
    %700 = arith.mulf %691, %586 : vector<8x32xf32>
    %701 = arith.mulf %685, %693 : vector<8x32xf32>
    %702 = arith.addf %700, %701 : vector<8x32xf32>
    %703 = math.tanh %702 : vector<8x32xf32>
    %704 = arith.mulf %699, %703 : vector<8x32xf32>
    %705 = vector.shape_cast %633 : vector<8x1xi1> to vector<8x1xi1>
    %706 = vector.broadcast %705 : vector<8x1xi1> to vector<8x32xi1>
    %707 = arith.select %706, %704, %583 : vector<8x32xi1>, vector<8x32xf32>
    %708 = vector.shape_cast %633 : vector<8x1xi1> to vector<8x1xi1>
    %709 = vector.broadcast %708 : vector<8x1xi1> to vector<8x32xi1>
    %710 = arith.select %709, %702, %586 : vector<8x32xi1>, vector<8x32xf32>
    %711 = vector.extract_strided_slice %630 {offsets = [0, 256], sizes = [8, 128], strides = [1, 1]} : vector<8x384xf32> to vector<8x128xf32>
    %cst_126 = arith.constant dense<0.000000e+00> : vector<8x128xf32>
    %712 = tpu.matmul %624, %6, %cst_126 {dimension_numbers = #tpu.dot_dimension_numbers<[1], [0], [0], [1], [0, 0, 1, 1], [], []>} : vector<8x32xf32>, vector<32x128xf32>, vector<8x128xf32> -> vector<8x128xf32>
    %713 = arith.addf %711, %712 : vector<8x128xf32>
    %714 = vector.extract_strided_slice %713 {offsets = [0, 0], sizes = [8, 32], strides = [1, 1]} : vector<8x128xf32> to vector<8x32xf32>
    %715 = arith.negf %714 : vector<8x32xf32>
    %716 = math.exp %715 : vector<8x32xf32>
    %cst_127 = arith.constant 1.000000e+00 : f32
    %717 = vector.broadcast %cst_127 : f32 to vector<8x32xf32>
    %718 = arith.addf %717, %716 : vector<8x32xf32>
    %719 = arith.divf %717, %718 : vector<8x32xf32>
    %720 = vector.extract_strided_slice %713 {offsets = [0, 32], sizes = [8, 32], strides = [1, 1]} : vector<8x128xf32> to vector<8x32xf32>
    %721 = arith.negf %720 : vector<8x32xf32>
    %722 = math.exp %721 : vector<8x32xf32>
    %cst_128 = arith.constant 1.000000e+00 : f32
    %723 = vector.broadcast %cst_128 : f32 to vector<8x32xf32>
    %724 = arith.addf %723, %722 : vector<8x32xf32>
    %725 = arith.divf %723, %724 : vector<8x32xf32>
    %726 = vector.extract_strided_slice %713 {offsets = [0, 64], sizes = [8, 32], strides = [1, 1]} : vector<8x128xf32> to vector<8x32xf32>
    %727 = math.tanh %726 : vector<8x32xf32>
    %728 = vector.extract_strided_slice %713 {offsets = [0, 96], sizes = [8, 32], strides = [1, 1]} : vector<8x128xf32> to vector<8x32xf32>
    %729 = arith.negf %728 : vector<8x32xf32>
    %730 = math.exp %729 : vector<8x32xf32>
    %cst_129 = arith.constant 1.000000e+00 : f32
    %731 = vector.broadcast %cst_129 : f32 to vector<8x32xf32>
    %732 = arith.addf %731, %730 : vector<8x32xf32>
    %733 = arith.divf %731, %732 : vector<8x32xf32>
    %734 = arith.mulf %725, %627 : vector<8x32xf32>
    %735 = arith.mulf %719, %727 : vector<8x32xf32>
    %736 = arith.addf %734, %735 : vector<8x32xf32>
    %737 = math.tanh %736 : vector<8x32xf32>
    %738 = arith.mulf %733, %737 : vector<8x32xf32>
    %cst_130 = arith.constant 0.000000e+00 : f32
    %739 = vector.shape_cast %635 : vector<8x1xi1> to vector<8x1xi1>
    %740 = vector.broadcast %739 : vector<8x1xi1> to vector<8x32xi1>
    %741 = vector.broadcast %cst_130 : f32 to vector<8x32xf32>
    %742 = arith.select %740, %738, %741 : vector<8x32xi1>, vector<8x32xf32>
    %743 = vector.shape_cast %742 : vector<8x32xf32> to vector<1x8x32xf32>
    %744 = arith.index_cast %631 : i32 to index
    %c0_131 = arith.constant 0 : index
    %c0_132 = arith.constant 0 : index
    %745 = vector.load %arg4[%744, %c0_131, %c0_132] : memref<8x8x32xf32, #tpu.memory_space<vmem>>, vector<1x8x32xf32>
    tpu.vector_store %arg4[%744, %c0_131, %c0_132], %743 {strides = array<i32>} : memref<8x8x32xf32, #tpu.memory_space<vmem>>, vector<1x8x32xf32>,
    %746 = vector.shape_cast %635 : vector<8x1xi1> to vector<8x1xi1>
    %747 = vector.broadcast %746 : vector<8x1xi1> to vector<8x32xi1>
    %748 = arith.select %747, %738, %624 : vector<8x32xi1>, vector<8x32xf32>
    %749 = vector.shape_cast %635 : vector<8x1xi1> to vector<8x1xi1>
    %750 = vector.broadcast %749 : vector<8x1xi1> to vector<8x32xi1>
    %751 = arith.select %750, %736, %627 : vector<8x32xi1>, vector<8x32xf32>
    %c6_i32 = arith.constant 6 : i32
    %752 = arith.index_cast %c6_i32 : i32 to index
    %c0_133 = arith.constant 0 : index
    %c0_134 = arith.constant 0 : index
    %753 = vector.load %arg1[%752, %c0_133, %c0_134] : memref<8x8x384xf32, #tpu.memory_space<vmem>>, vector<1x8x384xf32>
    %754 = vector.shape_cast %753 : vector<1x8x384xf32> to vector<8x384xf32>
    %c7_i32_135 = arith.constant 7 : i32
    %755 = arith.subi %c7_i32_135, %c6_i32 : i32
    %756 = vector.broadcast %c6_i32 : i32 to vector<8x1xi32>
    %757 = arith.cmpi slt, %756, %0 : vector<8x1xi32>
    %758 = vector.broadcast %755 : i32 to vector<8x1xi32>
    %759 = arith.cmpi slt, %758, %0 : vector<8x1xi32>
    %760 = vector.extract_strided_slice %754 {offsets = [0, 0], sizes = [8, 128], strides = [1, 1]} : vector<8x384xf32> to vector<8x128xf32>
    %cst_136 = arith.constant dense<0.000000e+00> : vector<8x128xf32>
    %761 = tpu.matmul %673, %2, %cst_136 {dimension_numbers = #tpu.dot_dimension_numbers<[1], [0], [0], [1], [0, 0, 1, 1], [], []>} : vector<8x32xf32>, vector<32x128xf32>, vector<8x128xf32> -> vector<8x128xf32>
    %762 = arith.addf %760, %761 : vector<8x128xf32>
    %763 = vector.extract_strided_slice %762 {offsets = [0, 0], sizes = [8, 32], strides = [1, 1]} : vector<8x128xf32> to vector<8x32xf32>
    %764 = arith.negf %763 : vector<8x32xf32>
    %765 = math.exp %764 : vector<8x32xf32>
    %cst_137 = arith.constant 1.000000e+00 : f32
    %766 = vector.broadcast %cst_137 : f32 to vector<8x32xf32>
    %767 = arith.addf %766, %765 : vector<8x32xf32>
    %768 = arith.divf %766, %767 : vector<8x32xf32>
    %769 = vector.extract_strided_slice %762 {offsets = [0, 32], sizes = [8, 32], strides = [1, 1]} : vector<8x128xf32> to vector<8x32xf32>
    %770 = arith.negf %769 : vector<8x32xf32>
    %771 = math.exp %770 : vector<8x32xf32>
    %cst_138 = arith.constant 1.000000e+00 : f32
    %772 = vector.broadcast %cst_138 : f32 to vector<8x32xf32>
    %773 = arith.addf %772, %771 : vector<8x32xf32>
    %774 = arith.divf %772, %773 : vector<8x32xf32>
    %775 = vector.extract_strided_slice %762 {offsets = [0, 64], sizes = [8, 32], strides = [1, 1]} : vector<8x128xf32> to vector<8x32xf32>
    %776 = math.tanh %775 : vector<8x32xf32>
    %777 = vector.extract_strided_slice %762 {offsets = [0, 96], sizes = [8, 32], strides = [1, 1]} : vector<8x128xf32> to vector<8x32xf32>
    %778 = arith.negf %777 : vector<8x32xf32>
    %779 = math.exp %778 : vector<8x32xf32>
    %cst_139 = arith.constant 1.000000e+00 : f32
    %780 = vector.broadcast %cst_139 : f32 to vector<8x32xf32>
    %781 = arith.addf %780, %779 : vector<8x32xf32>
    %782 = arith.divf %780, %781 : vector<8x32xf32>
    %783 = arith.mulf %774, %676 : vector<8x32xf32>
    %784 = arith.mulf %768, %776 : vector<8x32xf32>
    %785 = arith.addf %783, %784 : vector<8x32xf32>
    %786 = math.tanh %785 : vector<8x32xf32>
    %787 = arith.mulf %782, %786 : vector<8x32xf32>
    %cst_140 = arith.constant 0.000000e+00 : f32
    %788 = vector.shape_cast %757 : vector<8x1xi1> to vector<8x1xi1>
    %789 = vector.broadcast %788 : vector<8x1xi1> to vector<8x32xi1>
    %790 = vector.broadcast %cst_140 : f32 to vector<8x32xf32>
    %791 = arith.select %789, %787, %790 : vector<8x32xi1>, vector<8x32xf32>
    %792 = vector.shape_cast %791 : vector<8x32xf32> to vector<1x8x32xf32>
    %793 = arith.index_cast %c6_i32 : i32 to index
    %c0_141 = arith.constant 0 : index
    %c0_142 = arith.constant 0 : index
    %794 = vector.load %arg3[%793, %c0_141, %c0_142] : memref<8x8x32xf32, #tpu.memory_space<vmem>>, vector<1x8x32xf32>
    tpu.vector_store %arg3[%793, %c0_141, %c0_142], %792 {strides = array<i32>} : memref<8x8x32xf32, #tpu.memory_space<vmem>>, vector<1x8x32xf32>,
    %795 = vector.shape_cast %757 : vector<8x1xi1> to vector<8x1xi1>
    %796 = vector.broadcast %795 : vector<8x1xi1> to vector<8x32xi1>
    %797 = arith.select %796, %787, %673 : vector<8x32xi1>, vector<8x32xf32>
    %798 = vector.shape_cast %757 : vector<8x1xi1> to vector<8x1xi1>
    %799 = vector.broadcast %798 : vector<8x1xi1> to vector<8x32xi1>
    %800 = arith.select %799, %785, %676 : vector<8x32xi1>, vector<8x32xf32>
    %801 = vector.extract_strided_slice %754 {offsets = [0, 128], sizes = [8, 128], strides = [1, 1]} : vector<8x384xf32> to vector<8x128xf32>
    %cst_143 = arith.constant dense<0.000000e+00> : vector<8x128xf32>
    %802 = tpu.matmul %707, %4, %cst_143 {dimension_numbers = #tpu.dot_dimension_numbers<[1], [0], [0], [1], [0, 0, 1, 1], [], []>} : vector<8x32xf32>, vector<32x128xf32>, vector<8x128xf32> -> vector<8x128xf32>
    %803 = arith.addf %801, %802 : vector<8x128xf32>
    %804 = vector.extract_strided_slice %803 {offsets = [0, 0], sizes = [8, 32], strides = [1, 1]} : vector<8x128xf32> to vector<8x32xf32>
    %805 = arith.negf %804 : vector<8x32xf32>
    %806 = math.exp %805 : vector<8x32xf32>
    %cst_144 = arith.constant 1.000000e+00 : f32
    %807 = vector.broadcast %cst_144 : f32 to vector<8x32xf32>
    %808 = arith.addf %807, %806 : vector<8x32xf32>
    %809 = arith.divf %807, %808 : vector<8x32xf32>
    %810 = vector.extract_strided_slice %803 {offsets = [0, 32], sizes = [8, 32], strides = [1, 1]} : vector<8x128xf32> to vector<8x32xf32>
    %811 = arith.negf %810 : vector<8x32xf32>
    %812 = math.exp %811 : vector<8x32xf32>
    %cst_145 = arith.constant 1.000000e+00 : f32
    %813 = vector.broadcast %cst_145 : f32 to vector<8x32xf32>
    %814 = arith.addf %813, %812 : vector<8x32xf32>
    %815 = arith.divf %813, %814 : vector<8x32xf32>
    %816 = vector.extract_strided_slice %803 {offsets = [0, 64], sizes = [8, 32], strides = [1, 1]} : vector<8x128xf32> to vector<8x32xf32>
    %817 = math.tanh %816 : vector<8x32xf32>
    %818 = vector.extract_strided_slice %803 {offsets = [0, 96], sizes = [8, 32], strides = [1, 1]} : vector<8x128xf32> to vector<8x32xf32>
    %819 = arith.negf %818 : vector<8x32xf32>
    %820 = math.exp %819 : vector<8x32xf32>
    %cst_146 = arith.constant 1.000000e+00 : f32
    %821 = vector.broadcast %cst_146 : f32 to vector<8x32xf32>
    %822 = arith.addf %821, %820 : vector<8x32xf32>
    %823 = arith.divf %821, %822 : vector<8x32xf32>
    %824 = arith.mulf %815, %710 : vector<8x32xf32>
    %825 = arith.mulf %809, %817 : vector<8x32xf32>
    %826 = arith.addf %824, %825 : vector<8x32xf32>
    %827 = math.tanh %826 : vector<8x32xf32>
    %828 = arith.mulf %823, %827 : vector<8x32xf32>
    %829 = vector.shape_cast %757 : vector<8x1xi1> to vector<8x1xi1>
    %830 = vector.broadcast %829 : vector<8x1xi1> to vector<8x32xi1>
    %831 = arith.select %830, %828, %707 : vector<8x32xi1>, vector<8x32xf32>
    %832 = vector.shape_cast %757 : vector<8x1xi1> to vector<8x1xi1>
    %833 = vector.broadcast %832 : vector<8x1xi1> to vector<8x32xi1>
    %834 = arith.select %833, %826, %710 : vector<8x32xi1>, vector<8x32xf32>
    %835 = vector.extract_strided_slice %754 {offsets = [0, 256], sizes = [8, 128], strides = [1, 1]} : vector<8x384xf32> to vector<8x128xf32>
    %cst_147 = arith.constant dense<0.000000e+00> : vector<8x128xf32>
    %836 = tpu.matmul %748, %6, %cst_147 {dimension_numbers = #tpu.dot_dimension_numbers<[1], [0], [0], [1], [0, 0, 1, 1], [], []>} : vector<8x32xf32>, vector<32x128xf32>, vector<8x128xf32> -> vector<8x128xf32>
    %837 = arith.addf %835, %836 : vector<8x128xf32>
    %838 = vector.extract_strided_slice %837 {offsets = [0, 0], sizes = [8, 32], strides = [1, 1]} : vector<8x128xf32> to vector<8x32xf32>
    %839 = arith.negf %838 : vector<8x32xf32>
    %840 = math.exp %839 : vector<8x32xf32>
    %cst_148 = arith.constant 1.000000e+00 : f32
    %841 = vector.broadcast %cst_148 : f32 to vector<8x32xf32>
    %842 = arith.addf %841, %840 : vector<8x32xf32>
    %843 = arith.divf %841, %842 : vector<8x32xf32>
    %844 = vector.extract_strided_slice %837 {offsets = [0, 32], sizes = [8, 32], strides = [1, 1]} : vector<8x128xf32> to vector<8x32xf32>
    %845 = arith.negf %844 : vector<8x32xf32>
    %846 = math.exp %845 : vector<8x32xf32>
    %cst_149 = arith.constant 1.000000e+00 : f32
    %847 = vector.broadcast %cst_149 : f32 to vector<8x32xf32>
    %848 = arith.addf %847, %846 : vector<8x32xf32>
    %849 = arith.divf %847, %848 : vector<8x32xf32>
    %850 = vector.extract_strided_slice %837 {offsets = [0, 64], sizes = [8, 32], strides = [1, 1]} : vector<8x128xf32> to vector<8x32xf32>
    %851 = math.tanh %850 : vector<8x32xf32>
    %852 = vector.extract_strided_slice %837 {offsets = [0, 96], sizes = [8, 32], strides = [1, 1]} : vector<8x128xf32> to vector<8x32xf32>
    %853 = arith.negf %852 : vector<8x32xf32>
    %854 = math.exp %853 : vector<8x32xf32>
    %cst_150 = arith.constant 1.000000e+00 : f32
    %855 = vector.broadcast %cst_150 : f32 to vector<8x32xf32>
    %856 = arith.addf %855, %854 : vector<8x32xf32>
    %857 = arith.divf %855, %856 : vector<8x32xf32>
    %858 = arith.mulf %849, %751 : vector<8x32xf32>
    %859 = arith.mulf %843, %851 : vector<8x32xf32>
    %860 = arith.addf %858, %859 : vector<8x32xf32>
    %861 = math.tanh %860 : vector<8x32xf32>
    %862 = arith.mulf %857, %861 : vector<8x32xf32>
    %cst_151 = arith.constant 0.000000e+00 : f32
    %863 = vector.shape_cast %759 : vector<8x1xi1> to vector<8x1xi1>
    %864 = vector.broadcast %863 : vector<8x1xi1> to vector<8x32xi1>
    %865 = vector.broadcast %cst_151 : f32 to vector<8x32xf32>
    %866 = arith.select %864, %862, %865 : vector<8x32xi1>, vector<8x32xf32>
    %867 = vector.shape_cast %866 : vector<8x32xf32> to vector<1x8x32xf32>
    %868 = arith.index_cast %755 : i32 to index
    %c0_152 = arith.constant 0 : index
    %c0_153 = arith.constant 0 : index
    %869 = vector.load %arg4[%868, %c0_152, %c0_153] : memref<8x8x32xf32, #tpu.memory_space<vmem>>, vector<1x8x32xf32>
    tpu.vector_store %arg4[%868, %c0_152, %c0_153], %867 {strides = array<i32>} : memref<8x8x32xf32, #tpu.memory_space<vmem>>, vector<1x8x32xf32>,
    %870 = vector.shape_cast %759 : vector<8x1xi1> to vector<8x1xi1>
    %871 = vector.broadcast %870 : vector<8x1xi1> to vector<8x32xi1>
    %872 = arith.select %871, %862, %748 : vector<8x32xi1>, vector<8x32xf32>
    %873 = vector.shape_cast %759 : vector<8x1xi1> to vector<8x1xi1>
    %874 = vector.broadcast %873 : vector<8x1xi1> to vector<8x32xi1>
    %875 = arith.select %874, %860, %751 : vector<8x32xi1>, vector<8x32xf32>
    %c7_i32_154 = arith.constant 7 : i32
    %876 = arith.index_cast %c7_i32_154 : i32 to index
    %c0_155 = arith.constant 0 : index
    %c0_156 = arith.constant 0 : index
    %877 = vector.load %arg1[%876, %c0_155, %c0_156] : memref<8x8x384xf32, #tpu.memory_space<vmem>>, vector<1x8x384xf32>
    %878 = vector.shape_cast %877 : vector<1x8x384xf32> to vector<8x384xf32>
    %c7_i32_157 = arith.constant 7 : i32
    %879 = arith.subi %c7_i32_157, %c7_i32_154 : i32
    %880 = vector.broadcast %c7_i32_154 : i32 to vector<8x1xi32>
    %881 = arith.cmpi slt, %880, %0 : vector<8x1xi32>
    %882 = vector.broadcast %879 : i32 to vector<8x1xi32>
    %883 = arith.cmpi slt, %882, %0 : vector<8x1xi32>
    %884 = vector.extract_strided_slice %878 {offsets = [0, 0], sizes = [8, 128], strides = [1, 1]} : vector<8x384xf32> to vector<8x128xf32>
    %cst_158 = arith.constant dense<0.000000e+00> : vector<8x128xf32>
    %885 = tpu.matmul %797, %2, %cst_158 {dimension_numbers = #tpu.dot_dimension_numbers<[1], [0], [0], [1], [0, 0, 1, 1], [], []>} : vector<8x32xf32>, vector<32x128xf32>, vector<8x128xf32> -> vector<8x128xf32>
    %886 = arith.addf %884, %885 : vector<8x128xf32>
    %887 = vector.extract_strided_slice %886 {offsets = [0, 0], sizes = [8, 32], strides = [1, 1]} : vector<8x128xf32> to vector<8x32xf32>
    %888 = arith.negf %887 : vector<8x32xf32>
    %889 = math.exp %888 : vector<8x32xf32>
    %cst_159 = arith.constant 1.000000e+00 : f32
    %890 = vector.broadcast %cst_159 : f32 to vector<8x32xf32>
    %891 = arith.addf %890, %889 : vector<8x32xf32>
    %892 = arith.divf %890, %891 : vector<8x32xf32>
    %893 = vector.extract_strided_slice %886 {offsets = [0, 32], sizes = [8, 32], strides = [1, 1]} : vector<8x128xf32> to vector<8x32xf32>
    %894 = arith.negf %893 : vector<8x32xf32>
    %895 = math.exp %894 : vector<8x32xf32>
    %cst_160 = arith.constant 1.000000e+00 : f32
    %896 = vector.broadcast %cst_160 : f32 to vector<8x32xf32>
    %897 = arith.addf %896, %895 : vector<8x32xf32>
    %898 = arith.divf %896, %897 : vector<8x32xf32>
    %899 = vector.extract_strided_slice %886 {offsets = [0, 64], sizes = [8, 32], strides = [1, 1]} : vector<8x128xf32> to vector<8x32xf32>
    %900 = math.tanh %899 : vector<8x32xf32>
    %901 = vector.extract_strided_slice %886 {offsets = [0, 96], sizes = [8, 32], strides = [1, 1]} : vector<8x128xf32> to vector<8x32xf32>
    %902 = arith.negf %901 : vector<8x32xf32>
    %903 = math.exp %902 : vector<8x32xf32>
    %cst_161 = arith.constant 1.000000e+00 : f32
    %904 = vector.broadcast %cst_161 : f32 to vector<8x32xf32>
    %905 = arith.addf %904, %903 : vector<8x32xf32>
    %906 = arith.divf %904, %905 : vector<8x32xf32>
    %907 = arith.mulf %898, %800 : vector<8x32xf32>
    %908 = arith.mulf %892, %900 : vector<8x32xf32>
    %909 = arith.addf %907, %908 : vector<8x32xf32>
    %910 = math.tanh %909 : vector<8x32xf32>
    %911 = arith.mulf %906, %910 : vector<8x32xf32>
    %cst_162 = arith.constant 0.000000e+00 : f32
    %912 = vector.shape_cast %881 : vector<8x1xi1> to vector<8x1xi1>
    %913 = vector.broadcast %912 : vector<8x1xi1> to vector<8x32xi1>
    %914 = vector.broadcast %cst_162 : f32 to vector<8x32xf32>
    %915 = arith.select %913, %911, %914 : vector<8x32xi1>, vector<8x32xf32>
    %916 = vector.shape_cast %915 : vector<8x32xf32> to vector<1x8x32xf32>
    %917 = arith.index_cast %c7_i32_154 : i32 to index
    %c0_163 = arith.constant 0 : index
    %c0_164 = arith.constant 0 : index
    %918 = vector.load %arg3[%917, %c0_163, %c0_164] : memref<8x8x32xf32, #tpu.memory_space<vmem>>, vector<1x8x32xf32>
    tpu.vector_store %arg3[%917, %c0_163, %c0_164], %916 {strides = array<i32>} : memref<8x8x32xf32, #tpu.memory_space<vmem>>, vector<1x8x32xf32>,
    %919 = vector.shape_cast %881 : vector<8x1xi1> to vector<8x1xi1>
    %920 = vector.broadcast %919 : vector<8x1xi1> to vector<8x32xi1>
    %921 = arith.select %920, %911, %797 : vector<8x32xi1>, vector<8x32xf32>
    %922 = vector.shape_cast %881 : vector<8x1xi1> to vector<8x1xi1>
    %923 = vector.broadcast %922 : vector<8x1xi1> to vector<8x32xi1>
    %924 = arith.select %923, %909, %800 : vector<8x32xi1>, vector<8x32xf32>
    %925 = vector.extract_strided_slice %878 {offsets = [0, 128], sizes = [8, 128], strides = [1, 1]} : vector<8x384xf32> to vector<8x128xf32>
    %cst_165 = arith.constant dense<0.000000e+00> : vector<8x128xf32>
    %926 = tpu.matmul %831, %4, %cst_165 {dimension_numbers = #tpu.dot_dimension_numbers<[1], [0], [0], [1], [0, 0, 1, 1], [], []>} : vector<8x32xf32>, vector<32x128xf32>, vector<8x128xf32> -> vector<8x128xf32>
    %927 = arith.addf %925, %926 : vector<8x128xf32>
    %928 = vector.extract_strided_slice %927 {offsets = [0, 0], sizes = [8, 32], strides = [1, 1]} : vector<8x128xf32> to vector<8x32xf32>
    %929 = arith.negf %928 : vector<8x32xf32>
    %930 = math.exp %929 : vector<8x32xf32>
    %cst_166 = arith.constant 1.000000e+00 : f32
    %931 = vector.broadcast %cst_166 : f32 to vector<8x32xf32>
    %932 = arith.addf %931, %930 : vector<8x32xf32>
    %933 = arith.divf %931, %932 : vector<8x32xf32>
    %934 = vector.extract_strided_slice %927 {offsets = [0, 32], sizes = [8, 32], strides = [1, 1]} : vector<8x128xf32> to vector<8x32xf32>
    %935 = arith.negf %934 : vector<8x32xf32>
    %936 = math.exp %935 : vector<8x32xf32>
    %cst_167 = arith.constant 1.000000e+00 : f32
    %937 = vector.broadcast %cst_167 : f32 to vector<8x32xf32>
    %938 = arith.addf %937, %936 : vector<8x32xf32>
    %939 = arith.divf %937, %938 : vector<8x32xf32>
    %940 = vector.extract_strided_slice %927 {offsets = [0, 64], sizes = [8, 32], strides = [1, 1]} : vector<8x128xf32> to vector<8x32xf32>
    %941 = math.tanh %940 : vector<8x32xf32>
    %942 = vector.extract_strided_slice %927 {offsets = [0, 96], sizes = [8, 32], strides = [1, 1]} : vector<8x128xf32> to vector<8x32xf32>
    %943 = arith.negf %942 : vector<8x32xf32>
    %944 = math.exp %943 : vector<8x32xf32>
    %cst_168 = arith.constant 1.000000e+00 : f32
    %945 = vector.broadcast %cst_168 : f32 to vector<8x32xf32>
    %946 = arith.addf %945, %944 : vector<8x32xf32>
    %947 = arith.divf %945, %946 : vector<8x32xf32>
    %948 = arith.mulf %939, %834 : vector<8x32xf32>
    %949 = arith.mulf %933, %941 : vector<8x32xf32>
    %950 = arith.addf %948, %949 : vector<8x32xf32>
    %951 = math.tanh %950 : vector<8x32xf32>
    %952 = arith.mulf %947, %951 : vector<8x32xf32>
    %953 = vector.shape_cast %881 : vector<8x1xi1> to vector<8x1xi1>
    %954 = vector.broadcast %953 : vector<8x1xi1> to vector<8x32xi1>
    %955 = arith.select %954, %952, %831 : vector<8x32xi1>, vector<8x32xf32>
    %956 = vector.shape_cast %881 : vector<8x1xi1> to vector<8x1xi1>
    %957 = vector.broadcast %956 : vector<8x1xi1> to vector<8x32xi1>
    %958 = arith.select %957, %950, %834 : vector<8x32xi1>, vector<8x32xf32>
    %959 = vector.extract_strided_slice %878 {offsets = [0, 256], sizes = [8, 128], strides = [1, 1]} : vector<8x384xf32> to vector<8x128xf32>
    %cst_169 = arith.constant dense<0.000000e+00> : vector<8x128xf32>
    %960 = tpu.matmul %872, %6, %cst_169 {dimension_numbers = #tpu.dot_dimension_numbers<[1], [0], [0], [1], [0, 0, 1, 1], [], []>} : vector<8x32xf32>, vector<32x128xf32>, vector<8x128xf32> -> vector<8x128xf32>
    %961 = arith.addf %959, %960 : vector<8x128xf32>
    %962 = vector.extract_strided_slice %961 {offsets = [0, 0], sizes = [8, 32], strides = [1, 1]} : vector<8x128xf32> to vector<8x32xf32>
    %963 = arith.negf %962 : vector<8x32xf32>
    %964 = math.exp %963 : vector<8x32xf32>
    %cst_170 = arith.constant 1.000000e+00 : f32
    %965 = vector.broadcast %cst_170 : f32 to vector<8x32xf32>
    %966 = arith.addf %965, %964 : vector<8x32xf32>
    %967 = arith.divf %965, %966 : vector<8x32xf32>
    %968 = vector.extract_strided_slice %961 {offsets = [0, 32], sizes = [8, 32], strides = [1, 1]} : vector<8x128xf32> to vector<8x32xf32>
    %969 = arith.negf %968 : vector<8x32xf32>
    %970 = math.exp %969 : vector<8x32xf32>
    %cst_171 = arith.constant 1.000000e+00 : f32
    %971 = vector.broadcast %cst_171 : f32 to vector<8x32xf32>
    %972 = arith.addf %971, %970 : vector<8x32xf32>
    %973 = arith.divf %971, %972 : vector<8x32xf32>
    %974 = vector.extract_strided_slice %961 {offsets = [0, 64], sizes = [8, 32], strides = [1, 1]} : vector<8x128xf32> to vector<8x32xf32>
    %975 = math.tanh %974 : vector<8x32xf32>
    %976 = vector.extract_strided_slice %961 {offsets = [0, 96], sizes = [8, 32], strides = [1, 1]} : vector<8x128xf32> to vector<8x32xf32>
    %977 = arith.negf %976 : vector<8x32xf32>
    %978 = math.exp %977 : vector<8x32xf32>
    %cst_172 = arith.constant 1.000000e+00 : f32
    %979 = vector.broadcast %cst_172 : f32 to vector<8x32xf32>
    %980 = arith.addf %979, %978 : vector<8x32xf32>
    %981 = arith.divf %979, %980 : vector<8x32xf32>
    %982 = arith.mulf %973, %875 : vector<8x32xf32>
    %983 = arith.mulf %967, %975 : vector<8x32xf32>
    %984 = arith.addf %982, %983 : vector<8x32xf32>
    %985 = math.tanh %984 : vector<8x32xf32>
    %986 = arith.mulf %981, %985 : vector<8x32xf32>
    %cst_173 = arith.constant 0.000000e+00 : f32
    %987 = vector.shape_cast %883 : vector<8x1xi1> to vector<8x1xi1>
    %988 = vector.broadcast %987 : vector<8x1xi1> to vector<8x32xi1>
    %989 = vector.broadcast %cst_173 : f32 to vector<8x32xf32>
    %990 = arith.select %988, %986, %989 : vector<8x32xi1>, vector<8x32xf32>
    %991 = vector.shape_cast %990 : vector<8x32xf32> to vector<1x8x32xf32>
    %992 = arith.index_cast %879 : i32 to index
    %c0_174 = arith.constant 0 : index
    %c0_175 = arith.constant 0 : index
    %993 = vector.load %arg4[%992, %c0_174, %c0_175] : memref<8x8x32xf32, #tpu.memory_space<vmem>>, vector<1x8x32xf32>
    tpu.vector_store %arg4[%992, %c0_174, %c0_175], %991 {strides = array<i32>} : memref<8x8x32xf32, #tpu.memory_space<vmem>>, vector<1x8x32xf32>,
    %994 = vector.shape_cast %883 : vector<8x1xi1> to vector<8x1xi1>
    %995 = vector.broadcast %994 : vector<8x1xi1> to vector<8x32xi1>
    %996 = arith.select %995, %986, %872 : vector<8x32xi1>, vector<8x32xf32>
    %997 = vector.shape_cast %883 : vector<8x1xi1> to vector<8x1xi1>
    %998 = vector.broadcast %997 : vector<8x1xi1> to vector<8x32xi1>
    %999 = arith.select %998, %984, %875 : vector<8x32xi1>, vector<8x32xf32>
    %c8_i32 = arith.constant 8 : i32
    %c0_176 = arith.constant 0 : index
    %c0_177 = arith.constant 0 : index
    %1000 = vector.load %arg5[%c0_176, %c0_177] : memref<8x32xf32, #tpu.memory_space<vmem>>, vector<8x32xf32>
    tpu.vector_store %arg5[%c0_176, %c0_177], %921 {strides = array<i32>} : memref<8x32xf32, #tpu.memory_space<vmem>>, vector<8x32xf32>,
    %c0_178 = arith.constant 0 : index
    %c0_179 = arith.constant 0 : index
    %1001 = vector.load %arg6[%c0_178, %c0_179] : memref<8x32xf32, #tpu.memory_space<vmem>>, vector<8x32xf32>
    tpu.vector_store %arg6[%c0_178, %c0_179], %924 {strides = array<i32>} : memref<8x32xf32, #tpu.memory_space<vmem>>, vector<8x32xf32>,
    %c0_180 = arith.constant 0 : index
    %c0_181 = arith.constant 0 : index
    %1002 = vector.load %arg7[%c0_180, %c0_181] : memref<8x32xf32, #tpu.memory_space<vmem>>, vector<8x32xf32>
    tpu.vector_store %arg7[%c0_180, %c0_181], %958 {strides = array<i32>} : memref<8x32xf32, #tpu.memory_space<vmem>>, vector<8x32xf32>,
    %c0_182 = arith.constant 0 : index
    %c0_183 = arith.constant 0 : index
    %1003 = vector.load %arg8[%c0_182, %c0_183] : memref<8x32xf32, #tpu.memory_space<vmem>>, vector<8x32xf32>
    tpu.vector_store %arg8[%c0_182, %c0_183], %999 {strides = array<i32>} : memref<8x32xf32, #tpu.memory_space<vmem>>, vector<8x32xf32>,
    return
  }
}

</mosaic_0001>

<llo_original>
// kernel: bi_awd_embedding_forward.2
$region0: #{bi_awd_embedding_forward.2}
  #allocation0 [shape = 'u32[]', space=smem, size = 0x4, offset = 0x4, fixed_abs, tag = 'smem constant byte address 0x4 - core index']
  #allocation1 [shape = 'u32[144,128]{1,0:T(1,128)}', space=vmem, size = 0x12000, scoped, tag = 'internal scratch']
  %s0 = inlined_call_operand.vmem [shape: s32[8,1], index: 0, kind: input, shape index: {}]
  %s1 = inlined_call_operand.vmem [shape: f32[8,8,384], index: 1, kind: input, shape index: {}]
  %s2 = inlined_call_operand.vmem [shape: f32[3,32,128], index: 2, kind: input, shape index: {}]
  %s3 = inlined_call_operand.vmem [shape: f32[8,8,32], index: 3, kind: output, shape index: {0}]
  %s4 = inlined_call_operand.vmem [shape: f32[8,8,32], index: 4, kind: output, shape index: {1}]
  %s5 = inlined_call_operand.hbm [shape: f32[8,32], index: 5, kind: output, shape index: {2}]
  %s6 = inlined_call_operand.hbm [shape: f32[8,32], index: 6, kind: output, shape index: {3}]
  %s7 = inlined_call_operand.vmem [shape: f32[8,32], index: 7, kind: output, shape index: {4}]
  %s8 = inlined_call_operand.vmem [shape: f32[8,32], index: 8, kind: output, shape index: {5}]
  %9 = xla_tuple %s3, %s4, %s5, %s6, %s7, %s8
  %s10 = sld [smem:[#allocation0]]
  $region62: #{bi_awd_embedding_forward.2} parent=0
    _
  %s12 = ssub.s32 1, %s10
  %s13 = scalar_select 0, %s12, %s10
  $region1: #{bi_awd_embedding_forward.2} parent=0
    #allocation2 [shape = 'u8[4096]{0}', space=vmem, size = 0x1000, scoped, tag = 'output window, operand 2, single buffered']
    #allocation3 [shape = 's32[1]{0}', space=sflag, size = 0x4, scoped, tag = 'scoped memory for bi_awd_embedding_forward.2']
    #allocation4 [shape = 'u8[4096]{0}', space=vmem, size = 0x1000, scoped, tag = 'output window, operand 3, single buffered']
    #allocation5 [shape = 's32[1]{0}', space=sflag, size = 0x4, scoped, tag = 'scoped memory for bi_awd_embedding_forward.2']
    %14 = vsyncpa [#allocation3], 0
    %15 = vsyncpa [#allocation5], 0
    // Predicated region
    $region2: #{bi_awd_embedding_forward.2} parent=1 // pred_check
      _
    $region3: #{bi_awd_embedding_forward.2} parent=1 // pred_check_branch
      %17 = sbr.rel (0) target = $region5
    $region4: #{bi_awd_embedding_forward.2} parent=1 // pred_region
      _
    $region5: #{bi_awd_embedding_forward.2} parent=1 // pred_fallthru
      _
    // Predicated region
    $region6: #{bi_awd_embedding_forward.2} parent=1 // pred_check
      _
    $region7: #{bi_awd_embedding_forward.2} parent=1 // pred_check_branch
      %19 = sbr.rel (0) target = $region9
    $region8: #{bi_awd_embedding_forward.2} parent=1 // pred_region
      _
    $region9: #{bi_awd_embedding_forward.2} parent=1 // pred_fallthru
      _
    // Predicated region
    $region10: #{bi_awd_embedding_forward.2} parent=1 // pred_check
      _
    $region11: #{bi_awd_embedding_forward.2} parent=1 // pred_check_branch
      %21 = sbr.rel (0) target = $region13
    $region12: #{bi_awd_embedding_forward.2} parent=1 // pred_region
      _
    $region13: #{bi_awd_embedding_forward.2} parent=1 // pred_fallthru
      _
    %v22 = vld [vmem:[%s0] sm:$0xff]
    %v23 = vld [vmem:[%s2] sm:$0xff]
    %v24 = vld [vmem:[%s2 + $0x8] sm:$0xff]
    %v25 = vld [vmem:[%s2 + $0x10] sm:$0xff]
    %v26 = vld [vmem:[%s2 + $0x18] sm:$0xff]
    %s27 = scalar_lea.vmem %s2, 32
    %v28 = vld [vmem:[%s27] sm:$0xff]
    %v29 = vld [vmem:[%s27 + $0x8] sm:$0xff]
    %v30 = vld [vmem:[%s27 + $0x10] sm:$0xff]
    %v31 = vld [vmem:[%s27 + $0x18] sm:$0xff]
    %s32 = scalar_lea.vmem %s2, 64
    %v33 = vld [vmem:[%s32] sm:$0xff]
    %v34 = vld [vmem:[%s32 + $0x8] sm:$0xff]
    %v35 = vld [vmem:[%s32 + $0x10] sm:$0xff]
    %v36 = vld [vmem:[%s32 + $0x18] sm:$0xff]
    %v37 = vld [vmem:[%s1] sm:$0xff]
    %v38 = vld [vmem:[%s1 + $0x8] sm:$0xff]
    %v39 = vld [vmem:[%s1 + $0x10] sm:$0xff]
    %vm40 = vcmp.gt.s32.totalorder %v22, 0
    %vm41 = vcmp.gt.s32.totalorder %v22, 7
    %vm42 = vcmask 261120
    %v44 = vsel %vm42, 0.0, 0
    %46 = vmatprep.subr.mxu0 0.0
    %47 = vmatpush1.msra.mxu0 %v23
    %48 = vmatprep.subr.mxu0 0.0
    %49 = vmatpush1.msra.mxu0 %v24
    %50 = vmatprep.subr.mxu0 0.0
    %51 = vmatpush1.msra.mxu0 %v25
    %52 = vmatprep.subr.mxu0 0.0
    %53 = vmatpush1.msra.mxu0 %v26
    %54 = vmatprep.subr.mxu0 0.0
    %55 = vmatpush1.msra.mxu0 0.0
    %56 = vmatprep.subr.mxu0 0.0
    %57 = vmatpush1.msra.mxu0 0.0
    %58 = vmatprep.subr.mxu0 0.0
    %59 = vmatpush1.msra.mxu0 0.0
    %60 = vmatprep.subr.mxu0 0.0
    %61 = vmatpush1.msra.mxu0 0.0
    %62 = vmatprep.subr.mxu0 0.0
    %63 = vmatpush1.msra.mxu0 0.0
    %64 = vmatprep.subr.mxu0 0.0
    %65 = vmatpush1.msra.mxu0 0.0
    %66 = vmatprep.subr.mxu0 0.0
    %67 = vmatpush1.msra.mxu0 0.0
    %68 = vmatprep.subr.mxu0 0.0
    %69 = vmatpush1.msra.mxu0 0.0
    %70 = vmatprep.subr.mxu0 0.0
    %71 = vmatpush1.msra.mxu0 0.0
    %72 = vmatprep.subr.mxu0 0.0
    %73 = vmatpush1.msra.mxu0 0.0
    %74 = vmatprep.subr.mxu0 0.0
    %75 = vmatpush1.msra.mxu0 0.0
    %76 = vmatprep.subr.mxu0 0.0
    %77 = vmatpush1.msra.mxu0 0.0
    %78 = vmatprep.subr.mxu0 0.0
    %79 = vmatpush1.msra.mxu0 0.0
    %80 = vmatprep.subr.mxu0 0.0
    %81 = vmatpush1.msra.mxu0 0.0
    %82 = vmatprep.subr.mxu0 0.0
    %83 = vmatpush1.msra.mxu0 0.0
    %84 = vmatprep.subr.mxu0 0.0
    %85 = vmatpush1.msra.mxu0 0.0
    %86 = vmatprep.subr.mxu0 0.0
    %87 = vmatpush1.msra.mxu0 0.0
    %88 = vmatprep.subr.mxu0 0.0
    %89 = vmatpush1.msra.mxu0 0.0
    %90 = vmatprep.subr.mxu0 0.0
    %91 = vmatpush1.msra.mxu0 0.0
    %92 = vmatprep.subr.mxu0 0.0
    %93 = vmatpush1.msra.mxu0 0.0
    %94 = vmatprep.subr.mxu0 0.0
    %95 = vmatpush1.msra.mxu0 0.0
    %96 = vmatprep.subr.mxu0 0.0
    %97 = vmatpush1.msra.mxu0 0.0
    %98 = vmatprep.subr.mxu0 0.0
    %99 = vmatpush1.msra.mxu0 0.0
    %100 = vmatprep.subr.mxu0 0.0
    %101 = vmatpush1.msra.mxu0 0.0
    %102 = vmatprep.subr.mxu0 0.0
    %103 = vmatpush1.msra.mxu0 0.0
    %104 = vmatprep.subr.mxu0 0.0
    %105 = vmatpush1.msra.mxu0 0.0
    %106 = vmatprep.subr.mxu0 0.0
    %107 = vmatpush1.msra.mxu0 0.0
    %108 = vmatprep.subr.mxu0 0.0
    %109 = vmatpush1.msra.mxu0 0.0
    %110 = vmatprep.mubr.f32.mxu0 0.0
    %111 = vmatmul.mubr.f32.gmra.mrb[0].mxu0 %v44
    %v112 = vpop.f32.mrb[0].mxu0
    %v113 = vadd.f32 0.0, %v112
    %v114 = vpop.f32.mrb[0].mxu0
    %115 = vdwg.mxu0
    %v116 = vadd.f32 %v37, %v113
    %v117 = vxor.u32 %v116, 2147483648
    %v118 = vmul.f32 %v117, 1.442695
    %v119 = vpow.pop %v118
    %v120 = vadd.f32 %v119, 1.0
    %v121 = vrcp.pop %v120
    %v122 = vmul.f32 1.0, %v121
    %v123 = vtanh.pop %v116
    %v124 = vmul.f32 %v122, 0.0
    %126 = vrot.lane.b32.xlu0 %v123, 64
    %v127 = vpop.permute.xlu0 %126
    %v129 = vmul.f32 %v122, %v127
    %131 = vrot.lane.b32.xlu0 %v129, 32
    %v132 = vpop.permute.xlu0 %131
    %v134 = vadd.f32 %v124, %v132
    %v135 = vtanh.pop %v134
    %137 = vrot.lane.b32.xlu0 %v135, 64
    %v138 = vpop.permute.xlu0 %137
    %v140 = vmul.f32 %v122, %v138
    %v141 = vsel %vm40, 1, 0
    %142 = vset.pattern.permute.xlu0 0
    %143 = vperm.xlu0 %142, %v141
    %v144 = vpop.permute.xlu0 %143
    %vm145 = vcmp.eq.s32.totalorder %v144, 1
    %v146 = vsel %vm145, %v140, 0.0
    %148 = vrot.lane.b32.xlu0 %v146, 32
    %v149 = vpop.permute.xlu0 %148
    %151 = vst.msk [vmem:[%s3] sm:$0xff] %vm42, %v149
    %v152 = vsel %vm145, %v134, 0.0
    %153 = vmatprep.subr.mxu0 0.0
    %154 = vmatpush1.msra.mxu0 %v28
    %155 = vmatprep.subr.mxu0 0.0
    %156 = vmatpush1.msra.mxu0 %v29
    %157 = vmatprep.subr.mxu0 0.0
    %158 = vmatpush1.msra.mxu0 %v30
    %159 = vmatprep.subr.mxu0 0.0
    %160 = vmatpush1.msra.mxu0 %v31
    %161 = vmatprep.subr.mxu0 0.0
    %162 = vmatpush1.msra.mxu0 0.0
    %163 = vmatprep.subr.mxu0 0.0
    %164 = vmatpush1.msra.mxu0 0.0
    %165 = vmatprep.subr.mxu0 0.0
    %166 = vmatpush1.msra.mxu0 0.0
    %167 = vmatprep.subr.mxu0 0.0
    %168 = vmatpush1.msra.mxu0 0.0
    %169 = vmatprep.subr.mxu0 0.0
    %170 = vmatpush1.msra.mxu0 0.0
    %171 = vmatprep.subr.mxu0 0.0
    %172 = vmatpush1.msra.mxu0 0.0
    %173 = vmatprep.subr.mxu0 0.0
    %174 = vmatpush1.msra.mxu0 0.0
    %175 = vmatprep.subr.mxu0 0.0
    %176 = vmatpush1.msra.mxu0 0.0
    %177 = vmatprep.subr.mxu0 0.0
    %178 = vmatpush1.msra.mxu0 0.0
    %179 = vmatprep.subr.mxu0 0.0
    %180 = vmatpush1.msra.mxu0 0.0
    %181 = vmatprep.subr.mxu0 0.0
    %182 = vmatpush1.msra.mxu0 0.0
    %183 = vmatprep.subr.mxu0 0.0
    %184 = vmatpush1.msra.mxu0 0.0
    %185 = vmatprep.subr.mxu0 0.0
    %186 = vmatpush1.msra.mxu0 0.0
    %187 = vmatprep.subr.mxu0 0.0
    %188 = vmatpush1.msra.mxu0 0.0
    %189 = vmatprep.subr.mxu0 0.0
    %190 = vmatpush1.msra.mxu0 0.0
    %191 = vmatprep.subr.mxu0 0.0
    %192 = vmatpush1.msra.mxu0 0.0
    %193 = vmatprep.subr.mxu0 0.0
    %194 = vmatpush1.msra.mxu0 0.0
    %195 = vmatprep.subr.mxu0 0.0
    %196 = vmatpush1.msra.mxu0 0.0
    %197 = vmatprep.subr.mxu0 0.0
    %198 = vmatpush1.msra.mxu0 0.0
    %199 = vmatprep.subr.mxu0 0.0
    %200 = vmatpush1.msra.mxu0 0.0
    %201 = vmatprep.subr.mxu0 0.0
    %202 = vmatpush1.msra.mxu0 0.0
    %203 = vmatprep.subr.mxu0 0.0
    %204 = vmatpush1.msra.mxu0 0.0
    %205 = vmatprep.subr.mxu0 0.0
    %206 = vmatpush1.msra.mxu0 0.0
    %207 = vmatprep.subr.mxu0 0.0
    %208 = vmatpush1.msra.mxu0 0.0
    %209 = vmatprep.subr.mxu0 0.0
    %210 = vmatpush1.msra.mxu0 0.0
    %211 = vmatprep.subr.mxu0 0.0
    %212 = vmatpush1.msra.mxu0 0.0
    %213 = vmatprep.subr.mxu0 0.0
    %214 = vmatpush1.msra.mxu0 0.0
    %215 = vmatprep.subr.mxu0 0.0
    %216 = vmatpush1.msra.mxu0 0.0
    %217 = vmatprep.mubr.f32.mxu0 0.0
    %218 = vmatmul.mubr.f32.gmra.mrb[0].mxu0 %v44
    %v219 = vpop.f32.mrb[0].mxu0
    %v220 = vadd.f32 0.0, %v219
    %v221 = vpop.f32.mrb[0].mxu0
    %222 = vdwg.mxu0
    %v223 = vadd.f32 %v38, %v220
    %v224 = vxor.u32 %v223, 2147483648
    %v225 = vmul.f32 %v224, 1.442695
    %v226 = vpow.pop %v225
    %v227 = vadd.f32 %v226, 1.0
    %v228 = vrcp.pop %v227
    %v229 = vmul.f32 1.0, %v228
    %v230 = vtanh.pop %v223
    %v231 = vmul.f32 %v229, 0.0
    %233 = vrot.lane.b32.xlu0 %v230, 64
    %v234 = vpop.permute.xlu0 %233
    %v236 = vmul.f32 %v229, %v234
    %238 = vrot.lane.b32.xlu0 %v236, 32
    %v239 = vpop.permute.xlu0 %238
    %v241 = vadd.f32 %v231, %v239
    %v242 = vtanh.pop %v241
    %244 = vrot.lane.b32.xlu0 %v242, 64
    %v245 = vpop.permute.xlu0 %244
    %v247 = vmul.f32 %v229, %v245
    %v248 = vsel %vm145, %v247, 0.0
    %v249 = vsel %vm145, %v241, 0.0
    %250 = vmatprep.subr.mxu0 0.0
    %251 = vmatpush1.msra.mxu0 %v33
    %252 = vmatprep.subr.mxu0 0.0
    %253 = vmatpush1.msra.mxu0 %v34
    %254 = vmatprep.subr.mxu0 0.0
    %255 = vmatpush1.msra.mxu0 %v35
    %256 = vmatprep.subr.mxu0 0.0
    %257 = vmatpush1.msra.mxu0 %v36
    %258 = vmatprep.subr.mxu0 0.0
    %259 = vmatpush1.msra.mxu0 0.0
    %260 = vmatprep.subr.mxu0 0.0
    %261 = vmatpush1.msra.mxu0 0.0
    %262 = vmatprep.subr.mxu0 0.0
    %263 = vmatpush1.msra.mxu0 0.0
    %264 = vmatprep.subr.mxu0 0.0
    %265 = vmatpush1.msra.mxu0 0.0
    %266 = vmatprep.subr.mxu0 0.0
    %267 = vmatpush1.msra.mxu0 0.0
    %268 = vmatprep.subr.mxu0 0.0
    %269 = vmatpush1.msra.mxu0 0.0
    %270 = vmatprep.subr.mxu0 0.0
    %271 = vmatpush1.msra.mxu0 0.0
    %272 = vmatprep.subr.mxu0 0.0
    %273 = vmatpush1.msra.mxu0 0.0
    %274 = vmatprep.subr.mxu0 0.0
    %275 = vmatpush1.msra.mxu0 0.0
    %276 = vmatprep.subr.mxu0 0.0
    %277 = vmatpush1.msra.mxu0 0.0
    %278 = vmatprep.subr.mxu0 0.0
    %279 = vmatpush1.msra.mxu0 0.0
    %280 = vmatprep.subr.mxu0 0.0
    %281 = vmatpush1.msra.mxu0 0.0
    %282 = vmatprep.subr.mxu0 0.0
    %283 = vmatpush1.msra.mxu0 0.0
    %284 = vmatprep.subr.mxu0 0.0
    %285 = vmatpush1.msra.mxu0 0.0
    %286 = vmatprep.subr.mxu0 0.0
    %287 = vmatpush1.msra.mxu0 0.0
    %288 = vmatprep.subr.mxu0 0.0
    %289 = vmatpush1.msra.mxu0 0.0
    %290 = vmatprep.subr.mxu0 0.0
    %291 = vmatpush1.msra.mxu0 0.0
    %292 = vmatprep.subr.mxu0 0.0
    %293 = vmatpush1.msra.mxu0 0.0
    %294 = vmatprep.subr.mxu0 0.0
    %295 = vmatpush1.msra.mxu0 0.0
    %296 = vmatprep.subr.mxu0 0.0
    %297 = vmatpush1.msra.mxu0 0.0
    %298 = vmatprep.subr.mxu0 0.0
    %299 = vmatpush1.msra.mxu0 0.0
    %300 = vmatprep.subr.mxu0 0.0
    %301 = vmatpush1.msra.mxu0 0.0
    %302 = vmatprep.subr.mxu0 0.0
    %303 = vmatpush1.msra.mxu0 0.0
    %304 = vmatprep.subr.mxu0 0.0
    %305 = vmatpush1.msra.mxu0 0.0
    %306 = vmatprep.subr.mxu0 0.0
    %307 = vmatpush1.msra.mxu0 0.0
    %308 = vmatprep.subr.mxu0 0.0
    %309 = vmatpush1.msra.mxu0 0.0
    %310 = vmatprep.subr.mxu0 0.0
    %311 = vmatpush1.msra.mxu0 0.0
    %312 = vmatprep.subr.mxu0 0.0
    %313 = vmatpush1.msra.mxu0 0.0
    %314 = vmatprep.mubr.f32.mxu0 0.0
    %315 = vmatmul.mubr.f32.gmra.mrb[0].mxu0 %v44
    %v316 = vpop.f32.mrb[0].mxu0
    %v317 = vadd.f32 0.0, %v316
    %v318 = vpop.f32.mrb[0].mxu0
    %319 = vdwg.mxu0
    %v320 = vadd.f32 %v39, %v317
    %v321 = vxor.u32 %v320, 2147483648
    %v322 = vmul.f32 %v321, 1.442695
    %v323 = vpow.pop %v322
    %v324 = vadd.f32 %v323, 1.0
    %v325 = vrcp.pop %v324
    %v326 = vmul.f32 1.0, %v325
    %v327 = vtanh.pop %v320
    %v328 = vmul.f32 %v326, 0.0
    %330 = vrot.lane.b32.xlu0 %v327, 64
    %v331 = vpop.permute.xlu0 %330
    %v333 = vmul.f32 %v326, %v331
    %335 = vrot.lane.b32.xlu0 %v333, 32
    %v336 = vpop.permute.xlu0 %335
    %v338 = vadd.f32 %v328, %v336
    %v339 = vtanh.pop %v338
    %341 = vrot.lane.b32.xlu0 %v339, 64
    %v342 = vpop.permute.xlu0 %341
    %v344 = vmul.f32 %v326, %v342
    %v345 = vsel %vm41, 1, 0
    %346 = vset.pattern.permute.xlu0 0
    %347 = vperm.xlu0 %346, %v345
    %v348 = vpop.permute.xlu0 %347
    %vm349 = vcmp.eq.s32.totalorder %v348, 1
    %v350 = vsel %vm349, %v344, 0.0
    %352 = vrot.lane.b32.xlu0 %v350, 32
    %v353 = vpop.permute.xlu0 %352
    %s355 = scalar_lea.vmem %s4, 56
    %356 = vst.msk [vmem:[%s355] sm:$0xff] %vm42, %v353
    %v357 = vsel %vm349, %v338, 0.0
    %s358 = scalar_lea.vmem %s1, 24
    %v359 = vld [vmem:[%s358] sm:$0xff]
    %v360 = vld [vmem:[%s358 + $0x8] sm:$0xff]
    %v361 = vld [vmem:[%s358 + $0x10] sm:$0xff]
    %vm362 = vcmp.gt.s32.totalorder %v22, 1
    %vm363 = vcmp.gt.s32.totalorder %v22, 6
    %v364 = vsel %vm42, %v149, 0
    %366 = vmatprep.subr.mxu0 0.0
    %367 = vmatpush1.msra.mxu0 %v23
    %368 = vmatprep.subr.mxu0 0.0
    %369 = vmatpush1.msra.mxu0 %v24
    %370 = vmatprep.subr.mxu0 0.0
    %371 = vmatpush1.msra.mxu0 %v25
    %372 = vmatprep.subr.mxu0 0.0
    %373 = vmatpush1.msra.mxu0 %v26
    %374 = vmatprep.subr.mxu0 0.0
    %375 = vmatpush1.msra.mxu0 0.0
    %376 = vmatprep.subr.mxu0 0.0
    %377 = vmatpush1.msra.mxu0 0.0
    %378 = vmatprep.subr.mxu0 0.0
    %379 = vmatpush1.msra.mxu0 0.0
    %380 = vmatprep.subr.mxu0 0.0
    %381 = vmatpush1.msra.mxu0 0.0
    %382 = vmatprep.subr.mxu0 0.0
    %383 = vmatpush1.msra.mxu0 0.0
    %384 = vmatprep.subr.mxu0 0.0
    %385 = vmatpush1.msra.mxu0 0.0
    %386 = vmatprep.subr.mxu0 0.0
    %387 = vmatpush1.msra.mxu0 0.0
    %388 = vmatprep.subr.mxu0 0.0
    %389 = vmatpush1.msra.mxu0 0.0
    %390 = vmatprep.subr.mxu0 0.0
    %391 = vmatpush1.msra.mxu0 0.0
    %392 = vmatprep.subr.mxu0 0.0
    %393 = vmatpush1.msra.mxu0 0.0
    %394 = vmatprep.subr.mxu0 0.0
    %395 = vmatpush1.msra.mxu0 0.0
    %396 = vmatprep.subr.mxu0 0.0
    %397 = vmatpush1.msra.mxu0 0.0
    %398 = vmatprep.subr.mxu0 0.0
    %399 = vmatpush1.msra.mxu0 0.0
    %400 = vmatprep.subr.mxu0 0.0
    %401 = vmatpush1.msra.mxu0 0.0
    %402 = vmatprep.subr.mxu0 0.0
    %403 = vmatpush1.msra.mxu0 0.0
    %404 = vmatprep.subr.mxu0 0.0
    %405 = vmatpush1.msra.mxu0 0.0
    %406 = vmatprep.subr.mxu0 0.0
    %407 = vmatpush1.msra.mxu0 0.0
    %408 = vmatprep.subr.mxu0 0.0
    %409 = vmatpush1.msra.mxu0 0.0
    %410 = vmatprep.subr.mxu0 0.0
    %411 = vmatpush1.msra.mxu0 0.0
    %412 = vmatprep.subr.mxu0 0.0
    %413 = vmatpush1.msra.mxu0 0.0
    %414 = vmatprep.subr.mxu0 0.0
    %415 = vmatpush1.msra.mxu0 0.0
    %416 = vmatprep.subr.mxu0 0.0
    %417 = vmatpush1.msra.mxu0 0.0
    %418 = vmatprep.subr.mxu0 0.0
    %419 = vmatpush1.msra.mxu0 0.0
    %420 = vmatprep.subr.mxu0 0.0
    %421 = vmatpush1.msra.mxu0 0.0
    %422 = vmatprep.subr.mxu0 0.0
    %423 = vmatpush1.msra.mxu0 0.0
    %424 = vmatprep.subr.mxu0 0.0
    %425 = vmatpush1.msra.mxu0 0.0
    %426 = vmatprep.subr.mxu0 0.0
    %427 = vmatpush1.msra.mxu0 0.0
    %428 = vmatprep.subr.mxu0 0.0
    %429 = vmatpush1.msra.mxu0 0.0
    %430 = vmatprep.mubr.f32.mxu0 0.0
    %431 = vmatmul.mubr.f32.gmra.mrb[0].mxu0 %v364
    %v432 = vpop.f32.mrb[0].mxu0
    %v433 = vadd.f32 0.0, %v432
    %v434 = vpop.f32.mrb[0].mxu0
    %435 = vdwg.mxu0
    %v436 = vadd.f32 %v359, %v433
    %v437 = vxor.u32 %v436, 2147483648
    %v438 = vmul.f32 %v437, 1.442695
    %v439 = vpow.pop %v438
    %v440 = vadd.f32 %v439, 1.0
    %v441 = vrcp.pop %v440
    %v442 = vmul.f32 1.0, %v441
    %v443 = vtanh.pop %v436
    %v444 = vmul.f32 %v442, %v152
    %446 = vrot.lane.b32.xlu0 %v443, 64
    %v447 = vpop.permute.xlu0 %446
    %v449 = vmul.f32 %v442, %v447
    %451 = vrot.lane.b32.xlu0 %v449, 32
    %v452 = vpop.permute.xlu0 %451
    %v454 = vadd.f32 %v444, %v452
    %v455 = vtanh.pop %v454
    %457 = vrot.lane.b32.xlu0 %v455, 64
    %v458 = vpop.permute.xlu0 %457
    %v460 = vmul.f32 %v442, %v458
    %v461 = vsel %vm362, 1, 0
    %462 = vset.pattern.permute.xlu0 0
    %463 = vperm.xlu0 %462, %v461
    %v464 = vpop.permute.xlu0 %463
    %vm465 = vcmp.eq.s32.totalorder %v464, 1
    %v466 = vsel %vm465, %v460, 0.0
    %468 = vrot.lane.b32.xlu0 %v466, 32
    %v469 = vpop.permute.xlu0 %468
    %s471 = scalar_lea.vmem %s3, 8
    %472 = vst.msk [vmem:[%s471] sm:$0xff] %vm42, %v469
    %v473 = vsel %vm465, %v460, %v146
    %v474 = vsel %vm465, %v454, %v152
    %476 = vrot.lane.b32.xlu0 %v248, 32
    %v477 = vpop.permute.xlu0 %476
    %v478 = vsel %vm42, %v477, 0
    %480 = vmatprep.subr.mxu0 0.0
    %481 = vmatpush1.msra.mxu0 %v28
    %482 = vmatprep.subr.mxu0 0.0
    %483 = vmatpush1.msra.mxu0 %v29
    %484 = vmatprep.subr.mxu0 0.0
    %485 = vmatpush1.msra.mxu0 %v30
    %486 = vmatprep.subr.mxu0 0.0
    %487 = vmatpush1.msra.mxu0 %v31
    %488 = vmatprep.subr.mxu0 0.0
    %489 = vmatpush1.msra.mxu0 0.0
    %490 = vmatprep.subr.mxu0 0.0
    %491 = vmatpush1.msra.mxu0 0.0
    %492 = vmatprep.subr.mxu0 0.0
    %493 = vmatpush1.msra.mxu0 0.0
    %494 = vmatprep.subr.mxu0 0.0
    %495 = vmatpush1.msra.mxu0 0.0
    %496 = vmatprep.subr.mxu0 0.0
    %497 = vmatpush1.msra.mxu0 0.0
    %498 = vmatprep.subr.mxu0 0.0
    %499 = vmatpush1.msra.mxu0 0.0
    %500 = vmatprep.subr.mxu0 0.0
    %501 = vmatpush1.msra.mxu0 0.0
    %502 = vmatprep.subr.mxu0 0.0
    %503 = vmatpush1.msra.mxu0 0.0
    %504 = vmatprep.subr.mxu0 0.0
    %505 = vmatpush1.msra.mxu0 0.0
    %506 = vmatprep.subr.mxu0 0.0
    %507 = vmatpush1.msra.mxu0 0.0
    %508 = vmatprep.subr.mxu0 0.0
    %509 = vmatpush1.msra.mxu0 0.0
    %510 = vmatprep.subr.mxu0 0.0
    %511 = vmatpush1.msra.mxu0 0.0
    %512 = vmatprep.subr.mxu0 0.0
    %513 = vmatpush1.msra.mxu0 0.0
    %514 = vmatprep.subr.mxu0 0.0
    %515 = vmatpush1.msra.mxu0 0.0
    %516 = vmatprep.subr.mxu0 0.0
    %517 = vmatpush1.msra.mxu0 0.0
    %518 = vmatprep.subr.mxu0 0.0
    %519 = vmatpush1.msra.mxu0 0.0
    %520 = vmatprep.subr.mxu0 0.0
    %521 = vmatpush1.msra.mxu0 0.0
    %522 = vmatprep.subr.mxu0 0.0
    %523 = vmatpush1.msra.mxu0 0.0
    %524 = vmatprep.subr.mxu0 0.0
    %525 = vmatpush1.msra.mxu0 0.0
    %526 = vmatprep.subr.mxu0 0.0
    %527 = vmatpush1.msra.mxu0 0.0
    %528 = vmatprep.subr.mxu0 0.0
    %529 = vmatpush1.msra.mxu0 0.0
    %530 = vmatprep.subr.mxu0 0.0
    %531 = vmatpush1.msra.mxu0 0.0
    %532 = vmatprep.subr.mxu0 0.0
    %533 = vmatpush1.msra.mxu0 0.0
    %534 = vmatprep.subr.mxu0 0.0
    %535 = vmatpush1.msra.mxu0 0.0
    %536 = vmatprep.subr.mxu0 0.0
    %537 = vmatpush1.msra.mxu0 0.0
    %538 = vmatprep.subr.mxu0 0.0
    %539 = vmatpush1.msra.mxu0 0.0
    %540 = vmatprep.subr.mxu0 0.0
    %541 = vmatpush1.msra.mxu0 0.0
    %542 = vmatprep.subr.mxu0 0.0
    %543 = vmatpush1.msra.mxu0 0.0
    %544 = vmatprep.mubr.f32.mxu0 0.0
    %545 = vmatmul.mubr.f32.gmra.mrb[0].mxu0 %v478
    %v546 = vpop.f32.mrb[0].mxu0
    %v547 = vadd.f32 0.0, %v546
    %v548 = vpop.f32.mrb[0].mxu0
    %549 = vdwg.mxu0
    %v550 = vadd.f32 %v360, %v547
    %v551 = vxor.u32 %v550, 2147483648
    %v552 = vmul.f32 %v551, 1.442695
    %v553 = vpow.pop %v552
    %v554 = vadd.f32 %v553, 1.0
    %v555 = vrcp.pop %v554
    %v556 = vmul.f32 1.0, %v555
    %v557 = vtanh.pop %v550
    %v558 = vmul.f32 %v556, %v249
    %560 = vrot.lane.b32.xlu0 %v557, 64
    %v561 = vpop.permute.xlu0 %560
    %v563 = vmul.f32 %v556, %v561
    %565 = vrot.lane.b32.xlu0 %v563, 32
    %v566 = vpop.permute.xlu0 %565
    %v568 = vadd.f32 %v558, %v566
    %v569 = vtanh.pop %v568
    %571 = vrot.lane.b32.xlu0 %v569, 64
    %v572 = vpop.permute.xlu0 %571
    %v574 = vmul.f32 %v556, %v572
    %v575 = vsel %vm465, %v574, %v248
    %v576 = vsel %vm465, %v568, %v249
    %v577 = vsel %vm42, %v353, 0
    %579 = vmatprep.subr.mxu0 0.0
    %580 = vmatpush1.msra.mxu0 %v33
    %581 = vmatprep.subr.mxu0 0.0
    %582 = vmatpush1.msra.mxu0 %v34
    %583 = vmatprep.subr.mxu0 0.0
    %584 = vmatpush1.msra.mxu0 %v35
    %585 = vmatprep.subr.mxu0 0.0
    %586 = vmatpush1.msra.mxu0 %v36
    %587 = vmatprep.subr.mxu0 0.0
    %588 = vmatpush1.msra.mxu0 0.0
    %589 = vmatprep.subr.mxu0 0.0
    %590 = vmatpush1.msra.mxu0 0.0
    %591 = vmatprep.subr.mxu0 0.0
    %592 = vmatpush1.msra.mxu0 0.0
    %593 = vmatprep.subr.mxu0 0.0
    %594 = vmatpush1.msra.mxu0 0.0
    %595 = vmatprep.subr.mxu0 0.0
    %596 = vmatpush1.msra.mxu0 0.0
    %597 = vmatprep.subr.mxu0 0.0
    %598 = vmatpush1.msra.mxu0 0.0
    %599 = vmatprep.subr.mxu0 0.0
    %600 = vmatpush1.msra.mxu0 0.0
    %601 = vmatprep.subr.mxu0 0.0
    %602 = vmatpush1.msra.mxu0 0.0
    %603 = vmatprep.subr.mxu0 0.0
    %604 = vmatpush1.msra.mxu0 0.0
    %605 = vmatprep.subr.mxu0 0.0
    %606 = vmatpush1.msra.mxu0 0.0
    %607 = vmatprep.subr.mxu0 0.0
    %608 = vmatpush1.msra.mxu0 0.0
    %609 = vmatprep.subr.mxu0 0.0
    %610 = vmatpush1.msra.mxu0 0.0
    %611 = vmatprep.subr.mxu0 0.0
    %612 = vmatpush1.msra.mxu0 0.0
    %613 = vmatprep.subr.mxu0 0.0
    %614 = vmatpush1.msra.mxu0 0.0
    %615 = vmatprep.subr.mxu0 0.0
    %616 = vmatpush1.msra.mxu0 0.0
    %617 = vmatprep.subr.mxu0 0.0
    %618 = vmatpush1.msra.mxu0 0.0
    %619 = vmatprep.subr.mxu0 0.0
    %620 = vmatpush1.msra.mxu0 0.0
    %621 = vmatprep.subr.mxu0 0.0
    %622 = vmatpush1.msra.mxu0 0.0
    %623 = vmatprep.subr.mxu0 0.0
    %624 = vmatpush1.msra.mxu0 0.0
    %625 = vmatprep.subr.mxu0 0.0
    %626 = vmatpush1.msra.mxu0 0.0
    %627 = vmatprep.subr.mxu0 0.0
    %628 = vmatpush1.msra.mxu0 0.0
    %629 = vmatprep.subr.mxu0 0.0
    %630 = vmatpush1.msra.mxu0 0.0
    %631 = vmatprep.subr.mxu0 0.0
    %632 = vmatpush1.msra.mxu0 0.0
    %633 = vmatprep.subr.mxu0 0.0
    %634 = vmatpush1.msra.mxu0 0.0
    %635 = vmatprep.subr.mxu0 0.0
    %636 = vmatpush1.msra.mxu0 0.0
    %637 = vmatprep.subr.mxu0 0.0
    %638 = vmatpush1.msra.mxu0 0.0
    %639 = vmatprep.subr.mxu0 0.0
    %640 = vmatpush1.msra.mxu0 0.0
    %641 = vmatprep.subr.mxu0 0.0
    %642 = vmatpush1.msra.mxu0 0.0
    %643 = vmatprep.mubr.f32.mxu0 0.0
    %644 = vmatmul.mubr.f32.gmra.mrb[0].mxu0 %v577
    %v645 = vpop.f32.mrb[0].mxu0
    %v646 = vadd.f32 0.0, %v645
    %v647 = vpop.f32.mrb[0].mxu0
    %648 = vdwg.mxu0
    %v649 = vadd.f32 %v361, %v646
    %v650 = vxor.u32 %v649, 2147483648
    %v651 = vmul.f32 %v650, 1.442695
    %v652 = vpow.pop %v651
    %v653 = vadd.f32 %v652, 1.0
    %v654 = vrcp.pop %v653
    %v655 = vmul.f32 1.0, %v654
    %v656 = vtanh.pop %v649
    %v657 = vmul.f32 %v655, %v357
    %659 = vrot.lane.b32.xlu0 %v656, 64
    %v660 = vpop.permute.xlu0 %659
    %v662 = vmul.f32 %v655, %v660
    %664 = vrot.lane.b32.xlu0 %v662, 32
    %v665 = vpop.permute.xlu0 %664
    %v667 = vadd.f32 %v657, %v665
    %v668 = vtanh.pop %v667
    %670 = vrot.lane.b32.xlu0 %v668, 64
    %v671 = vpop.permute.xlu0 %670
    %v673 = vmul.f32 %v655, %v671
    %v674 = vsel %vm363, 1, 0
    %675 = vset.pattern.permute.xlu0 0
    %676 = vperm.xlu0 %675, %v674
    %v677 = vpop.permute.xlu0 %676
    %vm678 = vcmp.eq.s32.totalorder %v677, 1
    %v679 = vsel %vm678, %v673, 0.0
    %681 = vrot.lane.b32.xlu0 %v679, 32
    %v682 = vpop.permute.xlu0 %681
    %s684 = scalar_lea.vmem %s4, 48
    %685 = vst.msk [vmem:[%s684] sm:$0xff] %vm42, %v682
    %v686 = vsel %vm678, %v673, %v350
    %v687 = vsel %vm678, %v667, %v357
    %s688 = scalar_lea.vmem %s1, 48
    %v689 = vld [vmem:[%s688] sm:$0xff]
    %v690 = vld [vmem:[%s688 + $0x8] sm:$0xff]
    %v691 = vld [vmem:[%s688 + $0x10] sm:$0xff]
    %vm692 = vcmp.gt.s32.totalorder %v22, 2
    %vm693 = vcmp.gt.s32.totalorder %v22, 5
    %695 = vrot.lane.b32.xlu0 %v473, 32
    %v696 = vpop.permute.xlu0 %695
    %v697 = vsel %vm42, %v696, 0
    %699 = vmatprep.subr.mxu0 0.0
    %700 = vmatpush1.msra.mxu0 %v23
    %701 = vmatprep.subr.mxu0 0.0
    %702 = vmatpush1.msra.mxu0 %v24
    %703 = vmatprep.subr.mxu0 0.0
    %704 = vmatpush1.msra.mxu0 %v25
    %705 = vmatprep.subr.mxu0 0.0
    %706 = vmatpush1.msra.mxu0 %v26
    %707 = vmatprep.subr.mxu0 0.0
    %708 = vmatpush1.msra.mxu0 0.0
    %709 = vmatprep.subr.mxu0 0.0
    %710 = vmatpush1.msra.mxu0 0.0
    %711 = vmatprep.subr.mxu0 0.0
    %712 = vmatpush1.msra.mxu0 0.0
    %713 = vmatprep.subr.mxu0 0.0
    %714 = vmatpush1.msra.mxu0 0.0
    %715 = vmatprep.subr.mxu0 0.0
    %716 = vmatpush1.msra.mxu0 0.0
    %717 = vmatprep.subr.mxu0 0.0
    %718 = vmatpush1.msra.mxu0 0.0
    %719 = vmatprep.subr.mxu0 0.0
    %720 = vmatpush1.msra.mxu0 0.0
    %721 = vmatprep.subr.mxu0 0.0
    %722 = vmatpush1.msra.mxu0 0.0
    %723 = vmatprep.subr.mxu0 0.0
    %724 = vmatpush1.msra.mxu0 0.0
    %725 = vmatprep.subr.mxu0 0.0
    %726 = vmatpush1.msra.mxu0 0.0
    %727 = vmatprep.subr.mxu0 0.0
    %728 = vmatpush1.msra.mxu0 0.0
    %729 = vmatprep.subr.mxu0 0.0
    %730 = vmatpush1.msra.mxu0 0.0
    %731 = vmatprep.subr.mxu0 0.0
    %732 = vmatpush1.msra.mxu0 0.0
    %733 = vmatprep.subr.mxu0 0.0
    %734 = vmatpush1.msra.mxu0 0.0
    %735 = vmatprep.subr.mxu0 0.0
    %736 = vmatpush1.msra.mxu0 0.0
    %737 = vmatprep.subr.mxu0 0.0
    %738 = vmatpush1.msra.mxu0 0.0
    %739 = vmatprep.subr.mxu0 0.0
    %740 = vmatpush1.msra.mxu0 0.0
    %741 = vmatprep.subr.mxu0 0.0
    %742 = vmatpush1.msra.mxu0 0.0
    %743 = vmatprep.subr.mxu0 0.0
    %744 = vmatpush1.msra.mxu0 0.0
    %745 = vmatprep.subr.mxu0 0.0
    %746 = vmatpush1.msra.mxu0 0.0
    %747 = vmatprep.subr.mxu0 0.0
    %748 = vmatpush1.msra.mxu0 0.0
    %749 = vmatprep.subr.mxu0 0.0
    %750 = vmatpush1.msra.mxu0 0.0
    %751 = vmatprep.subr.mxu0 0.0
    %752 = vmatpush1.msra.mxu0 0.0
    %753 = vmatprep.subr.mxu0 0.0
    %754 = vmatpush1.msra.mxu0 0.0
    %755 = vmatprep.subr.mxu0 0.0
    %756 = vmatpush1.msra.mxu0 0.0
    %757 = vmatprep.subr.mxu0 0.0
    %758 = vmatpush1.msra.mxu0 0.0
    %759 = vmatprep.subr.mxu0 0.0
    %760 = vmatpush1.msra.mxu0 0.0
    %761 = vmatprep.subr.mxu0 0.0
    %762 = vmatpush1.msra.mxu0 0.0
    %763 = vmatprep.mubr.f32.mxu0 0.0
    %764 = vmatmul.mubr.f32.gmra.mrb[0].mxu0 %v697
    %v765 = vpop.f32.mrb[0].mxu0
    %v766 = vadd.f32 0.0, %v765
    %v767 = vpop.f32.mrb[0].mxu0
    %768 = vdwg.mxu0
    %v769 = vadd.f32 %v689, %v766
    %v770 = vxor.u32 %v769, 2147483648
    %v771 = vmul.f32 %v770, 1.442695
    %v772 = vpow.pop %v771
    %v773 = vadd.f32 %v772, 1.0
    %v774 = vrcp.pop %v773
    %v775 = vmul.f32 1.0, %v774
    %v776 = vtanh.pop %v769
    %v777 = vmul.f32 %v775, %v474
    %779 = vrot.lane.b32.xlu0 %v776, 64
    %v780 = vpop.permute.xlu0 %779
    %v782 = vmul.f32 %v775, %v780
    %784 = vrot.lane.b32.xlu0 %v782, 32
    %v785 = vpop.permute.xlu0 %784
    %v787 = vadd.f32 %v777, %v785
    %v788 = vtanh.pop %v787
    %790 = vrot.lane.b32.xlu0 %v788, 64
    %v791 = vpop.permute.xlu0 %790
    %v793 = vmul.f32 %v775, %v791
    %v794 = vsel %vm692, 1, 0
    %795 = vset.pattern.permute.xlu0 0
    %796 = vperm.xlu0 %795, %v794
    %v797 = vpop.permute.xlu0 %796
    %vm798 = vcmp.eq.s32.totalorder %v797, 1
    %v799 = vsel %vm798, %v793, 0.0
    %801 = vrot.lane.b32.xlu0 %v799, 32
    %v802 = vpop.permute.xlu0 %801
    %s804 = scalar_lea.vmem %s3, 16
    %805 = vst.msk [vmem:[%s804] sm:$0xff] %vm42, %v802
    %v806 = vsel %vm798, %v793, %v473
    %v807 = vsel %vm798, %v787, %v474
    %809 = vrot.lane.b32.xlu0 %v575, 32
    %v810 = vpop.permute.xlu0 %809
    %v811 = vsel %vm42, %v810, 0
    %813 = vmatprep.subr.mxu0 0.0
    %814 = vmatpush1.msra.mxu0 %v28
    %815 = vmatprep.subr.mxu0 0.0
    %816 = vmatpush1.msra.mxu0 %v29
    %817 = vmatprep.subr.mxu0 0.0
    %818 = vmatpush1.msra.mxu0 %v30
    %819 = vmatprep.subr.mxu0 0.0
    %820 = vmatpush1.msra.mxu0 %v31
    %821 = vmatprep.subr.mxu0 0.0
    %822 = vmatpush1.msra.mxu0 0.0
    %823 = vmatprep.subr.mxu0 0.0
    %824 = vmatpush1.msra.mxu0 0.0
    %825 = vmatprep.subr.mxu0 0.0
    %826 = vmatpush1.msra.mxu0 0.0
    %827 = vmatprep.subr.mxu0 0.0
    %828 = vmatpush1.msra.mxu0 0.0
    %829 = vmatprep.subr.mxu0 0.0
    %830 = vmatpush1.msra.mxu0 0.0
    %831 = vmatprep.subr.mxu0 0.0
    %832 = vmatpush1.msra.mxu0 0.0
    %833 = vmatprep.subr.mxu0 0.0
    %834 = vmatpush1.msra.mxu0 0.0
    %835 = vmatprep.subr.mxu0 0.0
    %836 = vmatpush1.msra.mxu0 0.0
    %837 = vmatprep.subr.mxu0 0.0
    %838 = vmatpush1.msra.mxu0 0.0
    %839 = vmatprep.subr.mxu0 0.0
    %840 = vmatpush1.msra.mxu0 0.0
    %841 = vmatprep.subr.mxu0 0.0
    %842 = vmatpush1.msra.mxu0 0.0
    %843 = vmatprep.subr.mxu0 0.0
    %844 = vmatpush1.msra.mxu0 0.0
    %845 = vmatprep.subr.mxu0 0.0
    %846 = vmatpush1.msra.mxu0 0.0
    %847 = vmatprep.subr.mxu0 0.0
    %848 = vmatpush1.msra.mxu0 0.0
    %849 = vmatprep.subr.mxu0 0.0
    %850 = vmatpush1.msra.mxu0 0.0
    %851 = vmatprep.subr.mxu0 0.0
    %852 = vmatpush1.msra.mxu0 0.0
    %853 = vmatprep.subr.mxu0 0.0
    %854 = vmatpush1.msra.mxu0 0.0
    %855 = vmatprep.subr.mxu0 0.0
    %856 = vmatpush1.msra.mxu0 0.0
    %857 = vmatprep.subr.mxu0 0.0
    %858 = vmatpush1.msra.mxu0 0.0
    %859 = vmatprep.subr.mxu0 0.0
    %860 = vmatpush1.msra.mxu0 0.0
    %861 = vmatprep.subr.mxu0 0.0
    %862 = vmatpush1.msra.mxu0 0.0
    %863 = vmatprep.subr.mxu0 0.0
    %864 = vmatpush1.msra.mxu0 0.0
    %865 = vmatprep.subr.mxu0 0.0
    %866 = vmatpush1.msra.mxu0 0.0
    %867 = vmatprep.subr.mxu0 0.0
    %868 = vmatpush1.msra.mxu0 0.0
    %869 = vmatprep.subr.mxu0 0.0
    %870 = vmatpush1.msra.mxu0 0.0
    %871 = vmatprep.subr.mxu0 0.0
    %872 = vmatpush1.msra.mxu0 0.0
    %873 = vmatprep.subr.mxu0 0.0
    %874 = vmatpush1.msra.mxu0 0.0
    %875 = vmatprep.subr.mxu0 0.0
    %876 = vmatpush1.msra.mxu0 0.0
    %877 = vmatprep.mubr.f32.mxu0 0.0
    %878 = vmatmul.mubr.f32.gmra.mrb[0].mxu0 %v811
    %v879 = vpop.f32.mrb[0].mxu0
    %v880 = vadd.f32 0.0, %v879
    %v881 = vpop.f32.mrb[0].mxu0
    %882 = vdwg.mxu0
    %v883 = vadd.f32 %v690, %v880
    %v884 = vxor.u32 %v883, 2147483648
    %v885 = vmul.f32 %v884, 1.442695
    %v886 = vpow.pop %v885
    %v887 = vadd.f32 %v886, 1.0
    %v888 = vrcp.pop %v887
    %v889 = vmul.f32 1.0, %v888
    %v890 = vtanh.pop %v883
    %v891 = vmul.f32 %v889, %v576
    %893 = vrot.lane.b32.xlu0 %v890, 64
    %v894 = vpop.permute.xlu0 %893
    %v896 = vmul.f32 %v889, %v894
    %898 = vrot.lane.b32.xlu0 %v896, 32
    %v899 = vpop.permute.xlu0 %898
    %v901 = vadd.f32 %v891, %v899
    %v902 = vtanh.pop %v901
    %904 = vrot.lane.b32.xlu0 %v902, 64
    %v905 = vpop.permute.xlu0 %904
    %v907 = vmul.f32 %v889, %v905
    %v908 = vsel %vm798, %v907, %v575
    %v909 = vsel %vm798, %v901, %v576
    %911 = vrot.lane.b32.xlu0 %v686, 32
    %v912 = vpop.permute.xlu0 %911
    %v913 = vsel %vm42, %v912, 0
    %915 = vmatprep.subr.mxu0 0.0
    %916 = vmatpush1.msra.mxu0 %v33
    %917 = vmatprep.subr.mxu0 0.0
    %918 = vmatpush1.msra.mxu0 %v34
    %919 = vmatprep.subr.mxu0 0.0
    %920 = vmatpush1.msra.mxu0 %v35
    %921 = vmatprep.subr.mxu0 0.0
    %922 = vmatpush1.msra.mxu0 %v36
    %923 = vmatprep.subr.mxu0 0.0
    %924 = vmatpush1.msra.mxu0 0.0
    %925 = vmatprep.subr.mxu0 0.0
    %926 = vmatpush1.msra.mxu0 0.0
    %927 = vmatprep.subr.mxu0 0.0
    %928 = vmatpush1.msra.mxu0 0.0
    %929 = vmatprep.subr.mxu0 0.0
    %930 = vmatpush1.msra.mxu0 0.0
    %931 = vmatprep.subr.mxu0 0.0
    %932 = vmatpush1.msra.mxu0 0.0
    %933 = vmatprep.subr.mxu0 0.0
    %934 = vmatpush1.msra.mxu0 0.0
    %935 = vmatprep.subr.mxu0 0.0
    %936 = vmatpush1.msra.mxu0 0.0
    %937 = vmatprep.subr.mxu0 0.0
    %938 = vmatpush1.msra.mxu0 0.0
    %939 = vmatprep.subr.mxu0 0.0
    %940 = vmatpush1.msra.mxu0 0.0
    %941 = vmatprep.subr.mxu0 0.0
    %942 = vmatpush1.msra.mxu0 0.0
    %943 = vmatprep.subr.mxu0 0.0
    %944 = vmatpush1.msra.mxu0 0.0
    %945 = vmatprep.subr.mxu0 0.0
    %946 = vmatpush1.msra.mxu0 0.0
    %947 = vmatprep.subr.mxu0 0.0
    %948 = vmatpush1.msra.mxu0 0.0
    %949 = vmatprep.subr.mxu0 0.0
    %950 = vmatpush1.msra.mxu0 0.0
    %951 = vmatprep.subr.mxu0 0.0
    %952 = vmatpush1.msra.mxu0 0.0
    %953 = vmatprep.subr.mxu0 0.0
    %954 = vmatpush1.msra.mxu0 0.0
    %955 = vmatprep.subr.mxu0 0.0
    %956 = vmatpush1.msra.mxu0 0.0
    %957 = vmatprep.subr.mxu0 0.0
    %958 = vmatpush1.msra.mxu0 0.0
    %959 = vmatprep.subr.mxu0 0.0
    %960 = vmatpush1.msra.mxu0 0.0
    %961 = vmatprep.subr.mxu0 0.0
    %962 = vmatpush1.msra.mxu0 0.0
    %963 = vmatprep.subr.mxu0 0.0
    %964 = vmatpush1.msra.mxu0 0.0
    %965 = vmatprep.subr.mxu0 0.0
    %966 = vmatpush1.msra.mxu0 0.0
    %967 = vmatprep.subr.mxu0 0.0
    %968 = vmatpush1.msra.mxu0 0.0
    %969 = vmatprep.subr.mxu0 0.0
    %970 = vmatpush1.msra.mxu0 0.0
    %971 = vmatprep.subr.mxu0 0.0
    %972 = vmatpush1.msra.mxu0 0.0
    %973 = vmatprep.subr.mxu0 0.0
    %974 = vmatpush1.msra.mxu0 0.0
    %975 = vmatprep.subr.mxu0 0.0
    %976 = vmatpush1.msra.mxu0 0.0
    %977 = vmatprep.subr.mxu0 0.0
    %978 = vmatpush1.msra.mxu0 0.0
    %979 = vmatprep.mubr.f32.mxu0 0.0
    %980 = vmatmul.mubr.f32.gmra.mrb[0].mxu0 %v913
    %v981 = vpop.f32.mrb[0].mxu0
    %v982 = vadd.f32 0.0, %v981
    %v983 = vpop.f32.mrb[0].mxu0
    %984 = vdwg.mxu0
    %v985 = vadd.f32 %v691, %v982
    %v986 = vxor.u32 %v985, 2147483648
    %v987 = vmul.f32 %v986, 1.442695
    %v988 = vpow.pop %v987
    %v989 = vadd.f32 %v988, 1.0
    %v990 = vrcp.pop %v989
    %v991 = vmul.f32 1.0, %v990
    %v992 = vtanh.pop %v985
    %v993 = vmul.f32 %v991, %v687
    %995 = vrot.lane.b32.xlu0 %v992, 64
    %v996 = vpop.permute.xlu0 %995
    %v998 = vmul.f32 %v991, %v996
    %1000 = vrot.lane.b32.xlu0 %v998, 32
    %v1001 = vpop.permute.xlu0 %1000
    %v1003 = vadd.f32 %v993, %v1001
    %v1004 = vtanh.pop %v1003
    %1006 = vrot.lane.b32.xlu0 %v1004, 64
    %v1007 = vpop.permute.xlu0 %1006
    %v1009 = vmul.f32 %v991, %v1007
    %v1010 = vsel %vm693, 1, 0
    %1011 = vset.pattern.permute.xlu0 0
    %1012 = vperm.xlu0 %1011, %v1010
    %v1013 = vpop.permute.xlu0 %1012
    %vm1014 = vcmp.eq.s32.totalorder %v1013, 1
    %v1015 = vsel %vm1014, %v1009, 0.0
    %1017 = vrot.lane.b32.xlu0 %v1015, 32
    %v1018 = vpop.permute.xlu0 %1017
    %s1020 = scalar_lea.vmem %s4, 40
    %1021 = vst.msk [vmem:[%s1020] sm:$0xff] %vm42, %v1018
    %v1022 = vsel %vm1014, %v1009, %v686
    %v1023 = vsel %vm1014, %v1003, %v687
    %s1024 = scalar_lea.vmem %s1, 72
    %v1025 = vld [vmem:[%s1024] sm:$0xff]
    %v1026 = vld [vmem:[%s1024 + $0x8] sm:$0xff]
    %v1027 = vld [vmem:[%s1024 + $0x10] sm:$0xff]
    %vm1028 = vcmp.gt.s32.totalorder %v22, 3
    %vm1029 = vcmp.gt.s32.totalorder %v22, 4
    %1031 = vrot.lane.b32.xlu0 %v806, 32
    %v1032 = vpop.permute.xlu0 %1031
    %v1033 = vsel %vm42, %v1032, 0
    %1035 = vmatprep.subr.mxu0 0.0
    %1036 = vmatpush1.msra.mxu0 %v23
    %1037 = vmatprep.subr.mxu0 0.0
    %1038 = vmatpush1.msra.mxu0 %v24
    %1039 = vmatprep.subr.mxu0 0.0
    %1040 = vmatpush1.msra.mxu0 %v25
    %1041 = vmatprep.subr.mxu0 0.0
    %1042 = vmatpush1.msra.mxu0 %v26
    %1043 = vmatprep.subr.mxu0 0.0
    %1044 = vmatpush1.msra.mxu0 0.0
    %1045 = vmatprep.subr.mxu0 0.0
    %1046 = vmatpush1.msra.mxu0 0.0
    %1047 = vmatprep.subr.mxu0 0.0
    %1048 = vmatpush1.msra.mxu0 0.0
    %1049 = vmatprep.subr.mxu0 0.0
    %1050 = vmatpush1.msra.mxu0 0.0
    %1051 = vmatprep.subr.mxu0 0.0
    %1052 = vmatpush1.msra.mxu0 0.0
    %1053 = vmatprep.subr.mxu0 0.0
    %1054 = vmatpush1.msra.mxu0 0.0
    %1055 = vmatprep.subr.mxu0 0.0
    %1056 = vmatpush1.msra.mxu0 0.0
    %1057 = vmatprep.subr.mxu0 0.0
    %1058 = vmatpush1.msra.mxu0 0.0
    %1059 = vmatprep.subr.mxu0 0.0
    %1060 = vmatpush1.msra.mxu0 0.0
    %1061 = vmatprep.subr.mxu0 0.0
    %1062 = vmatpush1.msra.mxu0 0.0
    %1063 = vmatprep.subr.mxu0 0.0
    %1064 = vmatpush1.msra.mxu0 0.0
    %1065 = vmatprep.subr.mxu0 0.0
    %1066 = vmatpush1.msra.mxu0 0.0
    %1067 = vmatprep.subr.mxu0 0.0
    %1068 = vmatpush1.msra.mxu0 0.0
    %1069 = vmatprep.subr.mxu0 0.0
    %1070 = vmatpush1.msra.mxu0 0.0
    %1071 = vmatprep.subr.mxu0 0.0
    %1072 = vmatpush1.msra.mxu0 0.0
    %1073 = vmatprep.subr.mxu0 0.0
    %1074 = vmatpush1.msra.mxu0 0.0
    %1075 = vmatprep.subr.mxu0 0.0
    %1076 = vmatpush1.msra.mxu0 0.0
    %1077 = vmatprep.subr.mxu0 0.0
    %1078 = vmatpush1.msra.mxu0 0.0
    %1079 = vmatprep.subr.mxu0 0.0
    %1080 = vmatpush1.msra.mxu0 0.0
    %1081 = vmatprep.subr.mxu0 0.0
    %1082 = vmatpush1.msra.mxu0 0.0
    %1083 = vmatprep.subr.mxu0 0.0
    %1084 = vmatpush1.msra.mxu0 0.0
    %1085 = vmatprep.subr.mxu0 0.0
    %1086 = vmatpush1.msra.mxu0 0.0
    %1087 = vmatprep.subr.mxu0 0.0
    %1088 = vmatpush1.msra.mxu0 0.0
    %1089 = vmatprep.subr.mxu0 0.0
    %1090 = vmatpush1.msra.mxu0 0.0
    %1091 = vmatprep.subr.mxu0 0.0
    %1092 = vmatpush1.msra.mxu0 0.0
    %1093 = vmatprep.subr.mxu0 0.0
    %1094 = vmatpush1.msra.mxu0 0.0
    %1095 = vmatprep.subr.mxu0 0.0
    %1096 = vmatpush1.msra.mxu0 0.0
    %1097 = vmatprep.subr.mxu0 0.0
    %1098 = vmatpush1.msra.mxu0 0.0
    %1099 = vmatprep.mubr.f32.mxu0 0.0
    %1100 = vmatmul.mubr.f32.gmra.mrb[0].mxu0 %v1033
    %v1101 = vpop.f32.mrb[0].mxu0
    %v1102 = vadd.f32 0.0, %v1101
    %v1103 = vpop.f32.mrb[0].mxu0
    %1104 = vdwg.mxu0
    %v1105 = vadd.f32 %v1025, %v1102
    %v1106 = vxor.u32 %v1105, 2147483648
    %v1107 = vmul.f32 %v1106, 1.442695
    %v1108 = vpow.pop %v1107
    %v1109 = vadd.f32 %v1108, 1.0
    %v1110 = vrcp.pop %v1109
    %v1111 = vmul.f32 1.0, %v1110
    %v1112 = vtanh.pop %v1105
    %v1113 = vmul.f32 %v1111, %v807
    %1115 = vrot.lane.b32.xlu0 %v1112, 64
    %v1116 = vpop.permute.xlu0 %1115
    %v1118 = vmul.f32 %v1111, %v1116
    %1120 = vrot.lane.b32.xlu0 %v1118, 32
    %v1121 = vpop.permute.xlu0 %1120
    %v1123 = vadd.f32 %v1113, %v1121
    %v1124 = vtanh.pop %v1123
    %1126 = vrot.lane.b32.xlu0 %v1124, 64
    %v1127 = vpop.permute.xlu0 %1126
    %v1129 = vmul.f32 %v1111, %v1127
    %v1130 = vsel %vm1028, 1, 0
    %1131 = vset.pattern.permute.xlu0 0
    %1132 = vperm.xlu0 %1131, %v1130
    %v1133 = vpop.permute.xlu0 %1132
    %vm1134 = vcmp.eq.s32.totalorder %v1133, 1
    %v1135 = vsel %vm1134, %v1129, 0.0
    %1137 = vrot.lane.b32.xlu0 %v1135, 32
    %v1138 = vpop.permute.xlu0 %1137
    %s1140 = scalar_lea.vmem %s3, 24
    %1141 = vst.msk [vmem:[%s1140] sm:$0xff] %vm42, %v1138
    %v1142 = vsel %vm1134, %v1129, %v806
    %v1143 = vsel %vm1134, %v1123, %v807
    %1145 = vrot.lane.b32.xlu0 %v908, 32
    %v1146 = vpop.permute.xlu0 %1145
    %v1147 = vsel %vm42, %v1146, 0
    %1149 = vmatprep.subr.mxu0 0.0
    %1150 = vmatpush1.msra.mxu0 %v28
    %1151 = vmatprep.subr.mxu0 0.0
    %1152 = vmatpush1.msra.mxu0 %v29
    %1153 = vmatprep.subr.mxu0 0.0
    %1154 = vmatpush1.msra.mxu0 %v30
    %1155 = vmatprep.subr.mxu0 0.0
    %1156 = vmatpush1.msra.mxu0 %v31
    %1157 = vmatprep.subr.mxu0 0.0
    %1158 = vmatpush1.msra.mxu0 0.0
    %1159 = vmatprep.subr.mxu0 0.0
    %1160 = vmatpush1.msra.mxu0 0.0
    %1161 = vmatprep.subr.mxu0 0.0
    %1162 = vmatpush1.msra.mxu0 0.0
    %1163 = vmatprep.subr.mxu0 0.0
    %1164 = vmatpush1.msra.mxu0 0.0
    %1165 = vmatprep.subr.mxu0 0.0
    %1166 = vmatpush1.msra.mxu0 0.0
    %1167 = vmatprep.subr.mxu0 0.0
    %1168 = vmatpush1.msra.mxu0 0.0
    %1169 = vmatprep.subr.mxu0 0.0
    %1170 = vmatpush1.msra.mxu0 0.0
    %1171 = vmatprep.subr.mxu0 0.0
    %1172 = vmatpush1.msra.mxu0 0.0
    %1173 = vmatprep.subr.mxu0 0.0
    %1174 = vmatpush1.msra.mxu0 0.0
    %1175 = vmatprep.subr.mxu0 0.0
    %1176 = vmatpush1.msra.mxu0 0.0
    %1177 = vmatprep.subr.mxu0 0.0
    %1178 = vmatpush1.msra.mxu0 0.0
    %1179 = vmatprep.subr.mxu0 0.0
    %1180 = vmatpush1.msra.mxu0 0.0
    %1181 = vmatprep.subr.mxu0 0.0
    %1182 = vmatpush1.msra.mxu0 0.0
    %1183 = vmatprep.subr.mxu0 0.0
    %1184 = vmatpush1.msra.mxu0 0.0
    %1185 = vmatprep.subr.mxu0 0.0
    %1186 = vmatpush1.msra.mxu0 0.0
    %1187 = vmatprep.subr.mxu0 0.0
    %1188 = vmatpush1.msra.mxu0 0.0
    %1189 = vmatprep.subr.mxu0 0.0
    %1190 = vmatpush1.msra.mxu0 0.0
    %1191 = vmatprep.subr.mxu0 0.0
    %1192 = vmatpush1.msra.mxu0 0.0
    %1193 = vmatprep.subr.mxu0 0.0
    %1194 = vmatpush1.msra.mxu0 0.0
    %1195 = vmatprep.subr.mxu0 0.0
    %1196 = vmatpush1.msra.mxu0 0.0
    %1197 = vmatprep.subr.mxu0 0.0
    %1198 = vmatpush1.msra.mxu0 0.0
    %1199 = vmatprep.subr.mxu0 0.0
    %1200 = vmatpush1.msra.mxu0 0.0
    %1201 = vmatprep.subr.mxu0 0.0
    %1202 = vmatpush1.msra.mxu0 0.0
    %1203 = vmatprep.subr.mxu0 0.0
    %1204 = vmatpush1.msra.mxu0 0.0
    %1205 = vmatprep.subr.mxu0 0.0
    %1206 = vmatpush1.msra.mxu0 0.0
    %1207 = vmatprep.subr.mxu0 0.0
    %1208 = vmatpush1.msra.mxu0 0.0
    %1209 = vmatprep.subr.mxu0 0.0
    %1210 = vmatpush1.msra.mxu0 0.0
    %1211 = vmatprep.subr.mxu0 0.0
    %1212 = vmatpush1.msra.mxu0 0.0
    %1213 = vmatprep.mubr.f32.mxu0 0.0
    %1214 = vmatmul.mubr.f32.gmra.mrb[0].mxu0 %v1147
    %v1215 = vpop.f32.mrb[0].mxu0
    %v1216 = vadd.f32 0.0, %v1215
    %v1217 = vpop.f32.mrb[0].mxu0
    %1218 = vdwg.mxu0
    %v1219 = vadd.f32 %v1026, %v1216
    %v1220 = vxor.u32 %v1219, 2147483648
    %v1221 = vmul.f32 %v1220, 1.442695
    %v1222 = vpow.pop %v1221
    %v1223 = vadd.f32 %v1222, 1.0
    %v1224 = vrcp.pop %v1223
    %v1225 = vmul.f32 1.0, %v1224
    %v1226 = vtanh.pop %v1219
    %v1227 = vmul.f32 %v1225, %v909
    %1229 = vrot.lane.b32.xlu0 %v1226, 64
    %v1230 = vpop.permute.xlu0 %1229
    %v1232 = vmul.f32 %v1225, %v1230
    %1234 = vrot.lane.b32.xlu0 %v1232, 32
    %v1235 = vpop.permute.xlu0 %1234
    %v1237 = vadd.f32 %v1227, %v1235
    %v1238 = vtanh.pop %v1237
    %1240 = vrot.lane.b32.xlu0 %v1238, 64
    %v1241 = vpop.permute.xlu0 %1240
    %v1243 = vmul.f32 %v1225, %v1241
    %v1244 = vsel %vm1134, %v1243, %v908
    %v1245 = vsel %vm1134, %v1237, %v909
    %1247 = vrot.lane.b32.xlu0 %v1022, 32
    %v1248 = vpop.permute.xlu0 %1247
    %v1249 = vsel %vm42, %v1248, 0
    %1251 = vmatprep.subr.mxu0 0.0
    %1252 = vmatpush1.msra.mxu0 %v33
    %1253 = vmatprep.subr.mxu0 0.0
    %1254 = vmatpush1.msra.mxu0 %v34
    %1255 = vmatprep.subr.mxu0 0.0
    %1256 = vmatpush1.msra.mxu0 %v35
    %1257 = vmatprep.subr.mxu0 0.0
    %1258 = vmatpush1.msra.mxu0 %v36
    %1259 = vmatprep.subr.mxu0 0.0
    %1260 = vmatpush1.msra.mxu0 0.0
    %1261 = vmatprep.subr.mxu0 0.0
    %1262 = vmatpush1.msra.mxu0 0.0
    %1263 = vmatprep.subr.mxu0 0.0
    %1264 = vmatpush1.msra.mxu0 0.0
    %1265 = vmatprep.subr.mxu0 0.0
    %1266 = vmatpush1.msra.mxu0 0.0
    %1267 = vmatprep.subr.mxu0 0.0
    %1268 = vmatpush1.msra.mxu0 0.0
    %1269 = vmatprep.subr.mxu0 0.0
    %1270 = vmatpush1.msra.mxu0 0.0
    %1271 = vmatprep.subr.mxu0 0.0
    %1272 = vmatpush1.msra.mxu0 0.0
    %1273 = vmatprep.subr.mxu0 0.0
    %1274 = vmatpush1.msra.mxu0 0.0
    %1275 = vmatprep.subr.mxu0 0.0
    %1276 = vmatpush1.msra.mxu0 0.0
    %1277 = vmatprep.subr.mxu0 0.0
    %1278 = vmatpush1.msra.mxu0 0.0
    %1279 = vmatprep.subr.mxu0 0.0
    %1280 = vmatpush1.msra.mxu0 0.0
    %1281 = vmatprep.subr.mxu0 0.0
    %1282 = vmatpush1.msra.mxu0 0.0
    %1283 = vmatprep.subr.mxu0 0.0
    %1284 = vmatpush1.msra.mxu0 0.0
    %1285 = vmatprep.subr.mxu0 0.0
    %1286 = vmatpush1.msra.mxu0 0.0
    %1287 = vmatprep.subr.mxu0 0.0
    %1288 = vmatpush1.msra.mxu0 0.0
    %1289 = vmatprep.subr.mxu0 0.0
    %1290 = vmatpush1.msra.mxu0 0.0
    %1291 = vmatprep.subr.mxu0 0.0
    %1292 = vmatpush1.msra.mxu0 0.0
    %1293 = vmatprep.subr.mxu0 0.0
    %1294 = vmatpush1.msra.mxu0 0.0
    %1295 = vmatprep.subr.mxu0 0.0
    %1296 = vmatpush1.msra.mxu0 0.0
    %1297 = vmatprep.subr.mxu0 0.0
    %1298 = vmatpush1.msra.mxu0 0.0
    %1299 = vmatprep.subr.mxu0 0.0
    %1300 = vmatpush1.msra.mxu0 0.0
    %1301 = vmatprep.subr.mxu0 0.0
    %1302 = vmatpush1.msra.mxu0 0.0
    %1303 = vmatprep.subr.mxu0 0.0
    %1304 = vmatpush1.msra.mxu0 0.0
    %1305 = vmatprep.subr.mxu0 0.0
    %1306 = vmatpush1.msra.mxu0 0.0
    %1307 = vmatprep.subr.mxu0 0.0
    %1308 = vmatpush1.msra.mxu0 0.0
    %1309 = vmatprep.subr.mxu0 0.0
    %1310 = vmatpush1.msra.mxu0 0.0
    %1311 = vmatprep.subr.mxu0 0.0
    %1312 = vmatpush1.msra.mxu0 0.0
    %1313 = vmatprep.subr.mxu0 0.0
    %1314 = vmatpush1.msra.mxu0 0.0
    %1315 = vmatprep.mubr.f32.mxu0 0.0
    %1316 = vmatmul.mubr.f32.gmra.mrb[0].mxu0 %v1249
    %v1317 = vpop.f32.mrb[0].mxu0
    %v1318 = vadd.f32 0.0, %v1317
    %v1319 = vpop.f32.mrb[0].mxu0
    %1320 = vdwg.mxu0
    %v1321 = vadd.f32 %v1027, %v1318
    %v1322 = vxor.u32 %v1321, 2147483648
    %v1323 = vmul.f32 %v1322, 1.442695
    %v1324 = vpow.pop %v1323
    %v1325 = vadd.f32 %v1324, 1.0
    %v1326 = vrcp.pop %v1325
    %v1327 = vmul.f32 1.0, %v1326
    %v1328 = vtanh.pop %v1321
    %v1329 = vmul.f32 %v1327, %v1023
    %1331 = vrot.lane.b32.xlu0 %v1328, 64
    %v1332 = vpop.permute.xlu0 %1331
    %v1334 = vmul.f32 %v1327, %v1332
    %1336 = vrot.lane.b32.xlu0 %v1334, 32
    %v1337 = vpop.permute.xlu0 %1336
    %v1339 = vadd.f32 %v1329, %v1337
    %v1340 = vtanh.pop %v1339
    %1342 = vrot.lane.b32.xlu0 %v1340, 64
    %v1343 = vpop.permute.xlu0 %1342
    %v1345 = vmul.f32 %v1327, %v1343
    %v1346 = vsel %vm1029, 1, 0
    %1347 = vset.pattern.permute.xlu0 0
    %1348 = vperm.xlu0 %1347, %v1346
    %v1349 = vpop.permute.xlu0 %1348
    %vm1350 = vcmp.eq.s32.totalorder %v1349, 1
    %v1351 = vsel %vm1350, %v1345, 0.0
    %1353 = vrot.lane.b32.xlu0 %v1351, 32
    %v1354 = vpop.permute.xlu0 %1353
    %s1356 = scalar_lea.vmem %s4, 32
    %1357 = vst.msk [vmem:[%s1356] sm:$0xff] %vm42, %v1354
    %v1358 = vsel %vm1350, %v1345, %v1022
    %v1359 = vsel %vm1350, %v1339, %v1023
    %s1360 = scalar_lea.vmem %s1, 96
    %v1361 = vld [vmem:[%s1360] sm:$0xff]
    %v1362 = vld [vmem:[%s1360 + $0x8] sm:$0xff]
    %v1363 = vld [vmem:[%s1360 + $0x10] sm:$0xff]
    %1365 = vrot.lane.b32.xlu0 %v1142, 32
    %v1366 = vpop.permute.xlu0 %1365
    %v1367 = vsel %vm42, %v1366, 0
    %1369 = vmatprep.subr.mxu0 0.0
    %1370 = vmatpush1.msra.mxu0 %v23
    %1371 = vmatprep.subr.mxu0 0.0
    %1372 = vmatpush1.msra.mxu0 %v24
    %1373 = vmatprep.subr.mxu0 0.0
    %1374 = vmatpush1.msra.mxu0 %v25
    %1375 = vmatprep.subr.mxu0 0.0
    %1376 = vmatpush1.msra.mxu0 %v26
    %1377 = vmatprep.subr.mxu0 0.0
    %1378 = vmatpush1.msra.mxu0 0.0
    %1379 = vmatprep.subr.mxu0 0.0
    %1380 = vmatpush1.msra.mxu0 0.0
    %1381 = vmatprep.subr.mxu0 0.0
    %1382 = vmatpush1.msra.mxu0 0.0
    %1383 = vmatprep.subr.mxu0 0.0
    %1384 = vmatpush1.msra.mxu0 0.0
    %1385 = vmatprep.subr.mxu0 0.0
    %1386 = vmatpush1.msra.mxu0 0.0
    %1387 = vmatprep.subr.mxu0 0.0
    %1388 = vmatpush1.msra.mxu0 0.0
    %1389 = vmatprep.subr.mxu0 0.0
    %1390 = vmatpush1.msra.mxu0 0.0
    %1391 = vmatprep.subr.mxu0 0.0
    %1392 = vmatpush1.msra.mxu0 0.0
    %1393 = vmatprep.subr.mxu0 0.0
    %1394 = vmatpush1.msra.mxu0 0.0
    %1395 = vmatprep.subr.mxu0 0.0
    %1396 = vmatpush1.msra.mxu0 0.0
    %1397 = vmatprep.subr.mxu0 0.0
    %1398 = vmatpush1.msra.mxu0 0.0
    %1399 = vmatprep.subr.mxu0 0.0
    %1400 = vmatpush1.msra.mxu0 0.0
    %1401 = vmatprep.subr.mxu0 0.0
    %1402 = vmatpush1.msra.mxu0 0.0
    %1403 = vmatprep.subr.mxu0 0.0
    %1404 = vmatpush1.msra.mxu0 0.0
    %1405 = vmatprep.subr.mxu0 0.0
    %1406 = vmatpush1.msra.mxu0 0.0
    %1407 = vmatprep.subr.mxu0 0.0
    %1408 = vmatpush1.msra.mxu0 0.0
    %1409 = vmatprep.subr.mxu0 0.0
    %1410 = vmatpush1.msra.mxu0 0.0
    %1411 = vmatprep.subr.mxu0 0.0
    %1412 = vmatpush1.msra.mxu0 0.0
    %1413 = vmatprep.subr.mxu0 0.0
    %1414 = vmatpush1.msra.mxu0 0.0
    %1415 = vmatprep.subr.mxu0 0.0
    %1416 = vmatpush1.msra.mxu0 0.0
    %1417 = vmatprep.subr.mxu0 0.0
    %1418 = vmatpush1.msra.mxu0 0.0
    %1419 = vmatprep.subr.mxu0 0.0
    %1420 = vmatpush1.msra.mxu0 0.0
    %1421 = vmatprep.subr.mxu0 0.0
    %1422 = vmatpush1.msra.mxu0 0.0
    %1423 = vmatprep.subr.mxu0 0.0
    %1424 = vmatpush1.msra.mxu0 0.0
    %1425 = vmatprep.subr.mxu0 0.0
    %1426 = vmatpush1.msra.mxu0 0.0
    %1427 = vmatprep.subr.mxu0 0.0
    %1428 = vmatpush1.msra.mxu0 0.0
    %1429 = vmatprep.subr.mxu0 0.0
    %1430 = vmatpush1.msra.mxu0 0.0
    %1431 = vmatprep.subr.mxu0 0.0
    %1432 = vmatpush1.msra.mxu0 0.0
    %1433 = vmatprep.mubr.f32.mxu0 0.0
    %1434 = vmatmul.mubr.f32.gmra.mrb[0].mxu0 %v1367
    %v1435 = vpop.f32.mrb[0].mxu0
    %v1436 = vadd.f32 0.0, %v1435
    %v1437 = vpop.f32.mrb[0].mxu0
    %1438 = vdwg.mxu0
    %v1439 = vadd.f32 %v1361, %v1436
    %v1440 = vxor.u32 %v1439, 2147483648
    %v1441 = vmul.f32 %v1440, 1.442695
    %v1442 = vpow.pop %v1441
    %v1443 = vadd.f32 %v1442, 1.0
    %v1444 = vrcp.pop %v1443
    %v1445 = vmul.f32 1.0, %v1444
    %v1446 = vtanh.pop %v1439
    %v1447 = vmul.f32 %v1445, %v1143
    %1449 = vrot.lane.b32.xlu0 %v1446, 64
    %v1450 = vpop.permute.xlu0 %1449
    %v1452 = vmul.f32 %v1445, %v1450
    %1454 = vrot.lane.b32.xlu0 %v1452, 32
    %v1455 = vpop.permute.xlu0 %1454
    %v1457 = vadd.f32 %v1447, %v1455
    %v1458 = vtanh.pop %v1457
    %1460 = vrot.lane.b32.xlu0 %v1458, 64
    %v1461 = vpop.permute.xlu0 %1460
    %v1463 = vmul.f32 %v1445, %v1461
    %v1464 = vsel %vm1350, %v1463, 0.0
    %1466 = vrot.lane.b32.xlu0 %v1464, 32
    %v1467 = vpop.permute.xlu0 %1466
    %s1469 = scalar_lea.vmem %s3, 32
    %1470 = vst.msk [vmem:[%s1469] sm:$0xff] %vm42, %v1467
    %v1471 = vsel %vm1350, %v1463, %v1142
    %v1472 = vsel %vm1350, %v1457, %v1143
    %1474 = vrot.lane.b32.xlu0 %v1244, 32
    %v1475 = vpop.permute.xlu0 %1474
    %v1476 = vsel %vm42, %v1475, 0
    %1478 = vmatprep.subr.mxu0 0.0
    %1479 = vmatpush1.msra.mxu0 %v28
    %1480 = vmatprep.subr.mxu0 0.0
    %1481 = vmatpush1.msra.mxu0 %v29
    %1482 = vmatprep.subr.mxu0 0.0
    %1483 = vmatpush1.msra.mxu0 %v30
    %1484 = vmatprep.subr.mxu0 0.0
    %1485 = vmatpush1.msra.mxu0 %v31
    %1486 = vmatprep.subr.mxu0 0.0
    %1487 = vmatpush1.msra.mxu0 0.0
    %1488 = vmatprep.subr.mxu0 0.0
    %1489 = vmatpush1.msra.mxu0 0.0
    %1490 = vmatprep.subr.mxu0 0.0
    %1491 = vmatpush1.msra.mxu0 0.0
    %1492 = vmatprep.subr.mxu0 0.0
    %1493 = vmatpush1.msra.mxu0 0.0
    %1494 = vmatprep.subr.mxu0 0.0
    %1495 = vmatpush1.msra.mxu0 0.0
    %1496 = vmatprep.subr.mxu0 0.0
    %1497 = vmatpush1.msra.mxu0 0.0
    %1498 = vmatprep.subr.mxu0 0.0
    %1499 = vmatpush1.msra.mxu0 0.0
    %1500 = vmatprep.subr.mxu0 0.0
    %1501 = vmatpush1.msra.mxu0 0.0
    %1502 = vmatprep.subr.mxu0 0.0
    %1503 = vmatpush1.msra.mxu0 0.0
    %1504 = vmatprep.subr.mxu0 0.0
    %1505 = vmatpush1.msra.mxu0 0.0
    %1506 = vmatprep.subr.mxu0 0.0
    %1507 = vmatpush1.msra.mxu0 0.0
    %1508 = vmatprep.subr.mxu0 0.0
    %1509 = vmatpush1.msra.mxu0 0.0
    %1510 = vmatprep.subr.mxu0 0.0
    %1511 = vmatpush1.msra.mxu0 0.0
    %1512 = vmatprep.subr.mxu0 0.0
    %1513 = vmatpush1.msra.mxu0 0.0
    %1514 = vmatprep.subr.mxu0 0.0
    %1515 = vmatpush1.msra.mxu0 0.0
    %1516 = vmatprep.subr.mxu0 0.0
    %1517 = vmatpush1.msra.mxu0 0.0
    %1518 = vmatprep.subr.mxu0 0.0
    %1519 = vmatpush1.msra.mxu0 0.0
    %1520 = vmatprep.subr.mxu0 0.0
    %1521 = vmatpush1.msra.mxu0 0.0
    %1522 = vmatprep.subr.mxu0 0.0
    %1523 = vmatpush1.msra.mxu0 0.0
    %1524 = vmatprep.subr.mxu0 0.0
    %1525 = vmatpush1.msra.mxu0 0.0
    %1526 = vmatprep.subr.mxu0 0.0
    %1527 = vmatpush1.msra.mxu0 0.0
    %1528 = vmatprep.subr.mxu0 0.0
    %1529 = vmatpush1.msra.mxu0 0.0
    %1530 = vmatprep.subr.mxu0 0.0
    %1531 = vmatpush1.msra.mxu0 0.0
    %1532 = vmatprep.subr.mxu0 0.0
    %1533 = vmatpush1.msra.mxu0 0.0
    %1534 = vmatprep.subr.mxu0 0.0
    %1535 = vmatpush1.msra.mxu0 0.0
    %1536 = vmatprep.subr.mxu0 0.0
    %1537 = vmatpush1.msra.mxu0 0.0
    %1538 = vmatprep.subr.mxu0 0.0
    %1539 = vmatpush1.msra.mxu0 0.0
    %1540 = vmatprep.subr.mxu0 0.0
    %1541 = vmatpush1.msra.mxu0 0.0
    %1542 = vmatprep.mubr.f32.mxu0 0.0
    %1543 = vmatmul.mubr.f32.gmra.mrb[0].mxu0 %v1476
    %v1544 = vpop.f32.mrb[0].mxu0
    %v1545 = vadd.f32 0.0, %v1544
    %v1546 = vpop.f32.mrb[0].mxu0
    %1547 = vdwg.mxu0
    %v1548 = vadd.f32 %v1362, %v1545
    %v1549 = vxor.u32 %v1548, 2147483648
    %v1550 = vmul.f32 %v1549, 1.442695
    %v1551 = vpow.pop %v1550
    %v1552 = vadd.f32 %v1551, 1.0
    %v1553 = vrcp.pop %v1552
    %v1554 = vmul.f32 1.0, %v1553
    %v1555 = vtanh.pop %v1548
    %v1556 = vmul.f32 %v1554, %v1245
    %1558 = vrot.lane.b32.xlu0 %v1555, 64
    %v1559 = vpop.permute.xlu0 %1558
    %v1561 = vmul.f32 %v1554, %v1559
    %1563 = vrot.lane.b32.xlu0 %v1561, 32
    %v1564 = vpop.permute.xlu0 %1563
    %v1566 = vadd.f32 %v1556, %v1564
    %v1567 = vtanh.pop %v1566
    %1569 = vrot.lane.b32.xlu0 %v1567, 64
    %v1570 = vpop.permute.xlu0 %1569
    %v1572 = vmul.f32 %v1554, %v1570
    %v1573 = vsel %vm1350, %v1572, %v1244
    %v1574 = vsel %vm1350, %v1566, %v1245
    %1576 = vrot.lane.b32.xlu0 %v1358, 32
    %v1577 = vpop.permute.xlu0 %1576
    %v1578 = vsel %vm42, %v1577, 0
    %1580 = vmatprep.subr.mxu0 0.0
    %1581 = vmatpush1.msra.mxu0 %v33
    %1582 = vmatprep.subr.mxu0 0.0
    %1583 = vmatpush1.msra.mxu0 %v34
    %1584 = vmatprep.subr.mxu0 0.0
    %1585 = vmatpush1.msra.mxu0 %v35
    %1586 = vmatprep.subr.mxu0 0.0
    %1587 = vmatpush1.msra.mxu0 %v36
    %1588 = vmatprep.subr.mxu0 0.0
    %1589 = vmatpush1.msra.mxu0 0.0
    %1590 = vmatprep.subr.mxu0 0.0
    %1591 = vmatpush1.msra.mxu0 0.0
    %1592 = vmatprep.subr.mxu0 0.0
    %1593 = vmatpush1.msra.mxu0 0.0
    %1594 = vmatprep.subr.mxu0 0.0
    %1595 = vmatpush1.msra.mxu0 0.0
    %1596 = vmatprep.subr.mxu0 0.0
    %1597 = vmatpush1.msra.mxu0 0.0
    %1598 = vmatprep.subr.mxu0 0.0
    %1599 = vmatpush1.msra.mxu0 0.0
    %1600 = vmatprep.subr.mxu0 0.0
    %1601 = vmatpush1.msra.mxu0 0.0
    %1602 = vmatprep.subr.mxu0 0.0
    %1603 = vmatpush1.msra.mxu0 0.0
    %1604 = vmatprep.subr.mxu0 0.0
    %1605 = vmatpush1.msra.mxu0 0.0
    %1606 = vmatprep.subr.mxu0 0.0
    %1607 = vmatpush1.msra.mxu0 0.0
    %1608 = vmatprep.subr.mxu0 0.0
    %1609 = vmatpush1.msra.mxu0 0.0
    %1610 = vmatprep.subr.mxu0 0.0
    %1611 = vmatpush1.msra.mxu0 0.0
    %1612 = vmatprep.subr.mxu0 0.0
    %1613 = vmatpush1.msra.mxu0 0.0
    %1614 = vmatprep.subr.mxu0 0.0
    %1615 = vmatpush1.msra.mxu0 0.0
    %1616 = vmatprep.subr.mxu0 0.0
    %1617 = vmatpush1.msra.mxu0 0.0
    %1618 = vmatprep.subr.mxu0 0.0
    %1619 = vmatpush1.msra.mxu0 0.0
    %1620 = vmatprep.subr.mxu0 0.0
    %1621 = vmatpush1.msra.mxu0 0.0
    %1622 = vmatprep.subr.mxu0 0.0
    %1623 = vmatpush1.msra.mxu0 0.0
    %1624 = vmatprep.subr.mxu0 0.0
    %1625 = vmatpush1.msra.mxu0 0.0
    %1626 = vmatprep.subr.mxu0 0.0
    %1627 = vmatpush1.msra.mxu0 0.0
    %1628 = vmatprep.subr.mxu0 0.0
    %1629 = vmatpush1.msra.mxu0 0.0
    %1630 = vmatprep.subr.mxu0 0.0
    %1631 = vmatpush1.msra.mxu0 0.0
    %1632 = vmatprep.subr.mxu0 0.0
    %1633 = vmatpush1.msra.mxu0 0.0
    %1634 = vmatprep.subr.mxu0 0.0
    %1635 = vmatpush1.msra.mxu0 0.0
    %1636 = vmatprep.subr.mxu0 0.0
    %1637 = vmatpush1.msra.mxu0 0.0
    %1638 = vmatprep.subr.mxu0 0.0
    %1639 = vmatpush1.msra.mxu0 0.0
    %1640 = vmatprep.subr.mxu0 0.0
    %1641 = vmatpush1.msra.mxu0 0.0
    %1642 = vmatprep.subr.mxu0 0.0
    %1643 = vmatpush1.msra.mxu0 0.0
    %1644 = vmatprep.mubr.f32.mxu0 0.0
    %1645 = vmatmul.mubr.f32.gmra.mrb[0].mxu0 %v1578
    %v1646 = vpop.f32.mrb[0].mxu0
    %v1647 = vadd.f32 0.0, %v1646
    %v1648 = vpop.f32.mrb[0].mxu0
    %1649 = vdwg.mxu0
    %v1650 = vadd.f32 %v1363, %v1647
    %v1651 = vxor.u32 %v1650, 2147483648
    %v1652 = vmul.f32 %v1651, 1.442695
    %v1653 = vpow.pop %v1652
    %v1654 = vadd.f32 %v1653, 1.0
    %v1655 = vrcp.pop %v1654
    %v1656 = vmul.f32 1.0, %v1655
    %v1657 = vtanh.pop %v1650
    %v1658 = vmul.f32 %v1656, %v1359
    %1660 = vrot.lane.b32.xlu0 %v1657, 64
    %v1661 = vpop.permute.xlu0 %1660
    %v1663 = vmul.f32 %v1656, %v1661
    %1665 = vrot.lane.b32.xlu0 %v1663, 32
    %v1666 = vpop.permute.xlu0 %1665
    %v1668 = vadd.f32 %v1658, %v1666
    %v1669 = vtanh.pop %v1668
    %1671 = vrot.lane.b32.xlu0 %v1669, 64
    %v1672 = vpop.permute.xlu0 %1671
    %v1674 = vmul.f32 %v1656, %v1672
    %v1675 = vsel %vm1134, %v1674, 0.0
    %1677 = vrot.lane.b32.xlu0 %v1675, 32
    %v1678 = vpop.permute.xlu0 %1677
    %s1680 = scalar_lea.vmem %s4, 24
    %1681 = vst.msk [vmem:[%s1680] sm:$0xff] %vm42, %v1678
    %v1682 = vsel %vm1134, %v1674, %v1358
    %v1683 = vsel %vm1134, %v1668, %v1359
    %s1684 = scalar_lea.vmem %s1, 120
    %v1685 = vld [vmem:[%s1684] sm:$0xff]
    %v1686 = vld [vmem:[%s1684 + $0x8] sm:$0xff]
    %v1687 = vld [vmem:[%s1684 + $0x10] sm:$0xff]
    %1689 = vrot.lane.b32.xlu0 %v1471, 32
    %v1690 = vpop.permute.xlu0 %1689
    %v1691 = vsel %vm42, %v1690, 0
    %1693 = vmatprep.subr.mxu0 0.0
    %1694 = vmatpush1.msra.mxu0 %v23
    %1695 = vmatprep.subr.mxu0 0.0
    %1696 = vmatpush1.msra.mxu0 %v24
    %1697 = vmatprep.subr.mxu0 0.0
    %1698 = vmatpush1.msra.mxu0 %v25
    %1699 = vmatprep.subr.mxu0 0.0
    %1700 = vmatpush1.msra.mxu0 %v26
    %1701 = vmatprep.subr.mxu0 0.0
    %1702 = vmatpush1.msra.mxu0 0.0
    %1703 = vmatprep.subr.mxu0 0.0
    %1704 = vmatpush1.msra.mxu0 0.0
    %1705 = vmatprep.subr.mxu0 0.0
    %1706 = vmatpush1.msra.mxu0 0.0
    %1707 = vmatprep.subr.mxu0 0.0
    %1708 = vmatpush1.msra.mxu0 0.0
    %1709 = vmatprep.subr.mxu0 0.0
    %1710 = vmatpush1.msra.mxu0 0.0
    %1711 = vmatprep.subr.mxu0 0.0
    %1712 = vmatpush1.msra.mxu0 0.0
    %1713 = vmatprep.subr.mxu0 0.0
    %1714 = vmatpush1.msra.mxu0 0.0
    %1715 = vmatprep.subr.mxu0 0.0
    %1716 = vmatpush1.msra.mxu0 0.0
    %1717 = vmatprep.subr.mxu0 0.0
    %1718 = vmatpush1.msra.mxu0 0.0
    %1719 = vmatprep.subr.mxu0 0.0
    %1720 = vmatpush1.msra.mxu0 0.0
    %1721 = vmatprep.subr.mxu0 0.0
    %1722 = vmatpush1.msra.mxu0 0.0
    %1723 = vmatprep.subr.mxu0 0.0
    %1724 = vmatpush1.msra.mxu0 0.0
    %1725 = vmatprep.subr.mxu0 0.0
    %1726 = vmatpush1.msra.mxu0 0.0
    %1727 = vmatprep.subr.mxu0 0.0
    %1728 = vmatpush1.msra.mxu0 0.0
    %1729 = vmatprep.subr.mxu0 0.0
    %1730 = vmatpush1.msra.mxu0 0.0
    %1731 = vmatprep.subr.mxu0 0.0
    %1732 = vmatpush1.msra.mxu0 0.0
    %1733 = vmatprep.subr.mxu0 0.0
    %1734 = vmatpush1.msra.mxu0 0.0
    %1735 = vmatprep.subr.mxu0 0.0
    %1736 = vmatpush1.msra.mxu0 0.0
    %1737 = vmatprep.subr.mxu0 0.0
    %1738 = vmatpush1.msra.mxu0 0.0
    %1739 = vmatprep.subr.mxu0 0.0
    %1740 = vmatpush1.msra.mxu0 0.0
    %1741 = vmatprep.subr.mxu0 0.0
    %1742 = vmatpush1.msra.mxu0 0.0
    %1743 = vmatprep.subr.mxu0 0.0
    %1744 = vmatpush1.msra.mxu0 0.0
    %1745 = vmatprep.subr.mxu0 0.0
    %1746 = vmatpush1.msra.mxu0 0.0
    %1747 = vmatprep.subr.mxu0 0.0
    %1748 = vmatpush1.msra.mxu0 0.0
    %1749 = vmatprep.subr.mxu0 0.0
    %1750 = vmatpush1.msra.mxu0 0.0
    %1751 = vmatprep.subr.mxu0 0.0
    %1752 = vmatpush1.msra.mxu0 0.0
    %1753 = vmatprep.subr.mxu0 0.0
    %1754 = vmatpush1.msra.mxu0 0.0
    %1755 = vmatprep.subr.mxu0 0.0
    %1756 = vmatpush1.msra.mxu0 0.0
    %1757 = vmatprep.mubr.f32.mxu0 0.0
    %1758 = vmatmul.mubr.f32.gmra.mrb[0].mxu0 %v1691
    %v1759 = vpop.f32.mrb[0].mxu0
    %v1760 = vadd.f32 0.0, %v1759
    %v1761 = vpop.f32.mrb[0].mxu0
    %1762 = vdwg.mxu0
    %v1763 = vadd.f32 %v1685, %v1760
    %v1764 = vxor.u32 %v1763, 2147483648
    %v1765 = vmul.f32 %v1764, 1.442695
    %v1766 = vpow.pop %v1765
    %v1767 = vadd.f32 %v1766, 1.0
    %v1768 = vrcp.pop %v1767
    %v1769 = vmul.f32 1.0, %v1768
    %v1770 = vtanh.pop %v1763
    %v1771 = vmul.f32 %v1769, %v1472
    %1773 = vrot.lane.b32.xlu0 %v1770, 64
    %v1774 = vpop.permute.xlu0 %1773
    %v1776 = vmul.f32 %v1769, %v1774
    %1778 = vrot.lane.b32.xlu0 %v1776, 32
    %v1779 = vpop.permute.xlu0 %1778
    %v1781 = vadd.f32 %v1771, %v1779
    %v1782 = vtanh.pop %v1781
    %1784 = vrot.lane.b32.xlu0 %v1782, 64
    %v1785 = vpop.permute.xlu0 %1784
    %v1787 = vmul.f32 %v1769, %v1785
    %v1788 = vsel %vm1014, %v1787, 0.0
    %1790 = vrot.lane.b32.xlu0 %v1788, 32
    %v1791 = vpop.permute.xlu0 %1790
    %s1793 = scalar_lea.vmem %s3, 40
    %1794 = vst.msk [vmem:[%s1793] sm:$0xff] %vm42, %v1791
    %v1795 = vsel %vm1014, %v1787, %v1471
    %v1796 = vsel %vm1014, %v1781, %v1472
    %1798 = vrot.lane.b32.xlu0 %v1573, 32
    %v1799 = vpop.permute.xlu0 %1798
    %v1800 = vsel %vm42, %v1799, 0
    %1802 = vmatprep.subr.mxu0 0.0
    %1803 = vmatpush1.msra.mxu0 %v28
    %1804 = vmatprep.subr.mxu0 0.0
    %1805 = vmatpush1.msra.mxu0 %v29
    %1806 = vmatprep.subr.mxu0 0.0
    %1807 = vmatpush1.msra.mxu0 %v30
    %1808 = vmatprep.subr.mxu0 0.0
    %1809 = vmatpush1.msra.mxu0 %v31
    %1810 = vmatprep.subr.mxu0 0.0
    %1811 = vmatpush1.msra.mxu0 0.0
    %1812 = vmatprep.subr.mxu0 0.0
    %1813 = vmatpush1.msra.mxu0 0.0
    %1814 = vmatprep.subr.mxu0 0.0
    %1815 = vmatpush1.msra.mxu0 0.0
    %1816 = vmatprep.subr.mxu0 0.0
    %1817 = vmatpush1.msra.mxu0 0.0
    %1818 = vmatprep.subr.mxu0 0.0
    %1819 = vmatpush1.msra.mxu0 0.0
    %1820 = vmatprep.subr.mxu0 0.0
    %1821 = vmatpush1.msra.mxu0 0.0
    %1822 = vmatprep.subr.mxu0 0.0
    %1823 = vmatpush1.msra.mxu0 0.0
    %1824 = vmatprep.subr.mxu0 0.0
    %1825 = vmatpush1.msra.mxu0 0.0
    %1826 = vmatprep.subr.mxu0 0.0
    %1827 = vmatpush1.msra.mxu0 0.0
    %1828 = vmatprep.subr.mxu0 0.0
    %1829 = vmatpush1.msra.mxu0 0.0
    %1830 = vmatprep.subr.mxu0 0.0
    %1831 = vmatpush1.msra.mxu0 0.0
    %1832 = vmatprep.subr.mxu0 0.0
    %1833 = vmatpush1.msra.mxu0 0.0
    %1834 = vmatprep.subr.mxu0 0.0
    %1835 = vmatpush1.msra.mxu0 0.0
    %1836 = vmatprep.subr.mxu0 0.0
    %1837 = vmatpush1.msra.mxu0 0.0
    %1838 = vmatprep.subr.mxu0 0.0
    %1839 = vmatpush1.msra.mxu0 0.0
    %1840 = vmatprep.subr.mxu0 0.0
    %1841 = vmatpush1.msra.mxu0 0.0
    %1842 = vmatprep.subr.mxu0 0.0
    %1843 = vmatpush1.msra.mxu0 0.0
    %1844 = vmatprep.subr.mxu0 0.0
    %1845 = vmatpush1.msra.mxu0 0.0
    %1846 = vmatprep.subr.mxu0 0.0
    %1847 = vmatpush1.msra.mxu0 0.0
    %1848 = vmatprep.subr.mxu0 0.0
    %1849 = vmatpush1.msra.mxu0 0.0
    %1850 = vmatprep.subr.mxu0 0.0
    %1851 = vmatpush1.msra.mxu0 0.0
    %1852 = vmatprep.subr.mxu0 0.0
    %1853 = vmatpush1.msra.mxu0 0.0
    %1854 = vmatprep.subr.mxu0 0.0
    %1855 = vmatpush1.msra.mxu0 0.0
    %1856 = vmatprep.subr.mxu0 0.0
    %1857 = vmatpush1.msra.mxu0 0.0
    %1858 = vmatprep.subr.mxu0 0.0
    %1859 = vmatpush1.msra.mxu0 0.0
    %1860 = vmatprep.subr.mxu0 0.0
    %1861 = vmatpush1.msra.mxu0 0.0
    %1862 = vmatprep.subr.mxu0 0.0
    %1863 = vmatpush1.msra.mxu0 0.0
    %1864 = vmatprep.subr.mxu0 0.0
    %1865 = vmatpush1.msra.mxu0 0.0
    %1866 = vmatprep.mubr.f32.mxu0 0.0
    %1867 = vmatmul.mubr.f32.gmra.mrb[0].mxu0 %v1800
    %v1868 = vpop.f32.mrb[0].mxu0
    %v1869 = vadd.f32 0.0, %v1868
    %v1870 = vpop.f32.mrb[0].mxu0
    %1871 = vdwg.mxu0
    %v1872 = vadd.f32 %v1686, %v1869
    %v1873 = vxor.u32 %v1872, 2147483648
    %v1874 = vmul.f32 %v1873, 1.442695
    %v1875 = vpow.pop %v1874
    %v1876 = vadd.f32 %v1875, 1.0
    %v1877 = vrcp.pop %v1876
    %v1878 = vmul.f32 1.0, %v1877
    %v1879 = vtanh.pop %v1872
    %v1880 = vmul.f32 %v1878, %v1574
    %1882 = vrot.lane.b32.xlu0 %v1879, 64
    %v1883 = vpop.permute.xlu0 %1882
    %v1885 = vmul.f32 %v1878, %v1883
    %1887 = vrot.lane.b32.xlu0 %v1885, 32
    %v1888 = vpop.permute.xlu0 %1887
    %v1890 = vadd.f32 %v1880, %v1888
    %v1891 = vtanh.pop %v1890
    %1893 = vrot.lane.b32.xlu0 %v1891, 64
    %v1894 = vpop.permute.xlu0 %1893
    %v1896 = vmul.f32 %v1878, %v1894
    %v1897 = vsel %vm1014, %v1896, %v1573
    %v1898 = vsel %vm1014, %v1890, %v1574
    %1900 = vrot.lane.b32.xlu0 %v1682, 32
    %v1901 = vpop.permute.xlu0 %1900
    %v1902 = vsel %vm42, %v1901, 0
    %1904 = vmatprep.subr.mxu0 0.0
    %1905 = vmatpush1.msra.mxu0 %v33
    %1906 = vmatprep.subr.mxu0 0.0
    %1907 = vmatpush1.msra.mxu0 %v34
    %1908 = vmatprep.subr.mxu0 0.0
    %1909 = vmatpush1.msra.mxu0 %v35
    %1910 = vmatprep.subr.mxu0 0.0
    %1911 = vmatpush1.msra.mxu0 %v36
    %1912 = vmatprep.subr.mxu0 0.0
    %1913 = vmatpush1.msra.mxu0 0.0
    %1914 = vmatprep.subr.mxu0 0.0
    %1915 = vmatpush1.msra.mxu0 0.0
    %1916 = vmatprep.subr.mxu0 0.0
    %1917 = vmatpush1.msra.mxu0 0.0
    %1918 = vmatprep.subr.mxu0 0.0
    %1919 = vmatpush1.msra.mxu0 0.0
    %1920 = vmatprep.subr.mxu0 0.0
    %1921 = vmatpush1.msra.mxu0 0.0
    %1922 = vmatprep.subr.mxu0 0.0
    %1923 = vmatpush1.msra.mxu0 0.0
    %1924 = vmatprep.subr.mxu0 0.0
    %1925 = vmatpush1.msra.mxu0 0.0
    %1926 = vmatprep.subr.mxu0 0.0
    %1927 = vmatpush1.msra.mxu0 0.0
    %1928 = vmatprep.subr.mxu0 0.0
    %1929 = vmatpush1.msra.mxu0 0.0
    %1930 = vmatprep.subr.mxu0 0.0
    %1931 = vmatpush1.msra.mxu0 0.0
    %1932 = vmatprep.subr.mxu0 0.0
    %1933 = vmatpush1.msra.mxu0 0.0
    %1934 = vmatprep.subr.mxu0 0.0
    %1935 = vmatpush1.msra.mxu0 0.0
    %1936 = vmatprep.subr.mxu0 0.0
    %1937 = vmatpush1.msra.mxu0 0.0
    %1938 = vmatprep.subr.mxu0 0.0
    %1939 = vmatpush1.msra.mxu0 0.0
    %1940 = vmatprep.subr.mxu0 0.0
    %1941 = vmatpush1.msra.mxu0 0.0
    %1942 = vmatprep.subr.mxu0 0.0
    %1943 = vmatpush1.msra.mxu0 0.0
    %1944 = vmatprep.subr.mxu0 0.0
    %1945 = vmatpush1.msra.mxu0 0.0
    %1946 = vmatprep.subr.mxu0 0.0
    %1947 = vmatpush1.msra.mxu0 0.0
    %1948 = vmatprep.subr.mxu0 0.0
    %1949 = vmatpush1.msra.mxu0 0.0
    %1950 = vmatprep.subr.mxu0 0.0
    %1951 = vmatpush1.msra.mxu0 0.0
    %1952 = vmatprep.subr.mxu0 0.0
    %1953 = vmatpush1.msra.mxu0 0.0
    %1954 = vmatprep.subr.mxu0 0.0
    %1955 = vmatpush1.msra.mxu0 0.0
    %1956 = vmatprep.subr.mxu0 0.0
    %1957 = vmatpush1.msra.mxu0 0.0
    %1958 = vmatprep.subr.mxu0 0.0
    %1959 = vmatpush1.msra.mxu0 0.0
    %1960 = vmatprep.subr.mxu0 0.0
    %1961 = vmatpush1.msra.mxu0 0.0
    %1962 = vmatprep.subr.mxu0 0.0
    %1963 = vmatpush1.msra.mxu0 0.0
    %1964 = vmatprep.subr.mxu0 0.0
    %1965 = vmatpush1.msra.mxu0 0.0
    %1966 = vmatprep.subr.mxu0 0.0
    %1967 = vmatpush1.msra.mxu0 0.0
    %1968 = vmatprep.mubr.f32.mxu0 0.0
    %1969 = vmatmul.mubr.f32.gmra.mrb[0].mxu0 %v1902
    %v1970 = vpop.f32.mrb[0].mxu0
    %v1971 = vadd.f32 0.0, %v1970
    %v1972 = vpop.f32.mrb[0].mxu0
    %1973 = vdwg.mxu0
    %v1974 = vadd.f32 %v1687, %v1971
    %v1975 = vxor.u32 %v1974, 2147483648
    %v1976 = vmul.f32 %v1975, 1.442695
    %v1977 = vpow.pop %v1976
    %v1978 = vadd.f32 %v1977, 1.0
    %v1979 = vrcp.pop %v1978
    %v1980 = vmul.f32 1.0, %v1979
    %v1981 = vtanh.pop %v1974
    %v1982 = vmul.f32 %v1980, %v1683
    %1984 = vrot.lane.b32.xlu0 %v1981, 64
    %v1985 = vpop.permute.xlu0 %1984
    %v1987 = vmul.f32 %v1980, %v1985
    %1989 = vrot.lane.b32.xlu0 %v1987, 32
    %v1990 = vpop.permute.xlu0 %1989
    %v1992 = vadd.f32 %v1982, %v1990
    %v1993 = vtanh.pop %v1992
    %1995 = vrot.lane.b32.xlu0 %v1993, 64
    %v1996 = vpop.permute.xlu0 %1995
    %v1998 = vmul.f32 %v1980, %v1996
    %v1999 = vsel %vm798, %v1998, 0.0
    %2001 = vrot.lane.b32.xlu0 %v1999, 32
    %v2002 = vpop.permute.xlu0 %2001
    %s2004 = scalar_lea.vmem %s4, 16
    %2005 = vst.msk [vmem:[%s2004] sm:$0xff] %vm42, %v2002
    %v2006 = vsel %vm798, %v1998, %v1682
    %v2007 = vsel %vm798, %v1992, %v1683
    %s2008 = scalar_lea.vmem %s1, 144
    %v2009 = vld [vmem:[%s2008] sm:$0xff]
    %v2010 = vld [vmem:[%s2008 + $0x8] sm:$0xff]
    %v2011 = vld [vmem:[%s2008 + $0x10] sm:$0xff]
    %2013 = vrot.lane.b32.xlu0 %v1795, 32
    %v2014 = vpop.permute.xlu0 %2013
    %v2015 = vsel %vm42, %v2014, 0
    %2017 = vmatprep.subr.mxu0 0.0
    %2018 = vmatpush1.msra.mxu0 %v23
    %2019 = vmatprep.subr.mxu0 0.0
    %2020 = vmatpush1.msra.mxu0 %v24
    %2021 = vmatprep.subr.mxu0 0.0
    %2022 = vmatpush1.msra.mxu0 %v25
    %2023 = vmatprep.subr.mxu0 0.0
    %2024 = vmatpush1.msra.mxu0 %v26
    %2025 = vmatprep.subr.mxu0 0.0
    %2026 = vmatpush1.msra.mxu0 0.0
    %2027 = vmatprep.subr.mxu0 0.0
    %2028 = vmatpush1.msra.mxu0 0.0
    %2029 = vmatprep.subr.mxu0 0.0
    %2030 = vmatpush1.msra.mxu0 0.0
    %2031 = vmatprep.subr.mxu0 0.0
    %2032 = vmatpush1.msra.mxu0 0.0
    %2033 = vmatprep.subr.mxu0 0.0
    %2034 = vmatpush1.msra.mxu0 0.0
    %2035 = vmatprep.subr.mxu0 0.0
    %2036 = vmatpush1.msra.mxu0 0.0
    %2037 = vmatprep.subr.mxu0 0.0
    %2038 = vmatpush1.msra.mxu0 0.0
    %2039 = vmatprep.subr.mxu0 0.0
    %2040 = vmatpush1.msra.mxu0 0.0
    %2041 = vmatprep.subr.mxu0 0.0
    %2042 = vmatpush1.msra.mxu0 0.0
    %2043 = vmatprep.subr.mxu0 0.0
    %2044 = vmatpush1.msra.mxu0 0.0
    %2045 = vmatprep.subr.mxu0 0.0
    %2046 = vmatpush1.msra.mxu0 0.0
    %2047 = vmatprep.subr.mxu0 0.0
    %2048 = vmatpush1.msra.mxu0 0.0
    %2049 = vmatprep.subr.mxu0 0.0
    %2050 = vmatpush1.msra.mxu0 0.0
    %2051 = vmatprep.subr.mxu0 0.0
    %2052 = vmatpush1.msra.mxu0 0.0
    %2053 = vmatprep.subr.mxu0 0.0
    %2054 = vmatpush1.msra.mxu0 0.0
    %2055 = vmatprep.subr.mxu0 0.0
    %2056 = vmatpush1.msra.mxu0 0.0
    %2057 = vmatprep.subr.mxu0 0.0
    %2058 = vmatpush1.msra.mxu0 0.0
    %2059 = vmatprep.subr.mxu0 0.0
    %2060 = vmatpush1.msra.mxu0 0.0
    %2061 = vmatprep.subr.mxu0 0.0
    %2062 = vmatpush1.msra.mxu0 0.0
    %2063 = vmatprep.subr.mxu0 0.0
    %2064 = vmatpush1.msra.mxu0 0.0
    %2065 = vmatprep.subr.mxu0 0.0
    %2066 = vmatpush1.msra.mxu0 0.0
    %2067 = vmatprep.subr.mxu0 0.0
    %2068 = vmatpush1.msra.mxu0 0.0
    %2069 = vmatprep.subr.mxu0 0.0
    %2070 = vmatpush1.msra.mxu0 0.0
    %2071 = vmatprep.subr.mxu0 0.0
    %2072 = vmatpush1.msra.mxu0 0.0
    %2073 = vmatprep.subr.mxu0 0.0
    %2074 = vmatpush1.msra.mxu0 0.0
    %2075 = vmatprep.subr.mxu0 0.0
    %2076 = vmatpush1.msra.mxu0 0.0
    %2077 = vmatprep.subr.mxu0 0.0
    %2078 = vmatpush1.msra.mxu0 0.0
    %2079 = vmatprep.subr.mxu0 0.0
    %2080 = vmatpush1.msra.mxu0 0.0
    %2081 = vmatprep.mubr.f32.mxu0 0.0
    %2082 = vmatmul.mubr.f32.gmra.mrb[0].mxu0 %v2015
    %v2083 = vpop.f32.mrb[0].mxu0
    %v2084 = vadd.f32 0.0, %v2083
    %v2085 = vpop.f32.mrb[0].mxu0
    %2086 = vdwg.mxu0
    %v2087 = vadd.f32 %v2009, %v2084
    %v2088 = vxor.u32 %v2087, 2147483648
    %v2089 = vmul.f32 %v2088, 1.442695
    %v2090 = vpow.pop %v2089
    %v2091 = vadd.f32 %v2090, 1.0
    %v2092 = vrcp.pop %v2091
    %v2093 = vmul.f32 1.0, %v2092
    %v2094 = vtanh.pop %v2087
    %v2095 = vmul.f32 %v2093, %v1796
    %2097 = vrot.lane.b32.xlu0 %v2094, 64
    %v2098 = vpop.permute.xlu0 %2097
    %v2100 = vmul.f32 %v2093, %v2098
    %2102 = vrot.lane.b32.xlu0 %v2100, 32
    %v2103 = vpop.permute.xlu0 %2102
    %v2105 = vadd.f32 %v2095, %v2103
    %v2106 = vtanh.pop %v2105
    %2108 = vrot.lane.b32.xlu0 %v2106, 64
    %v2109 = vpop.permute.xlu0 %2108
    %v2111 = vmul.f32 %v2093, %v2109
    %v2112 = vsel %vm678, %v2111, 0.0
    %2114 = vrot.lane.b32.xlu0 %v2112, 32
    %v2115 = vpop.permute.xlu0 %2114
    %s2117 = scalar_lea.vmem %s3, 48
    %2118 = vst.msk [vmem:[%s2117] sm:$0xff] %vm42, %v2115
    %v2119 = vsel %vm678, %v2111, %v1795
    %v2120 = vsel %vm678, %v2105, %v1796
    %2122 = vrot.lane.b32.xlu0 %v1897, 32
    %v2123 = vpop.permute.xlu0 %2122
    %v2124 = vsel %vm42, %v2123, 0
    %2126 = vmatprep.subr.mxu0 0.0
    %2127 = vmatpush1.msra.mxu0 %v28
    %2128 = vmatprep.subr.mxu0 0.0
    %2129 = vmatpush1.msra.mxu0 %v29
    %2130 = vmatprep.subr.mxu0 0.0
    %2131 = vmatpush1.msra.mxu0 %v30
    %2132 = vmatprep.subr.mxu0 0.0
    %2133 = vmatpush1.msra.mxu0 %v31
    %2134 = vmatprep.subr.mxu0 0.0
    %2135 = vmatpush1.msra.mxu0 0.0
    %2136 = vmatprep.subr.mxu0 0.0
    %2137 = vmatpush1.msra.mxu0 0.0
    %2138 = vmatprep.subr.mxu0 0.0
    %2139 = vmatpush1.msra.mxu0 0.0
    %2140 = vmatprep.subr.mxu0 0.0
    %2141 = vmatpush1.msra.mxu0 0.0
    %2142 = vmatprep.subr.mxu0 0.0
    %2143 = vmatpush1.msra.mxu0 0.0
    %2144 = vmatprep.subr.mxu0 0.0
    %2145 = vmatpush1.msra.mxu0 0.0
    %2146 = vmatprep.subr.mxu0 0.0
    %2147 = vmatpush1.msra.mxu0 0.0
    %2148 = vmatprep.subr.mxu0 0.0
    %2149 = vmatpush1.msra.mxu0 0.0
    %2150 = vmatprep.subr.mxu0 0.0
    %2151 = vmatpush1.msra.mxu0 0.0
    %2152 = vmatprep.subr.mxu0 0.0
    %2153 = vmatpush1.msra.mxu0 0.0
    %2154 = vmatprep.subr.mxu0 0.0
    %2155 = vmatpush1.msra.mxu0 0.0
    %2156 = vmatprep.subr.mxu0 0.0
    %2157 = vmatpush1.msra.mxu0 0.0
    %2158 = vmatprep.subr.mxu0 0.0
    %2159 = vmatpush1.msra.mxu0 0.0
    %2160 = vmatprep.subr.mxu0 0.0
    %2161 = vmatpush1.msra.mxu0 0.0
    %2162 = vmatprep.subr.mxu0 0.0
    %2163 = vmatpush1.msra.mxu0 0.0
    %2164 = vmatprep.subr.mxu0 0.0
    %2165 = vmatpush1.msra.mxu0 0.0
    %2166 = vmatprep.subr.mxu0 0.0
    %2167 = vmatpush1.msra.mxu0 0.0
    %2168 = vmatprep.subr.mxu0 0.0
    %2169 = vmatpush1.msra.mxu0 0.0
    %2170 = vmatprep.subr.mxu0 0.0
    %2171 = vmatpush1.msra.mxu0 0.0
    %2172 = vmatprep.subr.mxu0 0.0
    %2173 = vmatpush1.msra.mxu0 0.0
    %2174 = vmatprep.subr.mxu0 0.0
    %2175 = vmatpush1.msra.mxu0 0.0
    %2176 = vmatprep.subr.mxu0 0.0
    %2177 = vmatpush1.msra.mxu0 0.0
    %2178 = vmatprep.subr.mxu0 0.0
    %2179 = vmatpush1.msra.mxu0 0.0
    %2180 = vmatprep.subr.mxu0 0.0
    %2181 = vmatpush1.msra.mxu0 0.0
    %2182 = vmatprep.subr.mxu0 0.0
    %2183 = vmatpush1.msra.mxu0 0.0
    %2184 = vmatprep.subr.mxu0 0.0
    %2185 = vmatpush1.msra.mxu0 0.0
    %2186 = vmatprep.subr.mxu0 0.0
    %2187 = vmatpush1.msra.mxu0 0.0
    %2188 = vmatprep.subr.mxu0 0.0
    %2189 = vmatpush1.msra.mxu0 0.0
    %2190 = vmatprep.mubr.f32.mxu0 0.0
    %2191 = vmatmul.mubr.f32.gmra.mrb[0].mxu0 %v2124
    %v2192 = vpop.f32.mrb[0].mxu0
    %v2193 = vadd.f32 0.0, %v2192
    %v2194 = vpop.f32.mrb[0].mxu0
    %2195 = vdwg.mxu0
    %v2196 = vadd.f32 %v2010, %v2193
    %v2197 = vxor.u32 %v2196, 2147483648
    %v2198 = vmul.f32 %v2197, 1.442695
    %v2199 = vpow.pop %v2198
    %v2200 = vadd.f32 %v2199, 1.0
    %v2201 = vrcp.pop %v2200
    %v2202 = vmul.f32 1.0, %v2201
    %v2203 = vtanh.pop %v2196
    %v2204 = vmul.f32 %v2202, %v1898
    %2206 = vrot.lane.b32.xlu0 %v2203, 64
    %v2207 = vpop.permute.xlu0 %2206
    %v2209 = vmul.f32 %v2202, %v2207
    %2211 = vrot.lane.b32.xlu0 %v2209, 32
    %v2212 = vpop.permute.xlu0 %2211
    %v2214 = vadd.f32 %v2204, %v2212
    %v2215 = vtanh.pop %v2214
    %2217 = vrot.lane.b32.xlu0 %v2215, 64
    %v2218 = vpop.permute.xlu0 %2217
    %v2220 = vmul.f32 %v2202, %v2218
    %v2221 = vsel %vm678, %v2220, %v1897
    %v2222 = vsel %vm678, %v2214, %v1898
    %2224 = vrot.lane.b32.xlu0 %v2006, 32
    %v2225 = vpop.permute.xlu0 %2224
    %v2226 = vsel %vm42, %v2225, 0
    %2228 = vmatprep.subr.mxu0 0.0
    %2229 = vmatpush1.msra.mxu0 %v33
    %2230 = vmatprep.subr.mxu0 0.0
    %2231 = vmatpush1.msra.mxu0 %v34
    %2232 = vmatprep.subr.mxu0 0.0
    %2233 = vmatpush1.msra.mxu0 %v35
    %2234 = vmatprep.subr.mxu0 0.0
    %2235 = vmatpush1.msra.mxu0 %v36
    %2236 = vmatprep.subr.mxu0 0.0
    %2237 = vmatpush1.msra.mxu0 0.0
    %2238 = vmatprep.subr.mxu0 0.0
    %2239 = vmatpush1.msra.mxu0 0.0
    %2240 = vmatprep.subr.mxu0 0.0
    %2241 = vmatpush1.msra.mxu0 0.0
    %2242 = vmatprep.subr.mxu0 0.0
    %2243 = vmatpush1.msra.mxu0 0.0
    %2244 = vmatprep.subr.mxu0 0.0
    %2245 = vmatpush1.msra.mxu0 0.0
    %2246 = vmatprep.subr.mxu0 0.0
    %2247 = vmatpush1.msra.mxu0 0.0
    %2248 = vmatprep.subr.mxu0 0.0
    %2249 = vmatpush1.msra.mxu0 0.0
    %2250 = vmatprep.subr.mxu0 0.0
    %2251 = vmatpush1.msra.mxu0 0.0
    %2252 = vmatprep.subr.mxu0 0.0
    %2253 = vmatpush1.msra.mxu0 0.0
    %2254 = vmatprep.subr.mxu0 0.0
    %2255 = vmatpush1.msra.mxu0 0.0
    %2256 = vmatprep.subr.mxu0 0.0
    %2257 = vmatpush1.msra.mxu0 0.0
    %2258 = vmatprep.subr.mxu0 0.0
    %2259 = vmatpush1.msra.mxu0 0.0
    %2260 = vmatprep.subr.mxu0 0.0
    %2261 = vmatpush1.msra.mxu0 0.0
    %2262 = vmatprep.subr.mxu0 0.0
    %2263 = vmatpush1.msra.mxu0 0.0
    %2264 = vmatprep.subr.mxu0 0.0
    %2265 = vmatpush1.msra.mxu0 0.0
    %2266 = vmatprep.subr.mxu0 0.0
    %2267 = vmatpush1.msra.mxu0 0.0
    %2268 = vmatprep.subr.mxu0 0.0
    %2269 = vmatpush1.msra.mxu0 0.0
    %2270 = vmatprep.subr.mxu0 0.0
    %2271 = vmatpush1.msra.mxu0 0.0
    %2272 = vmatprep.subr.mxu0 0.0
    %2273 = vmatpush1.msra.mxu0 0.0
    %2274 = vmatprep.subr.mxu0 0.0
    %2275 = vmatpush1.msra.mxu0 0.0
    %2276 = vmatprep.subr.mxu0 0.0
    %2277 = vmatpush1.msra.mxu0 0.0
    %2278 = vmatprep.subr.mxu0 0.0
    %2279 = vmatpush1.msra.mxu0 0.0
    %2280 = vmatprep.subr.mxu0 0.0
    %2281 = vmatpush1.msra.mxu0 0.0
    %2282 = vmatprep.subr.mxu0 0.0
    %2283 = vmatpush1.msra.mxu0 0.0
    %2284 = vmatprep.subr.mxu0 0.0
    %2285 = vmatpush1.msra.mxu0 0.0
    %2286 = vmatprep.subr.mxu0 0.0
    %2287 = vmatpush1.msra.mxu0 0.0
    %2288 = vmatprep.subr.mxu0 0.0
    %2289 = vmatpush1.msra.mxu0 0.0
    %2290 = vmatprep.subr.mxu0 0.0
    %2291 = vmatpush1.msra.mxu0 0.0
    %2292 = vmatprep.mubr.f32.mxu0 0.0
    %2293 = vmatmul.mubr.f32.gmra.mrb[0].mxu0 %v2226
    %v2294 = vpop.f32.mrb[0].mxu0
    %v2295 = vadd.f32 0.0, %v2294
    %v2296 = vpop.f32.mrb[0].mxu0
    %2297 = vdwg.mxu0
    %v2298 = vadd.f32 %v2011, %v2295
    %v2299 = vxor.u32 %v2298, 2147483648
    %v2300 = vmul.f32 %v2299, 1.442695
    %v2301 = vpow.pop %v2300
    %v2302 = vadd.f32 %v2301, 1.0
    %v2303 = vrcp.pop %v2302
    %v2304 = vmul.f32 1.0, %v2303
    %v2305 = vtanh.pop %v2298
    %v2306 = vmul.f32 %v2304, %v2007
    %2308 = vrot.lane.b32.xlu0 %v2305, 64
    %v2309 = vpop.permute.xlu0 %2308
    %v2311 = vmul.f32 %v2304, %v2309
    %2313 = vrot.lane.b32.xlu0 %v2311, 32
    %v2314 = vpop.permute.xlu0 %2313
    %v2316 = vadd.f32 %v2306, %v2314
    %v2317 = vtanh.pop %v2316
    %2319 = vrot.lane.b32.xlu0 %v2317, 64
    %v2320 = vpop.permute.xlu0 %2319
    %v2322 = vmul.f32 %v2304, %v2320
    %v2323 = vsel %vm465, %v2322, 0.0
    %2325 = vrot.lane.b32.xlu0 %v2323, 32
    %v2326 = vpop.permute.xlu0 %2325
    %s2328 = scalar_lea.vmem %s4, 8
    %2329 = vst.msk [vmem:[%s2328] sm:$0xff] %vm42, %v2326
    %v2330 = vsel %vm465, %v2322, %v2006
    %v2331 = vsel %vm465, %v2316, %v2007
    %s2332 = scalar_lea.vmem %s1, 168
    %v2333 = vld [vmem:[%s2332] sm:$0xff]
    %v2334 = vld [vmem:[%s2332 + $0x8] sm:$0xff]
    %v2335 = vld [vmem:[%s2332 + $0x10] sm:$0xff]
    %2337 = vrot.lane.b32.xlu0 %v2119, 32
    %v2338 = vpop.permute.xlu0 %2337
    %v2339 = vsel %vm42, %v2338, 0
    %2341 = vmatprep.subr.mxu0 0.0
    %2342 = vmatpush1.msra.mxu0 %v23
    %2343 = vmatprep.subr.mxu0 0.0
    %2344 = vmatpush1.msra.mxu0 %v24
    %2345 = vmatprep.subr.mxu0 0.0
    %2346 = vmatpush1.msra.mxu0 %v25
    %2347 = vmatprep.subr.mxu0 0.0
    %2348 = vmatpush1.msra.mxu0 %v26
    %2349 = vmatprep.subr.mxu0 0.0
    %2350 = vmatpush1.msra.mxu0 0.0
    %2351 = vmatprep.subr.mxu0 0.0
    %2352 = vmatpush1.msra.mxu0 0.0
    %2353 = vmatprep.subr.mxu0 0.0
    %2354 = vmatpush1.msra.mxu0 0.0
    %2355 = vmatprep.subr.mxu0 0.0
    %2356 = vmatpush1.msra.mxu0 0.0
    %2357 = vmatprep.subr.mxu0 0.0
    %2358 = vmatpush1.msra.mxu0 0.0
    %2359 = vmatprep.subr.mxu0 0.0
    %2360 = vmatpush1.msra.mxu0 0.0
    %2361 = vmatprep.subr.mxu0 0.0
    %2362 = vmatpush1.msra.mxu0 0.0
    %2363 = vmatprep.subr.mxu0 0.0
    %2364 = vmatpush1.msra.mxu0 0.0
    %2365 = vmatprep.subr.mxu0 0.0
    %2366 = vmatpush1.msra.mxu0 0.0
    %2367 = vmatprep.subr.mxu0 0.0
    %2368 = vmatpush1.msra.mxu0 0.0
    %2369 = vmatprep.subr.mxu0 0.0
    %2370 = vmatpush1.msra.mxu0 0.0
    %2371 = vmatprep.subr.mxu0 0.0
    %2372 = vmatpush1.msra.mxu0 0.0
    %2373 = vmatprep.subr.mxu0 0.0
    %2374 = vmatpush1.msra.mxu0 0.0
    %2375 = vmatprep.subr.mxu0 0.0
    %2376 = vmatpush1.msra.mxu0 0.0
    %2377 = vmatprep.subr.mxu0 0.0
    %2378 = vmatpush1.msra.mxu0 0.0
    %2379 = vmatprep.subr.mxu0 0.0
    %2380 = vmatpush1.msra.mxu0 0.0
    %2381 = vmatprep.subr.mxu0 0.0
    %2382 = vmatpush1.msra.mxu0 0.0
    %2383 = vmatprep.subr.mxu0 0.0
    %2384 = vmatpush1.msra.mxu0 0.0
    %2385 = vmatprep.subr.mxu0 0.0
    %2386 = vmatpush1.msra.mxu0 0.0
    %2387 = vmatprep.subr.mxu0 0.0
    %2388 = vmatpush1.msra.mxu0 0.0
    %2389 = vmatprep.subr.mxu0 0.0
    %2390 = vmatpush1.msra.mxu0 0.0
    %2391 = vmatprep.subr.mxu0 0.0
    %2392 = vmatpush1.msra.mxu0 0.0
    %2393 = vmatprep.subr.mxu0 0.0
    %2394 = vmatpush1.msra.mxu0 0.0
    %2395 = vmatprep.subr.mxu0 0.0
    %2396 = vmatpush1.msra.mxu0 0.0
    %2397 = vmatprep.subr.mxu0 0.0
    %2398 = vmatpush1.msra.mxu0 0.0
    %2399 = vmatprep.subr.mxu0 0.0
    %2400 = vmatpush1.msra.mxu0 0.0
    %2401 = vmatprep.subr.mxu0 0.0
    %2402 = vmatpush1.msra.mxu0 0.0
    %2403 = vmatprep.subr.mxu0 0.0
    %2404 = vmatpush1.msra.mxu0 0.0
    %2405 = vmatprep.mubr.f32.mxu0 0.0
    %2406 = vmatmul.mubr.f32.gmra.mrb[0].mxu0 %v2339
    %v2407 = vpop.f32.mrb[0].mxu0
    %v2408 = vadd.f32 0.0, %v2407
    %v2409 = vpop.f32.mrb[0].mxu0
    %2410 = vdwg.mxu0
    %v2411 = vadd.f32 %v2333, %v2408
    %v2412 = vxor.u32 %v2411, 2147483648
    %v2413 = vmul.f32 %v2412, 1.442695
    %v2414 = vpow.pop %v2413
    %v2415 = vadd.f32 %v2414, 1.0
    %v2416 = vrcp.pop %v2415
    %v2417 = vmul.f32 1.0, %v2416
    %v2418 = vtanh.pop %v2411
    %v2419 = vmul.f32 %v2417, %v2120
    %2421 = vrot.lane.b32.xlu0 %v2418, 64
    %v2422 = vpop.permute.xlu0 %2421
    %v2424 = vmul.f32 %v2417, %v2422
    %2426 = vrot.lane.b32.xlu0 %v2424, 32
    %v2427 = vpop.permute.xlu0 %2426
    %v2429 = vadd.f32 %v2419, %v2427
    %v2430 = vtanh.pop %v2429
    %2432 = vrot.lane.b32.xlu0 %v2430, 64
    %v2433 = vpop.permute.xlu0 %2432
    %v2435 = vmul.f32 %v2417, %v2433
    %v2436 = vsel %vm349, %v2435, 0.0
    %2438 = vrot.lane.b32.xlu0 %v2436, 32
    %v2439 = vpop.permute.xlu0 %2438
    %s2441 = scalar_lea.vmem %s3, 56
    %2442 = vst.msk [vmem:[%s2441] sm:$0xff] %vm42, %v2439
    %v2443 = vsel %vm349, %v2435, %v2119
    %v2444 = vsel %vm349, %v2429, %v2120
    %2446 = vrot.lane.b32.xlu0 %v2221, 32
    %v2447 = vpop.permute.xlu0 %2446
    %v2448 = vsel %vm42, %v2447, 0
    %2450 = vmatprep.subr.mxu0 0.0
    %2451 = vmatpush1.msra.mxu0 %v28
    %2452 = vmatprep.subr.mxu0 0.0
    %2453 = vmatpush1.msra.mxu0 %v29
    %2454 = vmatprep.subr.mxu0 0.0
    %2455 = vmatpush1.msra.mxu0 %v30
    %2456 = vmatprep.subr.mxu0 0.0
    %2457 = vmatpush1.msra.mxu0 %v31
    %2458 = vmatprep.subr.mxu0 0.0
    %2459 = vmatpush1.msra.mxu0 0.0
    %2460 = vmatprep.subr.mxu0 0.0
    %2461 = vmatpush1.msra.mxu0 0.0
    %2462 = vmatprep.subr.mxu0 0.0
    %2463 = vmatpush1.msra.mxu0 0.0
    %2464 = vmatprep.subr.mxu0 0.0
    %2465 = vmatpush1.msra.mxu0 0.0
    %2466 = vmatprep.subr.mxu0 0.0
    %2467 = vmatpush1.msra.mxu0 0.0
    %2468 = vmatprep.subr.mxu0 0.0
    %2469 = vmatpush1.msra.mxu0 0.0
    %2470 = vmatprep.subr.mxu0 0.0
    %2471 = vmatpush1.msra.mxu0 0.0
    %2472 = vmatprep.subr.mxu0 0.0
    %2473 = vmatpush1.msra.mxu0 0.0
    %2474 = vmatprep.subr.mxu0 0.0
    %2475 = vmatpush1.msra.mxu0 0.0
    %2476 = vmatprep.subr.mxu0 0.0
    %2477 = vmatpush1.msra.mxu0 0.0
    %2478 = vmatprep.subr.mxu0 0.0
    %2479 = vmatpush1.msra.mxu0 0.0
    %2480 = vmatprep.subr.mxu0 0.0
    %2481 = vmatpush1.msra.mxu0 0.0
    %2482 = vmatprep.subr.mxu0 0.0
    %2483 = vmatpush1.msra.mxu0 0.0
    %2484 = vmatprep.subr.mxu0 0.0
    %2485 = vmatpush1.msra.mxu0 0.0
    %2486 = vmatprep.subr.mxu0 0.0
    %2487 = vmatpush1.msra.mxu0 0.0
    %2488 = vmatprep.subr.mxu0 0.0
    %2489 = vmatpush1.msra.mxu0 0.0
    %2490 = vmatprep.subr.mxu0 0.0
    %2491 = vmatpush1.msra.mxu0 0.0
    %2492 = vmatprep.subr.mxu0 0.0
    %2493 = vmatpush1.msra.mxu0 0.0
    %2494 = vmatprep.subr.mxu0 0.0
    %2495 = vmatpush1.msra.mxu0 0.0
    %2496 = vmatprep.subr.mxu0 0.0
    %2497 = vmatpush1.msra.mxu0 0.0
    %2498 = vmatprep.subr.mxu0 0.0
    %2499 = vmatpush1.msra.mxu0 0.0
    %2500 = vmatprep.subr.mxu0 0.0
    %2501 = vmatpush1.msra.mxu0 0.0
    %2502 = vmatprep.subr.mxu0 0.0
    %2503 = vmatpush1.msra.mxu0 0.0
    %2504 = vmatprep.subr.mxu0 0.0
    %2505 = vmatpush1.msra.mxu0 0.0
    %2506 = vmatprep.subr.mxu0 0.0
    %2507 = vmatpush1.msra.mxu0 0.0
    %2508 = vmatprep.subr.mxu0 0.0
    %2509 = vmatpush1.msra.mxu0 0.0
    %2510 = vmatprep.subr.mxu0 0.0
    %2511 = vmatpush1.msra.mxu0 0.0
    %2512 = vmatprep.subr.mxu0 0.0
    %2513 = vmatpush1.msra.mxu0 0.0
    %2514 = vmatprep.mubr.f32.mxu0 0.0
    %2515 = vmatmul.mubr.f32.gmra.mrb[0].mxu0 %v2448
    %v2516 = vpop.f32.mrb[0].mxu0
    %v2517 = vadd.f32 0.0, %v2516
    %v2518 = vpop.f32.mrb[0].mxu0
    %2519 = vdwg.mxu0
    %v2520 = vadd.f32 %v2334, %v2517
    %v2521 = vxor.u32 %v2520, 2147483648
    %v2522 = vmul.f32 %v2521, 1.442695
    %v2523 = vpow.pop %v2522
    %v2524 = vadd.f32 %v2523, 1.0
    %v2525 = vrcp.pop %v2524
    %v2526 = vmul.f32 1.0, %v2525
    %v2527 = vtanh.pop %v2520
    %v2528 = vmul.f32 %v2526, %v2222
    %2530 = vrot.lane.b32.xlu0 %v2527, 64
    %v2531 = vpop.permute.xlu0 %2530
    %v2533 = vmul.f32 %v2526, %v2531
    %2535 = vrot.lane.b32.xlu0 %v2533, 32
    %v2536 = vpop.permute.xlu0 %2535
    %v2538 = vadd.f32 %v2528, %v2536
    %v2539 = vsel %vm349, %v2538, %v2222
    %2541 = vrot.lane.b32.xlu0 %v2330, 32
    %v2542 = vpop.permute.xlu0 %2541
    %v2543 = vsel %vm42, %v2542, 0
    %2545 = vmatprep.subr.mxu0 0.0
    %2546 = vmatpush1.msra.mxu0 %v33
    %2547 = vmatprep.subr.mxu0 0.0
    %2548 = vmatpush1.msra.mxu0 %v34
    %2549 = vmatprep.subr.mxu0 0.0
    %2550 = vmatpush1.msra.mxu0 %v35
    %2551 = vmatprep.subr.mxu0 0.0
    %2552 = vmatpush1.msra.mxu0 %v36
    %2553 = vmatprep.subr.mxu0 0.0
    %2554 = vmatpush1.msra.mxu0 0.0
    %2555 = vmatprep.subr.mxu0 0.0
    %2556 = vmatpush1.msra.mxu0 0.0
    %2557 = vmatprep.subr.mxu0 0.0
    %2558 = vmatpush1.msra.mxu0 0.0
    %2559 = vmatprep.subr.mxu0 0.0
    %2560 = vmatpush1.msra.mxu0 0.0
    %2561 = vmatprep.subr.mxu0 0.0
    %2562 = vmatpush1.msra.mxu0 0.0
    %2563 = vmatprep.subr.mxu0 0.0
    %2564 = vmatpush1.msra.mxu0 0.0
    %2565 = vmatprep.subr.mxu0 0.0
    %2566 = vmatpush1.msra.mxu0 0.0
    %2567 = vmatprep.subr.mxu0 0.0
    %2568 = vmatpush1.msra.mxu0 0.0
    %2569 = vmatprep.subr.mxu0 0.0
    %2570 = vmatpush1.msra.mxu0 0.0
    %2571 = vmatprep.subr.mxu0 0.0
    %2572 = vmatpush1.msra.mxu0 0.0
    %2573 = vmatprep.subr.mxu0 0.0
    %2574 = vmatpush1.msra.mxu0 0.0
    %2575 = vmatprep.subr.mxu0 0.0
    %2576 = vmatpush1.msra.mxu0 0.0
    %2577 = vmatprep.subr.mxu0 0.0
    %2578 = vmatpush1.msra.mxu0 0.0
    %2579 = vmatprep.subr.mxu0 0.0
    %2580 = vmatpush1.msra.mxu0 0.0
    %2581 = vmatprep.subr.mxu0 0.0
    %2582 = vmatpush1.msra.mxu0 0.0
    %2583 = vmatprep.subr.mxu0 0.0
    %2584 = vmatpush1.msra.mxu0 0.0
    %2585 = vmatprep.subr.mxu0 0.0
    %2586 = vmatpush1.msra.mxu0 0.0
    %2587 = vmatprep.subr.mxu0 0.0
    %2588 = vmatpush1.msra.mxu0 0.0
    %2589 = vmatprep.subr.mxu0 0.0
    %2590 = vmatpush1.msra.mxu0 0.0
    %2591 = vmatprep.subr.mxu0 0.0
    %2592 = vmatpush1.msra.mxu0 0.0
    %2593 = vmatprep.subr.mxu0 0.0
    %2594 = vmatpush1.msra.mxu0 0.0
    %2595 = vmatprep.subr.mxu0 0.0
    %2596 = vmatpush1.msra.mxu0 0.0
    %2597 = vmatprep.subr.mxu0 0.0
    %2598 = vmatpush1.msra.mxu0 0.0
    %2599 = vmatprep.subr.mxu0 0.0
    %2600 = vmatpush1.msra.mxu0 0.0
    %2601 = vmatprep.subr.mxu0 0.0
    %2602 = vmatpush1.msra.mxu0 0.0
    %2603 = vmatprep.subr.mxu0 0.0
    %2604 = vmatpush1.msra.mxu0 0.0
    %2605 = vmatprep.subr.mxu0 0.0
    %2606 = vmatpush1.msra.mxu0 0.0
    %2607 = vmatprep.subr.mxu0 0.0
    %2608 = vmatpush1.msra.mxu0 0.0
    %2609 = vmatprep.mubr.f32.mxu0 0.0
    %2610 = vmatmul.mubr.f32.gmra.mrb[0].mxu0 %v2543
    %v2611 = vpop.f32.mrb[0].mxu0
    %v2612 = vadd.f32 0.0, %v2611
    %v2613 = vpop.f32.mrb[0].mxu0
    %2614 = vdwg.mxu0
    %v2615 = vadd.f32 %v2335, %v2612
    %v2616 = vxor.u32 %v2615, 2147483648
    %v2617 = vmul.f32 %v2616, 1.442695
    %v2618 = vpow.pop %v2617
    %v2619 = vadd.f32 %v2618, 1.0
    %v2620 = vrcp.pop %v2619
    %v2621 = vmul.f32 1.0, %v2620
    %v2622 = vtanh.pop %v2615
    %v2623 = vmul.f32 %v2621, %v2331
    %2625 = vrot.lane.b32.xlu0 %v2622, 64
    %v2626 = vpop.permute.xlu0 %2625
    %v2628 = vmul.f32 %v2621, %v2626
    %2630 = vrot.lane.b32.xlu0 %v2628, 32
    %v2631 = vpop.permute.xlu0 %2630
    %v2633 = vadd.f32 %v2623, %v2631
    %v2634 = vtanh.pop %v2633
    %2636 = vrot.lane.b32.xlu0 %v2634, 64
    %v2637 = vpop.permute.xlu0 %2636
    %v2639 = vmul.f32 %v2621, %v2637
    %v2640 = vsel %vm145, %v2639, 0.0
    %2642 = vrot.lane.b32.xlu0 %v2640, 32
    %v2643 = vpop.permute.xlu0 %2642
    %2645 = vst.msk [vmem:[%s4] sm:$0xff] %vm42, %v2643
    %v2646 = vsel %vm145, %v2633, %v2331
    %2648 = vrot.lane.b32.xlu0 %v2443, 32
    %v2649 = vpop.permute.xlu0 %2648
    %2651 = vst.msk [vmem:[#allocation2] sm:$0xff] %vm42, %v2649
    %2653 = vrot.lane.b32.xlu0 %v2444, 96
    %v2654 = vpop.permute.xlu0 %2653
    %2656 = vst.msk [vmem:[#allocation4] sm:$0xff] %vm42, %v2654
    %2658 = vrot.lane.b32.xlu0 %v2539, 96
    %v2659 = vpop.permute.xlu0 %2658
    %2661 = vst.msk [vmem:[%s7] sm:$0xff] %vm42, %v2659
    %2663 = vrot.lane.b32.xlu0 %v2646, 96
    %v2664 = vpop.permute.xlu0 %2663
    %2666 = vst.msk [vmem:[%s8] sm:$0xff] %vm42, %v2664
    // Predicated region
    $region14: #{bi_awd_embedding_forward.2} parent=1 // pred_check
      _
    $region15: #{bi_awd_embedding_forward.2} parent=1 // pred_check_branch
      %2668 = sbr.rel (0) target = $region17
    $region16: #{bi_awd_embedding_forward.2} parent=1 // pred_region
      _
    $region17: #{bi_awd_embedding_forward.2} parent=1 // pred_fallthru
      _
    // Predicated region
    $region18: #{bi_awd_embedding_forward.2} parent=1 // pred_check
      _
    $region19: #{bi_awd_embedding_forward.2} parent=1 // pred_check_branch
      %2670 = sbr.rel (0) target = $region21
    $region20: #{bi_awd_embedding_forward.2} parent=1 // pred_region
      _
    $region21: #{bi_awd_embedding_forward.2} parent=1 // pred_fallthru
      _
    // Predicated region
    $region22: #{bi_awd_embedding_forward.2} parent=1 // pred_check
      _
    $region23: #{bi_awd_embedding_forward.2} parent=1 // pred_check_branch
      %2672 = sbr.rel (0) target = $region25
    $region24: #{bi_awd_embedding_forward.2} parent=1 // pred_region
      %s2674 = ssub.s32 128, 128
      %2675 = vsyncadd [#allocation3], %s2674
      %s2677 = sshll.u32 [#allocation2], 4
      %s2678 = int_to_ptr.vmem [resolvable:$true] %s2677
      %2680 = dma.vmem_to_hbm [thread:$0]  %s2678, 128, %s5, [#allocation3]
    $region25: #{bi_awd_embedding_forward.2} parent=1 // pred_fallthru
      _
    // Predicated region
    $region26: #{bi_awd_embedding_forward.2} parent=1 // pred_check
      _
    $region27: #{bi_awd_embedding_forward.2} parent=1 // pred_check_branch
      %2682 = sbr.rel (0) target = $region29
    $region28: #{bi_awd_embedding_forward.2} parent=1 // pred_region
      %s2684 = ssub.s32 128, 128
      %2685 = vsyncadd [#allocation5], %s2684
      %s2687 = sshll.u32 [#allocation4], 4
      %s2688 = int_to_ptr.vmem [resolvable:$true] %s2687
      %2690 = dma.vmem_to_hbm [thread:$0]  %s2688, 128, %s6, [#allocation5]
    $region29: #{bi_awd_embedding_forward.2} parent=1 // pred_fallthru
      _
    // Predicated region
    $region30: #{bi_awd_embedding_forward.2} parent=1 // pred_check
      _
    $region31: #{bi_awd_embedding_forward.2} parent=1 // pred_check_branch
      %2692 = sbr.rel (0) target = $region33
    $region32: #{bi_awd_embedding_forward.2} parent=1 // pred_region
      _
    $region33: #{bi_awd_embedding_forward.2} parent=1 // pred_fallthru
      _
    // Predicated region
    $region34: #{bi_awd_embedding_forward.2} parent=1 // pred_check
      _
    $region35: #{bi_awd_embedding_forward.2} parent=1 // pred_check_branch
      %2694 = sbr.rel (0) target = $region37
    $region36: #{bi_awd_embedding_forward.2} parent=1 // pred_region
      _
    $region37: #{bi_awd_embedding_forward.2} parent=1 // pred_fallthru
      _
    // Predicated region
    $region38: #{bi_awd_embedding_forward.2} parent=1 // pred_check
      _
    $region39: #{bi_awd_embedding_forward.2} parent=1 // pred_check_branch
      %2696 = sbr.rel (0) target = $region41
    $region40: #{bi_awd_embedding_forward.2} parent=1 // pred_region
      _
    $region41: #{bi_awd_embedding_forward.2} parent=1 // pred_fallthru
      _
    // Predicated region
    $region42: #{bi_awd_embedding_forward.2} parent=1 // pred_check
      _
    $region43: #{bi_awd_embedding_forward.2} parent=1 // pred_check_branch
      %2698 = sbr.rel (0) target = $region45
    $region44: #{bi_awd_embedding_forward.2} parent=1 // pred_region
      _
    $region45: #{bi_awd_embedding_forward.2} parent=1 // pred_fallthru
      _
    // Predicated region
    $region46: #{bi_awd_embedding_forward.2} parent=1 // pred_check
      _
    $region47: #{bi_awd_embedding_forward.2} parent=1 // pred_check_branch
      %2700 = sbr.rel (0) target = $region49
    $region48: #{bi_awd_embedding_forward.2} parent=1 // pred_region
      %2701 = dma.done [#allocation3], 128
    $region49: #{bi_awd_embedding_forward.2} parent=1 // pred_fallthru
      _
    // Predicated region
    $region50: #{bi_awd_embedding_forward.2} parent=1 // pred_check
      _
    $region51: #{bi_awd_embedding_forward.2} parent=1 // pred_check_branch
      %2703 = sbr.rel (0) target = $region53
    $region52: #{bi_awd_embedding_forward.2} parent=1 // pred_region
      %2704 = dma.done [#allocation5], 128
    $region53: #{bi_awd_embedding_forward.2} parent=1 // pred_fallthru
      _
    // Predicated region
    $region54: #{bi_awd_embedding_forward.2} parent=1 // pred_check
      _
    $region55: #{bi_awd_embedding_forward.2} parent=1 // pred_check_branch
      %2706 = sbr.rel (0) target = $region57
    $region56: #{bi_awd_embedding_forward.2} parent=1 // pred_region
      _
    $region57: #{bi_awd_embedding_forward.2} parent=1 // pred_fallthru
      _
    // Predicated region
    $region58: #{bi_awd_embedding_forward.2} parent=1 // pred_check
      _
    $region59: #{bi_awd_embedding_forward.2} parent=1 // pred_check_branch
      %2708 = sbr.rel (0) target = $region61
    $region60: #{bi_awd_embedding_forward.2} parent=1 // pred_region
      _
    $region61: #{bi_awd_embedding_forward.2} parent=1 // pred_fallthru
      _
    %2709 = vsyncpa [#allocation3], 1
    %2710 = vsyncpa [#allocation5], 1

// kernel: bi_awd_embedding_forward.3
$region0: #{bi_awd_embedding_forward.3}
  #allocation0 [shape = 'u32[]', space=smem, size = 0x4, offset = 0x4, fixed_abs, tag = 'smem constant byte address 0x4 - core index']
  #allocation1 [shape = 'u32[144,128]{1,0:T(1,128)}', space=vmem, size = 0x12000, scoped, tag = 'internal scratch']
  %s0 = inlined_call_operand.vmem [shape: s32[8,1], index: 0, kind: input, shape index: {}]
  %s1 = inlined_call_operand.vmem [shape: f32[8,8,384], index: 1, kind: input, shape index: {}]
  %s2 = inlined_call_operand.vmem [shape: f32[3,32,128], index: 2, kind: input, shape index: {}]
  %s3 = inlined_call_operand.hbm [shape: f32[8,8,32], index: 3, kind: output, shape index: {0}]
  %s4 = inlined_call_operand.hbm [shape: f32[8,8,32], index: 4, kind: output, shape index: {1}]
  %s5 = inlined_call_operand.hbm [shape: f32[8,32], index: 5, kind: output, shape index: {2}]
  %s6 = inlined_call_operand.hbm [shape: f32[8,32], index: 6, kind: output, shape index: {3}]
  %s7 = inlined_call_operand.vmem [shape: f32[8,32], index: 7, kind: output, shape index: {4}]
  %s8 = inlined_call_operand.vmem [shape: f32[8,32], index: 8, kind: output, shape index: {5}]
  %9 = xla_tuple %s3, %s4, %s5, %s6, %s7, %s8
  %s10 = sld [smem:[#allocation0]]
  $region62: #{bi_awd_embedding_forward.3} parent=0
    _
  %s12 = ssub.s32 1, %s10
  %s13 = scalar_select 0, %s12, %s10
  $region1: #{bi_awd_embedding_forward.3} parent=0
    #allocation2 [shape = 'u8[32768]{0}', space=vmem, size = 0x8000, scoped, tag = 'output window, operand 0, single buffered']
    #allocation3 [shape = 's32[1]{0}', space=sflag, size = 0x4, scoped, tag = 'scoped memory for bi_awd_embedding_forward.3']
    #allocation4 [shape = 'u8[32768]{0}', space=vmem, size = 0x8000, scoped, tag = 'output window, operand 1, single buffered']
    #allocation5 [shape = 's32[1]{0}', space=sflag, size = 0x4, scoped, tag = 'scoped memory for bi_awd_embedding_forward.3']
    #allocation6 [shape = 'u8[4096]{0}', space=vmem, size = 0x1000, scoped, tag = 'output window, operand 2, single buffered']
    #allocation7 [shape = 'u8[4096]{0}', space=vmem, size = 0x1000, scoped, tag = 'output window, operand 3, single buffered']
    #allocation8 [shape = 's32[1]{0}', space=sflag, size = 0x4, scoped, tag = 'scoped memory for bi_awd_embedding_forward.3']
    %14 = vsyncpa [#allocation3], 0
    %15 = vsyncpa [#allocation5], 0
    %16 = vsyncpa [#allocation8], 0
    // Predicated region
    $region2: #{bi_awd_embedding_forward.3} parent=1 // pred_check
      _
    $region3: #{bi_awd_embedding_forward.3} parent=1 // pred_check_branch
      %18 = sbr.rel (0) target = $region5
    $region4: #{bi_awd_embedding_forward.3} parent=1 // pred_region
      _
    $region5: #{bi_awd_embedding_forward.3} parent=1 // pred_fallthru
      _
    // Predicated region
    $region6: #{bi_awd_embedding_forward.3} parent=1 // pred_check
      _
    $region7: #{bi_awd_embedding_forward.3} parent=1 // pred_check_branch
      %20 = sbr.rel (0) target = $region9
    $region8: #{bi_awd_embedding_forward.3} parent=1 // pred_region
      _
    $region9: #{bi_awd_embedding_forward.3} parent=1 // pred_fallthru
      _
    // Predicated region
    $region10: #{bi_awd_embedding_forward.3} parent=1 // pred_check
      _
    $region11: #{bi_awd_embedding_forward.3} parent=1 // pred_check_branch
      %22 = sbr.rel (0) target = $region13
    $region12: #{bi_awd_embedding_forward.3} parent=1 // pred_region
      _
    $region13: #{bi_awd_embedding_forward.3} parent=1 // pred_fallthru
      _
    %v23 = vld [vmem:[%s0] sm:$0xff]
    %v24 = vld [vmem:[%s2] sm:$0xff]
    %v25 = vld [vmem:[%s2 + $0x8] sm:$0xff]
    %v26 = vld [vmem:[%s2 + $0x10] sm:$0xff]
    %v27 = vld [vmem:[%s2 + $0x18] sm:$0xff]
    %s28 = scalar_lea.vmem %s2, 32
    %v29 = vld [vmem:[%s28] sm:$0xff]
    %v30 = vld [vmem:[%s28 + $0x8] sm:$0xff]
    %v31 = vld [vmem:[%s28 + $0x10] sm:$0xff]
    %v32 = vld [vmem:[%s28 + $0x18] sm:$0xff]
    %s33 = scalar_lea.vmem %s2, 64
    %v34 = vld [vmem:[%s33] sm:$0xff]
    %v35 = vld [vmem:[%s33 + $0x8] sm:$0xff]
    %v36 = vld [vmem:[%s33 + $0x10] sm:$0xff]
    %v37 = vld [vmem:[%s33 + $0x18] sm:$0xff]
    %v38 = vld [vmem:[%s1] sm:$0xff]
    %v39 = vld [vmem:[%s1 + $0x8] sm:$0xff]
    %v40 = vld [vmem:[%s1 + $0x10] sm:$0xff]
    %vm41 = vcmp.gt.s32.totalorder %v23, 0
    %vm42 = vcmp.gt.s32.totalorder %v23, 7
    %vm43 = vcmask 261120
    %v45 = vsel %vm43, 0.0, 0
    %47 = vmatprep.subr.mxu0 0.0
    %48 = vmatpush1.msra.mxu0 %v24
    %49 = vmatprep.subr.mxu0 0.0
    %50 = vmatpush1.msra.mxu0 %v25
    %51 = vmatprep.subr.mxu0 0.0
    %52 = vmatpush1.msra.mxu0 %v26
    %53 = vmatprep.subr.mxu0 0.0
    %54 = vmatpush1.msra.mxu0 %v27
    %55 = vmatprep.subr.mxu0 0.0
    %56 = vmatpush1.msra.mxu0 0.0
    %57 = vmatprep.subr.mxu0 0.0
    %58 = vmatpush1.msra.mxu0 0.0
    %59 = vmatprep.subr.mxu0 0.0
    %60 = vmatpush1.msra.mxu0 0.0
    %61 = vmatprep.subr.mxu0 0.0
    %62 = vmatpush1.msra.mxu0 0.0
    %63 = vmatprep.subr.mxu0 0.0
    %64 = vmatpush1.msra.mxu0 0.0
    %65 = vmatprep.subr.mxu0 0.0
    %66 = vmatpush1.msra.mxu0 0.0
    %67 = vmatprep.subr.mxu0 0.0
    %68 = vmatpush1.msra.mxu0 0.0
    %69 = vmatprep.subr.mxu0 0.0
    %70 = vmatpush1.msra.mxu0 0.0
    %71 = vmatprep.subr.mxu0 0.0
    %72 = vmatpush1.msra.mxu0 0.0
    %73 = vmatprep.subr.mxu0 0.0
    %74 = vmatpush1.msra.mxu0 0.0
    %75 = vmatprep.subr.mxu0 0.0
    %76 = vmatpush1.msra.mxu0 0.0
    %77 = vmatprep.subr.mxu0 0.0
    %78 = vmatpush1.msra.mxu0 0.0
    %79 = vmatprep.subr.mxu0 0.0
    %80 = vmatpush1.msra.mxu0 0.0
    %81 = vmatprep.subr.mxu0 0.0
    %82 = vmatpush1.msra.mxu0 0.0
    %83 = vmatprep.subr.mxu0 0.0
    %84 = vmatpush1.msra.mxu0 0.0
    %85 = vmatprep.subr.mxu0 0.0
    %86 = vmatpush1.msra.mxu0 0.0
    %87 = vmatprep.subr.mxu0 0.0
    %88 = vmatpush1.msra.mxu0 0.0
    %89 = vmatprep.subr.mxu0 0.0
    %90 = vmatpush1.msra.mxu0 0.0
    %91 = vmatprep.subr.mxu0 0.0
    %92 = vmatpush1.msra.mxu0 0.0
    %93 = vmatprep.subr.mxu0 0.0
    %94 = vmatpush1.msra.mxu0 0.0
    %95 = vmatprep.subr.mxu0 0.0
    %96 = vmatpush1.msra.mxu0 0.0
    %97 = vmatprep.subr.mxu0 0.0
    %98 = vmatpush1.msra.mxu0 0.0
    %99 = vmatprep.subr.mxu0 0.0
    %100 = vmatpush1.msra.mxu0 0.0
    %101 = vmatprep.subr.mxu0 0.0
    %102 = vmatpush1.msra.mxu0 0.0
    %103 = vmatprep.subr.mxu0 0.0
    %104 = vmatpush1.msra.mxu0 0.0
    %105 = vmatprep.subr.mxu0 0.0
    %106 = vmatpush1.msra.mxu0 0.0
    %107 = vmatprep.subr.mxu0 0.0
    %108 = vmatpush1.msra.mxu0 0.0
    %109 = vmatprep.subr.mxu0 0.0
    %110 = vmatpush1.msra.mxu0 0.0
    %111 = vmatprep.mubr.f32.mxu0 0.0
    %112 = vmatmul.mubr.f32.gmra.mrb[0].mxu0 %v45
    %v113 = vpop.f32.mrb[0].mxu0
    %v114 = vadd.f32 0.0, %v113
    %v115 = vpop.f32.mrb[0].mxu0
    %116 = vdwg.mxu0
    %v117 = vadd.f32 %v38, %v114
    %v118 = vxor.u32 %v117, 2147483648
    %v119 = vmul.f32 %v118, 1.442695
    %v120 = vpow.pop %v119
    %v121 = vadd.f32 %v120, 1.0
    %v122 = vrcp.pop %v121
    %v123 = vmul.f32 1.0, %v122
    %v124 = vtanh.pop %v117
    %v125 = vmul.f32 %v123, 0.0
    %127 = vrot.lane.b32.xlu0 %v124, 64
    %v128 = vpop.permute.xlu0 %127
    %v130 = vmul.f32 %v123, %v128
    %132 = vrot.lane.b32.xlu0 %v130, 32
    %v133 = vpop.permute.xlu0 %132
    %v135 = vadd.f32 %v125, %v133
    %v136 = vtanh.pop %v135
    %138 = vrot.lane.b32.xlu0 %v136, 64
    %v139 = vpop.permute.xlu0 %138
    %v141 = vmul.f32 %v123, %v139
    %v142 = vsel %vm41, 1, 0
    %143 = vset.pattern.permute.xlu0 0
    %144 = vperm.xlu0 %143, %v142
    %v145 = vpop.permute.xlu0 %144
    %vm146 = vcmp.eq.s32.totalorder %v145, 1
    %v147 = vsel %vm146, %v141, 0.0
    %149 = vrot.lane.b32.xlu0 %v147, 32
    %v150 = vpop.permute.xlu0 %149
    %152 = vst.msk [vmem:[#allocation2] sm:$0xff] %vm43, %v150
    %v153 = vsel %vm146, %v135, 0.0
    %154 = vmatprep.subr.mxu0 0.0
    %155 = vmatpush1.msra.mxu0 %v29
    %156 = vmatprep.subr.mxu0 0.0
    %157 = vmatpush1.msra.mxu0 %v30
    %158 = vmatprep.subr.mxu0 0.0
    %159 = vmatpush1.msra.mxu0 %v31
    %160 = vmatprep.subr.mxu0 0.0
    %161 = vmatpush1.msra.mxu0 %v32
    %162 = vmatprep.subr.mxu0 0.0
    %163 = vmatpush1.msra.mxu0 0.0
    %164 = vmatprep.subr.mxu0 0.0
    %165 = vmatpush1.msra.mxu0 0.0
    %166 = vmatprep.subr.mxu0 0.0
    %167 = vmatpush1.msra.mxu0 0.0
    %168 = vmatprep.subr.mxu0 0.0
    %169 = vmatpush1.msra.mxu0 0.0
    %170 = vmatprep.subr.mxu0 0.0
    %171 = vmatpush1.msra.mxu0 0.0
    %172 = vmatprep.subr.mxu0 0.0
    %173 = vmatpush1.msra.mxu0 0.0
    %174 = vmatprep.subr.mxu0 0.0
    %175 = vmatpush1.msra.mxu0 0.0
    %176 = vmatprep.subr.mxu0 0.0
    %177 = vmatpush1.msra.mxu0 0.0
    %178 = vmatprep.subr.mxu0 0.0
    %179 = vmatpush1.msra.mxu0 0.0
    %180 = vmatprep.subr.mxu0 0.0
    %181 = vmatpush1.msra.mxu0 0.0
    %182 = vmatprep.subr.mxu0 0.0
    %183 = vmatpush1.msra.mxu0 0.0
    %184 = vmatprep.subr.mxu0 0.0
    %185 = vmatpush1.msra.mxu0 0.0
    %186 = vmatprep.subr.mxu0 0.0
    %187 = vmatpush1.msra.mxu0 0.0
    %188 = vmatprep.subr.mxu0 0.0
    %189 = vmatpush1.msra.mxu0 0.0
    %190 = vmatprep.subr.mxu0 0.0
    %191 = vmatpush1.msra.mxu0 0.0
    %192 = vmatprep.subr.mxu0 0.0
    %193 = vmatpush1.msra.mxu0 0.0
    %194 = vmatprep.subr.mxu0 0.0
    %195 = vmatpush1.msra.mxu0 0.0
    %196 = vmatprep.subr.mxu0 0.0
    %197 = vmatpush1.msra.mxu0 0.0
    %198 = vmatprep.subr.mxu0 0.0
    %199 = vmatpush1.msra.mxu0 0.0
    %200 = vmatprep.subr.mxu0 0.0
    %201 = vmatpush1.msra.mxu0 0.0
    %202 = vmatprep.subr.mxu0 0.0
    %203 = vmatpush1.msra.mxu0 0.0
    %204 = vmatprep.subr.mxu0 0.0
    %205 = vmatpush1.msra.mxu0 0.0
    %206 = vmatprep.subr.mxu0 0.0
    %207 = vmatpush1.msra.mxu0 0.0
    %208 = vmatprep.subr.mxu0 0.0
    %209 = vmatpush1.msra.mxu0 0.0
    %210 = vmatprep.subr.mxu0 0.0
    %211 = vmatpush1.msra.mxu0 0.0
    %212 = vmatprep.subr.mxu0 0.0
    %213 = vmatpush1.msra.mxu0 0.0
    %214 = vmatprep.subr.mxu0 0.0
    %215 = vmatpush1.msra.mxu0 0.0
    %216 = vmatprep.subr.mxu0 0.0
    %217 = vmatpush1.msra.mxu0 0.0
    %218 = vmatprep.mubr.f32.mxu0 0.0
    %219 = vmatmul.mubr.f32.gmra.mrb[0].mxu0 %v45
    %v220 = vpop.f32.mrb[0].mxu0
    %v221 = vadd.f32 0.0, %v220
    %v222 = vpop.f32.mrb[0].mxu0
    %223 = vdwg.mxu0
    %v224 = vadd.f32 %v39, %v221
    %v225 = vxor.u32 %v224, 2147483648
    %v226 = vmul.f32 %v225, 1.442695
    %v227 = vpow.pop %v226
    %v228 = vadd.f32 %v227, 1.0
    %v229 = vrcp.pop %v228
    %v230 = vmul.f32 1.0, %v229
    %v231 = vtanh.pop %v224
    %v232 = vmul.f32 %v230, 0.0
    %234 = vrot.lane.b32.xlu0 %v231, 64
    %v235 = vpop.permute.xlu0 %234
    %v237 = vmul.f32 %v230, %v235
    %239 = vrot.lane.b32.xlu0 %v237, 32
    %v240 = vpop.permute.xlu0 %239
    %v242 = vadd.f32 %v232, %v240
    %v243 = vtanh.pop %v242
    %245 = vrot.lane.b32.xlu0 %v243, 64
    %v246 = vpop.permute.xlu0 %245
    %v248 = vmul.f32 %v230, %v246
    %v249 = vsel %vm146, %v248, 0.0
    %v250 = vsel %vm146, %v242, 0.0
    %251 = vmatprep.subr.mxu0 0.0
    %252 = vmatpush1.msra.mxu0 %v34
    %253 = vmatprep.subr.mxu0 0.0
    %254 = vmatpush1.msra.mxu0 %v35
    %255 = vmatprep.subr.mxu0 0.0
    %256 = vmatpush1.msra.mxu0 %v36
    %257 = vmatprep.subr.mxu0 0.0
    %258 = vmatpush1.msra.mxu0 %v37
    %259 = vmatprep.subr.mxu0 0.0
    %260 = vmatpush1.msra.mxu0 0.0
    %261 = vmatprep.subr.mxu0 0.0
    %262 = vmatpush1.msra.mxu0 0.0
    %263 = vmatprep.subr.mxu0 0.0
    %264 = vmatpush1.msra.mxu0 0.0
    %265 = vmatprep.subr.mxu0 0.0
    %266 = vmatpush1.msra.mxu0 0.0
    %267 = vmatprep.subr.mxu0 0.0
    %268 = vmatpush1.msra.mxu0 0.0
    %269 = vmatprep.subr.mxu0 0.0
    %270 = vmatpush1.msra.mxu0 0.0
    %271 = vmatprep.subr.mxu0 0.0
    %272 = vmatpush1.msra.mxu0 0.0
    %273 = vmatprep.subr.mxu0 0.0
    %274 = vmatpush1.msra.mxu0 0.0
    %275 = vmatprep.subr.mxu0 0.0
    %276 = vmatpush1.msra.mxu0 0.0
    %277 = vmatprep.subr.mxu0 0.0
    %278 = vmatpush1.msra.mxu0 0.0
    %279 = vmatprep.subr.mxu0 0.0
    %280 = vmatpush1.msra.mxu0 0.0
    %281 = vmatprep.subr.mxu0 0.0
    %282 = vmatpush1.msra.mxu0 0.0
    %283 = vmatprep.subr.mxu0 0.0
    %284 = vmatpush1.msra.mxu0 0.0
    %285 = vmatprep.subr.mxu0 0.0
    %286 = vmatpush1.msra.mxu0 0.0
    %287 = vmatprep.subr.mxu0 0.0
    %288 = vmatpush1.msra.mxu0 0.0
    %289 = vmatprep.subr.mxu0 0.0
    %290 = vmatpush1.msra.mxu0 0.0
    %291 = vmatprep.subr.mxu0 0.0
    %292 = vmatpush1.msra.mxu0 0.0
    %293 = vmatprep.subr.mxu0 0.0
    %294 = vmatpush1.msra.mxu0 0.0
    %295 = vmatprep.subr.mxu0 0.0
    %296 = vmatpush1.msra.mxu0 0.0
    %297 = vmatprep.subr.mxu0 0.0
    %298 = vmatpush1.msra.mxu0 0.0
    %299 = vmatprep.subr.mxu0 0.0
    %300 = vmatpush1.msra.mxu0 0.0
    %301 = vmatprep.subr.mxu0 0.0
    %302 = vmatpush1.msra.mxu0 0.0
    %303 = vmatprep.subr.mxu0 0.0
    %304 = vmatpush1.msra.mxu0 0.0
    %305 = vmatprep.subr.mxu0 0.0
    %306 = vmatpush1.msra.mxu0 0.0
    %307 = vmatprep.subr.mxu0 0.0
    %308 = vmatpush1.msra.mxu0 0.0
    %309 = vmatprep.subr.mxu0 0.0
    %310 = vmatpush1.msra.mxu0 0.0
    %311 = vmatprep.subr.mxu0 0.0
    %312 = vmatpush1.msra.mxu0 0.0
    %313 = vmatprep.subr.mxu0 0.0
    %314 = vmatpush1.msra.mxu0 0.0
    %315 = vmatprep.mubr.f32.mxu0 0.0
    %316 = vmatmul.mubr.f32.gmra.mrb[0].mxu0 %v45
    %v317 = vpop.f32.mrb[0].mxu0
    %v318 = vadd.f32 0.0, %v317
    %v319 = vpop.f32.mrb[0].mxu0
    %320 = vdwg.mxu0
    %v321 = vadd.f32 %v40, %v318
    %v322 = vxor.u32 %v321, 2147483648
    %v323 = vmul.f32 %v322, 1.442695
    %v324 = vpow.pop %v323
    %v325 = vadd.f32 %v324, 1.0
    %v326 = vrcp.pop %v325
    %v327 = vmul.f32 1.0, %v326
    %v328 = vtanh.pop %v321
    %v329 = vmul.f32 %v327, 0.0
    %331 = vrot.lane.b32.xlu0 %v328, 64
    %v332 = vpop.permute.xlu0 %331
    %v334 = vmul.f32 %v327, %v332
    %336 = vrot.lane.b32.xlu0 %v334, 32
    %v337 = vpop.permute.xlu0 %336
    %v339 = vadd.f32 %v329, %v337
    %v340 = vtanh.pop %v339
    %342 = vrot.lane.b32.xlu0 %v340, 64
    %v343 = vpop.permute.xlu0 %342
    %v345 = vmul.f32 %v327, %v343
    %v346 = vsel %vm42, 1, 0
    %347 = vset.pattern.permute.xlu0 0
    %348 = vperm.xlu0 %347, %v346
    %v349 = vpop.permute.xlu0 %348
    %vm350 = vcmp.eq.s32.totalorder %v349, 1
    %v351 = vsel %vm350, %v345, 0.0
    %353 = vrot.lane.b32.xlu0 %v351, 32
    %v354 = vpop.permute.xlu0 %353
    %s356 = scalar_lea.vmem [#allocation4], 56
    %357 = vst.msk [vmem:[%s356] sm:$0xff] %vm43, %v354
    %v358 = vsel %vm350, %v339, 0.0
    %s359 = scalar_lea.vmem %s1, 24
    %v360 = vld [vmem:[%s359] sm:$0xff]
    %v361 = vld [vmem:[%s359 + $0x8] sm:$0xff]
    %v362 = vld [vmem:[%s359 + $0x10] sm:$0xff]
    %vm363 = vcmp.gt.s32.totalorder %v23, 1
    %vm364 = vcmp.gt.s32.totalorder %v23, 6
    %v365 = vsel %vm43, %v150, 0
    %367 = vmatprep.subr.mxu0 0.0
    %368 = vmatpush1.msra.mxu0 %v24
    %369 = vmatprep.subr.mxu0 0.0
    %370 = vmatpush1.msra.mxu0 %v25
    %371 = vmatprep.subr.mxu0 0.0
    %372 = vmatpush1.msra.mxu0 %v26
    %373 = vmatprep.subr.mxu0 0.0
    %374 = vmatpush1.msra.mxu0 %v27
    %375 = vmatprep.subr.mxu0 0.0
    %376 = vmatpush1.msra.mxu0 0.0
    %377 = vmatprep.subr.mxu0 0.0
    %378 = vmatpush1.msra.mxu0 0.0
    %379 = vmatprep.subr.mxu0 0.0
    %380 = vmatpush1.msra.mxu0 0.0
    %381 = vmatprep.subr.mxu0 0.0
    %382 = vmatpush1.msra.mxu0 0.0
    %383 = vmatprep.subr.mxu0 0.0
    %384 = vmatpush1.msra.mxu0 0.0
    %385 = vmatprep.subr.mxu0 0.0
    %386 = vmatpush1.msra.mxu0 0.0
    %387 = vmatprep.subr.mxu0 0.0
    %388 = vmatpush1.msra.mxu0 0.0
    %389 = vmatprep.subr.mxu0 0.0
    %390 = vmatpush1.msra.mxu0 0.0
    %391 = vmatprep.subr.mxu0 0.0
    %392 = vmatpush1.msra.mxu0 0.0
    %393 = vmatprep.subr.mxu0 0.0
    %394 = vmatpush1.msra.mxu0 0.0
    %395 = vmatprep.subr.mxu0 0.0
    %396 = vmatpush1.msra.mxu0 0.0
    %397 = vmatprep.subr.mxu0 0.0
    %398 = vmatpush1.msra.mxu0 0.0
    %399 = vmatprep.subr.mxu0 0.0
    %400 = vmatpush1.msra.mxu0 0.0
    %401 = vmatprep.subr.mxu0 0.0
    %402 = vmatpush1.msra.mxu0 0.0
    %403 = vmatprep.subr.mxu0 0.0
    %404 = vmatpush1.msra.mxu0 0.0
    %405 = vmatprep.subr.mxu0 0.0
    %406 = vmatpush1.msra.mxu0 0.0
    %407 = vmatprep.subr.mxu0 0.0
    %408 = vmatpush1.msra.mxu0 0.0
    %409 = vmatprep.subr.mxu0 0.0
    %410 = vmatpush1.msra.mxu0 0.0
    %411 = vmatprep.subr.mxu0 0.0
    %412 = vmatpush1.msra.mxu0 0.0
    %413 = vmatprep.subr.mxu0 0.0
    %414 = vmatpush1.msra.mxu0 0.0
    %415 = vmatprep.subr.mxu0 0.0
    %416 = vmatpush1.msra.mxu0 0.0
    %417 = vmatprep.subr.mxu0 0.0
    %418 = vmatpush1.msra.mxu0 0.0
    %419 = vmatprep.subr.mxu0 0.0
    %420 = vmatpush1.msra.mxu0 0.0
    %421 = vmatprep.subr.mxu0 0.0
    %422 = vmatpush1.msra.mxu0 0.0
    %423 = vmatprep.subr.mxu0 0.0
    %424 = vmatpush1.msra.mxu0 0.0
    %425 = vmatprep.subr.mxu0 0.0
    %426 = vmatpush1.msra.mxu0 0.0
    %427 = vmatprep.subr.mxu0 0.0
    %428 = vmatpush1.msra.mxu0 0.0
    %429 = vmatprep.subr.mxu0 0.0
    %430 = vmatpush1.msra.mxu0 0.0
    %431 = vmatprep.mubr.f32.mxu0 0.0
    %432 = vmatmul.mubr.f32.gmra.mrb[0].mxu0 %v365
    %v433 = vpop.f32.mrb[0].mxu0
    %v434 = vadd.f32 0.0, %v433
    %v435 = vpop.f32.mrb[0].mxu0
    %436 = vdwg.mxu0
    %v437 = vadd.f32 %v360, %v434
    %v438 = vxor.u32 %v437, 2147483648
    %v439 = vmul.f32 %v438, 1.442695
    %v440 = vpow.pop %v439
    %v441 = vadd.f32 %v440, 1.0
    %v442 = vrcp.pop %v441
    %v443 = vmul.f32 1.0, %v442
    %v444 = vtanh.pop %v437
    %v445 = vmul.f32 %v443, %v153
    %447 = vrot.lane.b32.xlu0 %v444, 64
    %v448 = vpop.permute.xlu0 %447
    %v450 = vmul.f32 %v443, %v448
    %452 = vrot.lane.b32.xlu0 %v450, 32
    %v453 = vpop.permute.xlu0 %452
    %v455 = vadd.f32 %v445, %v453
    %v456 = vtanh.pop %v455
    %458 = vrot.lane.b32.xlu0 %v456, 64
    %v459 = vpop.permute.xlu0 %458
    %v461 = vmul.f32 %v443, %v459
    %v462 = vsel %vm363, 1, 0
    %463 = vset.pattern.permute.xlu0 0
    %464 = vperm.xlu0 %463, %v462
    %v465 = vpop.permute.xlu0 %464
    %vm466 = vcmp.eq.s32.totalorder %v465, 1
    %v467 = vsel %vm466, %v461, 0.0
    %469 = vrot.lane.b32.xlu0 %v467, 32
    %v470 = vpop.permute.xlu0 %469
    %s472 = scalar_lea.vmem [#allocation2], 8
    %473 = vst.msk [vmem:[%s472] sm:$0xff] %vm43, %v470
    %v474 = vsel %vm466, %v461, %v147
    %v475 = vsel %vm466, %v455, %v153
    %477 = vrot.lane.b32.xlu0 %v249, 32
    %v478 = vpop.permute.xlu0 %477
    %v479 = vsel %vm43, %v478, 0
    %481 = vmatprep.subr.mxu0 0.0
    %482 = vmatpush1.msra.mxu0 %v29
    %483 = vmatprep.subr.mxu0 0.0
    %484 = vmatpush1.msra.mxu0 %v30
    %485 = vmatprep.subr.mxu0 0.0
    %486 = vmatpush1.msra.mxu0 %v31
    %487 = vmatprep.subr.mxu0 0.0
    %488 = vmatpush1.msra.mxu0 %v32
    %489 = vmatprep.subr.mxu0 0.0
    %490 = vmatpush1.msra.mxu0 0.0
    %491 = vmatprep.subr.mxu0 0.0
    %492 = vmatpush1.msra.mxu0 0.0
    %493 = vmatprep.subr.mxu0 0.0
    %494 = vmatpush1.msra.mxu0 0.0
    %495 = vmatprep.subr.mxu0 0.0
    %496 = vmatpush1.msra.mxu0 0.0
    %497 = vmatprep.subr.mxu0 0.0
    %498 = vmatpush1.msra.mxu0 0.0
    %499 = vmatprep.subr.mxu0 0.0
    %500 = vmatpush1.msra.mxu0 0.0
    %501 = vmatprep.subr.mxu0 0.0
    %502 = vmatpush1.msra.mxu0 0.0
    %503 = vmatprep.subr.mxu0 0.0
    %504 = vmatpush1.msra.mxu0 0.0
    %505 = vmatprep.subr.mxu0 0.0
    %506 = vmatpush1.msra.mxu0 0.0
    %507 = vmatprep.subr.mxu0 0.0
    %508 = vmatpush1.msra.mxu0 0.0
    %509 = vmatprep.subr.mxu0 0.0
    %510 = vmatpush1.msra.mxu0 0.0
    %511 = vmatprep.subr.mxu0 0.0
    %512 = vmatpush1.msra.mxu0 0.0
    %513 = vmatprep.subr.mxu0 0.0
    %514 = vmatpush1.msra.mxu0 0.0
    %515 = vmatprep.subr.mxu0 0.0
    %516 = vmatpush1.msra.mxu0 0.0
    %517 = vmatprep.subr.mxu0 0.0
    %518 = vmatpush1.msra.mxu0 0.0
    %519 = vmatprep.subr.mxu0 0.0
    %520 = vmatpush1.msra.mxu0 0.0
    %521 = vmatprep.subr.mxu0 0.0
    %522 = vmatpush1.msra.mxu0 0.0
    %523 = vmatprep.subr.mxu0 0.0
    %524 = vmatpush1.msra.mxu0 0.0
    %525 = vmatprep.subr.mxu0 0.0
    %526 = vmatpush1.msra.mxu0 0.0
    %527 = vmatprep.subr.mxu0 0.0
    %528 = vmatpush1.msra.mxu0 0.0
    %529 = vmatprep.subr.mxu0 0.0
    %530 = vmatpush1.msra.mxu0 0.0
    %531 = vmatprep.subr.mxu0 0.0
    %532 = vmatpush1.msra.mxu0 0.0
    %533 = vmatprep.subr.mxu0 0.0
    %534 = vmatpush1.msra.mxu0 0.0
    %535 = vmatprep.subr.mxu0 0.0
    %536 = vmatpush1.msra.mxu0 0.0
    %537 = vmatprep.subr.mxu0 0.0
    %538 = vmatpush1.msra.mxu0 0.0
    %539 = vmatprep.subr.mxu0 0.0
    %540 = vmatpush1.msra.mxu0 0.0
    %541 = vmatprep.subr.mxu0 0.0
    %542 = vmatpush1.msra.mxu0 0.0
    %543 = vmatprep.subr.mxu0 0.0
    %544 = vmatpush1.msra.mxu0 0.0
    %545 = vmatprep.mubr.f32.mxu0 0.0
    %546 = vmatmul.mubr.f32.gmra.mrb[0].mxu0 %v479
    %v547 = vpop.f32.mrb[0].mxu0
    %v548 = vadd.f32 0.0, %v547
    %v549 = vpop.f32.mrb[0].mxu0
    %550 = vdwg.mxu0
    %v551 = vadd.f32 %v361, %v548
    %v552 = vxor.u32 %v551, 2147483648
    %v553 = vmul.f32 %v552, 1.442695
    %v554 = vpow.pop %v553
    %v555 = vadd.f32 %v554, 1.0
    %v556 = vrcp.pop %v555
    %v557 = vmul.f32 1.0, %v556
    %v558 = vtanh.pop %v551
    %v559 = vmul.f32 %v557, %v250
    %561 = vrot.lane.b32.xlu0 %v558, 64
    %v562 = vpop.permute.xlu0 %561
    %v564 = vmul.f32 %v557, %v562
    %566 = vrot.lane.b32.xlu0 %v564, 32
    %v567 = vpop.permute.xlu0 %566
    %v569 = vadd.f32 %v559, %v567
    %v570 = vtanh.pop %v569
    %572 = vrot.lane.b32.xlu0 %v570, 64
    %v573 = vpop.permute.xlu0 %572
    %v575 = vmul.f32 %v557, %v573
    %v576 = vsel %vm466, %v575, %v249
    %v577 = vsel %vm466, %v569, %v250
    %v578 = vsel %vm43, %v354, 0
    %580 = vmatprep.subr.mxu0 0.0
    %581 = vmatpush1.msra.mxu0 %v34
    %582 = vmatprep.subr.mxu0 0.0
    %583 = vmatpush1.msra.mxu0 %v35
    %584 = vmatprep.subr.mxu0 0.0
    %585 = vmatpush1.msra.mxu0 %v36
    %586 = vmatprep.subr.mxu0 0.0
    %587 = vmatpush1.msra.mxu0 %v37
    %588 = vmatprep.subr.mxu0 0.0
    %589 = vmatpush1.msra.mxu0 0.0
    %590 = vmatprep.subr.mxu0 0.0
    %591 = vmatpush1.msra.mxu0 0.0
    %592 = vmatprep.subr.mxu0 0.0
    %593 = vmatpush1.msra.mxu0 0.0
    %594 = vmatprep.subr.mxu0 0.0
    %595 = vmatpush1.msra.mxu0 0.0
    %596 = vmatprep.subr.mxu0 0.0
    %597 = vmatpush1.msra.mxu0 0.0
    %598 = vmatprep.subr.mxu0 0.0
    %599 = vmatpush1.msra.mxu0 0.0
    %600 = vmatprep.subr.mxu0 0.0
    %601 = vmatpush1.msra.mxu0 0.0
    %602 = vmatprep.subr.mxu0 0.0
    %603 = vmatpush1.msra.mxu0 0.0
    %604 = vmatprep.subr.mxu0 0.0
    %605 = vmatpush1.msra.mxu0 0.0
    %606 = vmatprep.subr.mxu0 0.0
    %607 = vmatpush1.msra.mxu0 0.0
    %608 = vmatprep.subr.mxu0 0.0
    %609 = vmatpush1.msra.mxu0 0.0
    %610 = vmatprep.subr.mxu0 0.0
    %611 = vmatpush1.msra.mxu0 0.0
    %612 = vmatprep.subr.mxu0 0.0
    %613 = vmatpush1.msra.mxu0 0.0
    %614 = vmatprep.subr.mxu0 0.0
    %615 = vmatpush1.msra.mxu0 0.0
    %616 = vmatprep.subr.mxu0 0.0
    %617 = vmatpush1.msra.mxu0 0.0
    %618 = vmatprep.subr.mxu0 0.0
    %619 = vmatpush1.msra.mxu0 0.0
    %620 = vmatprep.subr.mxu0 0.0
    %621 = vmatpush1.msra.mxu0 0.0
    %622 = vmatprep.subr.mxu0 0.0
    %623 = vmatpush1.msra.mxu0 0.0
    %624 = vmatprep.subr.mxu0 0.0
    %625 = vmatpush1.msra.mxu0 0.0
    %626 = vmatprep.subr.mxu0 0.0
    %627 = vmatpush1.msra.mxu0 0.0
    %628 = vmatprep.subr.mxu0 0.0
    %629 = vmatpush1.msra.mxu0 0.0
    %630 = vmatprep.subr.mxu0 0.0
    %631 = vmatpush1.msra.mxu0 0.0
    %632 = vmatprep.subr.mxu0 0.0
    %633 = vmatpush1.msra.mxu0 0.0
    %634 = vmatprep.subr.mxu0 0.0
    %635 = vmatpush1.msra.mxu0 0.0
    %636 = vmatprep.subr.mxu0 0.0
    %637 = vmatpush1.msra.mxu0 0.0
    %638 = vmatprep.subr.mxu0 0.0
    %639 = vmatpush1.msra.mxu0 0.0
    %640 = vmatprep.subr.mxu0 0.0
    %641 = vmatpush1.msra.mxu0 0.0
    %642 = vmatprep.subr.mxu0 0.0
    %643 = vmatpush1.msra.mxu0 0.0
    %644 = vmatprep.mubr.f32.mxu0 0.0
    %645 = vmatmul.mubr.f32.gmra.mrb[0].mxu0 %v578
    %v646 = vpop.f32.mrb[0].mxu0
    %v647 = vadd.f32 0.0, %v646
    %v648 = vpop.f32.mrb[0].mxu0
    %649 = vdwg.mxu0
    %v650 = vadd.f32 %v362, %v647
    %v651 = vxor.u32 %v650, 2147483648
    %v652 = vmul.f32 %v651, 1.442695
    %v653 = vpow.pop %v652
    %v654 = vadd.f32 %v653, 1.0
    %v655 = vrcp.pop %v654
    %v656 = vmul.f32 1.0, %v655
    %v657 = vtanh.pop %v650
    %v658 = vmul.f32 %v656, %v358
    %660 = vrot.lane.b32.xlu0 %v657, 64
    %v661 = vpop.permute.xlu0 %660
    %v663 = vmul.f32 %v656, %v661
    %665 = vrot.lane.b32.xlu0 %v663, 32
    %v666 = vpop.permute.xlu0 %665
    %v668 = vadd.f32 %v658, %v666
    %v669 = vtanh.pop %v668
    %671 = vrot.lane.b32.xlu0 %v669, 64
    %v672 = vpop.permute.xlu0 %671
    %v674 = vmul.f32 %v656, %v672
    %v675 = vsel %vm364, 1, 0
    %676 = vset.pattern.permute.xlu0 0
    %677 = vperm.xlu0 %676, %v675
    %v678 = vpop.permute.xlu0 %677
    %vm679 = vcmp.eq.s32.totalorder %v678, 1
    %v680 = vsel %vm679, %v674, 0.0
    %682 = vrot.lane.b32.xlu0 %v680, 32
    %v683 = vpop.permute.xlu0 %682
    %s685 = scalar_lea.vmem [#allocation4], 48
    %686 = vst.msk [vmem:[%s685] sm:$0xff] %vm43, %v683
    %v687 = vsel %vm679, %v674, %v351
    %v688 = vsel %vm679, %v668, %v358
    %s689 = scalar_lea.vmem %s1, 48
    %v690 = vld [vmem:[%s689] sm:$0xff]
    %v691 = vld [vmem:[%s689 + $0x8] sm:$0xff]
    %v692 = vld [vmem:[%s689 + $0x10] sm:$0xff]
    %vm693 = vcmp.gt.s32.totalorder %v23, 2
    %vm694 = vcmp.gt.s32.totalorder %v23, 5
    %696 = vrot.lane.b32.xlu0 %v474, 32
    %v697 = vpop.permute.xlu0 %696
    %v698 = vsel %vm43, %v697, 0
    %700 = vmatprep.subr.mxu0 0.0
    %701 = vmatpush1.msra.mxu0 %v24
    %702 = vmatprep.subr.mxu0 0.0
    %703 = vmatpush1.msra.mxu0 %v25
    %704 = vmatprep.subr.mxu0 0.0
    %705 = vmatpush1.msra.mxu0 %v26
    %706 = vmatprep.subr.mxu0 0.0
    %707 = vmatpush1.msra.mxu0 %v27
    %708 = vmatprep.subr.mxu0 0.0
    %709 = vmatpush1.msra.mxu0 0.0
    %710 = vmatprep.subr.mxu0 0.0
    %711 = vmatpush1.msra.mxu0 0.0
    %712 = vmatprep.subr.mxu0 0.0
    %713 = vmatpush1.msra.mxu0 0.0
    %714 = vmatprep.subr.mxu0 0.0
    %715 = vmatpush1.msra.mxu0 0.0
    %716 = vmatprep.subr.mxu0 0.0
    %717 = vmatpush1.msra.mxu0 0.0
    %718 = vmatprep.subr.mxu0 0.0
    %719 = vmatpush1.msra.mxu0 0.0
    %720 = vmatprep.subr.mxu0 0.0
    %721 = vmatpush1.msra.mxu0 0.0
    %722 = vmatprep.subr.mxu0 0.0
    %723 = vmatpush1.msra.mxu0 0.0
    %724 = vmatprep.subr.mxu0 0.0
    %725 = vmatpush1.msra.mxu0 0.0
    %726 = vmatprep.subr.mxu0 0.0
    %727 = vmatpush1.msra.mxu0 0.0
    %728 = vmatprep.subr.mxu0 0.0
    %729 = vmatpush1.msra.mxu0 0.0
    %730 = vmatprep.subr.mxu0 0.0
    %731 = vmatpush1.msra.mxu0 0.0
    %732 = vmatprep.subr.mxu0 0.0
    %733 = vmatpush1.msra.mxu0 0.0
    %734 = vmatprep.subr.mxu0 0.0
    %735 = vmatpush1.msra.mxu0 0.0
    %736 = vmatprep.subr.mxu0 0.0
    %737 = vmatpush1.msra.mxu0 0.0
    %738 = vmatprep.subr.mxu0 0.0
    %739 = vmatpush1.msra.mxu0 0.0
    %740 = vmatprep.subr.mxu0 0.0
    %741 = vmatpush1.msra.mxu0 0.0
    %742 = vmatprep.subr.mxu0 0.0
    %743 = vmatpush1.msra.mxu0 0.0
    %744 = vmatprep.subr.mxu0 0.0
    %745 = vmatpush1.msra.mxu0 0.0
    %746 = vmatprep.subr.mxu0 0.0
    %747 = vmatpush1.msra.mxu0 0.0
    %748 = vmatprep.subr.mxu0 0.0
    %749 = vmatpush1.msra.mxu0 0.0
    %750 = vmatprep.subr.mxu0 0.0
    %751 = vmatpush1.msra.mxu0 0.0
    %752 = vmatprep.subr.mxu0 0.0
    %753 = vmatpush1.msra.mxu0 0.0
    %754 = vmatprep.subr.mxu0 0.0
    %755 = vmatpush1.msra.mxu0 0.0
    %756 = vmatprep.subr.mxu0 0.0
    %757 = vmatpush1.msra.mxu0 0.0
    %758 = vmatprep.subr.mxu0 0.0
    %759 = vmatpush1.msra.mxu0 0.0
    %760 = vmatprep.subr.mxu0 0.0
    %761 = vmatpush1.msra.mxu0 0.0
    %762 = vmatprep.subr.mxu0 0.0
    %763 = vmatpush1.msra.mxu0 0.0
    %764 = vmatprep.mubr.f32.mxu0 0.0
    %765 = vmatmul.mubr.f32.gmra.mrb[0].mxu0 %v698
    %v766 = vpop.f32.mrb[0].mxu0
    %v767 = vadd.f32 0.0, %v766
    %v768 = vpop.f32.mrb[0].mxu0
    %769 = vdwg.mxu0
    %v770 = vadd.f32 %v690, %v767
    %v771 = vxor.u32 %v770, 2147483648
    %v772 = vmul.f32 %v771, 1.442695
    %v773 = vpow.pop %v772
    %v774 = vadd.f32 %v773, 1.0
    %v775 = vrcp.pop %v774
    %v776 = vmul.f32 1.0, %v775
    %v777 = vtanh.pop %v770
    %v778 = vmul.f32 %v776, %v475
    %780 = vrot.lane.b32.xlu0 %v777, 64
    %v781 = vpop.permute.xlu0 %780
    %v783 = vmul.f32 %v776, %v781
    %785 = vrot.lane.b32.xlu0 %v783, 32
    %v786 = vpop.permute.xlu0 %785
    %v788 = vadd.f32 %v778, %v786
    %v789 = vtanh.pop %v788
    %791 = vrot.lane.b32.xlu0 %v789, 64
    %v792 = vpop.permute.xlu0 %791
    %v794 = vmul.f32 %v776, %v792
    %v795 = vsel %vm693, 1, 0
    %796 = vset.pattern.permute.xlu0 0
    %797 = vperm.xlu0 %796, %v795
    %v798 = vpop.permute.xlu0 %797
    %vm799 = vcmp.eq.s32.totalorder %v798, 1
    %v800 = vsel %vm799, %v794, 0.0
    %802 = vrot.lane.b32.xlu0 %v800, 32
    %v803 = vpop.permute.xlu0 %802
    %s805 = scalar_lea.vmem [#allocation2], 16
    %806 = vst.msk [vmem:[%s805] sm:$0xff] %vm43, %v803
    %v807 = vsel %vm799, %v794, %v474
    %v808 = vsel %vm799, %v788, %v475
    %810 = vrot.lane.b32.xlu0 %v576, 32
    %v811 = vpop.permute.xlu0 %810
    %v812 = vsel %vm43, %v811, 0
    %814 = vmatprep.subr.mxu0 0.0
    %815 = vmatpush1.msra.mxu0 %v29
    %816 = vmatprep.subr.mxu0 0.0
    %817 = vmatpush1.msra.mxu0 %v30
    %818 = vmatprep.subr.mxu0 0.0
    %819 = vmatpush1.msra.mxu0 %v31
    %820 = vmatprep.subr.mxu0 0.0
    %821 = vmatpush1.msra.mxu0 %v32
    %822 = vmatprep.subr.mxu0 0.0
    %823 = vmatpush1.msra.mxu0 0.0
    %824 = vmatprep.subr.mxu0 0.0
    %825 = vmatpush1.msra.mxu0 0.0
    %826 = vmatprep.subr.mxu0 0.0
    %827 = vmatpush1.msra.mxu0 0.0
    %828 = vmatprep.subr.mxu0 0.0
    %829 = vmatpush1.msra.mxu0 0.0
    %830 = vmatprep.subr.mxu0 0.0
    %831 = vmatpush1.msra.mxu0 0.0
    %832 = vmatprep.subr.mxu0 0.0
    %833 = vmatpush1.msra.mxu0 0.0
    %834 = vmatprep.subr.mxu0 0.0
    %835 = vmatpush1.msra.mxu0 0.0
    %836 = vmatprep.subr.mxu0 0.0
    %837 = vmatpush1.msra.mxu0 0.0
    %838 = vmatprep.subr.mxu0 0.0
    %839 = vmatpush1.msra.mxu0 0.0
    %840 = vmatprep.subr.mxu0 0.0
    %841 = vmatpush1.msra.mxu0 0.0
    %842 = vmatprep.subr.mxu0 0.0
    %843 = vmatpush1.msra.mxu0 0.0
    %844 = vmatprep.subr.mxu0 0.0
    %845 = vmatpush1.msra.mxu0 0.0
    %846 = vmatprep.subr.mxu0 0.0
    %847 = vmatpush1.msra.mxu0 0.0
    %848 = vmatprep.subr.mxu0 0.0
    %849 = vmatpush1.msra.mxu0 0.0
    %850 = vmatprep.subr.mxu0 0.0
    %851 = vmatpush1.msra.mxu0 0.0
    %852 = vmatprep.subr.mxu0 0.0
    %853 = vmatpush1.msra.mxu0 0.0
    %854 = vmatprep.subr.mxu0 0.0
    %855 = vmatpush1.msra.mxu0 0.0
    %856 = vmatprep.subr.mxu0 0.0
    %857 = vmatpush1.msra.mxu0 0.0
    %858 = vmatprep.subr.mxu0 0.0
    %859 = vmatpush1.msra.mxu0 0.0
    %860 = vmatprep.subr.mxu0 0.0
    %861 = vmatpush1.msra.mxu0 0.0
    %862 = vmatprep.subr.mxu0 0.0
    %863 = vmatpush1.msra.mxu0 0.0
    %864 = vmatprep.subr.mxu0 0.0
    %865 = vmatpush1.msra.mxu0 0.0
    %866 = vmatprep.subr.mxu0 0.0
    %867 = vmatpush1.msra.mxu0 0.0
    %868 = vmatprep.subr.mxu0 0.0
    %869 = vmatpush1.msra.mxu0 0.0
    %870 = vmatprep.subr.mxu0 0.0
    %871 = vmatpush1.msra.mxu0 0.0
    %872 = vmatprep.subr.mxu0 0.0
    %873 = vmatpush1.msra.mxu0 0.0
    %874 = vmatprep.subr.mxu0 0.0
    %875 = vmatpush1.msra.mxu0 0.0
    %876 = vmatprep.subr.mxu0 0.0
    %877 = vmatpush1.msra.mxu0 0.0
    %878 = vmatprep.mubr.f32.mxu0 0.0
    %879 = vmatmul.mubr.f32.gmra.mrb[0].mxu0 %v812
    %v880 = vpop.f32.mrb[0].mxu0
    %v881 = vadd.f32 0.0, %v880
    %v882 = vpop.f32.mrb[0].mxu0
    %883 = vdwg.mxu0
    %v884 = vadd.f32 %v691, %v881
    %v885 = vxor.u32 %v884, 2147483648
    %v886 = vmul.f32 %v885, 1.442695
    %v887 = vpow.pop %v886
    %v888 = vadd.f32 %v887, 1.0
    %v889 = vrcp.pop %v888
    %v890 = vmul.f32 1.0, %v889
    %v891 = vtanh.pop %v884
    %v892 = vmul.f32 %v890, %v577
    %894 = vrot.lane.b32.xlu0 %v891, 64
    %v895 = vpop.permute.xlu0 %894
    %v897 = vmul.f32 %v890, %v895
    %899 = vrot.lane.b32.xlu0 %v897, 32
    %v900 = vpop.permute.xlu0 %899
    %v902 = vadd.f32 %v892, %v900
    %v903 = vtanh.pop %v902
    %905 = vrot.lane.b32.xlu0 %v903, 64
    %v906 = vpop.permute.xlu0 %905
    %v908 = vmul.f32 %v890, %v906
    %v909 = vsel %vm799, %v908, %v576
    %v910 = vsel %vm799, %v902, %v577
    %912 = vrot.lane.b32.xlu0 %v687, 32
    %v913 = vpop.permute.xlu0 %912
    %v914 = vsel %vm43, %v913, 0
    %916 = vmatprep.subr.mxu0 0.0
    %917 = vmatpush1.msra.mxu0 %v34
    %918 = vmatprep.subr.mxu0 0.0
    %919 = vmatpush1.msra.mxu0 %v35
    %920 = vmatprep.subr.mxu0 0.0
    %921 = vmatpush1.msra.mxu0 %v36
    %922 = vmatprep.subr.mxu0 0.0
    %923 = vmatpush1.msra.mxu0 %v37
    %924 = vmatprep.subr.mxu0 0.0
    %925 = vmatpush1.msra.mxu0 0.0
    %926 = vmatprep.subr.mxu0 0.0
    %927 = vmatpush1.msra.mxu0 0.0
    %928 = vmatprep.subr.mxu0 0.0
    %929 = vmatpush1.msra.mxu0 0.0
    %930 = vmatprep.subr.mxu0 0.0
    %931 = vmatpush1.msra.mxu0 0.0
    %932 = vmatprep.subr.mxu0 0.0
    %933 = vmatpush1.msra.mxu0 0.0
    %934 = vmatprep.subr.mxu0 0.0
    %935 = vmatpush1.msra.mxu0 0.0
    %936 = vmatprep.subr.mxu0 0.0
    %937 = vmatpush1.msra.mxu0 0.0
    %938 = vmatprep.subr.mxu0 0.0
    %939 = vmatpush1.msra.mxu0 0.0
    %940 = vmatprep.subr.mxu0 0.0
    %941 = vmatpush1.msra.mxu0 0.0
    %942 = vmatprep.subr.mxu0 0.0
    %943 = vmatpush1.msra.mxu0 0.0
    %944 = vmatprep.subr.mxu0 0.0
    %945 = vmatpush1.msra.mxu0 0.0
    %946 = vmatprep.subr.mxu0 0.0
    %947 = vmatpush1.msra.mxu0 0.0
    %948 = vmatprep.subr.mxu0 0.0
    %949 = vmatpush1.msra.mxu0 0.0
    %950 = vmatprep.subr.mxu0 0.0
    %951 = vmatpush1.msra.mxu0 0.0
    %952 = vmatprep.subr.mxu0 0.0
    %953 = vmatpush1.msra.mxu0 0.0
    %954 = vmatprep.subr.mxu0 0.0
    %955 = vmatpush1.msra.mxu0 0.0
    %956 = vmatprep.subr.mxu0 0.0
    %957 = vmatpush1.msra.mxu0 0.0
    %958 = vmatprep.subr.mxu0 0.0
    %959 = vmatpush1.msra.mxu0 0.0
    %960 = vmatprep.subr.mxu0 0.0
    %961 = vmatpush1.msra.mxu0 0.0
    %962 = vmatprep.subr.mxu0 0.0
    %963 = vmatpush1.msra.mxu0 0.0
    %964 = vmatprep.subr.mxu0 0.0
    %965 = vmatpush1.msra.mxu0 0.0
    %966 = vmatprep.subr.mxu0 0.0
    %967 = vmatpush1.msra.mxu0 0.0
    %968 = vmatprep.subr.mxu0 0.0
    %969 = vmatpush1.msra.mxu0 0.0
    %970 = vmatprep.subr.mxu0 0.0
    %971 = vmatpush1.msra.mxu0 0.0
    %972 = vmatprep.subr.mxu0 0.0
    %973 = vmatpush1.msra.mxu0 0.0
    %974 = vmatprep.subr.mxu0 0.0
    %975 = vmatpush1.msra.mxu0 0.0
    %976 = vmatprep.subr.mxu0 0.0
    %977 = vmatpush1.msra.mxu0 0.0
    %978 = vmatprep.subr.mxu0 0.0
    %979 = vmatpush1.msra.mxu0 0.0
    %980 = vmatprep.mubr.f32.mxu0 0.0
    %981 = vmatmul.mubr.f32.gmra.mrb[0].mxu0 %v914
    %v982 = vpop.f32.mrb[0].mxu0
    %v983 = vadd.f32 0.0, %v982
    %v984 = vpop.f32.mrb[0].mxu0
    %985 = vdwg.mxu0
    %v986 = vadd.f32 %v692, %v983
    %v987 = vxor.u32 %v986, 2147483648
    %v988 = vmul.f32 %v987, 1.442695
    %v989 = vpow.pop %v988
    %v990 = vadd.f32 %v989, 1.0
    %v991 = vrcp.pop %v990
    %v992 = vmul.f32 1.0, %v991
    %v993 = vtanh.pop %v986
    %v994 = vmul.f32 %v992, %v688
    %996 = vrot.lane.b32.xlu0 %v993, 64
    %v997 = vpop.permute.xlu0 %996
    %v999 = vmul.f32 %v992, %v997
    %1001 = vrot.lane.b32.xlu0 %v999, 32
    %v1002 = vpop.permute.xlu0 %1001
    %v1004 = vadd.f32 %v994, %v1002
    %v1005 = vtanh.pop %v1004
    %1007 = vrot.lane.b32.xlu0 %v1005, 64
    %v1008 = vpop.permute.xlu0 %1007
    %v1010 = vmul.f32 %v992, %v1008
    %v1011 = vsel %vm694, 1, 0
    %1012 = vset.pattern.permute.xlu0 0
    %1013 = vperm.xlu0 %1012, %v1011
    %v1014 = vpop.permute.xlu0 %1013
    %vm1015 = vcmp.eq.s32.totalorder %v1014, 1
    %v1016 = vsel %vm1015, %v1010, 0.0
    %1018 = vrot.lane.b32.xlu0 %v1016, 32
    %v1019 = vpop.permute.xlu0 %1018
    %s1021 = scalar_lea.vmem [#allocation4], 40
    %1022 = vst.msk [vmem:[%s1021] sm:$0xff] %vm43, %v1019
    %v1023 = vsel %vm1015, %v1010, %v687
    %v1024 = vsel %vm1015, %v1004, %v688
    %s1025 = scalar_lea.vmem %s1, 72
    %v1026 = vld [vmem:[%s1025] sm:$0xff]
    %v1027 = vld [vmem:[%s1025 + $0x8] sm:$0xff]
    %v1028 = vld [vmem:[%s1025 + $0x10] sm:$0xff]
    %vm1029 = vcmp.gt.s32.totalorder %v23, 3
    %vm1030 = vcmp.gt.s32.totalorder %v23, 4
    %1032 = vrot.lane.b32.xlu0 %v807, 32
    %v1033 = vpop.permute.xlu0 %1032
    %v1034 = vsel %vm43, %v1033, 0
    %1036 = vmatprep.subr.mxu0 0.0
    %1037 = vmatpush1.msra.mxu0 %v24
    %1038 = vmatprep.subr.mxu0 0.0
    %1039 = vmatpush1.msra.mxu0 %v25
    %1040 = vmatprep.subr.mxu0 0.0
    %1041 = vmatpush1.msra.mxu0 %v26
    %1042 = vmatprep.subr.mxu0 0.0
    %1043 = vmatpush1.msra.mxu0 %v27
    %1044 = vmatprep.subr.mxu0 0.0
    %1045 = vmatpush1.msra.mxu0 0.0
    %1046 = vmatprep.subr.mxu0 0.0
    %1047 = vmatpush1.msra.mxu0 0.0
    %1048 = vmatprep.subr.mxu0 0.0
    %1049 = vmatpush1.msra.mxu0 0.0
    %1050 = vmatprep.subr.mxu0 0.0
    %1051 = vmatpush1.msra.mxu0 0.0
    %1052 = vmatprep.subr.mxu0 0.0
    %1053 = vmatpush1.msra.mxu0 0.0
    %1054 = vmatprep.subr.mxu0 0.0
    %1055 = vmatpush1.msra.mxu0 0.0
    %1056 = vmatprep.subr.mxu0 0.0
    %1057 = vmatpush1.msra.mxu0 0.0
    %1058 = vmatprep.subr.mxu0 0.0
    %1059 = vmatpush1.msra.mxu0 0.0
    %1060 = vmatprep.subr.mxu0 0.0
    %1061 = vmatpush1.msra.mxu0 0.0
    %1062 = vmatprep.subr.mxu0 0.0
    %1063 = vmatpush1.msra.mxu0 0.0
    %1064 = vmatprep.subr.mxu0 0.0
    %1065 = vmatpush1.msra.mxu0 0.0
    %1066 = vmatprep.subr.mxu0 0.0
    %1067 = vmatpush1.msra.mxu0 0.0
    %1068 = vmatprep.subr.mxu0 0.0
    %1069 = vmatpush1.msra.mxu0 0.0
    %1070 = vmatprep.subr.mxu0 0.0
    %1071 = vmatpush1.msra.mxu0 0.0
    %1072 = vmatprep.subr.mxu0 0.0
    %1073 = vmatpush1.msra.mxu0 0.0
    %1074 = vmatprep.subr.mxu0 0.0
    %1075 = vmatpush1.msra.mxu0 0.0
    %1076 = vmatprep.subr.mxu0 0.0
    %1077 = vmatpush1.msra.mxu0 0.0
    %1078 = vmatprep.subr.mxu0 0.0
    %1079 = vmatpush1.msra.mxu0 0.0
    %1080 = vmatprep.subr.mxu0 0.0
    %1081 = vmatpush1.msra.mxu0 0.0
    %1082 = vmatprep.subr.mxu0 0.0
    %1083 = vmatpush1.msra.mxu0 0.0
    %1084 = vmatprep.subr.mxu0 0.0
    %1085 = vmatpush1.msra.mxu0 0.0
    %1086 = vmatprep.subr.mxu0 0.0
    %1087 = vmatpush1.msra.mxu0 0.0
    %1088 = vmatprep.subr.mxu0 0.0
    %1089 = vmatpush1.msra.mxu0 0.0
    %1090 = vmatprep.subr.mxu0 0.0
    %1091 = vmatpush1.msra.mxu0 0.0
    %1092 = vmatprep.subr.mxu0 0.0
    %1093 = vmatpush1.msra.mxu0 0.0
    %1094 = vmatprep.subr.mxu0 0.0
    %1095 = vmatpush1.msra.mxu0 0.0
    %1096 = vmatprep.subr.mxu0 0.0
    %1097 = vmatpush1.msra.mxu0 0.0
    %1098 = vmatprep.subr.mxu0 0.0
    %1099 = vmatpush1.msra.mxu0 0.0
    %1100 = vmatprep.mubr.f32.mxu0 0.0
    %1101 = vmatmul.mubr.f32.gmra.mrb[0].mxu0 %v1034
    %v1102 = vpop.f32.mrb[0].mxu0
    %v1103 = vadd.f32 0.0, %v1102
    %v1104 = vpop.f32.mrb[0].mxu0
    %1105 = vdwg.mxu0
    %v1106 = vadd.f32 %v1026, %v1103
    %v1107 = vxor.u32 %v1106, 2147483648
    %v1108 = vmul.f32 %v1107, 1.442695
    %v1109 = vpow.pop %v1108
    %v1110 = vadd.f32 %v1109, 1.0
    %v1111 = vrcp.pop %v1110
    %v1112 = vmul.f32 1.0, %v1111
    %v1113 = vtanh.pop %v1106
    %v1114 = vmul.f32 %v1112, %v808
    %1116 = vrot.lane.b32.xlu0 %v1113, 64
    %v1117 = vpop.permute.xlu0 %1116
    %v1119 = vmul.f32 %v1112, %v1117
    %1121 = vrot.lane.b32.xlu0 %v1119, 32
    %v1122 = vpop.permute.xlu0 %1121
    %v1124 = vadd.f32 %v1114, %v1122
    %v1125 = vtanh.pop %v1124
    %1127 = vrot.lane.b32.xlu0 %v1125, 64
    %v1128 = vpop.permute.xlu0 %1127
    %v1130 = vmul.f32 %v1112, %v1128
    %v1131 = vsel %vm1029, 1, 0
    %1132 = vset.pattern.permute.xlu0 0
    %1133 = vperm.xlu0 %1132, %v1131
    %v1134 = vpop.permute.xlu0 %1133
    %vm1135 = vcmp.eq.s32.totalorder %v1134, 1
    %v1136 = vsel %vm1135, %v1130, 0.0
    %1138 = vrot.lane.b32.xlu0 %v1136, 32
    %v1139 = vpop.permute.xlu0 %1138
    %s1141 = scalar_lea.vmem [#allocation2], 24
    %1142 = vst.msk [vmem:[%s1141] sm:$0xff] %vm43, %v1139
    %v1143 = vsel %vm1135, %v1130, %v807
    %v1144 = vsel %vm1135, %v1124, %v808
    %1146 = vrot.lane.b32.xlu0 %v909, 32
    %v1147 = vpop.permute.xlu0 %1146
    %v1148 = vsel %vm43, %v1147, 0
    %1150 = vmatprep.subr.mxu0 0.0
    %1151 = vmatpush1.msra.mxu0 %v29
    %1152 = vmatprep.subr.mxu0 0.0
    %1153 = vmatpush1.msra.mxu0 %v30
    %1154 = vmatprep.subr.mxu0 0.0
    %1155 = vmatpush1.msra.mxu0 %v31
    %1156 = vmatprep.subr.mxu0 0.0
    %1157 = vmatpush1.msra.mxu0 %v32
    %1158 = vmatprep.subr.mxu0 0.0
    %1159 = vmatpush1.msra.mxu0 0.0
    %1160 = vmatprep.subr.mxu0 0.0
    %1161 = vmatpush1.msra.mxu0 0.0
    %1162 = vmatprep.subr.mxu0 0.0
    %1163 = vmatpush1.msra.mxu0 0.0
    %1164 = vmatprep.subr.mxu0 0.0
    %1165 = vmatpush1.msra.mxu0 0.0
    %1166 = vmatprep.subr.mxu0 0.0
    %1167 = vmatpush1.msra.mxu0 0.0
    %1168 = vmatprep.subr.mxu0 0.0
    %1169 = vmatpush1.msra.mxu0 0.0
    %1170 = vmatprep.subr.mxu0 0.0
    %1171 = vmatpush1.msra.mxu0 0.0
    %1172 = vmatprep.subr.mxu0 0.0
    %1173 = vmatpush1.msra.mxu0 0.0
    %1174 = vmatprep.subr.mxu0 0.0
    %1175 = vmatpush1.msra.mxu0 0.0
    %1176 = vmatprep.subr.mxu0 0.0
    %1177 = vmatpush1.msra.mxu0 0.0
    %1178 = vmatprep.subr.mxu0 0.0
    %1179 = vmatpush1.msra.mxu0 0.0
    %1180 = vmatprep.subr.mxu0 0.0
    %1181 = vmatpush1.msra.mxu0 0.0
    %1182 = vmatprep.subr.mxu0 0.0
    %1183 = vmatpush1.msra.mxu0 0.0
    %1184 = vmatprep.subr.mxu0 0.0
    %1185 = vmatpush1.msra.mxu0 0.0
    %1186 = vmatprep.subr.mxu0 0.0
    %1187 = vmatpush1.msra.mxu0 0.0
    %1188 = vmatprep.subr.mxu0 0.0
    %1189 = vmatpush1.msra.mxu0 0.0
    %1190 = vmatprep.subr.mxu0 0.0
    %1191 = vmatpush1.msra.mxu0 0.0
    %1192 = vmatprep.subr.mxu0 0.0
    %1193 = vmatpush1.msra.mxu0 0.0
    %1194 = vmatprep.subr.mxu0 0.0
    %1195 = vmatpush1.msra.mxu0 0.0
    %1196 = vmatprep.subr.mxu0 0.0
    %1197 = vmatpush1.msra.mxu0 0.0
    %1198 = vmatprep.subr.mxu0 0.0
    %1199 = vmatpush1.msra.mxu0 0.0
    %1200 = vmatprep.subr.mxu0 0.0
    %1201 = vmatpush1.msra.mxu0 0.0
    %1202 = vmatprep.subr.mxu0 0.0
    %1203 = vmatpush1.msra.mxu0 0.0
    %1204 = vmatprep.subr.mxu0 0.0
    %1205 = vmatpush1.msra.mxu0 0.0
    %1206 = vmatprep.subr.mxu0 0.0
    %1207 = vmatpush1.msra.mxu0 0.0
    %1208 = vmatprep.subr.mxu0 0.0
    %1209 = vmatpush1.msra.mxu0 0.0
    %1210 = vmatprep.subr.mxu0 0.0
    %1211 = vmatpush1.msra.mxu0 0.0
    %1212 = vmatprep.subr.mxu0 0.0
    %1213 = vmatpush1.msra.mxu0 0.0
    %1214 = vmatprep.mubr.f32.mxu0 0.0
    %1215 = vmatmul.mubr.f32.gmra.mrb[0].mxu0 %v1148
    %v1216 = vpop.f32.mrb[0].mxu0
    %v1217 = vadd.f32 0.0, %v1216
    %v1218 = vpop.f32.mrb[0].mxu0
    %1219 = vdwg.mxu0
    %v1220 = vadd.f32 %v1027, %v1217
    %v1221 = vxor.u32 %v1220, 2147483648
    %v1222 = vmul.f32 %v1221, 1.442695
    %v1223 = vpow.pop %v1222
    %v1224 = vadd.f32 %v1223, 1.0
    %v1225 = vrcp.pop %v1224
    %v1226 = vmul.f32 1.0, %v1225
    %v1227 = vtanh.pop %v1220
    %v1228 = vmul.f32 %v1226, %v910
    %1230 = vrot.lane.b32.xlu0 %v1227, 64
    %v1231 = vpop.permute.xlu0 %1230
    %v1233 = vmul.f32 %v1226, %v1231
    %1235 = vrot.lane.b32.xlu0 %v1233, 32
    %v1236 = vpop.permute.xlu0 %1235
    %v1238 = vadd.f32 %v1228, %v1236
    %v1239 = vtanh.pop %v1238
    %1241 = vrot.lane.b32.xlu0 %v1239, 64
    %v1242 = vpop.permute.xlu0 %1241
    %v1244 = vmul.f32 %v1226, %v1242
    %v1245 = vsel %vm1135, %v1244, %v909
    %v1246 = vsel %vm1135, %v1238, %v910
    %1248 = vrot.lane.b32.xlu0 %v1023, 32
    %v1249 = vpop.permute.xlu0 %1248
    %v1250 = vsel %vm43, %v1249, 0
    %1252 = vmatprep.subr.mxu0 0.0
    %1253 = vmatpush1.msra.mxu0 %v34
    %1254 = vmatprep.subr.mxu0 0.0
    %1255 = vmatpush1.msra.mxu0 %v35
    %1256 = vmatprep.subr.mxu0 0.0
    %1257 = vmatpush1.msra.mxu0 %v36
    %1258 = vmatprep.subr.mxu0 0.0
    %1259 = vmatpush1.msra.mxu0 %v37
    %1260 = vmatprep.subr.mxu0 0.0
    %1261 = vmatpush1.msra.mxu0 0.0
    %1262 = vmatprep.subr.mxu0 0.0
    %1263 = vmatpush1.msra.mxu0 0.0
    %1264 = vmatprep.subr.mxu0 0.0
    %1265 = vmatpush1.msra.mxu0 0.0
    %1266 = vmatprep.subr.mxu0 0.0
    %1267 = vmatpush1.msra.mxu0 0.0
    %1268 = vmatprep.subr.mxu0 0.0
    %1269 = vmatpush1.msra.mxu0 0.0
    %1270 = vmatprep.subr.mxu0 0.0
    %1271 = vmatpush1.msra.mxu0 0.0
    %1272 = vmatprep.subr.mxu0 0.0
    %1273 = vmatpush1.msra.mxu0 0.0
    %1274 = vmatprep.subr.mxu0 0.0
    %1275 = vmatpush1.msra.mxu0 0.0
    %1276 = vmatprep.subr.mxu0 0.0
    %1277 = vmatpush1.msra.mxu0 0.0
    %1278 = vmatprep.subr.mxu0 0.0
    %1279 = vmatpush1.msra.mxu0 0.0
    %1280 = vmatprep.subr.mxu0 0.0
    %1281 = vmatpush1.msra.mxu0 0.0
    %1282 = vmatprep.subr.mxu0 0.0
    %1283 = vmatpush1.msra.mxu0 0.0
    %1284 = vmatprep.subr.mxu0 0.0
    %1285 = vmatpush1.msra.mxu0 0.0
    %1286 = vmatprep.subr.mxu0 0.0
    %1287 = vmatpush1.msra.mxu0 0.0
    %1288 = vmatprep.subr.mxu0 0.0
    %1289 = vmatpush1.msra.mxu0 0.0
    %1290 = vmatprep.subr.mxu0 0.0
    %1291 = vmatpush1.msra.mxu0 0.0
    %1292 = vmatprep.subr.mxu0 0.0
    %1293 = vmatpush1.msra.mxu0 0.0
    %1294 = vmatprep.subr.mxu0 0.0
    %1295 = vmatpush1.msra.mxu0 0.0
    %1296 = vmatprep.subr.mxu0 0.0
    %1297 = vmatpush1.msra.mxu0 0.0
    %1298 = vmatprep.subr.mxu0 0.0
    %1299 = vmatpush1.msra.mxu0 0.0
    %1300 = vmatprep.subr.mxu0 0.0
    %1301 = vmatpush1.msra.mxu0 0.0
    %1302 = vmatprep.subr.mxu0 0.0
    %1303 = vmatpush1.msra.mxu0 0.0
    %1304 = vmatprep.subr.mxu0 0.0
    %1305 = vmatpush1.msra.mxu0 0.0
    %1306 = vmatprep.subr.mxu0 0.0
    %1307 = vmatpush1.msra.mxu0 0.0
    %1308 = vmatprep.subr.mxu0 0.0
    %1309 = vmatpush1.msra.mxu0 0.0
    %1310 = vmatprep.subr.mxu0 0.0
    %1311 = vmatpush1.msra.mxu0 0.0
    %1312 = vmatprep.subr.mxu0 0.0
    %1313 = vmatpush1.msra.mxu0 0.0
    %1314 = vmatprep.subr.mxu0 0.0
    %1315 = vmatpush1.msra.mxu0 0.0
    %1316 = vmatprep.mubr.f32.mxu0 0.0
    %1317 = vmatmul.mubr.f32.gmra.mrb[0].mxu0 %v1250
    %v1318 = vpop.f32.mrb[0].mxu0
    %v1319 = vadd.f32 0.0, %v1318
    %v1320 = vpop.f32.mrb[0].mxu0
    %1321 = vdwg.mxu0
    %v1322 = vadd.f32 %v1028, %v1319
    %v1323 = vxor.u32 %v1322, 2147483648
    %v1324 = vmul.f32 %v1323, 1.442695
    %v1325 = vpow.pop %v1324
    %v1326 = vadd.f32 %v1325, 1.0
    %v1327 = vrcp.pop %v1326
    %v1328 = vmul.f32 1.0, %v1327
    %v1329 = vtanh.pop %v1322
    %v1330 = vmul.f32 %v1328, %v1024
    %1332 = vrot.lane.b32.xlu0 %v1329, 64
    %v1333 = vpop.permute.xlu0 %1332
    %v1335 = vmul.f32 %v1328, %v1333
    %1337 = vrot.lane.b32.xlu0 %v1335, 32
    %v1338 = vpop.permute.xlu0 %1337
    %v1340 = vadd.f32 %v1330, %v1338
    %v1341 = vtanh.pop %v1340
    %1343 = vrot.lane.b32.xlu0 %v1341, 64
    %v1344 = vpop.permute.xlu0 %1343
    %v1346 = vmul.f32 %v1328, %v1344
    %v1347 = vsel %vm1030, 1, 0
    %1348 = vset.pattern.permute.xlu0 0
    %1349 = vperm.xlu0 %1348, %v1347
    %v1350 = vpop.permute.xlu0 %1349
    %vm1351 = vcmp.eq.s32.totalorder %v1350, 1
    %v1352 = vsel %vm1351, %v1346, 0.0
    %1354 = vrot.lane.b32.xlu0 %v1352, 32
    %v1355 = vpop.permute.xlu0 %1354
    %s1357 = scalar_lea.vmem [#allocation4], 32
    %1358 = vst.msk [vmem:[%s1357] sm:$0xff] %vm43, %v1355
    %v1359 = vsel %vm1351, %v1346, %v1023
    %v1360 = vsel %vm1351, %v1340, %v1024
    %s1361 = scalar_lea.vmem %s1, 96
    %v1362 = vld [vmem:[%s1361] sm:$0xff]
    %v1363 = vld [vmem:[%s1361 + $0x8] sm:$0xff]
    %v1364 = vld [vmem:[%s1361 + $0x10] sm:$0xff]
    %1366 = vrot.lane.b32.xlu0 %v1143, 32
    %v1367 = vpop.permute.xlu0 %1366
    %v1368 = vsel %vm43, %v1367, 0
    %1370 = vmatprep.subr.mxu0 0.0
    %1371 = vmatpush1.msra.mxu0 %v24
    %1372 = vmatprep.subr.mxu0 0.0
    %1373 = vmatpush1.msra.mxu0 %v25
    %1374 = vmatprep.subr.mxu0 0.0
    %1375 = vmatpush1.msra.mxu0 %v26
    %1376 = vmatprep.subr.mxu0 0.0
    %1377 = vmatpush1.msra.mxu0 %v27
    %1378 = vmatprep.subr.mxu0 0.0
    %1379 = vmatpush1.msra.mxu0 0.0
    %1380 = vmatprep.subr.mxu0 0.0
    %1381 = vmatpush1.msra.mxu0 0.0
    %1382 = vmatprep.subr.mxu0 0.0
    %1383 = vmatpush1.msra.mxu0 0.0
    %1384 = vmatprep.subr.mxu0 0.0
    %1385 = vmatpush1.msra.mxu0 0.0
    %1386 = vmatprep.subr.mxu0 0.0
    %1387 = vmatpush1.msra.mxu0 0.0
    %1388 = vmatprep.subr.mxu0 0.0
    %1389 = vmatpush1.msra.mxu0 0.0
    %1390 = vmatprep.subr.mxu0 0.0
    %1391 = vmatpush1.msra.mxu0 0.0
    %1392 = vmatprep.subr.mxu0 0.0
    %1393 = vmatpush1.msra.mxu0 0.0
    %1394 = vmatprep.subr.mxu0 0.0
    %1395 = vmatpush1.msra.mxu0 0.0
    %1396 = vmatprep.subr.mxu0 0.0
    %1397 = vmatpush1.msra.mxu0 0.0
    %1398 = vmatprep.subr.mxu0 0.0
    %1399 = vmatpush1.msra.mxu0 0.0
    %1400 = vmatprep.subr.mxu0 0.0
    %1401 = vmatpush1.msra.mxu0 0.0
    %1402 = vmatprep.subr.mxu0 0.0
    %1403 = vmatpush1.msra.mxu0 0.0
    %1404 = vmatprep.subr.mxu0 0.0
    %1405 = vmatpush1.msra.mxu0 0.0
    %1406 = vmatprep.subr.mxu0 0.0
    %1407 = vmatpush1.msra.mxu0 0.0
    %1408 = vmatprep.subr.mxu0 0.0
    %1409 = vmatpush1.msra.mxu0 0.0
    %1410 = vmatprep.subr.mxu0 0.0
    %1411 = vmatpush1.msra.mxu0 0.0
    %1412 = vmatprep.subr.mxu0 0.0
    %1413 = vmatpush1.msra.mxu0 0.0
    %1414 = vmatprep.subr.mxu0 0.0
    %1415 = vmatpush1.msra.mxu0 0.0
    %1416 = vmatprep.subr.mxu0 0.0
    %1417 = vmatpush1.msra.mxu0 0.0
    %1418 = vmatprep.subr.mxu0 0.0
    %1419 = vmatpush1.msra.mxu0 0.0
    %1420 = vmatprep.subr.mxu0 0.0
    %1421 = vmatpush1.msra.mxu0 0.0
    %1422 = vmatprep.subr.mxu0 0.0
    %1423 = vmatpush1.msra.mxu0 0.0
    %1424 = vmatprep.subr.mxu0 0.0
    %1425 = vmatpush1.msra.mxu0 0.0
    %1426 = vmatprep.subr.mxu0 0.0
    %1427 = vmatpush1.msra.mxu0 0.0
    %1428 = vmatprep.subr.mxu0 0.0
    %1429 = vmatpush1.msra.mxu0 0.0
    %1430 = vmatprep.subr.mxu0 0.0
    %1431 = vmatpush1.msra.mxu0 0.0
    %1432 = vmatprep.subr.mxu0 0.0
    %1433 = vmatpush1.msra.mxu0 0.0
    %1434 = vmatprep.mubr.f32.mxu0 0.0
    %1435 = vmatmul.mubr.f32.gmra.mrb[0].mxu0 %v1368
    %v1436 = vpop.f32.mrb[0].mxu0
    %v1437 = vadd.f32 0.0, %v1436
    %v1438 = vpop.f32.mrb[0].mxu0
    %1439 = vdwg.mxu0
    %v1440 = vadd.f32 %v1362, %v1437
    %v1441 = vxor.u32 %v1440, 2147483648
    %v1442 = vmul.f32 %v1441, 1.442695
    %v1443 = vpow.pop %v1442
    %v1444 = vadd.f32 %v1443, 1.0
    %v1445 = vrcp.pop %v1444
    %v1446 = vmul.f32 1.0, %v1445
    %v1447 = vtanh.pop %v1440
    %v1448 = vmul.f32 %v1446, %v1144
    %1450 = vrot.lane.b32.xlu0 %v1447, 64
    %v1451 = vpop.permute.xlu0 %1450
    %v1453 = vmul.f32 %v1446, %v1451
    %1455 = vrot.lane.b32.xlu0 %v1453, 32
    %v1456 = vpop.permute.xlu0 %1455
    %v1458 = vadd.f32 %v1448, %v1456
    %v1459 = vtanh.pop %v1458
    %1461 = vrot.lane.b32.xlu0 %v1459, 64
    %v1462 = vpop.permute.xlu0 %1461
    %v1464 = vmul.f32 %v1446, %v1462
    %v1465 = vsel %vm1351, %v1464, 0.0
    %1467 = vrot.lane.b32.xlu0 %v1465, 32
    %v1468 = vpop.permute.xlu0 %1467
    %s1470 = scalar_lea.vmem [#allocation2], 32
    %1471 = vst.msk [vmem:[%s1470] sm:$0xff] %vm43, %v1468
    %v1472 = vsel %vm1351, %v1464, %v1143
    %v1473 = vsel %vm1351, %v1458, %v1144
    %1475 = vrot.lane.b32.xlu0 %v1245, 32
    %v1476 = vpop.permute.xlu0 %1475
    %v1477 = vsel %vm43, %v1476, 0
    %1479 = vmatprep.subr.mxu0 0.0
    %1480 = vmatpush1.msra.mxu0 %v29
    %1481 = vmatprep.subr.mxu0 0.0
    %1482 = vmatpush1.msra.mxu0 %v30
    %1483 = vmatprep.subr.mxu0 0.0
    %1484 = vmatpush1.msra.mxu0 %v31
    %1485 = vmatprep.subr.mxu0 0.0
    %1486 = vmatpush1.msra.mxu0 %v32
    %1487 = vmatprep.subr.mxu0 0.0
    %1488 = vmatpush1.msra.mxu0 0.0
    %1489 = vmatprep.subr.mxu0 0.0
    %1490 = vmatpush1.msra.mxu0 0.0
    %1491 = vmatprep.subr.mxu0 0.0
    %1492 = vmatpush1.msra.mxu0 0.0
    %1493 = vmatprep.subr.mxu0 0.0
    %1494 = vmatpush1.msra.mxu0 0.0
    %1495 = vmatprep.subr.mxu0 0.0
    %1496 = vmatpush1.msra.mxu0 0.0
    %1497 = vmatprep.subr.mxu0 0.0
    %1498 = vmatpush1.msra.mxu0 0.0
    %1499 = vmatprep.subr.mxu0 0.0
    %1500 = vmatpush1.msra.mxu0 0.0
    %1501 = vmatprep.subr.mxu0 0.0
    %1502 = vmatpush1.msra.mxu0 0.0
    %1503 = vmatprep.subr.mxu0 0.0
    %1504 = vmatpush1.msra.mxu0 0.0
    %1505 = vmatprep.subr.mxu0 0.0
    %1506 = vmatpush1.msra.mxu0 0.0
    %1507 = vmatprep.subr.mxu0 0.0
    %1508 = vmatpush1.msra.mxu0 0.0
    %1509 = vmatprep.subr.mxu0 0.0
    %1510 = vmatpush1.msra.mxu0 0.0
    %1511 = vmatprep.subr.mxu0 0.0
    %1512 = vmatpush1.msra.mxu0 0.0
    %1513 = vmatprep.subr.mxu0 0.0
    %1514 = vmatpush1.msra.mxu0 0.0
    %1515 = vmatprep.subr.mxu0 0.0
    %1516 = vmatpush1.msra.mxu0 0.0
    %1517 = vmatprep.subr.mxu0 0.0
    %1518 = vmatpush1.msra.mxu0 0.0
    %1519 = vmatprep.subr.mxu0 0.0
    %1520 = vmatpush1.msra.mxu0 0.0
    %1521 = vmatprep.subr.mxu0 0.0
    %1522 = vmatpush1.msra.mxu0 0.0
    %1523 = vmatprep.subr.mxu0 0.0
    %1524 = vmatpush1.msra.mxu0 0.0
    %1525 = vmatprep.subr.mxu0 0.0
    %1526 = vmatpush1.msra.mxu0 0.0
    %1527 = vmatprep.subr.mxu0 0.0
    %1528 = vmatpush1.msra.mxu0 0.0
    %1529 = vmatprep.subr.mxu0 0.0
    %1530 = vmatpush1.msra.mxu0 0.0
    %1531 = vmatprep.subr.mxu0 0.0
    %1532 = vmatpush1.msra.mxu0 0.0
    %1533 = vmatprep.subr.mxu0 0.0
    %1534 = vmatpush1.msra.mxu0 0.0
    %1535 = vmatprep.subr.mxu0 0.0
    %1536 = vmatpush1.msra.mxu0 0.0
    %1537 = vmatprep.subr.mxu0 0.0
    %1538 = vmatpush1.msra.mxu0 0.0
    %1539 = vmatprep.subr.mxu0 0.0
    %1540 = vmatpush1.msra.mxu0 0.0
    %1541 = vmatprep.subr.mxu0 0.0
    %1542 = vmatpush1.msra.mxu0 0.0
    %1543 = vmatprep.mubr.f32.mxu0 0.0
    %1544 = vmatmul.mubr.f32.gmra.mrb[0].mxu0 %v1477
    %v1545 = vpop.f32.mrb[0].mxu0
    %v1546 = vadd.f32 0.0, %v1545
    %v1547 = vpop.f32.mrb[0].mxu0
    %1548 = vdwg.mxu0
    %v1549 = vadd.f32 %v1363, %v1546
    %v1550 = vxor.u32 %v1549, 2147483648
    %v1551 = vmul.f32 %v1550, 1.442695
    %v1552 = vpow.pop %v1551
    %v1553 = vadd.f32 %v1552, 1.0
    %v1554 = vrcp.pop %v1553
    %v1555 = vmul.f32 1.0, %v1554
    %v1556 = vtanh.pop %v1549
    %v1557 = vmul.f32 %v1555, %v1246
    %1559 = vrot.lane.b32.xlu0 %v1556, 64
    %v1560 = vpop.permute.xlu0 %1559
    %v1562 = vmul.f32 %v1555, %v1560
    %1564 = vrot.lane.b32.xlu0 %v1562, 32
    %v1565 = vpop.permute.xlu0 %1564
    %v1567 = vadd.f32 %v1557, %v1565
    %v1568 = vtanh.pop %v1567
    %1570 = vrot.lane.b32.xlu0 %v1568, 64
    %v1571 = vpop.permute.xlu0 %1570
    %v1573 = vmul.f32 %v1555, %v1571
    %v1574 = vsel %vm1351, %v1573, %v1245
    %v1575 = vsel %vm1351, %v1567, %v1246
    %1577 = vrot.lane.b32.xlu0 %v1359, 32
    %v1578 = vpop.permute.xlu0 %1577
    %v1579 = vsel %vm43, %v1578, 0
    %1581 = vmatprep.subr.mxu0 0.0
    %1582 = vmatpush1.msra.mxu0 %v34
    %1583 = vmatprep.subr.mxu0 0.0
    %1584 = vmatpush1.msra.mxu0 %v35
    %1585 = vmatprep.subr.mxu0 0.0
    %1586 = vmatpush1.msra.mxu0 %v36
    %1587 = vmatprep.subr.mxu0 0.0
    %1588 = vmatpush1.msra.mxu0 %v37
    %1589 = vmatprep.subr.mxu0 0.0
    %1590 = vmatpush1.msra.mxu0 0.0
    %1591 = vmatprep.subr.mxu0 0.0
    %1592 = vmatpush1.msra.mxu0 0.0
    %1593 = vmatprep.subr.mxu0 0.0
    %1594 = vmatpush1.msra.mxu0 0.0
    %1595 = vmatprep.subr.mxu0 0.0
    %1596 = vmatpush1.msra.mxu0 0.0
    %1597 = vmatprep.subr.mxu0 0.0
    %1598 = vmatpush1.msra.mxu0 0.0
    %1599 = vmatprep.subr.mxu0 0.0
    %1600 = vmatpush1.msra.mxu0 0.0
    %1601 = vmatprep.subr.mxu0 0.0
    %1602 = vmatpush1.msra.mxu0 0.0
    %1603 = vmatprep.subr.mxu0 0.0
    %1604 = vmatpush1.msra.mxu0 0.0
    %1605 = vmatprep.subr.mxu0 0.0
    %1606 = vmatpush1.msra.mxu0 0.0
    %1607 = vmatprep.subr.mxu0 0.0
    %1608 = vmatpush1.msra.mxu0 0.0
    %1609 = vmatprep.subr.mxu0 0.0
    %1610 = vmatpush1.msra.mxu0 0.0
    %1611 = vmatprep.subr.mxu0 0.0
    %1612 = vmatpush1.msra.mxu0 0.0
    %1613 = vmatprep.subr.mxu0 0.0
    %1614 = vmatpush1.msra.mxu0 0.0
    %1615 = vmatprep.subr.mxu0 0.0
    %1616 = vmatpush1.msra.mxu0 0.0
    %1617 = vmatprep.subr.mxu0 0.0
    %1618 = vmatpush1.msra.mxu0 0.0
    %1619 = vmatprep.subr.mxu0 0.0
    %1620 = vmatpush1.msra.mxu0 0.0
    %1621 = vmatprep.subr.mxu0 0.0
    %1622 = vmatpush1.msra.mxu0 0.0
    %1623 = vmatprep.subr.mxu0 0.0
    %1624 = vmatpush1.msra.mxu0 0.0
    %1625 = vmatprep.subr.mxu0 0.0
    %1626 = vmatpush1.msra.mxu0 0.0
    %1627 = vmatprep.subr.mxu0 0.0
    %1628 = vmatpush1.msra.mxu0 0.0
    %1629 = vmatprep.subr.mxu0 0.0
    %1630 = vmatpush1.msra.mxu0 0.0
    %1631 = vmatprep.subr.mxu0 0.0
    %1632 = vmatpush1.msra.mxu0 0.0
    %1633 = vmatprep.subr.mxu0 0.0
    %1634 = vmatpush1.msra.mxu0 0.0
    %1635 = vmatprep.subr.mxu0 0.0
    %1636 = vmatpush1.msra.mxu0 0.0
    %1637 = vmatprep.subr.mxu0 0.0
    %1638 = vmatpush1.msra.mxu0 0.0
    %1639 = vmatprep.subr.mxu0 0.0
    %1640 = vmatpush1.msra.mxu0 0.0
    %1641 = vmatprep.subr.mxu0 0.0
    %1642 = vmatpush1.msra.mxu0 0.0
    %1643 = vmatprep.subr.mxu0 0.0
    %1644 = vmatpush1.msra.mxu0 0.0
    %1645 = vmatprep.mubr.f32.mxu0 0.0
    %1646 = vmatmul.mubr.f32.gmra.mrb[0].mxu0 %v1579
    %v1647 = vpop.f32.mrb[0].mxu0
    %v1648 = vadd.f32 0.0, %v1647
    %v1649 = vpop.f32.mrb[0].mxu0
    %1650 = vdwg.mxu0
    %v1651 = vadd.f32 %v1364, %v1648
    %v1652 = vxor.u32 %v1651, 2147483648
    %v1653 = vmul.f32 %v1652, 1.442695
    %v1654 = vpow.pop %v1653
    %v1655 = vadd.f32 %v1654, 1.0
    %v1656 = vrcp.pop %v1655
    %v1657 = vmul.f32 1.0, %v1656
    %v1658 = vtanh.pop %v1651
    %v1659 = vmul.f32 %v1657, %v1360
    %1661 = vrot.lane.b32.xlu0 %v1658, 64
    %v1662 = vpop.permute.xlu0 %1661
    %v1664 = vmul.f32 %v1657, %v1662
    %1666 = vrot.lane.b32.xlu0 %v1664, 32
    %v1667 = vpop.permute.xlu0 %1666
    %v1669 = vadd.f32 %v1659, %v1667
    %v1670 = vtanh.pop %v1669
    %1672 = vrot.lane.b32.xlu0 %v1670, 64
    %v1673 = vpop.permute.xlu0 %1672
    %v1675 = vmul.f32 %v1657, %v1673
    %v1676 = vsel %vm1135, %v1675, 0.0
    %1678 = vrot.lane.b32.xlu0 %v1676, 32
    %v1679 = vpop.permute.xlu0 %1678
    %s1681 = scalar_lea.vmem [#allocation4], 24
    %1682 = vst.msk [vmem:[%s1681] sm:$0xff] %vm43, %v1679
    %v1683 = vsel %vm1135, %v1675, %v1359
    %v1684 = vsel %vm1135, %v1669, %v1360
    %s1685 = scalar_lea.vmem %s1, 120
    %v1686 = vld [vmem:[%s1685] sm:$0xff]
    %v1687 = vld [vmem:[%s1685 + $0x8] sm:$0xff]
    %v1688 = vld [vmem:[%s1685 + $0x10] sm:$0xff]
    %1690 = vrot.lane.b32.xlu0 %v1472, 32
    %v1691 = vpop.permute.xlu0 %1690
    %v1692 = vsel %vm43, %v1691, 0
    %1694 = vmatprep.subr.mxu0 0.0
    %1695 = vmatpush1.msra.mxu0 %v24
    %1696 = vmatprep.subr.mxu0 0.0
    %1697 = vmatpush1.msra.mxu0 %v25
    %1698 = vmatprep.subr.mxu0 0.0
    %1699 = vmatpush1.msra.mxu0 %v26
    %1700 = vmatprep.subr.mxu0 0.0
    %1701 = vmatpush1.msra.mxu0 %v27
    %1702 = vmatprep.subr.mxu0 0.0
    %1703 = vmatpush1.msra.mxu0 0.0
    %1704 = vmatprep.subr.mxu0 0.0
    %1705 = vmatpush1.msra.mxu0 0.0
    %1706 = vmatprep.subr.mxu0 0.0
    %1707 = vmatpush1.msra.mxu0 0.0
    %1708 = vmatprep.subr.mxu0 0.0
    %1709 = vmatpush1.msra.mxu0 0.0
    %1710 = vmatprep.subr.mxu0 0.0
    %1711 = vmatpush1.msra.mxu0 0.0
    %1712 = vmatprep.subr.mxu0 0.0
    %1713 = vmatpush1.msra.mxu0 0.0
    %1714 = vmatprep.subr.mxu0 0.0
    %1715 = vmatpush1.msra.mxu0 0.0
    %1716 = vmatprep.subr.mxu0 0.0
    %1717 = vmatpush1.msra.mxu0 0.0
    %1718 = vmatprep.subr.mxu0 0.0
    %1719 = vmatpush1.msra.mxu0 0.0
    %1720 = vmatprep.subr.mxu0 0.0
    %1721 = vmatpush1.msra.mxu0 0.0
    %1722 = vmatprep.subr.mxu0 0.0
    %1723 = vmatpush1.msra.mxu0 0.0
    %1724 = vmatprep.subr.mxu0 0.0
    %1725 = vmatpush1.msra.mxu0 0.0
    %1726 = vmatprep.subr.mxu0 0.0
    %1727 = vmatpush1.msra.mxu0 0.0
    %1728 = vmatprep.subr.mxu0 0.0
    %1729 = vmatpush1.msra.mxu0 0.0
    %1730 = vmatprep.subr.mxu0 0.0
    %1731 = vmatpush1.msra.mxu0 0.0
    %1732 = vmatprep.subr.mxu0 0.0
    %1733 = vmatpush1.msra.mxu0 0.0
    %1734 = vmatprep.subr.mxu0 0.0
    %1735 = vmatpush1.msra.mxu0 0.0
    %1736 = vmatprep.subr.mxu0 0.0
    %1737 = vmatpush1.msra.mxu0 0.0
    %1738 = vmatprep.subr.mxu0 0.0
    %1739 = vmatpush1.msra.mxu0 0.0
    %1740 = vmatprep.subr.mxu0 0.0
    %1741 = vmatpush1.msra.mxu0 0.0
    %1742 = vmatprep.subr.mxu0 0.0
    %1743 = vmatpush1.msra.mxu0 0.0
    %1744 = vmatprep.subr.mxu0 0.0
    %1745 = vmatpush1.msra.mxu0 0.0
    %1746 = vmatprep.subr.mxu0 0.0
    %1747 = vmatpush1.msra.mxu0 0.0
    %1748 = vmatprep.subr.mxu0 0.0
    %1749 = vmatpush1.msra.mxu0 0.0
    %1750 = vmatprep.subr.mxu0 0.0
    %1751 = vmatpush1.msra.mxu0 0.0
    %1752 = vmatprep.subr.mxu0 0.0
    %1753 = vmatpush1.msra.mxu0 0.0
    %1754 = vmatprep.subr.mxu0 0.0
    %1755 = vmatpush1.msra.mxu0 0.0
    %1756 = vmatprep.subr.mxu0 0.0
    %1757 = vmatpush1.msra.mxu0 0.0
    %1758 = vmatprep.mubr.f32.mxu0 0.0
    %1759 = vmatmul.mubr.f32.gmra.mrb[0].mxu0 %v1692
    %v1760 = vpop.f32.mrb[0].mxu0
    %v1761 = vadd.f32 0.0, %v1760
    %v1762 = vpop.f32.mrb[0].mxu0
    %1763 = vdwg.mxu0
    %v1764 = vadd.f32 %v1686, %v1761
    %v1765 = vxor.u32 %v1764, 2147483648
    %v1766 = vmul.f32 %v1765, 1.442695
    %v1767 = vpow.pop %v1766
    %v1768 = vadd.f32 %v1767, 1.0
    %v1769 = vrcp.pop %v1768
    %v1770 = vmul.f32 1.0, %v1769
    %v1771 = vtanh.pop %v1764
    %v1772 = vmul.f32 %v1770, %v1473
    %1774 = vrot.lane.b32.xlu0 %v1771, 64
    %v1775 = vpop.permute.xlu0 %1774
    %v1777 = vmul.f32 %v1770, %v1775
    %1779 = vrot.lane.b32.xlu0 %v1777, 32
    %v1780 = vpop.permute.xlu0 %1779
    %v1782 = vadd.f32 %v1772, %v1780
    %v1783 = vtanh.pop %v1782
    %1785 = vrot.lane.b32.xlu0 %v1783, 64
    %v1786 = vpop.permute.xlu0 %1785
    %v1788 = vmul.f32 %v1770, %v1786
    %v1789 = vsel %vm1015, %v1788, 0.0
    %1791 = vrot.lane.b32.xlu0 %v1789, 32
    %v1792 = vpop.permute.xlu0 %1791
    %s1794 = scalar_lea.vmem [#allocation2], 40
    %1795 = vst.msk [vmem:[%s1794] sm:$0xff] %vm43, %v1792
    %v1796 = vsel %vm1015, %v1788, %v1472
    %v1797 = vsel %vm1015, %v1782, %v1473
    %1799 = vrot.lane.b32.xlu0 %v1574, 32
    %v1800 = vpop.permute.xlu0 %1799
    %v1801 = vsel %vm43, %v1800, 0
    %1803 = vmatprep.subr.mxu0 0.0
    %1804 = vmatpush1.msra.mxu0 %v29
    %1805 = vmatprep.subr.mxu0 0.0
    %1806 = vmatpush1.msra.mxu0 %v30
    %1807 = vmatprep.subr.mxu0 0.0
    %1808 = vmatpush1.msra.mxu0 %v31
    %1809 = vmatprep.subr.mxu0 0.0
    %1810 = vmatpush1.msra.mxu0 %v32
    %1811 = vmatprep.subr.mxu0 0.0
    %1812 = vmatpush1.msra.mxu0 0.0
    %1813 = vmatprep.subr.mxu0 0.0
    %1814 = vmatpush1.msra.mxu0 0.0
    %1815 = vmatprep.subr.mxu0 0.0
    %1816 = vmatpush1.msra.mxu0 0.0
    %1817 = vmatprep.subr.mxu0 0.0
    %1818 = vmatpush1.msra.mxu0 0.0
    %1819 = vmatprep.subr.mxu0 0.0
    %1820 = vmatpush1.msra.mxu0 0.0
    %1821 = vmatprep.subr.mxu0 0.0
    %1822 = vmatpush1.msra.mxu0 0.0
    %1823 = vmatprep.subr.mxu0 0.0
    %1824 = vmatpush1.msra.mxu0 0.0
    %1825 = vmatprep.subr.mxu0 0.0
    %1826 = vmatpush1.msra.mxu0 0.0
    %1827 = vmatprep.subr.mxu0 0.0
    %1828 = vmatpush1.msra.mxu0 0.0
    %1829 = vmatprep.subr.mxu0 0.0
    %1830 = vmatpush1.msra.mxu0 0.0
    %1831 = vmatprep.subr.mxu0 0.0
    %1832 = vmatpush1.msra.mxu0 0.0
    %1833 = vmatprep.subr.mxu0 0.0
    %1834 = vmatpush1.msra.mxu0 0.0
    %1835 = vmatprep.subr.mxu0 0.0
    %1836 = vmatpush1.msra.mxu0 0.0
    %1837 = vmatprep.subr.mxu0 0.0
    %1838 = vmatpush1.msra.mxu0 0.0
    %1839 = vmatprep.subr.mxu0 0.0
    %1840 = vmatpush1.msra.mxu0 0.0
    %1841 = vmatprep.subr.mxu0 0.0
    %1842 = vmatpush1.msra.mxu0 0.0
    %1843 = vmatprep.subr.mxu0 0.0
    %1844 = vmatpush1.msra.mxu0 0.0
    %1845 = vmatprep.subr.mxu0 0.0
    %1846 = vmatpush1.msra.mxu0 0.0
    %1847 = vmatprep.subr.mxu0 0.0
    %1848 = vmatpush1.msra.mxu0 0.0
    %1849 = vmatprep.subr.mxu0 0.0
    %1850 = vmatpush1.msra.mxu0 0.0
    %1851 = vmatprep.subr.mxu0 0.0
    %1852 = vmatpush1.msra.mxu0 0.0
    %1853 = vmatprep.subr.mxu0 0.0
    %1854 = vmatpush1.msra.mxu0 0.0
    %1855 = vmatprep.subr.mxu0 0.0
    %1856 = vmatpush1.msra.mxu0 0.0
    %1857 = vmatprep.subr.mxu0 0.0
    %1858 = vmatpush1.msra.mxu0 0.0
    %1859 = vmatprep.subr.mxu0 0.0
    %1860 = vmatpush1.msra.mxu0 0.0
    %1861 = vmatprep.subr.mxu0 0.0
    %1862 = vmatpush1.msra.mxu0 0.0
    %1863 = vmatprep.subr.mxu0 0.0
    %1864 = vmatpush1.msra.mxu0 0.0
    %1865 = vmatprep.subr.mxu0 0.0
    %1866 = vmatpush1.msra.mxu0 0.0
    %1867 = vmatprep.mubr.f32.mxu0 0.0
    %1868 = vmatmul.mubr.f32.gmra.mrb[0].mxu0 %v1801
    %v1869 = vpop.f32.mrb[0].mxu0
    %v1870 = vadd.f32 0.0, %v1869
    %v1871 = vpop.f32.mrb[0].mxu0
    %1872 = vdwg.mxu0
    %v1873 = vadd.f32 %v1687, %v1870
    %v1874 = vxor.u32 %v1873, 2147483648
    %v1875 = vmul.f32 %v1874, 1.442695
    %v1876 = vpow.pop %v1875
    %v1877 = vadd.f32 %v1876, 1.0
    %v1878 = vrcp.pop %v1877
    %v1879 = vmul.f32 1.0, %v1878
    %v1880 = vtanh.pop %v1873
    %v1881 = vmul.f32 %v1879, %v1575
    %1883 = vrot.lane.b32.xlu0 %v1880, 64
    %v1884 = vpop.permute.xlu0 %1883
    %v1886 = vmul.f32 %v1879, %v1884
    %1888 = vrot.lane.b32.xlu0 %v1886, 32
    %v1889 = vpop.permute.xlu0 %1888
    %v1891 = vadd.f32 %v1881, %v1889
    %v1892 = vtanh.pop %v1891
    %1894 = vrot.lane.b32.xlu0 %v1892, 64
    %v1895 = vpop.permute.xlu0 %1894
    %v1897 = vmul.f32 %v1879, %v1895
    %v1898 = vsel %vm1015, %v1897, %v1574
    %v1899 = vsel %vm1015, %v1891, %v1575
    %1901 = vrot.lane.b32.xlu0 %v1683, 32
    %v1902 = vpop.permute.xlu0 %1901
    %v1903 = vsel %vm43, %v1902, 0
    %1905 = vmatprep.subr.mxu0 0.0
    %1906 = vmatpush1.msra.mxu0 %v34
    %1907 = vmatprep.subr.mxu0 0.0
    %1908 = vmatpush1.msra.mxu0 %v35
    %1909 = vmatprep.subr.mxu0 0.0
    %1910 = vmatpush1.msra.mxu0 %v36
    %1911 = vmatprep.subr.mxu0 0.0
    %1912 = vmatpush1.msra.mxu0 %v37
    %1913 = vmatprep.subr.mxu0 0.0
    %1914 = vmatpush1.msra.mxu0 0.0
    %1915 = vmatprep.subr.mxu0 0.0
    %1916 = vmatpush1.msra.mxu0 0.0
    %1917 = vmatprep.subr.mxu0 0.0
    %1918 = vmatpush1.msra.mxu0 0.0
    %1919 = vmatprep.subr.mxu0 0.0
    %1920 = vmatpush1.msra.mxu0 0.0
    %1921 = vmatprep.subr.mxu0 0.0
    %1922 = vmatpush1.msra.mxu0 0.0
    %1923 = vmatprep.subr.mxu0 0.0
    %1924 = vmatpush1.msra.mxu0 0.0
    %1925 = vmatprep.subr.mxu0 0.0
    %1926 = vmatpush1.msra.mxu0 0.0
    %1927 = vmatprep.subr.mxu0 0.0
    %1928 = vmatpush1.msra.mxu0 0.0
    %1929 = vmatprep.subr.mxu0 0.0
    %1930 = vmatpush1.msra.mxu0 0.0
    %1931 = vmatprep.subr.mxu0 0.0
    %1932 = vmatpush1.msra.mxu0 0.0
    %1933 = vmatprep.subr.mxu0 0.0
    %1934 = vmatpush1.msra.mxu0 0.0
    %1935 = vmatprep.subr.mxu0 0.0
    %1936 = vmatpush1.msra.mxu0 0.0
    %1937 = vmatprep.subr.mxu0 0.0
    %1938 = vmatpush1.msra.mxu0 0.0
    %1939 = vmatprep.subr.mxu0 0.0
    %1940 = vmatpush1.msra.mxu0 0.0
    %1941 = vmatprep.subr.mxu0 0.0
    %1942 = vmatpush1.msra.mxu0 0.0
    %1943 = vmatprep.subr.mxu0 0.0
    %1944 = vmatpush1.msra.mxu0 0.0
    %1945 = vmatprep.subr.mxu0 0.0
    %1946 = vmatpush1.msra.mxu0 0.0
    %1947 = vmatprep.subr.mxu0 0.0
    %1948 = vmatpush1.msra.mxu0 0.0
    %1949 = vmatprep.subr.mxu0 0.0
    %1950 = vmatpush1.msra.mxu0 0.0
    %1951 = vmatprep.subr.mxu0 0.0
    %1952 = vmatpush1.msra.mxu0 0.0
    %1953 = vmatprep.subr.mxu0 0.0
    %1954 = vmatpush1.msra.mxu0 0.0
    %1955 = vmatprep.subr.mxu0 0.0
    %1956 = vmatpush1.msra.mxu0 0.0
    %1957 = vmatprep.subr.mxu0 0.0
    %1958 = vmatpush1.msra.mxu0 0.0
    %1959 = vmatprep.subr.mxu0 0.0
    %1960 = vmatpush1.msra.mxu0 0.0
    %1961 = vmatprep.subr.mxu0 0.0
    %1962 = vmatpush1.msra.mxu0 0.0
    %1963 = vmatprep.subr.mxu0 0.0
    %1964 = vmatpush1.msra.mxu0 0.0
    %1965 = vmatprep.subr.mxu0 0.0
    %1966 = vmatpush1.msra.mxu0 0.0
    %1967 = vmatprep.subr.mxu0 0.0
    %1968 = vmatpush1.msra.mxu0 0.0
    %1969 = vmatprep.mubr.f32.mxu0 0.0
    %1970 = vmatmul.mubr.f32.gmra.mrb[0].mxu0 %v1903
    %v1971 = vpop.f32.mrb[0].mxu0
    %v1972 = vadd.f32 0.0, %v1971
    %v1973 = vpop.f32.mrb[0].mxu0
    %1974 = vdwg.mxu0
    %v1975 = vadd.f32 %v1688, %v1972
    %v1976 = vxor.u32 %v1975, 2147483648
    %v1977 = vmul.f32 %v1976, 1.442695
    %v1978 = vpow.pop %v1977
    %v1979 = vadd.f32 %v1978, 1.0
    %v1980 = vrcp.pop %v1979
    %v1981 = vmul.f32 1.0, %v1980
    %v1982 = vtanh.pop %v1975
    %v1983 = vmul.f32 %v1981, %v1684
    %1985 = vrot.lane.b32.xlu0 %v1982, 64
    %v1986 = vpop.permute.xlu0 %1985
    %v1988 = vmul.f32 %v1981, %v1986
    %1990 = vrot.lane.b32.xlu0 %v1988, 32
    %v1991 = vpop.permute.xlu0 %1990
    %v1993 = vadd.f32 %v1983, %v1991
    %v1994 = vtanh.pop %v1993
    %1996 = vrot.lane.b32.xlu0 %v1994, 64
    %v1997 = vpop.permute.xlu0 %1996
    %v1999 = vmul.f32 %v1981, %v1997
    %v2000 = vsel %vm799, %v1999, 0.0
    %2002 = vrot.lane.b32.xlu0 %v2000, 32
    %v2003 = vpop.permute.xlu0 %2002
    %s2005 = scalar_lea.vmem [#allocation4], 16
    %2006 = vst.msk [vmem:[%s2005] sm:$0xff] %vm43, %v2003
    %v2007 = vsel %vm799, %v1999, %v1683
    %v2008 = vsel %vm799, %v1993, %v1684
    %s2009 = scalar_lea.vmem %s1, 144
    %v2010 = vld [vmem:[%s2009] sm:$0xff]
    %v2011 = vld [vmem:[%s2009 + $0x8] sm:$0xff]
    %v2012 = vld [vmem:[%s2009 + $0x10] sm:$0xff]
    %2014 = vrot.lane.b32.xlu0 %v1796, 32
    %v2015 = vpop.permute.xlu0 %2014
    %v2016 = vsel %vm43, %v2015, 0
    %2018 = vmatprep.subr.mxu0 0.0
    %2019 = vmatpush1.msra.mxu0 %v24
    %2020 = vmatprep.subr.mxu0 0.0
    %2021 = vmatpush1.msra.mxu0 %v25
    %2022 = vmatprep.subr.mxu0 0.0
    %2023 = vmatpush1.msra.mxu0 %v26
    %2024 = vmatprep.subr.mxu0 0.0
    %2025 = vmatpush1.msra.mxu0 %v27
    %2026 = vmatprep.subr.mxu0 0.0
    %2027 = vmatpush1.msra.mxu0 0.0
    %2028 = vmatprep.subr.mxu0 0.0
    %2029 = vmatpush1.msra.mxu0 0.0
    %2030 = vmatprep.subr.mxu0 0.0
    %2031 = vmatpush1.msra.mxu0 0.0
    %2032 = vmatprep.subr.mxu0 0.0
    %2033 = vmatpush1.msra.mxu0 0.0
    %2034 = vmatprep.subr.mxu0 0.0
    %2035 = vmatpush1.msra.mxu0 0.0
    %2036 = vmatprep.subr.mxu0 0.0
    %2037 = vmatpush1.msra.mxu0 0.0
    %2038 = vmatprep.subr.mxu0 0.0
    %2039 = vmatpush1.msra.mxu0 0.0
    %2040 = vmatprep.subr.mxu0 0.0
    %2041 = vmatpush1.msra.mxu0 0.0
    %2042 = vmatprep.subr.mxu0 0.0
    %2043 = vmatpush1.msra.mxu0 0.0
    %2044 = vmatprep.subr.mxu0 0.0
    %2045 = vmatpush1.msra.mxu0 0.0
    %2046 = vmatprep.subr.mxu0 0.0
    %2047 = vmatpush1.msra.mxu0 0.0
    %2048 = vmatprep.subr.mxu0 0.0
    %2049 = vmatpush1.msra.mxu0 0.0
    %2050 = vmatprep.subr.mxu0 0.0
    %2051 = vmatpush1.msra.mxu0 0.0
    %2052 = vmatprep.subr.mxu0 0.0
    %2053 = vmatpush1.msra.mxu0 0.0
    %2054 = vmatprep.subr.mxu0 0.0
    %2055 = vmatpush1.msra.mxu0 0.0
    %2056 = vmatprep.subr.mxu0 0.0
    %2057 = vmatpush1.msra.mxu0 0.0
    %2058 = vmatprep.subr.mxu0 0.0
    %2059 = vmatpush1.msra.mxu0 0.0
    %2060 = vmatprep.subr.mxu0 0.0
    %2061 = vmatpush1.msra.mxu0 0.0
    %2062 = vmatprep.subr.mxu0 0.0
    %2063 = vmatpush1.msra.mxu0 0.0
    %2064 = vmatprep.subr.mxu0 0.0
    %2065 = vmatpush1.msra.mxu0 0.0
    %2066 = vmatprep.subr.mxu0 0.0
    %2067 = vmatpush1.msra.mxu0 0.0
    %2068 = vmatprep.subr.mxu0 0.0
    %2069 = vmatpush1.msra.mxu0 0.0
    %2070 = vmatprep.subr.mxu0 0.0
    %2071 = vmatpush1.msra.mxu0 0.0
    %2072 = vmatprep.subr.mxu0 0.0
    %2073 = vmatpush1.msra.mxu0 0.0
    %2074 = vmatprep.subr.mxu0 0.0
    %2075 = vmatpush1.msra.mxu0 0.0
    %2076 = vmatprep.subr.mxu0 0.0
    %2077 = vmatpush1.msra.mxu0 0.0
    %2078 = vmatprep.subr.mxu0 0.0
    %2079 = vmatpush1.msra.mxu0 0.0
    %2080 = vmatprep.subr.mxu0 0.0
    %2081 = vmatpush1.msra.mxu0 0.0
    %2082 = vmatprep.mubr.f32.mxu0 0.0
    %2083 = vmatmul.mubr.f32.gmra.mrb[0].mxu0 %v2016
    %v2084 = vpop.f32.mrb[0].mxu0
    %v2085 = vadd.f32 0.0, %v2084
    %v2086 = vpop.f32.mrb[0].mxu0
    %2087 = vdwg.mxu0
    %v2088 = vadd.f32 %v2010, %v2085
    %v2089 = vxor.u32 %v2088, 2147483648
    %v2090 = vmul.f32 %v2089, 1.442695
    %v2091 = vpow.pop %v2090
    %v2092 = vadd.f32 %v2091, 1.0
    %v2093 = vrcp.pop %v2092
    %v2094 = vmul.f32 1.0, %v2093
    %v2095 = vtanh.pop %v2088
    %v2096 = vmul.f32 %v2094, %v1797
    %2098 = vrot.lane.b32.xlu0 %v2095, 64
    %v2099 = vpop.permute.xlu0 %2098
    %v2101 = vmul.f32 %v2094, %v2099
    %2103 = vrot.lane.b32.xlu0 %v2101, 32
    %v2104 = vpop.permute.xlu0 %2103
    %v2106 = vadd.f32 %v2096, %v2104
    %v2107 = vtanh.pop %v2106
    %2109 = vrot.lane.b32.xlu0 %v2107, 64
    %v2110 = vpop.permute.xlu0 %2109
    %v2112 = vmul.f32 %v2094, %v2110
    %v2113 = vsel %vm679, %v2112, 0.0
    %2115 = vrot.lane.b32.xlu0 %v2113, 32
    %v2116 = vpop.permute.xlu0 %2115
    %s2118 = scalar_lea.vmem [#allocation2], 48
    %2119 = vst.msk [vmem:[%s2118] sm:$0xff] %vm43, %v2116
    %v2120 = vsel %vm679, %v2112, %v1796
    %v2121 = vsel %vm679, %v2106, %v1797
    %2123 = vrot.lane.b32.xlu0 %v1898, 32
    %v2124 = vpop.permute.xlu0 %2123
    %v2125 = vsel %vm43, %v2124, 0
    %2127 = vmatprep.subr.mxu0 0.0
    %2128 = vmatpush1.msra.mxu0 %v29
    %2129 = vmatprep.subr.mxu0 0.0
    %2130 = vmatpush1.msra.mxu0 %v30
    %2131 = vmatprep.subr.mxu0 0.0
    %2132 = vmatpush1.msra.mxu0 %v31
    %2133 = vmatprep.subr.mxu0 0.0
    %2134 = vmatpush1.msra.mxu0 %v32
    %2135 = vmatprep.subr.mxu0 0.0
    %2136 = vmatpush1.msra.mxu0 0.0
    %2137 = vmatprep.subr.mxu0 0.0
    %2138 = vmatpush1.msra.mxu0 0.0
    %2139 = vmatprep.subr.mxu0 0.0
    %2140 = vmatpush1.msra.mxu0 0.0
    %2141 = vmatprep.subr.mxu0 0.0
    %2142 = vmatpush1.msra.mxu0 0.0
    %2143 = vmatprep.subr.mxu0 0.0
    %2144 = vmatpush1.msra.mxu0 0.0
    %2145 = vmatprep.subr.mxu0 0.0
    %2146 = vmatpush1.msra.mxu0 0.0
    %2147 = vmatprep.subr.mxu0 0.0
    %2148 = vmatpush1.msra.mxu0 0.0
    %2149 = vmatprep.subr.mxu0 0.0
    %2150 = vmatpush1.msra.mxu0 0.0
    %2151 = vmatprep.subr.mxu0 0.0
    %2152 = vmatpush1.msra.mxu0 0.0
    %2153 = vmatprep.subr.mxu0 0.0
    %2154 = vmatpush1.msra.mxu0 0.0
    %2155 = vmatprep.subr.mxu0 0.0
    %2156 = vmatpush1.msra.mxu0 0.0
    %2157 = vmatprep.subr.mxu0 0.0
    %2158 = vmatpush1.msra.mxu0 0.0
    %2159 = vmatprep.subr.mxu0 0.0
    %2160 = vmatpush1.msra.mxu0 0.0
    %2161 = vmatprep.subr.mxu0 0.0
    %2162 = vmatpush1.msra.mxu0 0.0
    %2163 = vmatprep.subr.mxu0 0.0
    %2164 = vmatpush1.msra.mxu0 0.0
    %2165 = vmatprep.subr.mxu0 0.0
    %2166 = vmatpush1.msra.mxu0 0.0
    %2167 = vmatprep.subr.mxu0 0.0
    %2168 = vmatpush1.msra.mxu0 0.0
    %2169 = vmatprep.subr.mxu0 0.0
    %2170 = vmatpush1.msra.mxu0 0.0
    %2171 = vmatprep.subr.mxu0 0.0
    %2172 = vmatpush1.msra.mxu0 0.0
    %2173 = vmatprep.subr.mxu0 0.0
    %2174 = vmatpush1.msra.mxu0 0.0
    %2175 = vmatprep.subr.mxu0 0.0
    %2176 = vmatpush1.msra.mxu0 0.0
    %2177 = vmatprep.subr.mxu0 0.0
    %2178 = vmatpush1.msra.mxu0 0.0
    %2179 = vmatprep.subr.mxu0 0.0
    %2180 = vmatpush1.msra.mxu0 0.0
    %2181 = vmatprep.subr.mxu0 0.0
    %2182 = vmatpush1.msra.mxu0 0.0
    %2183 = vmatprep.subr.mxu0 0.0
    %2184 = vmatpush1.msra.mxu0 0.0
    %2185 = vmatprep.subr.mxu0 0.0
    %2186 = vmatpush1.msra.mxu0 0.0
    %2187 = vmatprep.subr.mxu0 0.0
    %2188 = vmatpush1.msra.mxu0 0.0
    %2189 = vmatprep.subr.mxu0 0.0
    %2190 = vmatpush1.msra.mxu0 0.0
    %2191 = vmatprep.mubr.f32.mxu0 0.0
    %2192 = vmatmul.mubr.f32.gmra.mrb[0].mxu0 %v2125
    %v2193 = vpop.f32.mrb[0].mxu0
    %v2194 = vadd.f32 0.0, %v2193
    %v2195 = vpop.f32.mrb[0].mxu0
    %2196 = vdwg.mxu0
    %v2197 = vadd.f32 %v2011, %v2194
    %v2198 = vxor.u32 %v2197, 2147483648
    %v2199 = vmul.f32 %v2198, 1.442695
    %v2200 = vpow.pop %v2199
    %v2201 = vadd.f32 %v2200, 1.0
    %v2202 = vrcp.pop %v2201
    %v2203 = vmul.f32 1.0, %v2202
    %v2204 = vtanh.pop %v2197
    %v2205 = vmul.f32 %v2203, %v1899
    %2207 = vrot.lane.b32.xlu0 %v2204, 64
    %v2208 = vpop.permute.xlu0 %2207
    %v2210 = vmul.f32 %v2203, %v2208
    %2212 = vrot.lane.b32.xlu0 %v2210, 32
    %v2213 = vpop.permute.xlu0 %2212
    %v2215 = vadd.f32 %v2205, %v2213
    %v2216 = vtanh.pop %v2215
    %2218 = vrot.lane.b32.xlu0 %v2216, 64
    %v2219 = vpop.permute.xlu0 %2218
    %v2221 = vmul.f32 %v2203, %v2219
    %v2222 = vsel %vm679, %v2221, %v1898
    %v2223 = vsel %vm679, %v2215, %v1899
    %2225 = vrot.lane.b32.xlu0 %v2007, 32
    %v2226 = vpop.permute.xlu0 %2225
    %v2227 = vsel %vm43, %v2226, 0
    %2229 = vmatprep.subr.mxu0 0.0
    %2230 = vmatpush1.msra.mxu0 %v34
    %2231 = vmatprep.subr.mxu0 0.0
    %2232 = vmatpush1.msra.mxu0 %v35
    %2233 = vmatprep.subr.mxu0 0.0
    %2234 = vmatpush1.msra.mxu0 %v36
    %2235 = vmatprep.subr.mxu0 0.0
    %2236 = vmatpush1.msra.mxu0 %v37
    %2237 = vmatprep.subr.mxu0 0.0
    %2238 = vmatpush1.msra.mxu0 0.0
    %2239 = vmatprep.subr.mxu0 0.0
    %2240 = vmatpush1.msra.mxu0 0.0
    %2241 = vmatprep.subr.mxu0 0.0
    %2242 = vmatpush1.msra.mxu0 0.0
    %2243 = vmatprep.subr.mxu0 0.0
    %2244 = vmatpush1.msra.mxu0 0.0
    %2245 = vmatprep.subr.mxu0 0.0
    %2246 = vmatpush1.msra.mxu0 0.0
    %2247 = vmatprep.subr.mxu0 0.0
    %2248 = vmatpush1.msra.mxu0 0.0
    %2249 = vmatprep.subr.mxu0 0.0
    %2250 = vmatpush1.msra.mxu0 0.0
    %2251 = vmatprep.subr.mxu0 0.0
    %2252 = vmatpush1.msra.mxu0 0.0
    %2253 = vmatprep.subr.mxu0 0.0
    %2254 = vmatpush1.msra.mxu0 0.0
    %2255 = vmatprep.subr.mxu0 0.0
    %2256 = vmatpush1.msra.mxu0 0.0
    %2257 = vmatprep.subr.mxu0 0.0
    %2258 = vmatpush1.msra.mxu0 0.0
    %2259 = vmatprep.subr.mxu0 0.0
    %2260 = vmatpush1.msra.mxu0 0.0
    %2261 = vmatprep.subr.mxu0 0.0
    %2262 = vmatpush1.msra.mxu0 0.0
    %2263 = vmatprep.subr.mxu0 0.0
    %2264 = vmatpush1.msra.mxu0 0.0
    %2265 = vmatprep.subr.mxu0 0.0
    %2266 = vmatpush1.msra.mxu0 0.0
    %2267 = vmatprep.subr.mxu0 0.0
    %2268 = vmatpush1.msra.mxu0 0.0
    %2269 = vmatprep.subr.mxu0 0.0
    %2270 = vmatpush1.msra.mxu0 0.0
    %2271 = vmatprep.subr.mxu0 0.0
    %2272 = vmatpush1.msra.mxu0 0.0
    %2273 = vmatprep.subr.mxu0 0.0
    %2274 = vmatpush1.msra.mxu0 0.0
    %2275 = vmatprep.subr.mxu0 0.0
    %2276 = vmatpush1.msra.mxu0 0.0
    %2277 = vmatprep.subr.mxu0 0.0
    %2278 = vmatpush1.msra.mxu0 0.0
    %2279 = vmatprep.subr.mxu0 0.0
    %2280 = vmatpush1.msra.mxu0 0.0
    %2281 = vmatprep.subr.mxu0 0.0
    %2282 = vmatpush1.msra.mxu0 0.0
    %2283 = vmatprep.subr.mxu0 0.0
    %2284 = vmatpush1.msra.mxu0 0.0
    %2285 = vmatprep.subr.mxu0 0.0
    %2286 = vmatpush1.msra.mxu0 0.0
    %2287 = vmatprep.subr.mxu0 0.0
    %2288 = vmatpush1.msra.mxu0 0.0
    %2289 = vmatprep.subr.mxu0 0.0
    %2290 = vmatpush1.msra.mxu0 0.0
    %2291 = vmatprep.subr.mxu0 0.0
    %2292 = vmatpush1.msra.mxu0 0.0
    %2293 = vmatprep.mubr.f32.mxu0 0.0
    %2294 = vmatmul.mubr.f32.gmra.mrb[0].mxu0 %v2227
    %v2295 = vpop.f32.mrb[0].mxu0
    %v2296 = vadd.f32 0.0, %v2295
    %v2297 = vpop.f32.mrb[0].mxu0
    %2298 = vdwg.mxu0
    %v2299 = vadd.f32 %v2012, %v2296
    %v2300 = vxor.u32 %v2299, 2147483648
    %v2301 = vmul.f32 %v2300, 1.442695
    %v2302 = vpow.pop %v2301
    %v2303 = vadd.f32 %v2302, 1.0
    %v2304 = vrcp.pop %v2303
    %v2305 = vmul.f32 1.0, %v2304
    %v2306 = vtanh.pop %v2299
    %v2307 = vmul.f32 %v2305, %v2008
    %2309 = vrot.lane.b32.xlu0 %v2306, 64
    %v2310 = vpop.permute.xlu0 %2309
    %v2312 = vmul.f32 %v2305, %v2310
    %2314 = vrot.lane.b32.xlu0 %v2312, 32
    %v2315 = vpop.permute.xlu0 %2314
    %v2317 = vadd.f32 %v2307, %v2315
    %v2318 = vtanh.pop %v2317
    %2320 = vrot.lane.b32.xlu0 %v2318, 64
    %v2321 = vpop.permute.xlu0 %2320
    %v2323 = vmul.f32 %v2305, %v2321
    %v2324 = vsel %vm466, %v2323, 0.0
    %2326 = vrot.lane.b32.xlu0 %v2324, 32
    %v2327 = vpop.permute.xlu0 %2326
    %s2329 = scalar_lea.vmem [#allocation4], 8
    %2330 = vst.msk [vmem:[%s2329] sm:$0xff] %vm43, %v2327
    %v2331 = vsel %vm466, %v2323, %v2007
    %v2332 = vsel %vm466, %v2317, %v2008
    %s2333 = scalar_lea.vmem %s1, 168
    %v2334 = vld [vmem:[%s2333] sm:$0xff]
    %v2335 = vld [vmem:[%s2333 + $0x8] sm:$0xff]
    %v2336 = vld [vmem:[%s2333 + $0x10] sm:$0xff]
    %2338 = vrot.lane.b32.xlu0 %v2120, 32
    %v2339 = vpop.permute.xlu0 %2338
    %v2340 = vsel %vm43, %v2339, 0
    %2342 = vmatprep.subr.mxu0 0.0
    %2343 = vmatpush1.msra.mxu0 %v24
    %2344 = vmatprep.subr.mxu0 0.0
    %2345 = vmatpush1.msra.mxu0 %v25
    %2346 = vmatprep.subr.mxu0 0.0
    %2347 = vmatpush1.msra.mxu0 %v26
    %2348 = vmatprep.subr.mxu0 0.0
    %2349 = vmatpush1.msra.mxu0 %v27
    %2350 = vmatprep.subr.mxu0 0.0
    %2351 = vmatpush1.msra.mxu0 0.0
    %2352 = vmatprep.subr.mxu0 0.0
    %2353 = vmatpush1.msra.mxu0 0.0
    %2354 = vmatprep.subr.mxu0 0.0
    %2355 = vmatpush1.msra.mxu0 0.0
    %2356 = vmatprep.subr.mxu0 0.0
    %2357 = vmatpush1.msra.mxu0 0.0
    %2358 = vmatprep.subr.mxu0 0.0
    %2359 = vmatpush1.msra.mxu0 0.0
    %2360 = vmatprep.subr.mxu0 0.0
    %2361 = vmatpush1.msra.mxu0 0.0
    %2362 = vmatprep.subr.mxu0 0.0
    %2363 = vmatpush1.msra.mxu0 0.0
    %2364 = vmatprep.subr.mxu0 0.0
    %2365 = vmatpush1.msra.mxu0 0.0
    %2366 = vmatprep.subr.mxu0 0.0
    %2367 = vmatpush1.msra.mxu0 0.0
    %2368 = vmatprep.subr.mxu0 0.0
    %2369 = vmatpush1.msra.mxu0 0.0
    %2370 = vmatprep.subr.mxu0 0.0
    %2371 = vmatpush1.msra.mxu0 0.0
    %2372 = vmatprep.subr.mxu0 0.0
    %2373 = vmatpush1.msra.mxu0 0.0
    %2374 = vmatprep.subr.mxu0 0.0
    %2375 = vmatpush1.msra.mxu0 0.0
    %2376 = vmatprep.subr.mxu0 0.0
    %2377 = vmatpush1.msra.mxu0 0.0
    %2378 = vmatprep.subr.mxu0 0.0
    %2379 = vmatpush1.msra.mxu0 0.0
    %2380 = vmatprep.subr.mxu0 0.0
    %2381 = vmatpush1.msra.mxu0 0.0
    %2382 = vmatprep.subr.mxu0 0.0
    %2383 = vmatpush1.msra.mxu0 0.0
    %2384 = vmatprep.subr.mxu0 0.0
    %2385 = vmatpush1.msra.mxu0 0.0
    %2386 = vmatprep.subr.mxu0 0.0
    %2387 = vmatpush1.msra.mxu0 0.0
    %2388 = vmatprep.subr.mxu0 0.0
    %2389 = vmatpush1.msra.mxu0 0.0
    %2390 = vmatprep.subr.mxu0 0.0
    %2391 = vmatpush1.msra.mxu0 0.0
    %2392 = vmatprep.subr.mxu0 0.0
    %2393 = vmatpush1.msra.mxu0 0.0
    %2394 = vmatprep.subr.mxu0 0.0
    %2395 = vmatpush1.msra.mxu0 0.0
    %2396 = vmatprep.subr.mxu0 0.0
    %2397 = vmatpush1.msra.mxu0 0.0
    %2398 = vmatprep.subr.mxu0 0.0
    %2399 = vmatpush1.msra.mxu0 0.0
    %2400 = vmatprep.subr.mxu0 0.0
    %2401 = vmatpush1.msra.mxu0 0.0
    %2402 = vmatprep.subr.mxu0 0.0
    %2403 = vmatpush1.msra.mxu0 0.0
    %2404 = vmatprep.subr.mxu0 0.0
    %2405 = vmatpush1.msra.mxu0 0.0
    %2406 = vmatprep.mubr.f32.mxu0 0.0
    %2407 = vmatmul.mubr.f32.gmra.mrb[0].mxu0 %v2340
    %v2408 = vpop.f32.mrb[0].mxu0
    %v2409 = vadd.f32 0.0, %v2408
    %v2410 = vpop.f32.mrb[0].mxu0
    %2411 = vdwg.mxu0
    %v2412 = vadd.f32 %v2334, %v2409
    %v2413 = vxor.u32 %v2412, 2147483648
    %v2414 = vmul.f32 %v2413, 1.442695
    %v2415 = vpow.pop %v2414
    %v2416 = vadd.f32 %v2415, 1.0
    %v2417 = vrcp.pop %v2416
    %v2418 = vmul.f32 1.0, %v2417
    %v2419 = vtanh.pop %v2412
    %v2420 = vmul.f32 %v2418, %v2121
    %2422 = vrot.lane.b32.xlu0 %v2419, 64
    %v2423 = vpop.permute.xlu0 %2422
    %v2425 = vmul.f32 %v2418, %v2423
    %2427 = vrot.lane.b32.xlu0 %v2425, 32
    %v2428 = vpop.permute.xlu0 %2427
    %v2430 = vadd.f32 %v2420, %v2428
    %v2431 = vtanh.pop %v2430
    %2433 = vrot.lane.b32.xlu0 %v2431, 64
    %v2434 = vpop.permute.xlu0 %2433
    %v2436 = vmul.f32 %v2418, %v2434
    %v2437 = vsel %vm350, %v2436, 0.0
    %2439 = vrot.lane.b32.xlu0 %v2437, 32
    %v2440 = vpop.permute.xlu0 %2439
    %s2442 = scalar_lea.vmem [#allocation2], 56
    %2443 = vst.msk [vmem:[%s2442] sm:$0xff] %vm43, %v2440
    %v2444 = vsel %vm350, %v2436, %v2120
    %v2445 = vsel %vm350, %v2430, %v2121
    %2447 = vrot.lane.b32.xlu0 %v2222, 32
    %v2448 = vpop.permute.xlu0 %2447
    %v2449 = vsel %vm43, %v2448, 0
    %2451 = vmatprep.subr.mxu0 0.0
    %2452 = vmatpush1.msra.mxu0 %v29
    %2453 = vmatprep.subr.mxu0 0.0
    %2454 = vmatpush1.msra.mxu0 %v30
    %2455 = vmatprep.subr.mxu0 0.0
    %2456 = vmatpush1.msra.mxu0 %v31
    %2457 = vmatprep.subr.mxu0 0.0
    %2458 = vmatpush1.msra.mxu0 %v32
    %2459 = vmatprep.subr.mxu0 0.0
    %2460 = vmatpush1.msra.mxu0 0.0
    %2461 = vmatprep.subr.mxu0 0.0
    %2462 = vmatpush1.msra.mxu0 0.0
    %2463 = vmatprep.subr.mxu0 0.0
    %2464 = vmatpush1.msra.mxu0 0.0
    %2465 = vmatprep.subr.mxu0 0.0
    %2466 = vmatpush1.msra.mxu0 0.0
    %2467 = vmatprep.subr.mxu0 0.0
    %2468 = vmatpush1.msra.mxu0 0.0
    %2469 = vmatprep.subr.mxu0 0.0
    %2470 = vmatpush1.msra.mxu0 0.0
    %2471 = vmatprep.subr.mxu0 0.0
    %2472 = vmatpush1.msra.mxu0 0.0
    %2473 = vmatprep.subr.mxu0 0.0
    %2474 = vmatpush1.msra.mxu0 0.0
    %2475 = vmatprep.subr.mxu0 0.0
    %2476 = vmatpush1.msra.mxu0 0.0
    %2477 = vmatprep.subr.mxu0 0.0
    %2478 = vmatpush1.msra.mxu0 0.0
    %2479 = vmatprep.subr.mxu0 0.0
    %2480 = vmatpush1.msra.mxu0 0.0
    %2481 = vmatprep.subr.mxu0 0.0
    %2482 = vmatpush1.msra.mxu0 0.0
    %2483 = vmatprep.subr.mxu0 0.0
    %2484 = vmatpush1.msra.mxu0 0.0
    %2485 = vmatprep.subr.mxu0 0.0
    %2486 = vmatpush1.msra.mxu0 0.0
    %2487 = vmatprep.subr.mxu0 0.0
    %2488 = vmatpush1.msra.mxu0 0.0
    %2489 = vmatprep.subr.mxu0 0.0
    %2490 = vmatpush1.msra.mxu0 0.0
    %2491 = vmatprep.subr.mxu0 0.0
    %2492 = vmatpush1.msra.mxu0 0.0
    %2493 = vmatprep.subr.mxu0 0.0
    %2494 = vmatpush1.msra.mxu0 0.0
    %2495 = vmatprep.subr.mxu0 0.0
    %2496 = vmatpush1.msra.mxu0 0.0
    %2497 = vmatprep.subr.mxu0 0.0
    %2498 = vmatpush1.msra.mxu0 0.0
    %2499 = vmatprep.subr.mxu0 0.0
    %2500 = vmatpush1.msra.mxu0 0.0
    %2501 = vmatprep.subr.mxu0 0.0
    %2502 = vmatpush1.msra.mxu0 0.0
    %2503 = vmatprep.subr.mxu0 0.0
    %2504 = vmatpush1.msra.mxu0 0.0
    %2505 = vmatprep.subr.mxu0 0.0
    %2506 = vmatpush1.msra.mxu0 0.0
    %2507 = vmatprep.subr.mxu0 0.0
    %2508 = vmatpush1.msra.mxu0 0.0
    %2509 = vmatprep.subr.mxu0 0.0
    %2510 = vmatpush1.msra.mxu0 0.0
    %2511 = vmatprep.subr.mxu0 0.0
    %2512 = vmatpush1.msra.mxu0 0.0
    %2513 = vmatprep.subr.mxu0 0.0
    %2514 = vmatpush1.msra.mxu0 0.0
    %2515 = vmatprep.mubr.f32.mxu0 0.0
    %2516 = vmatmul.mubr.f32.gmra.mrb[0].mxu0 %v2449
    %v2517 = vpop.f32.mrb[0].mxu0
    %v2518 = vadd.f32 0.0, %v2517
    %v2519 = vpop.f32.mrb[0].mxu0
    %2520 = vdwg.mxu0
    %v2521 = vadd.f32 %v2335, %v2518
    %v2522 = vxor.u32 %v2521, 2147483648
    %v2523 = vmul.f32 %v2522, 1.442695
    %v2524 = vpow.pop %v2523
    %v2525 = vadd.f32 %v2524, 1.0
    %v2526 = vrcp.pop %v2525
    %v2527 = vmul.f32 1.0, %v2526
    %v2528 = vtanh.pop %v2521
    %v2529 = vmul.f32 %v2527, %v2223
    %2531 = vrot.lane.b32.xlu0 %v2528, 64
    %v2532 = vpop.permute.xlu0 %2531
    %v2534 = vmul.f32 %v2527, %v2532
    %2536 = vrot.lane.b32.xlu0 %v2534, 32
    %v2537 = vpop.permute.xlu0 %2536
    %v2539 = vadd.f32 %v2529, %v2537
    %v2540 = vsel %vm350, %v2539, %v2223
    %2542 = vrot.lane.b32.xlu0 %v2331, 32
    %v2543 = vpop.permute.xlu0 %2542
    %v2544 = vsel %vm43, %v2543, 0
    %2546 = vmatprep.subr.mxu0 0.0
    %2547 = vmatpush1.msra.mxu0 %v34
    %2548 = vmatprep.subr.mxu0 0.0
    %2549 = vmatpush1.msra.mxu0 %v35
    %2550 = vmatprep.subr.mxu0 0.0
    %2551 = vmatpush1.msra.mxu0 %v36
    %2552 = vmatprep.subr.mxu0 0.0
    %2553 = vmatpush1.msra.mxu0 %v37
    %2554 = vmatprep.subr.mxu0 0.0
    %2555 = vmatpush1.msra.mxu0 0.0
    %2556 = vmatprep.subr.mxu0 0.0
    %2557 = vmatpush1.msra.mxu0 0.0
    %2558 = vmatprep.subr.mxu0 0.0
    %2559 = vmatpush1.msra.mxu0 0.0
    %2560 = vmatprep.subr.mxu0 0.0
    %2561 = vmatpush1.msra.mxu0 0.0
    %2562 = vmatprep.subr.mxu0 0.0
    %2563 = vmatpush1.msra.mxu0 0.0
    %2564 = vmatprep.subr.mxu0 0.0
    %2565 = vmatpush1.msra.mxu0 0.0
    %2566 = vmatprep.subr.mxu0 0.0
    %2567 = vmatpush1.msra.mxu0 0.0
    %2568 = vmatprep.subr.mxu0 0.0
    %2569 = vmatpush1.msra.mxu0 0.0
    %2570 = vmatprep.subr.mxu0 0.0
    %2571 = vmatpush1.msra.mxu0 0.0
    %2572 = vmatprep.subr.mxu0 0.0
    %2573 = vmatpush1.msra.mxu0 0.0
    %2574 = vmatprep.subr.mxu0 0.0
    %2575 = vmatpush1.msra.mxu0 0.0
    %2576 = vmatprep.subr.mxu0 0.0
    %2577 = vmatpush1.msra.mxu0 0.0
    %2578 = vmatprep.subr.mxu0 0.0
    %2579 = vmatpush1.msra.mxu0 0.0
    %2580 = vmatprep.subr.mxu0 0.0
    %2581 = vmatpush1.msra.mxu0 0.0
    %2582 = vmatprep.subr.mxu0 0.0
    %2583 = vmatpush1.msra.mxu0 0.0
    %2584 = vmatprep.subr.mxu0 0.0
    %2585 = vmatpush1.msra.mxu0 0.0
    %2586 = vmatprep.subr.mxu0 0.0
    %2587 = vmatpush1.msra.mxu0 0.0
    %2588 = vmatprep.subr.mxu0 0.0
    %2589 = vmatpush1.msra.mxu0 0.0
    %2590 = vmatprep.subr.mxu0 0.0
    %2591 = vmatpush1.msra.mxu0 0.0
    %2592 = vmatprep.subr.mxu0 0.0
    %2593 = vmatpush1.msra.mxu0 0.0
    %2594 = vmatprep.subr.mxu0 0.0
    %2595 = vmatpush1.msra.mxu0 0.0
    %2596 = vmatprep.subr.mxu0 0.0
    %2597 = vmatpush1.msra.mxu0 0.0
    %2598 = vmatprep.subr.mxu0 0.0
    %2599 = vmatpush1.msra.mxu0 0.0
    %2600 = vmatprep.subr.mxu0 0.0
    %2601 = vmatpush1.msra.mxu0 0.0
    %2602 = vmatprep.subr.mxu0 0.0
    %2603 = vmatpush1.msra.mxu0 0.0
    %2604 = vmatprep.subr.mxu0 0.0
    %2605 = vmatpush1.msra.mxu0 0.0
    %2606 = vmatprep.subr.mxu0 0.0
    %2607 = vmatpush1.msra.mxu0 0.0
    %2608 = vmatprep.subr.mxu0 0.0
    %2609 = vmatpush1.msra.mxu0 0.0
    %2610 = vmatprep.mubr.f32.mxu0 0.0
    %2611 = vmatmul.mubr.f32.gmra.mrb[0].mxu0 %v2544
    %v2612 = vpop.f32.mrb[0].mxu0
    %v2613 = vadd.f32 0.0, %v2612
    %v2614 = vpop.f32.mrb[0].mxu0
    %2615 = vdwg.mxu0
    %v2616 = vadd.f32 %v2336, %v2613
    %v2617 = vxor.u32 %v2616, 2147483648
    %v2618 = vmul.f32 %v2617, 1.442695
    %v2619 = vpow.pop %v2618
    %v2620 = vadd.f32 %v2619, 1.0
    %v2621 = vrcp.pop %v2620
    %v2622 = vmul.f32 1.0, %v2621
    %v2623 = vtanh.pop %v2616
    %v2624 = vmul.f32 %v2622, %v2332
    %2626 = vrot.lane.b32.xlu0 %v2623, 64
    %v2627 = vpop.permute.xlu0 %2626
    %v2629 = vmul.f32 %v2622, %v2627
    %2631 = vrot.lane.b32.xlu0 %v2629, 32
    %v2632 = vpop.permute.xlu0 %2631
    %v2634 = vadd.f32 %v2624, %v2632
    %v2635 = vtanh.pop %v2634
    %2637 = vrot.lane.b32.xlu0 %v2635, 64
    %v2638 = vpop.permute.xlu0 %2637
    %v2640 = vmul.f32 %v2622, %v2638
    %v2641 = vsel %vm146, %v2640, 0.0
    %2643 = vrot.lane.b32.xlu0 %v2641, 32
    %v2644 = vpop.permute.xlu0 %2643
    %2646 = vst.msk [vmem:[#allocation4] sm:$0xff] %vm43, %v2644
    %v2647 = vsel %vm146, %v2634, %v2332
    %2649 = vrot.lane.b32.xlu0 %v2444, 32
    %v2650 = vpop.permute.xlu0 %2649
    %2652 = vst.msk [vmem:[#allocation6] sm:$0xff] %vm43, %v2650
    %2654 = vrot.lane.b32.xlu0 %v2445, 96
    %v2655 = vpop.permute.xlu0 %2654
    %2657 = vst.msk [vmem:[#allocation7] sm:$0xff] %vm43, %v2655
    %2659 = vrot.lane.b32.xlu0 %v2540, 96
    %v2660 = vpop.permute.xlu0 %2659
    %2662 = vst.msk [vmem:[%s7] sm:$0xff] %vm43, %v2660
    %2664 = vrot.lane.b32.xlu0 %v2647, 96
    %v2665 = vpop.permute.xlu0 %2664
    %2667 = vst.msk [vmem:[%s8] sm:$0xff] %vm43, %v2665
    // Predicated region
    $region14: #{bi_awd_embedding_forward.3} parent=1 // pred_check
      _
    $region15: #{bi_awd_embedding_forward.3} parent=1 // pred_check_branch
      %2669 = sbr.rel (0) target = $region17
    $region16: #{bi_awd_embedding_forward.3} parent=1 // pred_region
      %s2671 = ssub.s32 1024, 1024
      %2672 = vsyncadd [#allocation3], %s2671
      %s2673 = sshll.u32 [#allocation2], 4
      %s2674 = int_to_ptr.vmem [resolvable:$true] %s2673
      %2679 = dma.vmem_to_hbm [thread:$0]  %s2674, 1024, %s3, [#allocation3], 128, 128, 8
    $region17: #{bi_awd_embedding_forward.3} parent=1 // pred_fallthru
      _
    // Predicated region
    $region18: #{bi_awd_embedding_forward.3} parent=1 // pred_check
      _
    $region19: #{bi_awd_embedding_forward.3} parent=1 // pred_check_branch
      %2681 = sbr.rel (0) target = $region21
    $region20: #{bi_awd_embedding_forward.3} parent=1 // pred_region
      %s2683 = ssub.s32 1024, 1024
      %2684 = vsyncadd [#allocation5], %s2683
      %s2685 = sshll.u32 [#allocation4], 4
      %s2686 = int_to_ptr.vmem [resolvable:$true] %s2685
      %2691 = dma.vmem_to_hbm [thread:$0]  %s2686, 1024, %s4, [#allocation5], 128, 128, 8
    $region21: #{bi_awd_embedding_forward.3} parent=1 // pred_fallthru
      _
    // Predicated region
    $region22: #{bi_awd_embedding_forward.3} parent=1 // pred_check
      _
    $region23: #{bi_awd_embedding_forward.3} parent=1 // pred_check_branch
      %2693 = sbr.rel (0) target = $region25
    $region24: #{bi_awd_embedding_forward.3} parent=1 // pred_region
      %s2695 = ssub.s32 128, 128
      %2696 = vsyncadd [#allocation5], %s2695
      %s2698 = sshll.u32 [#allocation6], 4
      %s2699 = int_to_ptr.vmem [resolvable:$true] %s2698
      %2701 = dma.vmem_to_hbm [thread:$0]  %s2699, 128, %s5, [#allocation5]
    $region25: #{bi_awd_embedding_forward.3} parent=1 // pred_fallthru
      _
    // Predicated region
    $region26: #{bi_awd_embedding_forward.3} parent=1 // pred_check
      _
    $region27: #{bi_awd_embedding_forward.3} parent=1 // pred_check_branch
      %2703 = sbr.rel (0) target = $region29
    $region28: #{bi_awd_embedding_forward.3} parent=1 // pred_region
      %s2705 = ssub.s32 128, 128
      %2706 = vsyncadd [#allocation8], %s2705
      %s2708 = sshll.u32 [#allocation7], 4
      %s2709 = int_to_ptr.vmem [resolvable:$true] %s2708
      %2711 = dma.vmem_to_hbm [thread:$0]  %s2709, 128, %s6, [#allocation8]
    $region29: #{bi_awd_embedding_forward.3} parent=1 // pred_fallthru
      _
    // Predicated region
    $region30: #{bi_awd_embedding_forward.3} parent=1 // pred_check
      _
    $region31: #{bi_awd_embedding_forward.3} parent=1 // pred_check_branch
      %2713 = sbr.rel (0) target = $region33
    $region32: #{bi_awd_embedding_forward.3} parent=1 // pred_region
      _
    $region33: #{bi_awd_embedding_forward.3} parent=1 // pred_fallthru
      _
    // Predicated region
    $region34: #{bi_awd_embedding_forward.3} parent=1 // pred_check
      _
    $region35: #{bi_awd_embedding_forward.3} parent=1 // pred_check_branch
      %2715 = sbr.rel (0) target = $region37
    $region36: #{bi_awd_embedding_forward.3} parent=1 // pred_region
      _
    $region37: #{bi_awd_embedding_forward.3} parent=1 // pred_fallthru
      _
    // Predicated region
    $region38: #{bi_awd_embedding_forward.3} parent=1 // pred_check
      _
    $region39: #{bi_awd_embedding_forward.3} parent=1 // pred_check_branch
      %2717 = sbr.rel (0) target = $region41
    $region40: #{bi_awd_embedding_forward.3} parent=1 // pred_region
      %2718 = dma.done [#allocation3], 1024
    $region41: #{bi_awd_embedding_forward.3} parent=1 // pred_fallthru
      _
    // Predicated region
    $region42: #{bi_awd_embedding_forward.3} parent=1 // pred_check
      _
    $region43: #{bi_awd_embedding_forward.3} parent=1 // pred_check_branch
      %2720 = sbr.rel (0) target = $region45
    $region44: #{bi_awd_embedding_forward.3} parent=1 // pred_region
      %2721 = dma.done [#allocation5], 1024
    $region45: #{bi_awd_embedding_forward.3} parent=1 // pred_fallthru
      _
    // Predicated region
    $region46: #{bi_awd_embedding_forward.3} parent=1 // pred_check
      _
    $region47: #{bi_awd_embedding_forward.3} parent=1 // pred_check_branch
      %2723 = sbr.rel (0) target = $region49
    $region48: #{bi_awd_embedding_forward.3} parent=1 // pred_region
      %2724 = dma.done [#allocation5], 128
    $region49: #{bi_awd_embedding_forward.3} parent=1 // pred_fallthru
      _
    // Predicated region
    $region50: #{bi_awd_embedding_forward.3} parent=1 // pred_check
      _
    $region51: #{bi_awd_embedding_forward.3} parent=1 // pred_check_branch
      %2726 = sbr.rel (0) target = $region53
    $region52: #{bi_awd_embedding_forward.3} parent=1 // pred_region
      %2727 = dma.done [#allocation8], 128
    $region53: #{bi_awd_embedding_forward.3} parent=1 // pred_fallthru
      _
    // Predicated region
    $region54: #{bi_awd_embedding_forward.3} parent=1 // pred_check
      _
    $region55: #{bi_awd_embedding_forward.3} parent=1 // pred_check_branch
      %2729 = sbr.rel (0) target = $region57
    $region56: #{bi_awd_embedding_forward.3} parent=1 // pred_region
      _
    $region57: #{bi_awd_embedding_forward.3} parent=1 // pred_fallthru
      _
    // Predicated region
    $region58: #{bi_awd_embedding_forward.3} parent=1 // pred_check
      _
    $region59: #{bi_awd_embedding_forward.3} parent=1 // pred_check_branch
      %2731 = sbr.rel (0) target = $region61
    $region60: #{bi_awd_embedding_forward.3} parent=1 // pred_region
      _
    $region61: #{bi_awd_embedding_forward.3} parent=1 // pred_fallthru
      _
    %2732 = vsyncpa [#allocation3], 1
    %2733 = vsyncpa [#allocation5], 1
    %2734 = vsyncpa [#allocation8], 1

</llo_original>
